<compile_context>
chip_gen: v6e
topology: v6e:2x2x1
jax: 0.10.0
libtpu: 0.0.40
codegen_flags: <defaults>
</compile_context>

<pallas_src>
import functools

import jax
import jax.numpy as jnp
from jax import lax
from jax.experimental import pallas as pl
from jax.experimental.pallas import tpu as pltpu

# ----- module hyper-params (consistent with the PyTorch module) -----
N_EMBD = 384
NUM_HEADS = 6
HEAD_SIZE = N_EMBD // NUM_HEADS   # 64
BLOCK_SIZE = 256                  # causal-mask buffer size (T <= BLOCK_SIZE)

B = 2
T = 128                           # sequence length for the example (<= BLOCK_SIZE)

_MASK_VALUE = -1e30               # finite "−inf": exp underflows to 0, never NaN


# --------------------------- fused MHA kernel --------------------------------
def mha_fused_kernel(x_ref, wqkv_ref, wo_ref, bo_ref, o_ref):
    """One batch element per grid point: QKV proj + 6 causal heads + out proj."""
    # In-kernel cast of the activations (hides under the MXU matmul below).
    x = x_ref[0].astype(jnp.bfloat16)                      # (T, C)
    t = x.shape[0]

    # One wide MXU matmul for all heads' Q, K, V: (T, C) @ (C, 3C) -> (T, 3C).
    # The n_embd**-0.5 attention scale is folded into the Q columns of wqkv.
    # Single contiguous f32 -> bf16 cast right after (smallest live intermediate).
    qkv = jnp.dot(x, wqkv_ref[...],
                  preferred_element_type=jnp.float32).astype(jnp.bfloat16)

    # Causal mask (shared by all heads).
    row = lax.broadcasted_iota(jnp.int32, (t, t), 0)
    col = lax.broadcasted_iota(jnp.int32, (t, t), 1)
    causal = col <= row

    # Accumulate the output projection head-by-head: no concat, bounded live ranges.
    acc = jnp.zeros((t, N_EMBD), jnp.float32)
    for h in range(NUM_HEADS):
        q = qkv[:, h * HEAD_SIZE:(h + 1) * HEAD_SIZE]
        k = qkv[:, N_EMBD + h * HEAD_SIZE:N_EMBD + (h + 1) * HEAD_SIZE]
        v = qkv[:, 2 * N_EMBD + h * HEAD_SIZE:2 * N_EMBD + (h + 1) * HEAD_SIZE]

        # scores = q @ k^T (trans-B contraction, no explicit transpose), f32.
        s = lax.dot_general(q, k, dimension_numbers=(((1,), (1,)), ((), ())),
                            preferred_element_type=jnp.float32)      # (T, T)

        # causal mask + softmax in f32.
        s = jnp.where(causal, s, _MASK_VALUE)
        m = jnp.max(s, axis=-1, keepdims=True)
        p = jnp.exp(s - m)
        inv = pl.reciprocal(jnp.sum(p, axis=-1, keepdims=True), approx=True)
        wei = (p * inv).astype(jnp.bfloat16)

        # attention dropout is identity in eval mode.
        out_h = jnp.dot(wei, v, preferred_element_type=jnp.float32)  # (T, hs)

        # Fold this head's slice of the output projection immediately:
        # acc += out_h @ Wo[h*hs:(h+1)*hs, :]
        acc = acc + jnp.dot(out_h.astype(jnp.bfloat16),
                            wo_ref[h * HEAD_SIZE:(h + 1) * HEAD_SIZE, :],
                            preferred_element_type=jnp.float32)

    # Bias once at the end (final dropout = identity). Lane-dense (T, 384) store.
    o_ref[0] = (acc + bo_ref[...]).astype(o_ref.dtype)


# ------------------------ one-time parameter packing --------------------------
def pack_mha_params(params):
    """Pack PyTorch-layout params into kernel operands. Call ONCE at init time.

    params:
      wq/wk/wv : (H, C, hs)  per-head projection weights (x @ W layout)
      wo       : (C, C)      output projection weight (x @ W layout)
      bo       : (1, C)      output projection bias
    """
    H, C, hs = params["wq"].shape
    scale = jnp.float32(C) ** -0.5     # PyTorch Head uses n_embd**-0.5

    def stack(w):                      # (H, C, hs) -> (C, H*hs), head-major lanes
        return jnp.transpose(w, (1, 0, 2)).reshape(C, H * hs)

    wqkv = jnp.concatenate(
        [stack(params["wq"]) * scale, stack(params["wk"]), stack(params["wv"])],
        axis=-1).astype(jnp.bfloat16)                              # (C, 3C)
    wo = params["wo"].astype(jnp.bfloat16)                         # (C, C)
    bo = params["bo"].astype(jnp.float32).reshape(1, C)            # (1, C)
    return {"wqkv": wqkv, "wo": wo, "bo": bo}


# ------------------------------ forward wrapper -------------------------------
@functools.partial(jax.jit, static_argnames=("out_dtype",))
def multi_head_attention(x, packed, out_dtype=jnp.float32):
    """Forward pass of MultiHeadAttention (eval mode: dropout = identity).

    x      : (B, T, C) float32
    packed : output of pack_mha_params (bf16 wqkv/wo, f32 bo)
    """
    Bx, Tx, Cx = x.shape
    wqkv, wo, bo = packed["wqkv"], packed["wo"], packed["bo"]

    return pl.pallas_call(
        mha_fused_kernel,
        out_shape=jax.ShapeDtypeStruct((Bx, Tx, Cx), out_dtype),
        grid_spec=pltpu.PrefetchScalarGridSpec(
            num_scalar_prefetch=0,
            grid=(Bx,),
            in_specs=[
                pl.BlockSpec((1, Tx, Cx), lambda b: (b, 0, 0)),     # x (f32)
                pl.BlockSpec((Cx, 3 * Cx), lambda b: (0, 0)),       # wqkv (bf16)
                pl.BlockSpec((Cx, Cx), lambda b: (0, 0)),           # wo (bf16)
                pl.BlockSpec((1, Cx), lambda b: (0, 0)),            # bo (f32)
            ],
            out_specs=pl.BlockSpec((1, Tx, Cx), lambda b: (b, 0, 0)),
        ),
        compiler_params=pltpu.CompilerParams(
            dimension_semantics=("parallel",)),                     # 1 batch / TC
    )(x, wqkv, wo, bo)


# ------------------------- pure-JAX reference (check) ------------------------
def reference(x, params):
    q = jnp.einsum("btc,hcd->bhtd", x, params["wq"])
    k = jnp.einsum("btc,hcd->bhtd", x, params["wk"])
    v = jnp.einsum("btc,hcd->bhtd", x, params["wv"])
    s = jnp.einsum("bhtd,bhsd->bhts", q, k) * (N_EMBD ** -0.5)
    tt = x.shape[1]
    mask = jnp.tril(jnp.ones((tt, tt), dtype=bool))
    s = jnp.where(mask[None, None], s, -jnp.inf)
    w = jax.nn.softmax(s, axis=-1)
    o = jnp.einsum("bhts,bhsd->bhtd", w, v)
    cat = jnp.transpose(o, (0, 2, 1, 3)).reshape(x.shape)
    return cat @ params["wo"] + params["bo"][0]


if __name__ == "__main__":
    key = jax.random.PRNGKey(0)
    k_x, k_q, k_k, k_v, k_wo, k_bo = jax.random.split(key, 6)

    x = jax.random.normal(k_x, (B, T, N_EMBD), dtype=jnp.float32)

    scale = 0.02
    params = {
        "wq": scale * jax.random.normal(k_q, (NUM_HEADS, N_EMBD, HEAD_SIZE), jnp.float32),
        "wk": scale * jax.random.normal(k_k, (NUM_HEADS, N_EMBD, HEAD_SIZE), jnp.float32),
        "wv": scale * jax.random.normal(k_v, (NUM_HEADS, N_EMBD, HEAD_SIZE), jnp.float32),
        "wo": scale * jax.random.normal(k_wo, (N_EMBD, N_EMBD), jnp.float32),
        "bo": scale * jax.random.normal(k_bo, (1, N_EMBD), jnp.float32),
    }

    # One-time packing (init-time, NOT per forward call).
    packed = jax.block_until_ready(pack_mha_params(params))

    out = multi_head_attention(x, packed)
    out = jax.block_until_ready(out)

    ref = jax.block_until_ready(reference(x, params))
    assert out.shape == (B, T, N_EMBD)
    # bf16 MXU operands with f32 accumulation -> slightly looser tolerance vs f32 ref
    assert jnp.allclose(out, ref, atol=5e-3, rtol=5e-3), "mismatch vs reference"

    print("KERNEL_OK")
</pallas_src>

<mosaic_0001>
module attributes {stable_mosaic.version = 11 : i64} {
  func.func @mha_fused_kernel(%arg0: i32, %arg1: memref<1x128x384xf32, #tpu.memory_space<vmem>>, %arg2: memref<384x1152xbf16, #tpu.memory_space<vmem>>, %arg3: memref<384x384xbf16, #tpu.memory_space<vmem>>, %arg4: memref<1x384xf32, #tpu.memory_space<vmem>>, %arg5: memref<1x128x384xf32, #tpu.memory_space<vmem>>) attributes {dimension_semantics = [#tpu.dimension_semantics<parallel>], iteration_bounds = array<i64: 2>, scalar_prefetch = 0 : i64, scratch_operands = 0 : i64, tpu.core_type = #tpu.core_type<tc>, window_params = [{transform_indices = @transform_0, window_bounds = array<i64: 1, 128, 384>}, {pipeline_mode = #tpu.pipeline_mode<synchronous>, transform_indices = @transform_1, window_bounds = array<i64: 384, 1152>}, {pipeline_mode = #tpu.pipeline_mode<synchronous>, transform_indices = @transform_2, window_bounds = array<i64: 384, 384>}, {pipeline_mode = #tpu.pipeline_mode<synchronous>, transform_indices = @transform_3, window_bounds = array<i64: 1, 384>}, {transform_indices = @transform_4, window_bounds = array<i64: 1, 128, 384>}]} {
    %c0 = arith.constant 0 : index
    %c0_0 = arith.constant 0 : index
    %c0_1 = arith.constant 0 : index
    %0 = vector.load %arg1[%c0, %c0_0, %c0_1] : memref<1x128x384xf32, #tpu.memory_space<vmem>>, vector<1x128x384xf32>
    %1 = vector.shape_cast %0 : vector<1x128x384xf32> to vector<128x384xf32>
    %2 = arith.truncf %1 : vector<128x384xf32> to vector<128x384xbf16>
    %c0_2 = arith.constant 0 : index
    %c0_3 = arith.constant 0 : index
    %3 = vector.load %arg2[%c0_2, %c0_3] : memref<384x1152xbf16, #tpu.memory_space<vmem>>, vector<384x1152xbf16>
    %cst = arith.constant dense<0.000000e+00> : vector<128x1152xf32>
    %4 = tpu.matmul %2, %3, %cst {dimension_numbers = #tpu.dot_dimension_numbers<[1], [0], [0], [1], [0, 0, 1, 1], [], []>} : vector<128x384xbf16>, vector<384x1152xbf16>, vector<128x1152xf32> -> vector<128x1152xf32>
    %5 = arith.truncf %4 : vector<128x1152xf32> to vector<128x1152xbf16>
    %6 = tpu.iota {dimensions = array<i32: 0>} : vector<128x128xi32>
    %7 = tpu.iota {dimensions = array<i32: 1>} : vector<128x128xi32>
    %8 = arith.cmpi sle, %7, %6 : vector<128x128xi32>
    %cst_4 = arith.constant 0.000000e+00 : f32
    %9 = vector.broadcast %cst_4 : f32 to vector<128x384xf32>
    %10 = vector.extract_strided_slice %5 {offsets = [0, 0], sizes = [128, 64], strides = [1, 1]} : vector<128x1152xbf16> to vector<128x64xbf16>
    %11 = vector.extract_strided_slice %5 {offsets = [0, 384], sizes = [128, 64], strides = [1, 1]} : vector<128x1152xbf16> to vector<128x64xbf16>
    %12 = vector.extract_strided_slice %5 {offsets = [0, 768], sizes = [128, 64], strides = [1, 1]} : vector<128x1152xbf16> to vector<128x64xbf16>
    %cst_5 = arith.constant dense<0.000000e+00> : vector<128x128xf32>
    %13 = tpu.matmul %10, %11, %cst_5 {dimension_numbers = #tpu.dot_dimension_numbers<[1], [1], [0], [0], [0, 0, 1, 0], [], []>} : vector<128x64xbf16>, vector<128x64xbf16>, vector<128x128xf32> -> vector<128x128xf32>
    %cst_6 = arith.constant -1.000000e+30 : f32
    %14 = vector.broadcast %cst_6 : f32 to vector<128x128xf32>
    %15 = arith.select %8, %13, %14 : vector<128x128xi1>, vector<128x128xf32>
    %cst_7 = arith.constant dense<0xFF800000> : vector<128xf32>
    %16 = vector.multi_reduction <maximumf>, %15, %cst_7 [1] : vector<128x128xf32> to vector<128xf32>
    %17 = vector.shape_cast %16 : vector<128xf32> to vector<128x1xf32>
    %18 = vector.broadcast %17 : vector<128x1xf32> to vector<128x128xf32>
    %19 = arith.subf %15, %18 : vector<128x128xf32>
    %20 = math.exp %19 : vector<128x128xf32>
    %cst_8 = arith.constant dense<0.000000e+00> : vector<128xf32>
    %21 = vector.multi_reduction <add>, %20, %cst_8 [1] : vector<128x128xf32> to vector<128xf32>
    %22 = vector.shape_cast %21 : vector<128xf32> to vector<128x1xf32>
    %23 = tpu.reciprocal %22 {approx = true} : vector<128x1xf32> -> vector<128x1xf32>
    %24 = vector.broadcast %23 : vector<128x1xf32> to vector<128x128xf32>
    %25 = arith.mulf %20, %24 : vector<128x128xf32>
    %26 = arith.truncf %25 : vector<128x128xf32> to vector<128x128xbf16>
    %cst_9 = arith.constant dense<0.000000e+00> : vector<128x64xf32>
    %27 = tpu.matmul %26, %12, %cst_9 {dimension_numbers = #tpu.dot_dimension_numbers<[1], [0], [0], [1], [0, 0, 1, 1], [], []>} : vector<128x128xbf16>, vector<128x64xbf16>, vector<128x64xf32> -> vector<128x64xf32>
    %28 = arith.truncf %27 : vector<128x64xf32> to vector<128x64xbf16>
    %c0_10 = arith.constant 0 : index
    %c0_11 = arith.constant 0 : index
    %29 = vector.load %arg3[%c0_10, %c0_11] : memref<384x384xbf16, #tpu.memory_space<vmem>>, vector<64x384xbf16>
    %cst_12 = arith.constant dense<0.000000e+00> : vector<128x384xf32>
    %30 = tpu.matmul %28, %29, %cst_12 {dimension_numbers = #tpu.dot_dimension_numbers<[1], [0], [0], [1], [0, 0, 1, 1], [], []>} : vector<128x64xbf16>, vector<64x384xbf16>, vector<128x384xf32> -> vector<128x384xf32>
    %31 = arith.addf %9, %30 : vector<128x384xf32>
    %32 = vector.extract_strided_slice %5 {offsets = [0, 64], sizes = [128, 64], strides = [1, 1]} : vector<128x1152xbf16> to vector<128x64xbf16>
    %33 = vector.extract_strided_slice %5 {offsets = [0, 448], sizes = [128, 64], strides = [1, 1]} : vector<128x1152xbf16> to vector<128x64xbf16>
    %34 = vector.extract_strided_slice %5 {offsets = [0, 832], sizes = [128, 64], strides = [1, 1]} : vector<128x1152xbf16> to vector<128x64xbf16>
    %cst_13 = arith.constant dense<0.000000e+00> : vector<128x128xf32>
    %35 = tpu.matmul %32, %33, %cst_13 {dimension_numbers = #tpu.dot_dimension_numbers<[1], [1], [0], [0], [0, 0, 1, 0], [], []>} : vector<128x64xbf16>, vector<128x64xbf16>, vector<128x128xf32> -> vector<128x128xf32>
    %cst_14 = arith.constant -1.000000e+30 : f32
    %36 = vector.broadcast %cst_14 : f32 to vector<128x128xf32>
    %37 = arith.select %8, %35, %36 : vector<128x128xi1>, vector<128x128xf32>
    %cst_15 = arith.constant dense<0xFF800000> : vector<128xf32>
    %38 = vector.multi_reduction <maximumf>, %37, %cst_15 [1] : vector<128x128xf32> to vector<128xf32>
    %39 = vector.shape_cast %38 : vector<128xf32> to vector<128x1xf32>
    %40 = vector.broadcast %39 : vector<128x1xf32> to vector<128x128xf32>
    %41 = arith.subf %37, %40 : vector<128x128xf32>
    %42 = math.exp %41 : vector<128x128xf32>
    %cst_16 = arith.constant dense<0.000000e+00> : vector<128xf32>
    %43 = vector.multi_reduction <add>, %42, %cst_16 [1] : vector<128x128xf32> to vector<128xf32>
    %44 = vector.shape_cast %43 : vector<128xf32> to vector<128x1xf32>
    %45 = tpu.reciprocal %44 {approx = true} : vector<128x1xf32> -> vector<128x1xf32>
    %46 = vector.broadcast %45 : vector<128x1xf32> to vector<128x128xf32>
    %47 = arith.mulf %42, %46 : vector<128x128xf32>
    %48 = arith.truncf %47 : vector<128x128xf32> to vector<128x128xbf16>
    %cst_17 = arith.constant dense<0.000000e+00> : vector<128x64xf32>
    %49 = tpu.matmul %48, %34, %cst_17 {dimension_numbers = #tpu.dot_dimension_numbers<[1], [0], [0], [1], [0, 0, 1, 1], [], []>} : vector<128x128xbf16>, vector<128x64xbf16>, vector<128x64xf32> -> vector<128x64xf32>
    %50 = arith.truncf %49 : vector<128x64xf32> to vector<128x64xbf16>
    %c64 = arith.constant 64 : index
    %c0_18 = arith.constant 0 : index
    %51 = vector.load %arg3[%c64, %c0_18] : memref<384x384xbf16, #tpu.memory_space<vmem>>, vector<64x384xbf16>
    %cst_19 = arith.constant dense<0.000000e+00> : vector<128x384xf32>
    %52 = tpu.matmul %50, %51, %cst_19 {dimension_numbers = #tpu.dot_dimension_numbers<[1], [0], [0], [1], [0, 0, 1, 1], [], []>} : vector<128x64xbf16>, vector<64x384xbf16>, vector<128x384xf32> -> vector<128x384xf32>
    %53 = arith.addf %31, %52 : vector<128x384xf32>
    %54 = vector.extract_strided_slice %5 {offsets = [0, 128], sizes = [128, 64], strides = [1, 1]} : vector<128x1152xbf16> to vector<128x64xbf16>
    %55 = vector.extract_strided_slice %5 {offsets = [0, 512], sizes = [128, 64], strides = [1, 1]} : vector<128x1152xbf16> to vector<128x64xbf16>
    %56 = vector.extract_strided_slice %5 {offsets = [0, 896], sizes = [128, 64], strides = [1, 1]} : vector<128x1152xbf16> to vector<128x64xbf16>
    %cst_20 = arith.constant dense<0.000000e+00> : vector<128x128xf32>
    %57 = tpu.matmul %54, %55, %cst_20 {dimension_numbers = #tpu.dot_dimension_numbers<[1], [1], [0], [0], [0, 0, 1, 0], [], []>} : vector<128x64xbf16>, vector<128x64xbf16>, vector<128x128xf32> -> vector<128x128xf32>
    %cst_21 = arith.constant -1.000000e+30 : f32
    %58 = vector.broadcast %cst_21 : f32 to vector<128x128xf32>
    %59 = arith.select %8, %57, %58 : vector<128x128xi1>, vector<128x128xf32>
    %cst_22 = arith.constant dense<0xFF800000> : vector<128xf32>
    %60 = vector.multi_reduction <maximumf>, %59, %cst_22 [1] : vector<128x128xf32> to vector<128xf32>
    %61 = vector.shape_cast %60 : vector<128xf32> to vector<128x1xf32>
    %62 = vector.broadcast %61 : vector<128x1xf32> to vector<128x128xf32>
    %63 = arith.subf %59, %62 : vector<128x128xf32>
    %64 = math.exp %63 : vector<128x128xf32>
    %cst_23 = arith.constant dense<0.000000e+00> : vector<128xf32>
    %65 = vector.multi_reduction <add>, %64, %cst_23 [1] : vector<128x128xf32> to vector<128xf32>
    %66 = vector.shape_cast %65 : vector<128xf32> to vector<128x1xf32>
    %67 = tpu.reciprocal %66 {approx = true} : vector<128x1xf32> -> vector<128x1xf32>
    %68 = vector.broadcast %67 : vector<128x1xf32> to vector<128x128xf32>
    %69 = arith.mulf %64, %68 : vector<128x128xf32>
    %70 = arith.truncf %69 : vector<128x128xf32> to vector<128x128xbf16>
    %cst_24 = arith.constant dense<0.000000e+00> : vector<128x64xf32>
    %71 = tpu.matmul %70, %56, %cst_24 {dimension_numbers = #tpu.dot_dimension_numbers<[1], [0], [0], [1], [0, 0, 1, 1], [], []>} : vector<128x128xbf16>, vector<128x64xbf16>, vector<128x64xf32> -> vector<128x64xf32>
    %72 = arith.truncf %71 : vector<128x64xf32> to vector<128x64xbf16>
    %c128 = arith.constant 128 : index
    %c0_25 = arith.constant 0 : index
    %73 = vector.load %arg3[%c128, %c0_25] : memref<384x384xbf16, #tpu.memory_space<vmem>>, vector<64x384xbf16>
    %cst_26 = arith.constant dense<0.000000e+00> : vector<128x384xf32>
    %74 = tpu.matmul %72, %73, %cst_26 {dimension_numbers = #tpu.dot_dimension_numbers<[1], [0], [0], [1], [0, 0, 1, 1], [], []>} : vector<128x64xbf16>, vector<64x384xbf16>, vector<128x384xf32> -> vector<128x384xf32>
    %75 = arith.addf %53, %74 : vector<128x384xf32>
    %76 = vector.extract_strided_slice %5 {offsets = [0, 192], sizes = [128, 64], strides = [1, 1]} : vector<128x1152xbf16> to vector<128x64xbf16>
    %77 = vector.extract_strided_slice %5 {offsets = [0, 576], sizes = [128, 64], strides = [1, 1]} : vector<128x1152xbf16> to vector<128x64xbf16>
    %78 = vector.extract_strided_slice %5 {offsets = [0, 960], sizes = [128, 64], strides = [1, 1]} : vector<128x1152xbf16> to vector<128x64xbf16>
    %cst_27 = arith.constant dense<0.000000e+00> : vector<128x128xf32>
    %79 = tpu.matmul %76, %77, %cst_27 {dimension_numbers = #tpu.dot_dimension_numbers<[1], [1], [0], [0], [0, 0, 1, 0], [], []>} : vector<128x64xbf16>, vector<128x64xbf16>, vector<128x128xf32> -> vector<128x128xf32>
    %cst_28 = arith.constant -1.000000e+30 : f32
    %80 = vector.broadcast %cst_28 : f32 to vector<128x128xf32>
    %81 = arith.select %8, %79, %80 : vector<128x128xi1>, vector<128x128xf32>
    %cst_29 = arith.constant dense<0xFF800000> : vector<128xf32>
    %82 = vector.multi_reduction <maximumf>, %81, %cst_29 [1] : vector<128x128xf32> to vector<128xf32>
    %83 = vector.shape_cast %82 : vector<128xf32> to vector<128x1xf32>
    %84 = vector.broadcast %83 : vector<128x1xf32> to vector<128x128xf32>
    %85 = arith.subf %81, %84 : vector<128x128xf32>
    %86 = math.exp %85 : vector<128x128xf32>
    %cst_30 = arith.constant dense<0.000000e+00> : vector<128xf32>
    %87 = vector.multi_reduction <add>, %86, %cst_30 [1] : vector<128x128xf32> to vector<128xf32>
    %88 = vector.shape_cast %87 : vector<128xf32> to vector<128x1xf32>
    %89 = tpu.reciprocal %88 {approx = true} : vector<128x1xf32> -> vector<128x1xf32>
    %90 = vector.broadcast %89 : vector<128x1xf32> to vector<128x128xf32>
    %91 = arith.mulf %86, %90 : vector<128x128xf32>
    %92 = arith.truncf %91 : vector<128x128xf32> to vector<128x128xbf16>
    %cst_31 = arith.constant dense<0.000000e+00> : vector<128x64xf32>
    %93 = tpu.matmul %92, %78, %cst_31 {dimension_numbers = #tpu.dot_dimension_numbers<[1], [0], [0], [1], [0, 0, 1, 1], [], []>} : vector<128x128xbf16>, vector<128x64xbf16>, vector<128x64xf32> -> vector<128x64xf32>
    %94 = arith.truncf %93 : vector<128x64xf32> to vector<128x64xbf16>
    %c192 = arith.constant 192 : index
    %c0_32 = arith.constant 0 : index
    %95 = vector.load %arg3[%c192, %c0_32] : memref<384x384xbf16, #tpu.memory_space<vmem>>, vector<64x384xbf16>
    %cst_33 = arith.constant dense<0.000000e+00> : vector<128x384xf32>
    %96 = tpu.matmul %94, %95, %cst_33 {dimension_numbers = #tpu.dot_dimension_numbers<[1], [0], [0], [1], [0, 0, 1, 1], [], []>} : vector<128x64xbf16>, vector<64x384xbf16>, vector<128x384xf32> -> vector<128x384xf32>
    %97 = arith.addf %75, %96 : vector<128x384xf32>
    %98 = vector.extract_strided_slice %5 {offsets = [0, 256], sizes = [128, 64], strides = [1, 1]} : vector<128x1152xbf16> to vector<128x64xbf16>
    %99 = vector.extract_strided_slice %5 {offsets = [0, 640], sizes = [128, 64], strides = [1, 1]} : vector<128x1152xbf16> to vector<128x64xbf16>
    %100 = vector.extract_strided_slice %5 {offsets = [0, 1024], sizes = [128, 64], strides = [1, 1]} : vector<128x1152xbf16> to vector<128x64xbf16>
    %cst_34 = arith.constant dense<0.000000e+00> : vector<128x128xf32>
    %101 = tpu.matmul %98, %99, %cst_34 {dimension_numbers = #tpu.dot_dimension_numbers<[1], [1], [0], [0], [0, 0, 1, 0], [], []>} : vector<128x64xbf16>, vector<128x64xbf16>, vector<128x128xf32> -> vector<128x128xf32>
    %cst_35 = arith.constant -1.000000e+30 : f32
    %102 = vector.broadcast %cst_35 : f32 to vector<128x128xf32>
    %103 = arith.select %8, %101, %102 : vector<128x128xi1>, vector<128x128xf32>
    %cst_36 = arith.constant dense<0xFF800000> : vector<128xf32>
    %104 = vector.multi_reduction <maximumf>, %103, %cst_36 [1] : vector<128x128xf32> to vector<128xf32>
    %105 = vector.shape_cast %104 : vector<128xf32> to vector<128x1xf32>
    %106 = vector.broadcast %105 : vector<128x1xf32> to vector<128x128xf32>
    %107 = arith.subf %103, %106 : vector<128x128xf32>
    %108 = math.exp %107 : vector<128x128xf32>
    %cst_37 = arith.constant dense<0.000000e+00> : vector<128xf32>
    %109 = vector.multi_reduction <add>, %108, %cst_37 [1] : vector<128x128xf32> to vector<128xf32>
    %110 = vector.shape_cast %109 : vector<128xf32> to vector<128x1xf32>
    %111 = tpu.reciprocal %110 {approx = true} : vector<128x1xf32> -> vector<128x1xf32>
    %112 = vector.broadcast %111 : vector<128x1xf32> to vector<128x128xf32>
    %113 = arith.mulf %108, %112 : vector<128x128xf32>
    %114 = arith.truncf %113 : vector<128x128xf32> to vector<128x128xbf16>
    %cst_38 = arith.constant dense<0.000000e+00> : vector<128x64xf32>
    %115 = tpu.matmul %114, %100, %cst_38 {dimension_numbers = #tpu.dot_dimension_numbers<[1], [0], [0], [1], [0, 0, 1, 1], [], []>} : vector<128x128xbf16>, vector<128x64xbf16>, vector<128x64xf32> -> vector<128x64xf32>
    %116 = arith.truncf %115 : vector<128x64xf32> to vector<128x64xbf16>
    %c256 = arith.constant 256 : index
    %c0_39 = arith.constant 0 : index
    %117 = vector.load %arg3[%c256, %c0_39] : memref<384x384xbf16, #tpu.memory_space<vmem>>, vector<64x384xbf16>
    %cst_40 = arith.constant dense<0.000000e+00> : vector<128x384xf32>
    %118 = tpu.matmul %116, %117, %cst_40 {dimension_numbers = #tpu.dot_dimension_numbers<[1], [0], [0], [1], [0, 0, 1, 1], [], []>} : vector<128x64xbf16>, vector<64x384xbf16>, vector<128x384xf32> -> vector<128x384xf32>
    %119 = arith.addf %97, %118 : vector<128x384xf32>
    %120 = vector.extract_strided_slice %5 {offsets = [0, 320], sizes = [128, 64], strides = [1, 1]} : vector<128x1152xbf16> to vector<128x64xbf16>
    %121 = vector.extract_strided_slice %5 {offsets = [0, 704], sizes = [128, 64], strides = [1, 1]} : vector<128x1152xbf16> to vector<128x64xbf16>
    %122 = vector.extract_strided_slice %5 {offsets = [0, 1088], sizes = [128, 64], strides = [1, 1]} : vector<128x1152xbf16> to vector<128x64xbf16>
    %cst_41 = arith.constant dense<0.000000e+00> : vector<128x128xf32>
    %123 = tpu.matmul %120, %121, %cst_41 {dimension_numbers = #tpu.dot_dimension_numbers<[1], [1], [0], [0], [0, 0, 1, 0], [], []>} : vector<128x64xbf16>, vector<128x64xbf16>, vector<128x128xf32> -> vector<128x128xf32>
    %cst_42 = arith.constant -1.000000e+30 : f32
    %124 = vector.broadcast %cst_42 : f32 to vector<128x128xf32>
    %125 = arith.select %8, %123, %124 : vector<128x128xi1>, vector<128x128xf32>
    %cst_43 = arith.constant dense<0xFF800000> : vector<128xf32>
    %126 = vector.multi_reduction <maximumf>, %125, %cst_43 [1] : vector<128x128xf32> to vector<128xf32>
    %127 = vector.shape_cast %126 : vector<128xf32> to vector<128x1xf32>
    %128 = vector.broadcast %127 : vector<128x1xf32> to vector<128x128xf32>
    %129 = arith.subf %125, %128 : vector<128x128xf32>
    %130 = math.exp %129 : vector<128x128xf32>
    %cst_44 = arith.constant dense<0.000000e+00> : vector<128xf32>
    %131 = vector.multi_reduction <add>, %130, %cst_44 [1] : vector<128x128xf32> to vector<128xf32>
    %132 = vector.shape_cast %131 : vector<128xf32> to vector<128x1xf32>
    %133 = tpu.reciprocal %132 {approx = true} : vector<128x1xf32> -> vector<128x1xf32>
    %134 = vector.broadcast %133 : vector<128x1xf32> to vector<128x128xf32>
    %135 = arith.mulf %130, %134 : vector<128x128xf32>
    %136 = arith.truncf %135 : vector<128x128xf32> to vector<128x128xbf16>
    %cst_45 = arith.constant dense<0.000000e+00> : vector<128x64xf32>
    %137 = tpu.matmul %136, %122, %cst_45 {dimension_numbers = #tpu.dot_dimension_numbers<[1], [0], [0], [1], [0, 0, 1, 1], [], []>} : vector<128x128xbf16>, vector<128x64xbf16>, vector<128x64xf32> -> vector<128x64xf32>
    %138 = arith.truncf %137 : vector<128x64xf32> to vector<128x64xbf16>
    %c320 = arith.constant 320 : index
    %c0_46 = arith.constant 0 : index
    %139 = vector.load %arg3[%c320, %c0_46] : memref<384x384xbf16, #tpu.memory_space<vmem>>, vector<64x384xbf16>
    %cst_47 = arith.constant dense<0.000000e+00> : vector<128x384xf32>
    %140 = tpu.matmul %138, %139, %cst_47 {dimension_numbers = #tpu.dot_dimension_numbers<[1], [0], [0], [1], [0, 0, 1, 1], [], []>} : vector<128x64xbf16>, vector<64x384xbf16>, vector<128x384xf32> -> vector<128x384xf32>
    %141 = arith.addf %119, %140 : vector<128x384xf32>
    %c0_48 = arith.constant 0 : index
    %c0_49 = arith.constant 0 : index
    %142 = vector.load %arg4[%c0_48, %c0_49] : memref<1x384xf32, #tpu.memory_space<vmem>>, vector<1x384xf32>
    %143 = vector.broadcast %142 : vector<1x384xf32> to vector<128x384xf32>
    %144 = arith.addf %141, %143 : vector<128x384xf32>
    %c0_50 = arith.constant 0 : index
    %c0_51 = arith.constant 0 : index
    %c0_52 = arith.constant 0 : index
    %145 = vector.load %arg5[%c0_50, %c0_51, %c0_52] : memref<1x128x384xf32, #tpu.memory_space<vmem>>, vector<1x128x384xf32>
    %146 = vector.shape_cast %145 : vector<1x128x384xf32> to vector<128x384xf32>
    %147 = vector.shape_cast %144 : vector<128x384xf32> to vector<1x128x384xf32>
    tpu.vector_store %arg5[%c0_50, %c0_51, %c0_52], %147 {strides = array<i32>} : memref<1x128x384xf32, #tpu.memory_space<vmem>>, vector<1x128x384xf32>,
    return
  }
  func.func @transform_0(%arg0: i32) -> (i32, i32, i32) {
    %c0_i32 = arith.constant 0 : i32
    %c0_i32_0 = arith.constant 0 : i32
    %c0_i32_1 = arith.constant 0 : i32
    return %arg0, %c0_i32, %c0_i32_0 : i32, i32, i32
  }
  func.func @transform_1(%arg0: i32) -> (i32, i32) {
    %c0_i32 = arith.constant 0 : i32
    %c0_i32_0 = arith.constant 0 : i32
    %c0_i32_1 = arith.constant 0 : i32
    return %c0_i32, %c0_i32_0 : i32, i32
  }
  func.func @transform_2(%arg0: i32) -> (i32, i32) {
    %c0_i32 = arith.constant 0 : i32
    %c0_i32_0 = arith.constant 0 : i32
    %c0_i32_1 = arith.constant 0 : i32
    return %c0_i32, %c0_i32_0 : i32, i32
  }
  func.func @transform_3(%arg0: i32) -> (i32, i32) {
    %c0_i32 = arith.constant 0 : i32
    %c0_i32_0 = arith.constant 0 : i32
    %c0_i32_1 = arith.constant 0 : i32
    return %c0_i32, %c0_i32_0 : i32, i32
  }
  func.func @transform_4(%arg0: i32) -> (i32, i32, i32) {
    %c0_i32 = arith.constant 0 : i32
    %c0_i32_0 = arith.constant 0 : i32
    %c0_i32_1 = arith.constant 0 : i32
    return %arg0, %c0_i32, %c0_i32_0 : i32, i32, i32
  }
}

</mosaic_0001>

<llo_original>
// kernel: multi_head_attention.1
$region0: #{multi_head_attention.1}
  #allocation0 [shape = 'u32[]', space=smem, size = 0x4, offset = 0x4, fixed_abs, tag = 'smem constant byte address 0x4 - core index']
  #allocation1 [shape = 'u32[144,128]{1,0:T(1,128)}', space=vmem, size = 0x12000, scoped, tag = 'internal scratch']
  %s0 = inlined_call_operand.hbm [shape: f32[2,128,384], index: 0, kind: input, shape index: {}]
  %s1 = inlined_call_operand.hbm [shape: bf16[384,1152], index: 1, kind: input, shape index: {}]
  %s2 = inlined_call_operand.hbm [shape: bf16[384,384], index: 2, kind: input, shape index: {}]
  %s3 = inlined_call_operand.hbm [shape: f32[1,384], index: 3, kind: input, shape index: {}]
  %s4 = inlined_call_operand.hbm [shape: f32[2,128,384], index: 4, kind: output, shape index: {}]
  %s5 = sld [smem:[#allocation0]]
  $region65: #{multi_head_attention.1} parent=0
    _
  %s7 = ssub.s32 1, %s5
  %s8 = scalar_select 0, %s7, %s5
  $region1: #{multi_head_attention.1} parent=0
    #allocation2 [shape = 'u8[393216]{0}', space=vmem, size = 0x60000, scoped, tag = 'input window, operand 0']
    #allocation3 [shape = 's32[2]{0}', space=sflag, size = 0x8, scoped, tag = 'scoped memory for multi_head_attention.1']
    #allocation4 [shape = 's32[2]{0}', space=sflag, size = 0x8, scoped, tag = 'scoped memory for multi_head_attention.1']
    #allocation5 [shape = 'u8[884736]{0}', space=vmem, size = 0xd8000, scoped, tag = 'input window, operand 1, single buffered']
    #allocation6 [shape = 's32[1]{0}', space=sflag, size = 0x4, scoped, tag = 'scoped memory for multi_head_attention.1']
    #allocation7 [shape = 'u8[294912]{0}', space=vmem, size = 0x48000, scoped, tag = 'input window, operand 2, single buffered']
    #allocation8 [shape = 'u8[1536]{0}', space=vmem, size = 0x800, scoped, tag = 'input window, operand 3, single buffered']
    #allocation9 [shape = 's32[1]{0}', space=sflag, size = 0x4, scoped, tag = 'scoped memory for multi_head_attention.1']
    #allocation10 [shape = 'u8[393216]{0}', space=vmem, size = 0x60000, scoped, tag = 'output window, operand 0']
    %9 = vsyncpa [#allocation3], 0
    %s10 = scalar_lea.sflag [#allocation3], 1
    %11 = vsyncpa %s10, 0
    %12 = vsyncpa [#allocation6], 0
    %13 = vsyncpa [#allocation9], 0
    %14 = vsyncpa [#allocation4], 0
    %s15 = scalar_lea.sflag [#allocation4], 1
    %16 = vsyncpa %s15, 0
    loop: start=0, step=1, limit=4
    $region2: #{multi_head_attention.1} parent=1 // loop_pre_header
      _
    $region3: #{multi_head_attention.1} parent=1 // loop_header
      %s18 = sphi 0, %s22
      %p19 = scmp.ge.s32.totalorder %s18, 4
      %s28 = sphi 0, %s30
      %s31 = sphi 0, %s28
      %s32 = sphi 0, %s31
      %s48 = sphi 0, %s32
      %s52 = sphi 0, %s52
      %s54 = sphi 0, %s52
      %s55 = sphi 0, %s54
      %s69 = sphi 0, %s55
      %s73 = sphi 0, %s73
      %s75 = sphi 0, %s73
      %s76 = sphi 0, %s75
      %s90 = sphi 0, %s76
      %s94 = sphi 0, %s94
      %s96 = sphi 0, %s94
      %s97 = sphi 0, %s96
      %s111 = sphi 0, %s97
      %s117 = sphi 0, %s119
      %s120 = sphi 0, %s117
      %s121 = sphi 0, %s120
      %s137 = sphi 0, %s121
    $region4: #{multi_head_attention.1} parent=1 // loop_header_branch
      %21 = sbr.rel (%p19) target = $region8
    $region5: #{multi_head_attention.1} parent=1 // loop_body
      %s23 = ssub.s32 %s18, 1
      %s24 = ssub.s32 %s18, 2
      %s25 = sadd.s32 %s18, 1
      %s26 = ssub.s32 %s18, %s25
      %p27 = scmp.eq.s32.totalorder %s26, 0
      %s29 = sadd.s32 %s28, 1
      %s30 = scalar_select %p27, %s28, %s29
      %p33 = pneg %p27
      %p34 = scmp.eq.s32.totalorder %s18, 1
      %p35 = por %p33, %p34
      %p36 = scmp.ne.s32.totalorder %s28, %s31
      %p37 = scmp.eq.s32.totalorder %s18, 0
      %p38 = por %p36, %p37
      %p39 = scmp.ne.s32.totalorder %s28, %s31
      %p40 = scmp.eq.s32.totalorder %s23, 1
      %p41 = por %p39, %p40
      %p42 = scmp.ne.s32.totalorder %s31, %s32
      %p43 = scmp.eq.s32.totalorder %s23, 0
      %p44 = por %p42, %p43
      %p45 = scmp.ne.s32.totalorder %s31, %s32
      %p46 = scmp.eq.s32.totalorder %s24, 1
      %p47 = por %p45, %p46
      %p49 = scmp.ne.s32.totalorder %s32, %s48
      %p50 = scmp.eq.s32.totalorder %s24, 0
      %p51 = por %p49, %p50
      %s53 = sadd.s32 %s52, 1
      %p56 = scmp.eq.s32.totalorder %s18, 1
      %p57 = scmp.ne.s32.totalorder %s52, %s54
      %p58 = scmp.eq.s32.totalorder %s18, 0
      %p59 = por %p57, %p58
      %p60 = scmp.ne.s32.totalorder %s52, %s54
      %p61 = scmp.eq.s32.totalorder %s23, 1
      %p62 = por %p60, %p61
      %p63 = scmp.ne.s32.totalorder %s54, %s55
      %p64 = scmp.eq.s32.totalorder %s23, 0
      %p65 = por %p63, %p64
      %p66 = scmp.ne.s32.totalorder %s54, %s55
      %p67 = scmp.eq.s32.totalorder %s24, 1
      %p68 = por %p66, %p67
      %p70 = scmp.ne.s32.totalorder %s55, %s69
      %p71 = scmp.eq.s32.totalorder %s24, 0
      %p72 = por %p70, %p71
      %s74 = sadd.s32 %s73, 1
      %p77 = scmp.eq.s32.totalorder %s18, 1
      %p78 = scmp.ne.s32.totalorder %s73, %s75
      %p79 = scmp.eq.s32.totalorder %s18, 0
      %p80 = por %p78, %p79
      %p81 = scmp.ne.s32.totalorder %s73, %s75
      %p82 = scmp.eq.s32.totalorder %s23, 1
      %p83 = por %p81, %p82
      %p84 = scmp.ne.s32.totalorder %s75, %s76
      %p85 = scmp.eq.s32.totalorder %s23, 0
      %p86 = por %p84, %p85
      %p87 = scmp.ne.s32.totalorder %s75, %s76
      %p88 = scmp.eq.s32.totalorder %s24, 1
      %p89 = por %p87, %p88
      %p91 = scmp.ne.s32.totalorder %s76, %s90
      %p92 = scmp.eq.s32.totalorder %s24, 0
      %p93 = por %p91, %p92
      %s95 = sadd.s32 %s94, 1
      %p98 = scmp.eq.s32.totalorder %s18, 1
      %p99 = scmp.ne.s32.totalorder %s94, %s96
      %p100 = scmp.eq.s32.totalorder %s18, 0
      %p101 = por %p99, %p100
      %p102 = scmp.ne.s32.totalorder %s94, %s96
      %p103 = scmp.eq.s32.totalorder %s23, 1
      %p104 = por %p102, %p103
      %p105 = scmp.ne.s32.totalorder %s96, %s97
      %p106 = scmp.eq.s32.totalorder %s23, 0
      %p107 = por %p105, %p106
      %p108 = scmp.ne.s32.totalorder %s96, %s97
      %p109 = scmp.eq.s32.totalorder %s24, 1
      %p110 = por %p108, %p109
      %p112 = scmp.ne.s32.totalorder %s97, %s111
      %p113 = scmp.eq.s32.totalorder %s24, 0
      %p114 = por %p112, %p113
      %s115 = ssub.s32 %s18, %s25
      %p116 = scmp.eq.s32.totalorder %s115, 0
      %s118 = sadd.s32 %s117, 1
      %s119 = scalar_select %p116, %s117, %s118
      %p122 = pneg %p116
      %p123 = scmp.eq.s32.totalorder %s18, 1
      %p124 = por %p122, %p123
      %p125 = scmp.ne.s32.totalorder %s117, %s120
      %p126 = scmp.eq.s32.totalorder %s18, 0
      %p127 = por %p125, %p126
      %p128 = scmp.ne.s32.totalorder %s117, %s120
      %p129 = scmp.eq.s32.totalorder %s23, 1
      %p130 = por %p128, %p129
      %p131 = scmp.ne.s32.totalorder %s120, %s121
      %p132 = scmp.eq.s32.totalorder %s23, 0
      %p133 = por %p131, %p132
      %p134 = scmp.ne.s32.totalorder %s120, %s121
      %p135 = scmp.eq.s32.totalorder %s24, 1
      %p136 = por %p134, %p135
      %p138 = scmp.ne.s32.totalorder %s121, %s137
      %p139 = scmp.eq.s32.totalorder %s24, 0
      %p140 = por %p138, %p139
      %p141 = scmp.le.s32.totalorder 1, %s18
      %p142 = scmp.lt.s32.totalorder %s18, 3
      %p143 = pnand %p141, %p142
      %p144 = pneg %p143
      // Predicated region
      $region9: #{multi_head_attention.1} parent=5 // pred_check
        _
      $region10: #{multi_head_attention.1} parent=5 // pred_check_branch
        %146 = sbr.rel (%p143) target = $region12
      $region11: #{multi_head_attention.1} parent=5 // pred_region
        %s147 = ssub.s32 %s18, 1
        // Predicated region
        $region13: #{multi_head_attention.1} parent=11 // pred_check
          %p148 = pneg %p65
        $region14: #{multi_head_attention.1} parent=11 // pred_check_branch
          %150 = sbr.rel (%p148) target = $region16
        $region15: #{multi_head_attention.1} parent=11 // pred_region
          %s152 = ssub.s32 27648, 27648
          %153 = vsyncadd [#allocation6], %s152
          %s154 = sshll.u32 [#allocation5], 4
          %s155 = int_to_ptr.vmem [resolvable:$true] %s154
          %160 = dma.hbm_to_vmem [thread:$0]  %s1, 27648, %s155, [#allocation6], 576, 576, 36
        $region16: #{multi_head_attention.1} parent=11 // pred_fallthru
          _
        // Predicated region
        $region17: #{multi_head_attention.1} parent=11 // pred_check
          %p161 = pneg %p86
        $region18: #{multi_head_attention.1} parent=11 // pred_check_branch
          %163 = sbr.rel (%p161) target = $region20
        $region19: #{multi_head_attention.1} parent=11 // pred_region
          %s165 = ssub.s32 9216, 9216
          %166 = vsyncadd [#allocation6], %s165
          %s167 = sshll.u32 [#allocation7], 4
          %s168 = int_to_ptr.vmem [resolvable:$true] %s167
          %173 = dma.hbm_to_vmem [thread:$0]  %s2, 9216, %s168, [#allocation6], 192, 192, 12
        $region20: #{multi_head_attention.1} parent=11 // pred_fallthru
          _
        // Predicated region
        $region21: #{multi_head_attention.1} parent=11 // pred_check
          %p174 = pneg %p107
        $region22: #{multi_head_attention.1} parent=11 // pred_check_branch
          %176 = sbr.rel (%p174) target = $region24
        $region23: #{multi_head_attention.1} parent=11 // pred_region
          %s178 = ssub.s32 48, 48
          %179 = vsyncadd [#allocation9], %s178
          %s181 = sshll.u32 [#allocation8], 4
          %s182 = int_to_ptr.vmem [resolvable:$true] %s181
          %184 = dma.hbm_to_vmem [thread:$0]  %s3, 48, %s182, [#allocation9]
        $region24: #{multi_head_attention.1} parent=11 // pred_fallthru
          _
      $region12: #{multi_head_attention.1} parent=5 // pred_fallthru
        _
      %p185 = scmp.lt.s32.totalorder %s18, 2
      // Predicated region
      $region25: #{multi_head_attention.1} parent=5 // pred_check
        %p186 = pneg %p185
      $region26: #{multi_head_attention.1} parent=5 // pred_check_branch
        %188 = sbr.rel (%p186) target = $region28
      $region27: #{multi_head_attention.1} parent=5 // pred_region
        // Predicated region
        $region29: #{multi_head_attention.1} parent=27 // pred_check
          %p189 = pneg %p38
        $region30: #{multi_head_attention.1} parent=27 // pred_check_branch
          %191 = sbr.rel (%p189) target = $region32
        $region31: #{multi_head_attention.1} parent=27 // pred_region
          %s192 = sand.u32 %s28, 1
          %s193 = scalar_lea.sflag [#allocation3], %s192
          %s194 = sand.u32 %s28, 1
          %s195 = smul.addr %s194, 384
          %s196 = scalar_lea.vmem [#allocation2], %s195
          %s198 = ssub.s32 6144, 6144
          %199 = vsyncadd %s193, %s198
          %s200 = smul.addr %s18, 48
          %s201 = smul.addr %s200, 128
          %s202 = scalar_lea.hbm %s0, %s201
          %s203 = sshll.u32 %s196, 4
          %s204 = int_to_ptr.vmem [resolvable:$true] %s203
          %209 = dma.hbm_to_vmem [thread:$0]  %s202, 6144, %s204, %s193, 384, 384, 24
        $region32: #{multi_head_attention.1} parent=27 // pred_fallthru
          _
      $region28: #{multi_head_attention.1} parent=5 // pred_fallthru
        _
      %p210 = scmp.le.s32.totalorder 1, %s18
      %p211 = scmp.lt.s32.totalorder %s18, 3
      %p212 = pnand %p210, %p211
      %p213 = pneg %p212
      // Predicated region
      $region33: #{multi_head_attention.1} parent=5 // pred_check
        _
      $region34: #{multi_head_attention.1} parent=5 // pred_check_branch
        %215 = sbr.rel (%p212) target = $region36
      $region35: #{multi_head_attention.1} parent=5 // pred_region
        %s216 = ssub.s32 %s18, 1
        %s217 = sand.u32 %s31, 1
        %s218 = scalar_lea.sflag [#allocation3], %s217
        %s219 = sand.u32 %s31, 1
        %s220 = smul.addr %s219, 384
        %s221 = scalar_lea.vmem [#allocation2], %s220
        // Predicated region
        $region37: #{multi_head_attention.1} parent=35 // pred_check
          %p222 = pneg %p44
        $region38: #{multi_head_attention.1} parent=35 // pred_check_branch
          %224 = sbr.rel (%p222) target = $region40
        $region39: #{multi_head_attention.1} parent=35 // pred_region
          %225 = dma.done %s218, 6144
        $region40: #{multi_head_attention.1} parent=35 // pred_fallthru
          _
        // Predicated region
        $region41: #{multi_head_attention.1} parent=35 // pred_check
          %p226 = pneg %p65
        $region42: #{multi_head_attention.1} parent=35 // pred_check_branch
          %228 = sbr.rel (%p226) target = $region44
        $region43: #{multi_head_attention.1} parent=35 // pred_region
          %229 = dma.done [#allocation6], 27648
        $region44: #{multi_head_attention.1} parent=35 // pred_fallthru
          _
        // Predicated region
        $region45: #{multi_head_attention.1} parent=35 // pred_check
          %p230 = pneg %p86
        $region46: #{multi_head_attention.1} parent=35 // pred_check_branch
          %232 = sbr.rel (%p230) target = $region48
        $region47: #{multi_head_attention.1} parent=35 // pred_region
          %233 = dma.done [#allocation6], 9216
        $region48: #{multi_head_attention.1} parent=35 // pred_fallthru
          _
        // Predicated region
        $region49: #{multi_head_attention.1} parent=35 // pred_check
          %p234 = pneg %p107
        $region50: #{multi_head_attention.1} parent=35 // pred_check_branch
          %236 = sbr.rel (%p234) target = $region52
        $region51: #{multi_head_attention.1} parent=35 // pred_region
          %237 = dma.done [#allocation9], 48
        $region52: #{multi_head_attention.1} parent=35 // pred_fallthru
          _
        %s238 = sand.u32 %s31, 1
        %s239 = scalar_lea.sflag [#allocation3], %s238
        %s240 = sand.u32 %s31, 1
        %s241 = smul.addr %s240, 384
        %s242 = scalar_lea.vmem [#allocation2], %s241
        %p243 = pneg %p44
        %p244 = pneg %p41
        %p245 = pneg %p65
        %p246 = pneg %p62
        %p247 = pneg %p86
        %p248 = pneg %p83
        %p249 = pneg %p107
        %p250 = pneg %p104
        %p251 = pneg %p133
        %p252 = pneg %p130
        %s253 = sand.u32 %s120, 1
        %s254 = scalar_lea.sflag [#allocation4], %s253
        %s255 = sand.u32 %s120, 1
        %s256 = smul.addr %s255, 384
        %s257 = scalar_lea.vmem [#allocation10], %s256
        %v259 = vld [vmem:[%s221] sm:$0xff]
        %v260 = vld [vmem:[%s221 + $0x8] sm:$0xff]
        %v261 = vld [vmem:[%s221 + $0x10] sm:$0xff]
        %v262 = vld [vmem:[%s221 + $0x18] sm:$0xff]
        %v263 = vld [vmem:[%s221 + $0x20] sm:$0xff]
        %v264 = vld [vmem:[%s221 + $0x28] sm:$0xff]
        %v265 = vld [vmem:[%s221 + $0x30] sm:$0xff]
        %v266 = vld [vmem:[%s221 + $0x38] sm:$0xff]
        %v267 = vld [vmem:[%s221 + $0x40] sm:$0xff]
        %v268 = vld [vmem:[%s221 + $0x48] sm:$0xff]
        %v269 = vld [vmem:[%s221 + $0x50] sm:$0xff]
        %v270 = vld [vmem:[%s221 + $0x58] sm:$0xff]
        %v271 = vld [vmem:[%s221 + $0x60] sm:$0xff]
        %v272 = vld [vmem:[%s221 + $0x68] sm:$0xff]
        %v273 = vld [vmem:[%s221 + $0x70] sm:$0xff]
        %v274 = vld [vmem:[%s221 + $0x78] sm:$0xff]
        %v275 = vld [vmem:[%s221 + $0x80] sm:$0xff]
        %v276 = vld [vmem:[%s221 + $0x88] sm:$0xff]
        %v277 = vld [vmem:[%s221 + $0x90] sm:$0xff]
        %v278 = vld [vmem:[%s221 + $0x98] sm:$0xff]
        %v279 = vld [vmem:[%s221 + $0xa0] sm:$0xff]
        %v280 = vld [vmem:[%s221 + $0xa8] sm:$0xff]
        %v281 = vld [vmem:[%s221 + $0xb0] sm:$0xff]
        %v282 = vld [vmem:[%s221 + $0xb8] sm:$0xff]
        %v283 = vld [vmem:[%s221 + $0xc0] sm:$0xff]
        %v284 = vld [vmem:[%s221 + $0xc8] sm:$0xff]
        %v285 = vld [vmem:[%s221 + $0xd0] sm:$0xff]
        %v286 = vld [vmem:[%s221 + $0xd8] sm:$0xff]
        %v287 = vld [vmem:[%s221 + $0xe0] sm:$0xff]
        %v288 = vld [vmem:[%s221 + $0xe8] sm:$0xff]
        %v289 = vld [vmem:[%s221 + $0xf0] sm:$0xff]
        %v290 = vld [vmem:[%s221 + $0xf8] sm:$0xff]
        %v291 = vld [vmem:[%s221 + $0x100] sm:$0xff]
        %v292 = vld [vmem:[%s221 + $0x108] sm:$0xff]
        %v293 = vld [vmem:[%s221 + $0x110] sm:$0xff]
        %v294 = vld [vmem:[%s221 + $0x118] sm:$0xff]
        %v295 = vld [vmem:[%s221 + $0x120] sm:$0xff]
        %v296 = vld [vmem:[%s221 + $0x128] sm:$0xff]
        %v297 = vld [vmem:[%s221 + $0x130] sm:$0xff]
        %v298 = vld [vmem:[%s221 + $0x138] sm:$0xff]
        %v299 = vld [vmem:[%s221 + $0x140] sm:$0xff]
        %v300 = vld [vmem:[%s221 + $0x148] sm:$0xff]
        %v301 = vld [vmem:[%s221 + $0x150] sm:$0xff]
        %v302 = vld [vmem:[%s221 + $0x158] sm:$0xff]
        %v303 = vld [vmem:[%s221 + $0x160] sm:$0xff]
        %v304 = vld [vmem:[%s221 + $0x168] sm:$0xff]
        %v305 = vld [vmem:[%s221 + $0x170] sm:$0xff]
        %v306 = vld [vmem:[%s221 + $0x178] sm:$0xff]
        %v307 = vpack.c.bf16 %v262, %v259
        %v308 = vpack.c.bf16 %v263, %v260
        %v309 = vpack.c.bf16 %v264, %v261
        %v310 = vpack.c.bf16 %v268, %v265
        %v311 = vpack.c.bf16 %v269, %v266
        %v312 = vpack.c.bf16 %v270, %v267
        %v313 = vpack.c.bf16 %v274, %v271
        %v314 = vpack.c.bf16 %v275, %v272
        %v315 = vpack.c.bf16 %v276, %v273
        %v316 = vpack.c.bf16 %v280, %v277
        %v317 = vpack.c.bf16 %v281, %v278
        %v318 = vpack.c.bf16 %v282, %v279
        %v319 = vpack.c.bf16 %v286, %v283
        %v320 = vpack.c.bf16 %v287, %v284
        %v321 = vpack.c.bf16 %v288, %v285
        %v322 = vpack.c.bf16 %v292, %v289
        %v323 = vpack.c.bf16 %v293, %v290
        %v324 = vpack.c.bf16 %v294, %v291
        %v325 = vpack.c.bf16 %v298, %v295
        %v326 = vpack.c.bf16 %v299, %v296
        %v327 = vpack.c.bf16 %v300, %v297
        %v328 = vpack.c.bf16 %v304, %v301
        %v329 = vpack.c.bf16 %v305, %v302
        %v330 = vpack.c.bf16 %v306, %v303
        %v331 = vld [vmem:[#allocation5] sm:$0xff]
        %v332 = vld [vmem:[#allocation5 + $0x8] sm:$0xff]
        %v333 = vld [vmem:[#allocation5 + $0x10] sm:$0xff]
        %v334 = vld [vmem:[#allocation5 + $0x18] sm:$0xff]
        %v335 = vld [vmem:[#allocation5 + $0x20] sm:$0xf]
        %v336 = vld [vmem:[#allocation5 + $0x24] sm:$0xff]
        %v337 = vld [vmem:[#allocation5 + $0x2c] sm:$0xff]
        %v338 = vld [vmem:[#allocation5 + $0x34] sm:$0xff]
        %v339 = vld [vmem:[#allocation5 + $0x3c] sm:$0xff]
        %v340 = vld [vmem:[#allocation5 + $0x44] sm:$0xf]
        %v341 = vld [vmem:[#allocation5 + $0x48] sm:$0xff]
        %v342 = vld [vmem:[#allocation5 + $0x50] sm:$0xff]
        %v343 = vld [vmem:[#allocation5 + $0x58] sm:$0xff]
        %v344 = vld [vmem:[#allocation5 + $0x60] sm:$0xff]
        %v345 = vld [vmem:[#allocation5 + $0x68] sm:$0xf]
        %v346 = vld [vmem:[#allocation5 + $0x6c] sm:$0xff]
        %v347 = vld [vmem:[#allocation5 + $0x74] sm:$0xff]
        %v348 = vld [vmem:[#allocation5 + $0x7c] sm:$0xff]
        %v349 = vld [vmem:[#allocation5 + $0x84] sm:$0xff]
        %v350 = vld [vmem:[#allocation5 + $0x8c] sm:$0xf]
        %v351 = vld [vmem:[#allocation5 + $0x90] sm:$0xff]
        %v352 = vld [vmem:[#allocation5 + $0x98] sm:$0xff]
        %v353 = vld [vmem:[#allocation5 + $0xa0] sm:$0xff]
        %v354 = vld [vmem:[#allocation5 + $0xa8] sm:$0xff]
        %v355 = vld [vmem:[#allocation5 + $0xb0] sm:$0xf]
        %v356 = vld [vmem:[#allocation5 + $0xb4] sm:$0xff]
        %v357 = vld [vmem:[#allocation5 + $0xbc] sm:$0xff]
        %v358 = vld [vmem:[#allocation5 + $0xc4] sm:$0xff]
        %v359 = vld [vmem:[#allocation5 + $0xcc] sm:$0xff]
        %v360 = vld [vmem:[#allocation5 + $0xd4] sm:$0xf]
        %v361 = vld [vmem:[#allocation5 + $0xd8] sm:$0xff]
        %v362 = vld [vmem:[#allocation5 + $0xe0] sm:$0xff]
        %v363 = vld [vmem:[#allocation5 + $0xe8] sm:$0xff]
        %v364 = vld [vmem:[#allocation5 + $0xf0] sm:$0xff]
        %v365 = vld [vmem:[#allocation5 + $0xf8] sm:$0xf]
        %v366 = vld [vmem:[#allocation5 + $0xfc] sm:$0xff]
        %v367 = vld [vmem:[#allocation5 + $0x104] sm:$0xff]
        %v368 = vld [vmem:[#allocation5 + $0x10c] sm:$0xff]
        %v369 = vld [vmem:[#allocation5 + $0x114] sm:$0xff]
        %v370 = vld [vmem:[#allocation5 + $0x11c] sm:$0xf]
        %v371 = vld [vmem:[#allocation5 + $0x120] sm:$0xff]
        %v372 = vld [vmem:[#allocation5 + $0x128] sm:$0xff]
        %v373 = vld [vmem:[#allocation5 + $0x130] sm:$0xff]
        %v374 = vld [vmem:[#allocation5 + $0x138] sm:$0xff]
        %v375 = vld [vmem:[#allocation5 + $0x140] sm:$0xf]
        %v376 = vld [vmem:[#allocation5 + $0x144] sm:$0xff]
        %v377 = vld [vmem:[#allocation5 + $0x14c] sm:$0xff]
        %v378 = vld [vmem:[#allocation5 + $0x154] sm:$0xff]
        %v379 = vld [vmem:[#allocation5 + $0x15c] sm:$0xff]
        %v380 = vld [vmem:[#allocation5 + $0x164] sm:$0xf]
        %v381 = vld [vmem:[#allocation5 + $0x168] sm:$0xff]
        %v382 = vld [vmem:[#allocation5 + $0x170] sm:$0xff]
        %v383 = vld [vmem:[#allocation5 + $0x178] sm:$0xff]
        %v384 = vld [vmem:[#allocation5 + $0x180] sm:$0xff]
        %v385 = vld [vmem:[#allocation5 + $0x188] sm:$0xf]
        %v386 = vld [vmem:[#allocation5 + $0x18c] sm:$0xff]
        %v387 = vld [vmem:[#allocation5 + $0x194] sm:$0xff]
        %v388 = vld [vmem:[#allocation5 + $0x19c] sm:$0xff]
        %v389 = vld [vmem:[#allocation5 + $0x1a4] sm:$0xff]
        %v390 = vld [vmem:[#allocation5 + $0x1ac] sm:$0xf]
        %v391 = vld [vmem:[#allocation5 + $0x1b0] sm:$0xff]
        %v392 = vld [vmem:[#allocation5 + $0x1b8] sm:$0xff]
        %v393 = vld [vmem:[#allocation5 + $0x1c0] sm:$0xff]
        %v394 = vld [vmem:[#allocation5 + $0x1c8] sm:$0xff]
        %v395 = vld [vmem:[#allocation5 + $0x1d0] sm:$0xf]
        %v396 = vld [vmem:[#allocation5 + $0x1d4] sm:$0xff]
        %v397 = vld [vmem:[#allocation5 + $0x1dc] sm:$0xff]
        %v398 = vld [vmem:[#allocation5 + $0x1e4] sm:$0xff]
        %v399 = vld [vmem:[#allocation5 + $0x1ec] sm:$0xff]
        %v400 = vld [vmem:[#allocation5 + $0x1f4] sm:$0xf]
        %v401 = vld [vmem:[#allocation5 + $0x1f8] sm:$0xff]
        %v402 = vld [vmem:[#allocation5 + $0x200] sm:$0xff]
        %v403 = vld [vmem:[#allocation5 + $0x208] sm:$0xff]
        %v404 = vld [vmem:[#allocation5 + $0x210] sm:$0xff]
        %v405 = vld [vmem:[#allocation5 + $0x218] sm:$0xf]
        %v406 = vld [vmem:[#allocation5 + $0x21c] sm:$0xff]
        %v407 = vld [vmem:[#allocation5 + $0x224] sm:$0xff]
        %v408 = vld [vmem:[#allocation5 + $0x22c] sm:$0xff]
        %v409 = vld [vmem:[#allocation5 + $0x234] sm:$0xff]
        %v410 = vld [vmem:[#allocation5 + $0x23c] sm:$0xf]
        %v411 = vld [vmem:[#allocation5 + $0x240] sm:$0xff]
        %v412 = vld [vmem:[#allocation5 + $0x248] sm:$0xff]
        %v413 = vld [vmem:[#allocation5 + $0x250] sm:$0xff]
        %v414 = vld [vmem:[#allocation5 + $0x258] sm:$0xff]
        %v415 = vld [vmem:[#allocation5 + $0x260] sm:$0xf]
        %v416 = vld [vmem:[#allocation5 + $0x264] sm:$0xff]
        %v417 = vld [vmem:[#allocation5 + $0x26c] sm:$0xff]
        %v418 = vld [vmem:[#allocation5 + $0x274] sm:$0xff]
        %v419 = vld [vmem:[#allocation5 + $0x27c] sm:$0xff]
        %v420 = vld [vmem:[#allocation5 + $0x284] sm:$0xf]
        %v421 = vld [vmem:[#allocation5 + $0x288] sm:$0xff]
        %v422 = vld [vmem:[#allocation5 + $0x290] sm:$0xff]
        %v423 = vld [vmem:[#allocation5 + $0x298] sm:$0xff]
        %v424 = vld [vmem:[#allocation5 + $0x2a0] sm:$0xff]
        %v425 = vld [vmem:[#allocation5 + $0x2a8] sm:$0xf]
        %v426 = vld [vmem:[#allocation5 + $0x2ac] sm:$0xff]
        %v427 = vld [vmem:[#allocation5 + $0x2b4] sm:$0xff]
        %v428 = vld [vmem:[#allocation5 + $0x2bc] sm:$0xff]
        %v429 = vld [vmem:[#allocation5 + $0x2c4] sm:$0xff]
        %v430 = vld [vmem:[#allocation5 + $0x2cc] sm:$0xf]
        %v431 = vld [vmem:[#allocation5 + $0x2d0] sm:$0xff]
        %v432 = vld [vmem:[#allocation5 + $0x2d8] sm:$0xff]
        %v433 = vld [vmem:[#allocation5 + $0x2e0] sm:$0xff]
        %v434 = vld [vmem:[#allocation5 + $0x2e8] sm:$0xff]
        %v435 = vld [vmem:[#allocation5 + $0x2f0] sm:$0xf]
        %v436 = vld [vmem:[#allocation5 + $0x2f4] sm:$0xff]
        %v437 = vld [vmem:[#allocation5 + $0x2fc] sm:$0xff]
        %v438 = vld [vmem:[#allocation5 + $0x304] sm:$0xff]
        %v439 = vld [vmem:[#allocation5 + $0x30c] sm:$0xff]
        %v440 = vld [vmem:[#allocation5 + $0x314] sm:$0xf]
        %v441 = vld [vmem:[#allocation5 + $0x318] sm:$0xff]
        %v442 = vld [vmem:[#allocation5 + $0x320] sm:$0xff]
        %v443 = vld [vmem:[#allocation5 + $0x328] sm:$0xff]
        %v444 = vld [vmem:[#allocation5 + $0x330] sm:$0xff]
        %v445 = vld [vmem:[#allocation5 + $0x338] sm:$0xf]
        %v446 = vld [vmem:[#allocation5 + $0x33c] sm:$0xff]
        %v447 = vld [vmem:[#allocation5 + $0x344] sm:$0xff]
        %v448 = vld [vmem:[#allocation5 + $0x34c] sm:$0xff]
        %v449 = vld [vmem:[#allocation5 + $0x354] sm:$0xff]
        %v450 = vld [vmem:[#allocation5 + $0x35c] sm:$0xf]
        %v451 = vld [vmem:[#allocation5 + $0x360] sm:$0xff]
        %v452 = vld [vmem:[#allocation5 + $0x368] sm:$0xff]
        %v453 = vld [vmem:[#allocation5 + $0x370] sm:$0xff]
        %v454 = vld [vmem:[#allocation5 + $0x378] sm:$0xff]
        %v455 = vld [vmem:[#allocation5 + $0x380] sm:$0xf]
        %v456 = vld [vmem:[#allocation5 + $0x384] sm:$0xff]
        %v457 = vld [vmem:[#allocation5 + $0x38c] sm:$0xff]
        %v458 = vld [vmem:[#allocation5 + $0x394] sm:$0xff]
        %v459 = vld [vmem:[#allocation5 + $0x39c] sm:$0xff]
        %v460 = vld [vmem:[#allocation5 + $0x3a4] sm:$0xf]
        %v461 = vld [vmem:[#allocation5 + $0x3a8] sm:$0xff]
        %v462 = vld [vmem:[#allocation5 + $0x3b0] sm:$0xff]
        %v463 = vld [vmem:[#allocation5 + $0x3b8] sm:$0xff]
        %v464 = vld [vmem:[#allocation5 + $0x3c0] sm:$0xff]
        %v465 = vld [vmem:[#allocation5 + $0x3c8] sm:$0xf]
        %v466 = vld [vmem:[#allocation5 + $0x3cc] sm:$0xff]
        %v467 = vld [vmem:[#allocation5 + $0x3d4] sm:$0xff]
        %v468 = vld [vmem:[#allocation5 + $0x3dc] sm:$0xff]
        %v469 = vld [vmem:[#allocation5 + $0x3e4] sm:$0xff]
        %v470 = vld [vmem:[#allocation5 + $0x3ec] sm:$0xf]
        %v471 = vld [vmem:[#allocation5 + $0x3f0] sm:$0xff]
        %v472 = vld [vmem:[#allocation5 + $0x3f8] sm:$0xff]
        %v473 = vld [vmem:[#allocation5 + $0x400] sm:$0xff]
        %v474 = vld [vmem:[#allocation5 + $0x408] sm:$0xff]
        %v475 = vld [vmem:[#allocation5 + $0x410] sm:$0xf]
        %v476 = vld [vmem:[#allocation5 + $0x414] sm:$0xff]
        %v477 = vld [vmem:[#allocation5 + $0x41c] sm:$0xff]
        %v478 = vld [vmem:[#allocation5 + $0x424] sm:$0xff]
        %v479 = vld [vmem:[#allocation5 + $0x42c] sm:$0xff]
        %v480 = vld [vmem:[#allocation5 + $0x434] sm:$0xf]
        %v481 = vld [vmem:[#allocation5 + $0x438] sm:$0xff]
        %v482 = vld [vmem:[#allocation5 + $0x440] sm:$0xff]
        %v483 = vld [vmem:[#allocation5 + $0x448] sm:$0xff]
        %v484 = vld [vmem:[#allocation5 + $0x450] sm:$0xff]
        %v485 = vld [vmem:[#allocation5 + $0x458] sm:$0xf]
        %v486 = vld [vmem:[#allocation5 + $0x45c] sm:$0xff]
        %v487 = vld [vmem:[#allocation5 + $0x464] sm:$0xff]
        %v488 = vld [vmem:[#allocation5 + $0x46c] sm:$0xff]
        %v489 = vld [vmem:[#allocation5 + $0x474] sm:$0xff]
        %v490 = vld [vmem:[#allocation5 + $0x47c] sm:$0xf]
        %v491 = vld [vmem:[#allocation5 + $0x480] sm:$0xff]
        %v492 = vld [vmem:[#allocation5 + $0x488] sm:$0xff]
        %v493 = vld [vmem:[#allocation5 + $0x490] sm:$0xff]
        %v494 = vld [vmem:[#allocation5 + $0x498] sm:$0xff]
        %v495 = vld [vmem:[#allocation5 + $0x4a0] sm:$0xf]
        %v496 = vld [vmem:[#allocation5 + $0x4a4] sm:$0xff]
        %v497 = vld [vmem:[#allocation5 + $0x4ac] sm:$0xff]
        %v498 = vld [vmem:[#allocation5 + $0x4b4] sm:$0xff]
        %v499 = vld [vmem:[#allocation5 + $0x4bc] sm:$0xff]
        %v500 = vld [vmem:[#allocation5 + $0x4c4] sm:$0xf]
        %v501 = vld [vmem:[#allocation5 + $0x4c8] sm:$0xff]
        %v502 = vld [vmem:[#allocation5 + $0x4d0] sm:$0xff]
        %v503 = vld [vmem:[#allocation5 + $0x4d8] sm:$0xff]
        %v504 = vld [vmem:[#allocation5 + $0x4e0] sm:$0xff]
        %v505 = vld [vmem:[#allocation5 + $0x4e8] sm:$0xf]
        %v506 = vld [vmem:[#allocation5 + $0x4ec] sm:$0xff]
        %v507 = vld [vmem:[#allocation5 + $0x4f4] sm:$0xff]
        %v508 = vld [vmem:[#allocation5 + $0x4fc] sm:$0xff]
        %v509 = vld [vmem:[#allocation5 + $0x504] sm:$0xff]
        %v510 = vld [vmem:[#allocation5 + $0x50c] sm:$0xf]
        %v511 = vld [vmem:[#allocation5 + $0x510] sm:$0xff]
        %v512 = vld [vmem:[#allocation5 + $0x518] sm:$0xff]
        %v513 = vld [vmem:[#allocation5 + $0x520] sm:$0xff]
        %v514 = vld [vmem:[#allocation5 + $0x528] sm:$0xff]
        %v515 = vld [vmem:[#allocation5 + $0x530] sm:$0xf]
        %v516 = vld [vmem:[#allocation5 + $0x534] sm:$0xff]
        %v517 = vld [vmem:[#allocation5 + $0x53c] sm:$0xff]
        %v518 = vld [vmem:[#allocation5 + $0x544] sm:$0xff]
        %v519 = vld [vmem:[#allocation5 + $0x54c] sm:$0xff]
        %v520 = vld [vmem:[#allocation5 + $0x554] sm:$0xf]
        %v521 = vld [vmem:[#allocation5 + $0x558] sm:$0xff]
        %v522 = vld [vmem:[#allocation5 + $0x560] sm:$0xff]
        %v523 = vld [vmem:[#allocation5 + $0x568] sm:$0xff]
        %v524 = vld [vmem:[#allocation5 + $0x570] sm:$0xff]
        %v525 = vld [vmem:[#allocation5 + $0x578] sm:$0xf]
        %v526 = vld [vmem:[#allocation5 + $0x57c] sm:$0xff]
        %v527 = vld [vmem:[#allocation5 + $0x584] sm:$0xff]
        %v528 = vld [vmem:[#allocation5 + $0x58c] sm:$0xff]
        %v529 = vld [vmem:[#allocation5 + $0x594] sm:$0xff]
        %v530 = vld [vmem:[#allocation5 + $0x59c] sm:$0xf]
        %v531 = vld [vmem:[#allocation5 + $0x5a0] sm:$0xff]
        %v532 = vld [vmem:[#allocation5 + $0x5a8] sm:$0xff]
        %v533 = vld [vmem:[#allocation5 + $0x5b0] sm:$0xff]
        %v534 = vld [vmem:[#allocation5 + $0x5b8] sm:$0xff]
        %v535 = vld [vmem:[#allocation5 + $0x5c0] sm:$0xf]
        %v536 = vld [vmem:[#allocation5 + $0x5c4] sm:$0xff]
        %v537 = vld [vmem:[#allocation5 + $0x5cc] sm:$0xff]
        %v538 = vld [vmem:[#allocation5 + $0x5d4] sm:$0xff]
        %v539 = vld [vmem:[#allocation5 + $0x5dc] sm:$0xff]
        %v540 = vld [vmem:[#allocation5 + $0x5e4] sm:$0xf]
        %v541 = vld [vmem:[#allocation5 + $0x5e8] sm:$0xff]
        %v542 = vld [vmem:[#allocation5 + $0x5f0] sm:$0xff]
        %v543 = vld [vmem:[#allocation5 + $0x5f8] sm:$0xff]
        %v544 = vld [vmem:[#allocation5 + $0x600] sm:$0xff]
        %v545 = vld [vmem:[#allocation5 + $0x608] sm:$0xf]
        %v546 = vld [vmem:[#allocation5 + $0x60c] sm:$0xff]
        %v547 = vld [vmem:[#allocation5 + $0x614] sm:$0xff]
        %v548 = vld [vmem:[#allocation5 + $0x61c] sm:$0xff]
        %v549 = vld [vmem:[#allocation5 + $0x624] sm:$0xff]
        %v550 = vld [vmem:[#allocation5 + $0x62c] sm:$0xf]
        %v551 = vld [vmem:[#allocation5 + $0x630] sm:$0xff]
        %v552 = vld [vmem:[#allocation5 + $0x638] sm:$0xff]
        %v553 = vld [vmem:[#allocation5 + $0x640] sm:$0xff]
        %v554 = vld [vmem:[#allocation5 + $0x648] sm:$0xff]
        %v555 = vld [vmem:[#allocation5 + $0x650] sm:$0xf]
        %v556 = vld [vmem:[#allocation5 + $0x654] sm:$0xff]
        %v557 = vld [vmem:[#allocation5 + $0x65c] sm:$0xff]
        %v558 = vld [vmem:[#allocation5 + $0x664] sm:$0xff]
        %v559 = vld [vmem:[#allocation5 + $0x66c] sm:$0xff]
        %v560 = vld [vmem:[#allocation5 + $0x674] sm:$0xf]
        %v561 = vld [vmem:[#allocation5 + $0x678] sm:$0xff]
        %v562 = vld [vmem:[#allocation5 + $0x680] sm:$0xff]
        %v563 = vld [vmem:[#allocation5 + $0x688] sm:$0xff]
        %v564 = vld [vmem:[#allocation5 + $0x690] sm:$0xff]
        %v565 = vld [vmem:[#allocation5 + $0x698] sm:$0xf]
        %v566 = vld [vmem:[#allocation5 + $0x69c] sm:$0xff]
        %v567 = vld [vmem:[#allocation5 + $0x6a4] sm:$0xff]
        %v568 = vld [vmem:[#allocation5 + $0x6ac] sm:$0xff]
        %v569 = vld [vmem:[#allocation5 + $0x6b4] sm:$0xff]
        %v570 = vld [vmem:[#allocation5 + $0x6bc] sm:$0xf]
        %v811 = vunpack.c.l.b16 %v331
        %v812 = vunpack.c.h.b16 %v331
        %v813 = vunpack.c.l.b16 %v332
        %v814 = vunpack.c.h.b16 %v332
        %v815 = vunpack.c.l.b16 %v333
        %v816 = vunpack.c.h.b16 %v333
        %v817 = vunpack.c.l.b16 %v334
        %v818 = vunpack.c.h.b16 %v334
        %v819 = vunpack.c.l.b16 %v335
        %v820 = vunpack.c.l.b16 %v336
        %v821 = vunpack.c.h.b16 %v336
        %v822 = vunpack.c.l.b16 %v337
        %v823 = vunpack.c.h.b16 %v337
        %v824 = vunpack.c.l.b16 %v338
        %v825 = vunpack.c.h.b16 %v338
        %v826 = vunpack.c.l.b16 %v339
        %v827 = vunpack.c.h.b16 %v339
        %v828 = vunpack.c.l.b16 %v340
        %v829 = vunpack.c.l.b16 %v341
        %v830 = vunpack.c.h.b16 %v341
        %v831 = vunpack.c.l.b16 %v342
        %v832 = vunpack.c.h.b16 %v342
        %v833 = vunpack.c.l.b16 %v343
        %v834 = vunpack.c.h.b16 %v343
        %v835 = vunpack.c.l.b16 %v344
        %v836 = vunpack.c.h.b16 %v344
        %v837 = vunpack.c.l.b16 %v345
        %v838 = vunpack.c.l.b16 %v346
        %v839 = vunpack.c.h.b16 %v346
        %v840 = vunpack.c.l.b16 %v347
        %v841 = vunpack.c.h.b16 %v347
        %v842 = vunpack.c.l.b16 %v348
        %v843 = vunpack.c.h.b16 %v348
        %v844 = vunpack.c.l.b16 %v349
        %v845 = vunpack.c.h.b16 %v349
        %v846 = vunpack.c.l.b16 %v350
        %v847 = vunpack.c.l.b16 %v351
        %v848 = vunpack.c.h.b16 %v351
        %v849 = vunpack.c.l.b16 %v352
        %v850 = vunpack.c.h.b16 %v352
        %v851 = vunpack.c.l.b16 %v353
        %v852 = vunpack.c.h.b16 %v353
        %v853 = vunpack.c.l.b16 %v354
        %v854 = vunpack.c.h.b16 %v354
        %v855 = vunpack.c.l.b16 %v355
        %v856 = vunpack.c.l.b16 %v356
        %v857 = vunpack.c.h.b16 %v356
        %v858 = vunpack.c.l.b16 %v357
        %v859 = vunpack.c.h.b16 %v357
        %v860 = vunpack.c.l.b16 %v358
        %v861 = vunpack.c.h.b16 %v358
        %v862 = vunpack.c.l.b16 %v359
        %v863 = vunpack.c.h.b16 %v359
        %v864 = vunpack.c.l.b16 %v360
        %v865 = vunpack.c.l.b16 %v361
        %v866 = vunpack.c.h.b16 %v361
        %v867 = vunpack.c.l.b16 %v362
        %v868 = vunpack.c.h.b16 %v362
        %v869 = vunpack.c.l.b16 %v363
        %v870 = vunpack.c.h.b16 %v363
        %v871 = vunpack.c.l.b16 %v364
        %v872 = vunpack.c.h.b16 %v364
        %v873 = vunpack.c.l.b16 %v365
        %v874 = vunpack.c.l.b16 %v366
        %v875 = vunpack.c.h.b16 %v366
        %v876 = vunpack.c.l.b16 %v367
        %v877 = vunpack.c.h.b16 %v367
        %v878 = vunpack.c.l.b16 %v368
        %v879 = vunpack.c.h.b16 %v368
        %v880 = vunpack.c.l.b16 %v369
        %v881 = vunpack.c.h.b16 %v369
        %v882 = vunpack.c.l.b16 %v370
        %v883 = vunpack.c.l.b16 %v371
        %v884 = vunpack.c.h.b16 %v371
        %v885 = vunpack.c.l.b16 %v372
        %v886 = vunpack.c.h.b16 %v372
        %v887 = vunpack.c.l.b16 %v373
        %v888 = vunpack.c.h.b16 %v373
        %v889 = vunpack.c.l.b16 %v374
        %v890 = vunpack.c.h.b16 %v374
        %v891 = vunpack.c.l.b16 %v375
        %v892 = vunpack.c.l.b16 %v376
        %v893 = vunpack.c.h.b16 %v376
        %v894 = vunpack.c.l.b16 %v377
        %v895 = vunpack.c.h.b16 %v377
        %v896 = vunpack.c.l.b16 %v378
        %v897 = vunpack.c.h.b16 %v378
        %v898 = vunpack.c.l.b16 %v379
        %v899 = vunpack.c.h.b16 %v379
        %v900 = vunpack.c.l.b16 %v380
        %v901 = vunpack.c.l.b16 %v381
        %v902 = vunpack.c.h.b16 %v381
        %v903 = vunpack.c.l.b16 %v382
        %v904 = vunpack.c.h.b16 %v382
        %v905 = vunpack.c.l.b16 %v383
        %v906 = vunpack.c.h.b16 %v383
        %v907 = vunpack.c.l.b16 %v384
        %v908 = vunpack.c.h.b16 %v384
        %v909 = vunpack.c.l.b16 %v385
        %v910 = vunpack.c.l.b16 %v386
        %v911 = vunpack.c.h.b16 %v386
        %v912 = vunpack.c.l.b16 %v387
        %v913 = vunpack.c.h.b16 %v387
        %v914 = vunpack.c.l.b16 %v388
        %v915 = vunpack.c.h.b16 %v388
        %v916 = vunpack.c.l.b16 %v389
        %v917 = vunpack.c.h.b16 %v389
        %v918 = vunpack.c.l.b16 %v390
        %v919 = vunpack.c.l.b16 %v391
        %v920 = vunpack.c.h.b16 %v391
        %v921 = vunpack.c.l.b16 %v392
        %v922 = vunpack.c.h.b16 %v392
        %v923 = vunpack.c.l.b16 %v393
        %v924 = vunpack.c.h.b16 %v393
        %v925 = vunpack.c.l.b16 %v394
        %v926 = vunpack.c.h.b16 %v394
        %v927 = vunpack.c.l.b16 %v395
        %v928 = vunpack.c.l.b16 %v396
        %v929 = vunpack.c.h.b16 %v396
        %v930 = vunpack.c.l.b16 %v397
        %v931 = vunpack.c.h.b16 %v397
        %v932 = vunpack.c.l.b16 %v398
        %v933 = vunpack.c.h.b16 %v398
        %v934 = vunpack.c.l.b16 %v399
        %v935 = vunpack.c.h.b16 %v399
        %v936 = vunpack.c.l.b16 %v400
        %v937 = vunpack.c.l.b16 %v401
        %v938 = vunpack.c.h.b16 %v401
        %v939 = vunpack.c.l.b16 %v402
        %v940 = vunpack.c.h.b16 %v402
        %v941 = vunpack.c.l.b16 %v403
        %v942 = vunpack.c.h.b16 %v403
        %v943 = vunpack.c.l.b16 %v404
        %v944 = vunpack.c.h.b16 %v404
        %v945 = vunpack.c.l.b16 %v405
        %v946 = vunpack.c.l.b16 %v406
        %v947 = vunpack.c.h.b16 %v406
        %v948 = vunpack.c.l.b16 %v407
        %v949 = vunpack.c.h.b16 %v407
        %v950 = vunpack.c.l.b16 %v408
        %v951 = vunpack.c.h.b16 %v408
        %v952 = vunpack.c.l.b16 %v409
        %v953 = vunpack.c.h.b16 %v409
        %v954 = vunpack.c.l.b16 %v410
        %v955 = vunpack.c.l.b16 %v411
        %v956 = vunpack.c.h.b16 %v411
        %v957 = vunpack.c.l.b16 %v412
        %v958 = vunpack.c.h.b16 %v412
        %v959 = vunpack.c.l.b16 %v413
        %v960 = vunpack.c.h.b16 %v413
        %v961 = vunpack.c.l.b16 %v414
        %v962 = vunpack.c.h.b16 %v414
        %v963 = vunpack.c.l.b16 %v415
        %v964 = vunpack.c.l.b16 %v416
        %v965 = vunpack.c.h.b16 %v416
        %v966 = vunpack.c.l.b16 %v417
        %v967 = vunpack.c.h.b16 %v417
        %v968 = vunpack.c.l.b16 %v418
        %v969 = vunpack.c.h.b16 %v418
        %v970 = vunpack.c.l.b16 %v419
        %v971 = vunpack.c.h.b16 %v419
        %v972 = vunpack.c.l.b16 %v420
        %v973 = vunpack.c.l.b16 %v421
        %v974 = vunpack.c.h.b16 %v421
        %v975 = vunpack.c.l.b16 %v422
        %v976 = vunpack.c.h.b16 %v422
        %v977 = vunpack.c.l.b16 %v423
        %v978 = vunpack.c.h.b16 %v423
        %v979 = vunpack.c.l.b16 %v424
        %v980 = vunpack.c.h.b16 %v424
        %v981 = vunpack.c.l.b16 %v425
        %v982 = vunpack.c.l.b16 %v426
        %v983 = vunpack.c.h.b16 %v426
        %v984 = vunpack.c.l.b16 %v427
        %v985 = vunpack.c.h.b16 %v427
        %v986 = vunpack.c.l.b16 %v428
        %v987 = vunpack.c.h.b16 %v428
        %v988 = vunpack.c.l.b16 %v429
        %v989 = vunpack.c.h.b16 %v429
        %v990 = vunpack.c.l.b16 %v430
        %v991 = vunpack.c.l.b16 %v431
        %v992 = vunpack.c.h.b16 %v431
        %v993 = vunpack.c.l.b16 %v432
        %v994 = vunpack.c.h.b16 %v432
        %v995 = vunpack.c.l.b16 %v433
        %v996 = vunpack.c.h.b16 %v433
        %v997 = vunpack.c.l.b16 %v434
        %v998 = vunpack.c.h.b16 %v434
        %v999 = vunpack.c.l.b16 %v435
        %v1000 = vunpack.c.l.b16 %v436
        %v1001 = vunpack.c.h.b16 %v436
        %v1002 = vunpack.c.l.b16 %v437
        %v1003 = vunpack.c.h.b16 %v437
        %v1004 = vunpack.c.l.b16 %v438
        %v1005 = vunpack.c.h.b16 %v438
        %v1006 = vunpack.c.l.b16 %v439
        %v1007 = vunpack.c.h.b16 %v439
        %v1008 = vunpack.c.l.b16 %v440
        %v1009 = vunpack.c.l.b16 %v441
        %v1010 = vunpack.c.h.b16 %v441
        %v1011 = vunpack.c.l.b16 %v442
        %v1012 = vunpack.c.h.b16 %v442
        %v1013 = vunpack.c.l.b16 %v443
        %v1014 = vunpack.c.h.b16 %v443
        %v1015 = vunpack.c.l.b16 %v444
        %v1016 = vunpack.c.h.b16 %v444
        %v1017 = vunpack.c.l.b16 %v445
        %v1018 = vunpack.c.l.b16 %v446
        %v1019 = vunpack.c.h.b16 %v446
        %v1020 = vunpack.c.l.b16 %v447
        %v1021 = vunpack.c.h.b16 %v447
        %v1022 = vunpack.c.l.b16 %v448
        %v1023 = vunpack.c.h.b16 %v448
        %v1024 = vunpack.c.l.b16 %v449
        %v1025 = vunpack.c.h.b16 %v449
        %v1026 = vunpack.c.l.b16 %v450
        %v1027 = vunpack.c.l.b16 %v451
        %v1028 = vunpack.c.h.b16 %v451
        %v1029 = vunpack.c.l.b16 %v452
        %v1030 = vunpack.c.h.b16 %v452
        %v1031 = vunpack.c.l.b16 %v453
        %v1032 = vunpack.c.h.b16 %v453
        %v1033 = vunpack.c.l.b16 %v454
        %v1034 = vunpack.c.h.b16 %v454
        %v1035 = vunpack.c.l.b16 %v455
        %v1036 = vunpack.c.l.b16 %v456
        %v1037 = vunpack.c.h.b16 %v456
        %v1038 = vunpack.c.l.b16 %v457
        %v1039 = vunpack.c.h.b16 %v457
        %v1040 = vunpack.c.l.b16 %v458
        %v1041 = vunpack.c.h.b16 %v458
        %v1042 = vunpack.c.l.b16 %v459
        %v1043 = vunpack.c.h.b16 %v459
        %v1044 = vunpack.c.l.b16 %v460
        %v1045 = vunpack.c.l.b16 %v461
        %v1046 = vunpack.c.h.b16 %v461
        %v1047 = vunpack.c.l.b16 %v462
        %v1048 = vunpack.c.h.b16 %v462
        %v1049 = vunpack.c.l.b16 %v463
        %v1050 = vunpack.c.h.b16 %v463
        %v1051 = vunpack.c.l.b16 %v464
        %v1052 = vunpack.c.h.b16 %v464
        %v1053 = vunpack.c.l.b16 %v465
        %v1054 = vunpack.c.l.b16 %v466
        %v1055 = vunpack.c.h.b16 %v466
        %v1056 = vunpack.c.l.b16 %v467
        %v1057 = vunpack.c.h.b16 %v467
        %v1058 = vunpack.c.l.b16 %v468
        %v1059 = vunpack.c.h.b16 %v468
        %v1060 = vunpack.c.l.b16 %v469
        %v1061 = vunpack.c.h.b16 %v469
        %v1062 = vunpack.c.l.b16 %v470
        %v1063 = vunpack.c.l.b16 %v471
        %v1064 = vunpack.c.h.b16 %v471
        %v1065 = vunpack.c.l.b16 %v472
        %v1066 = vunpack.c.h.b16 %v472
        %v1067 = vunpack.c.l.b16 %v473
        %v1068 = vunpack.c.h.b16 %v473
        %v1069 = vunpack.c.l.b16 %v474
        %v1070 = vunpack.c.h.b16 %v474
        %v1071 = vunpack.c.l.b16 %v475
        %v1072 = vunpack.c.l.b16 %v476
        %v1073 = vunpack.c.h.b16 %v476
        %v1074 = vunpack.c.l.b16 %v477
        %v1075 = vunpack.c.h.b16 %v477
        %v1076 = vunpack.c.l.b16 %v478
        %v1077 = vunpack.c.h.b16 %v478
        %v1078 = vunpack.c.l.b16 %v479
        %v1079 = vunpack.c.h.b16 %v479
        %v1080 = vunpack.c.l.b16 %v480
        %v1081 = vunpack.c.l.b16 %v481
        %v1082 = vunpack.c.h.b16 %v481
        %v1083 = vunpack.c.l.b16 %v482
        %v1084 = vunpack.c.h.b16 %v482
        %v1085 = vunpack.c.l.b16 %v483
        %v1086 = vunpack.c.h.b16 %v483
        %v1087 = vunpack.c.l.b16 %v484
        %v1088 = vunpack.c.h.b16 %v484
        %v1089 = vunpack.c.l.b16 %v485
        %v1090 = vunpack.c.l.b16 %v486
        %v1091 = vunpack.c.h.b16 %v486
        %v1092 = vunpack.c.l.b16 %v487
        %v1093 = vunpack.c.h.b16 %v487
        %v1094 = vunpack.c.l.b16 %v488
        %v1095 = vunpack.c.h.b16 %v488
        %v1096 = vunpack.c.l.b16 %v489
        %v1097 = vunpack.c.h.b16 %v489
        %v1098 = vunpack.c.l.b16 %v490
        %v1099 = vunpack.c.l.b16 %v491
        %v1100 = vunpack.c.h.b16 %v491
        %v1101 = vunpack.c.l.b16 %v492
        %v1102 = vunpack.c.h.b16 %v492
        %v1103 = vunpack.c.l.b16 %v493
        %v1104 = vunpack.c.h.b16 %v493
        %v1105 = vunpack.c.l.b16 %v494
        %v1106 = vunpack.c.h.b16 %v494
        %v1107 = vunpack.c.l.b16 %v495
        %v1108 = vunpack.c.l.b16 %v496
        %v1109 = vunpack.c.h.b16 %v496
        %v1110 = vunpack.c.l.b16 %v497
        %v1111 = vunpack.c.h.b16 %v497
        %v1112 = vunpack.c.l.b16 %v498
        %v1113 = vunpack.c.h.b16 %v498
        %v1114 = vunpack.c.l.b16 %v499
        %v1115 = vunpack.c.h.b16 %v499
        %v1116 = vunpack.c.l.b16 %v500
        %v1117 = vunpack.c.l.b16 %v501
        %v1118 = vunpack.c.h.b16 %v501
        %v1119 = vunpack.c.l.b16 %v502
        %v1120 = vunpack.c.h.b16 %v502
        %v1121 = vunpack.c.l.b16 %v503
        %v1122 = vunpack.c.h.b16 %v503
        %v1123 = vunpack.c.l.b16 %v504
        %v1124 = vunpack.c.h.b16 %v504
        %v1125 = vunpack.c.l.b16 %v505
        %v1126 = vunpack.c.l.b16 %v506
        %v1127 = vunpack.c.h.b16 %v506
        %v1128 = vunpack.c.l.b16 %v507
        %v1129 = vunpack.c.h.b16 %v507
        %v1130 = vunpack.c.l.b16 %v508
        %v1131 = vunpack.c.h.b16 %v508
        %v1132 = vunpack.c.l.b16 %v509
        %v1133 = vunpack.c.h.b16 %v509
        %v1134 = vunpack.c.l.b16 %v510
        %v1135 = vunpack.c.l.b16 %v511
        %v1136 = vunpack.c.h.b16 %v511
        %v1137 = vunpack.c.l.b16 %v512
        %v1138 = vunpack.c.h.b16 %v512
        %v1139 = vunpack.c.l.b16 %v513
        %v1140 = vunpack.c.h.b16 %v513
        %v1141 = vunpack.c.l.b16 %v514
        %v1142 = vunpack.c.h.b16 %v514
        %v1143 = vunpack.c.l.b16 %v515
        %v1144 = vunpack.c.l.b16 %v516
        %v1145 = vunpack.c.h.b16 %v516
        %v1146 = vunpack.c.l.b16 %v517
        %v1147 = vunpack.c.h.b16 %v517
        %v1148 = vunpack.c.l.b16 %v518
        %v1149 = vunpack.c.h.b16 %v518
        %v1150 = vunpack.c.l.b16 %v519
        %v1151 = vunpack.c.h.b16 %v519
        %v1152 = vunpack.c.l.b16 %v520
        %v1153 = vunpack.c.l.b16 %v521
        %v1154 = vunpack.c.h.b16 %v521
        %v1155 = vunpack.c.l.b16 %v522
        %v1156 = vunpack.c.h.b16 %v522
        %v1157 = vunpack.c.l.b16 %v523
        %v1158 = vunpack.c.h.b16 %v523
        %v1159 = vunpack.c.l.b16 %v524
        %v1160 = vunpack.c.h.b16 %v524
        %v1161 = vunpack.c.l.b16 %v525
        %v1162 = vunpack.c.l.b16 %v526
        %v1163 = vunpack.c.h.b16 %v526
        %v1164 = vunpack.c.l.b16 %v527
        %v1165 = vunpack.c.h.b16 %v527
        %v1166 = vunpack.c.l.b16 %v528
        %v1167 = vunpack.c.h.b16 %v528
        %v1168 = vunpack.c.l.b16 %v529
        %v1169 = vunpack.c.h.b16 %v529
        %v1170 = vunpack.c.l.b16 %v530
        %v1171 = vunpack.c.l.b16 %v531
        %v1172 = vunpack.c.h.b16 %v531
        %v1173 = vunpack.c.l.b16 %v532
        %v1174 = vunpack.c.h.b16 %v532
        %v1175 = vunpack.c.l.b16 %v533
        %v1176 = vunpack.c.h.b16 %v533
        %v1177 = vunpack.c.l.b16 %v534
        %v1178 = vunpack.c.h.b16 %v534
        %v1179 = vunpack.c.l.b16 %v535
        %v1180 = vunpack.c.l.b16 %v536
        %v1181 = vunpack.c.h.b16 %v536
        %v1182 = vunpack.c.l.b16 %v537
        %v1183 = vunpack.c.h.b16 %v537
        %v1184 = vunpack.c.l.b16 %v538
        %v1185 = vunpack.c.h.b16 %v538
        %v1186 = vunpack.c.l.b16 %v539
        %v1187 = vunpack.c.h.b16 %v539
        %v1188 = vunpack.c.l.b16 %v540
        %v1189 = vunpack.c.l.b16 %v541
        %v1190 = vunpack.c.h.b16 %v541
        %v1191 = vunpack.c.l.b16 %v542
        %v1192 = vunpack.c.h.b16 %v542
        %v1193 = vunpack.c.l.b16 %v543
        %v1194 = vunpack.c.h.b16 %v543
        %v1195 = vunpack.c.l.b16 %v544
        %v1196 = vunpack.c.h.b16 %v544
        %v1197 = vunpack.c.l.b16 %v545
        %v1198 = vunpack.c.l.b16 %v546
        %v1199 = vunpack.c.h.b16 %v546
        %v1200 = vunpack.c.l.b16 %v547
        %v1201 = vunpack.c.h.b16 %v547
        %v1202 = vunpack.c.l.b16 %v548
        %v1203 = vunpack.c.h.b16 %v548
        %v1204 = vunpack.c.l.b16 %v549
        %v1205 = vunpack.c.h.b16 %v549
        %v1206 = vunpack.c.l.b16 %v550
        %v1207 = vunpack.c.l.b16 %v551
        %v1208 = vunpack.c.h.b16 %v551
        %v1209 = vunpack.c.l.b16 %v552
        %v1210 = vunpack.c.h.b16 %v552
        %v1211 = vunpack.c.l.b16 %v553
        %v1212 = vunpack.c.h.b16 %v553
        %v1213 = vunpack.c.l.b16 %v554
        %v1214 = vunpack.c.h.b16 %v554
        %v1215 = vunpack.c.l.b16 %v555
        %v1216 = vunpack.c.l.b16 %v556
        %v1217 = vunpack.c.h.b16 %v556
        %v1218 = vunpack.c.l.b16 %v557
        %v1219 = vunpack.c.h.b16 %v557
        %v1220 = vunpack.c.l.b16 %v558
        %v1221 = vunpack.c.h.b16 %v558
        %v1222 = vunpack.c.l.b16 %v559
        %v1223 = vunpack.c.h.b16 %v559
        %v1224 = vunpack.c.l.b16 %v560
        %v1225 = vunpack.c.l.b16 %v561
        %v1226 = vunpack.c.h.b16 %v561
        %v1227 = vunpack.c.l.b16 %v562
        %v1228 = vunpack.c.h.b16 %v562
        %v1229 = vunpack.c.l.b16 %v563
        %v1230 = vunpack.c.h.b16 %v563
        %v1231 = vunpack.c.l.b16 %v564
        %v1232 = vunpack.c.h.b16 %v564
        %v1233 = vunpack.c.l.b16 %v565
        %v1234 = vunpack.c.l.b16 %v566
        %v1235 = vunpack.c.h.b16 %v566
        %v1236 = vunpack.c.l.b16 %v567
        %v1237 = vunpack.c.h.b16 %v567
        %v1238 = vunpack.c.l.b16 %v568
        %v1239 = vunpack.c.h.b16 %v568
        %v1240 = vunpack.c.l.b16 %v569
        %v1241 = vunpack.c.h.b16 %v569
        %v1242 = vunpack.c.l.b16 %v570
        %v1243 = vpack.c.b16 %v820, %v811
        %v1244 = vpack.c.b16 %v821, %v812
        %v1245 = vpack.c.b16 %v822, %v813
        %v1246 = vpack.c.b16 %v823, %v814
        %v1247 = vpack.c.b16 %v824, %v815
        %v1248 = vpack.c.b16 %v825, %v816
        %v1249 = vpack.c.b16 %v826, %v817
        %v1250 = vpack.c.b16 %v827, %v818
        %v1251 = vpack.c.b16 %v828, %v819
        %v1252 = vpack.c.b16 %v838, %v829
        %v1253 = vpack.c.b16 %v839, %v830
        %v1254 = vpack.c.b16 %v840, %v831
        %v1255 = vpack.c.b16 %v841, %v832
        %v1256 = vpack.c.b16 %v842, %v833
        %v1257 = vpack.c.b16 %v843, %v834
        %v1258 = vpack.c.b16 %v844, %v835
        %v1259 = vpack.c.b16 %v845, %v836
        %v1260 = vpack.c.b16 %v846, %v837
        %v1261 = vpack.c.b16 %v856, %v847
        %v1262 = vpack.c.b16 %v857, %v848
        %v1263 = vpack.c.b16 %v858, %v849
        %v1264 = vpack.c.b16 %v859, %v850
        %v1265 = vpack.c.b16 %v860, %v851
        %v1266 = vpack.c.b16 %v861, %v852
        %v1267 = vpack.c.b16 %v862, %v853
        %v1268 = vpack.c.b16 %v863, %v854
        %v1269 = vpack.c.b16 %v864, %v855
        %v1270 = vpack.c.b16 %v874, %v865
        %v1271 = vpack.c.b16 %v875, %v866
        %v1272 = vpack.c.b16 %v876, %v867
        %v1273 = vpack.c.b16 %v877, %v868
        %v1274 = vpack.c.b16 %v878, %v869
        %v1275 = vpack.c.b16 %v879, %v870
        %v1276 = vpack.c.b16 %v880, %v871
        %v1277 = vpack.c.b16 %v881, %v872
        %v1278 = vpack.c.b16 %v882, %v873
        %v1279 = vpack.c.b16 %v892, %v883
        %v1280 = vpack.c.b16 %v893, %v884
        %v1281 = vpack.c.b16 %v894, %v885
        %v1282 = vpack.c.b16 %v895, %v886
        %v1283 = vpack.c.b16 %v896, %v887
        %v1284 = vpack.c.b16 %v897, %v888
        %v1285 = vpack.c.b16 %v898, %v889
        %v1286 = vpack.c.b16 %v899, %v890
        %v1287 = vpack.c.b16 %v900, %v891
        %v1288 = vpack.c.b16 %v910, %v901
        %v1289 = vpack.c.b16 %v911, %v902
        %v1290 = vpack.c.b16 %v912, %v903
        %v1291 = vpack.c.b16 %v913, %v904
        %v1292 = vpack.c.b16 %v914, %v905
        %v1293 = vpack.c.b16 %v915, %v906
        %v1294 = vpack.c.b16 %v916, %v907
        %v1295 = vpack.c.b16 %v917, %v908
        %v1296 = vpack.c.b16 %v918, %v909
        %v1297 = vpack.c.b16 %v928, %v919
        %v1298 = vpack.c.b16 %v929, %v920
        %v1299 = vpack.c.b16 %v930, %v921
        %v1300 = vpack.c.b16 %v931, %v922
        %v1301 = vpack.c.b16 %v932, %v923
        %v1302 = vpack.c.b16 %v933, %v924
        %v1303 = vpack.c.b16 %v934, %v925
        %v1304 = vpack.c.b16 %v935, %v926
        %v1305 = vpack.c.b16 %v936, %v927
        %v1306 = vpack.c.b16 %v946, %v937
        %v1307 = vpack.c.b16 %v947, %v938
        %v1308 = vpack.c.b16 %v948, %v939
        %v1309 = vpack.c.b16 %v949, %v940
        %v1310 = vpack.c.b16 %v950, %v941
        %v1311 = vpack.c.b16 %v951, %v942
        %v1312 = vpack.c.b16 %v952, %v943
        %v1313 = vpack.c.b16 %v953, %v944
        %v1314 = vpack.c.b16 %v954, %v945
        %v1315 = vpack.c.b16 %v964, %v955
        %v1316 = vpack.c.b16 %v965, %v956
        %v1317 = vpack.c.b16 %v966, %v957
        %v1318 = vpack.c.b16 %v967, %v958
        %v1319 = vpack.c.b16 %v968, %v959
        %v1320 = vpack.c.b16 %v969, %v960
        %v1321 = vpack.c.b16 %v970, %v961
        %v1322 = vpack.c.b16 %v971, %v962
        %v1323 = vpack.c.b16 %v972, %v963
        %v1324 = vpack.c.b16 %v982, %v973
        %v1325 = vpack.c.b16 %v983, %v974
        %v1326 = vpack.c.b16 %v984, %v975
        %v1327 = vpack.c.b16 %v985, %v976
        %v1328 = vpack.c.b16 %v986, %v977
        %v1329 = vpack.c.b16 %v987, %v978
        %v1330 = vpack.c.b16 %v988, %v979
        %v1331 = vpack.c.b16 %v989, %v980
        %v1332 = vpack.c.b16 %v990, %v981
        %v1333 = vpack.c.b16 %v1000, %v991
        %v1334 = vpack.c.b16 %v1001, %v992
        %v1335 = vpack.c.b16 %v1002, %v993
        %v1336 = vpack.c.b16 %v1003, %v994
        %v1337 = vpack.c.b16 %v1004, %v995
        %v1338 = vpack.c.b16 %v1005, %v996
        %v1339 = vpack.c.b16 %v1006, %v997
        %v1340 = vpack.c.b16 %v1007, %v998
        %v1341 = vpack.c.b16 %v1008, %v999
        %v1342 = vpack.c.b16 %v1018, %v1009
        %v1343 = vpack.c.b16 %v1019, %v1010
        %v1344 = vpack.c.b16 %v1020, %v1011
        %v1345 = vpack.c.b16 %v1021, %v1012
        %v1346 = vpack.c.b16 %v1022, %v1013
        %v1347 = vpack.c.b16 %v1023, %v1014
        %v1348 = vpack.c.b16 %v1024, %v1015
        %v1349 = vpack.c.b16 %v1025, %v1016
        %v1350 = vpack.c.b16 %v1026, %v1017
        %v1351 = vpack.c.b16 %v1036, %v1027
        %v1352 = vpack.c.b16 %v1037, %v1028
        %v1353 = vpack.c.b16 %v1038, %v1029
        %v1354 = vpack.c.b16 %v1039, %v1030
        %v1355 = vpack.c.b16 %v1040, %v1031
        %v1356 = vpack.c.b16 %v1041, %v1032
        %v1357 = vpack.c.b16 %v1042, %v1033
        %v1358 = vpack.c.b16 %v1043, %v1034
        %v1359 = vpack.c.b16 %v1044, %v1035
        %v1360 = vpack.c.b16 %v1054, %v1045
        %v1361 = vpack.c.b16 %v1055, %v1046
        %v1362 = vpack.c.b16 %v1056, %v1047
        %v1363 = vpack.c.b16 %v1057, %v1048
        %v1364 = vpack.c.b16 %v1058, %v1049
        %v1365 = vpack.c.b16 %v1059, %v1050
        %v1366 = vpack.c.b16 %v1060, %v1051
        %v1367 = vpack.c.b16 %v1061, %v1052
        %v1368 = vpack.c.b16 %v1062, %v1053
        %v1369 = vpack.c.b16 %v1072, %v1063
        %v1370 = vpack.c.b16 %v1073, %v1064
        %v1371 = vpack.c.b16 %v1074, %v1065
        %v1372 = vpack.c.b16 %v1075, %v1066
        %v1373 = vpack.c.b16 %v1076, %v1067
        %v1374 = vpack.c.b16 %v1077, %v1068
        %v1375 = vpack.c.b16 %v1078, %v1069
        %v1376 = vpack.c.b16 %v1079, %v1070
        %v1377 = vpack.c.b16 %v1080, %v1071
        %v1378 = vpack.c.b16 %v1090, %v1081
        %v1379 = vpack.c.b16 %v1091, %v1082
        %v1380 = vpack.c.b16 %v1092, %v1083
        %v1381 = vpack.c.b16 %v1093, %v1084
        %v1382 = vpack.c.b16 %v1094, %v1085
        %v1383 = vpack.c.b16 %v1095, %v1086
        %v1384 = vpack.c.b16 %v1096, %v1087
        %v1385 = vpack.c.b16 %v1097, %v1088
        %v1386 = vpack.c.b16 %v1098, %v1089
        %v1387 = vpack.c.b16 %v1108, %v1099
        %v1388 = vpack.c.b16 %v1109, %v1100
        %v1389 = vpack.c.b16 %v1110, %v1101
        %v1390 = vpack.c.b16 %v1111, %v1102
        %v1391 = vpack.c.b16 %v1112, %v1103
        %v1392 = vpack.c.b16 %v1113, %v1104
        %v1393 = vpack.c.b16 %v1114, %v1105
        %v1394 = vpack.c.b16 %v1115, %v1106
        %v1395 = vpack.c.b16 %v1116, %v1107
        %v1396 = vpack.c.b16 %v1126, %v1117
        %v1397 = vpack.c.b16 %v1127, %v1118
        %v1398 = vpack.c.b16 %v1128, %v1119
        %v1399 = vpack.c.b16 %v1129, %v1120
        %v1400 = vpack.c.b16 %v1130, %v1121
        %v1401 = vpack.c.b16 %v1131, %v1122
        %v1402 = vpack.c.b16 %v1132, %v1123
        %v1403 = vpack.c.b16 %v1133, %v1124
        %v1404 = vpack.c.b16 %v1134, %v1125
        %v1405 = vpack.c.b16 %v1144, %v1135
        %v1406 = vpack.c.b16 %v1145, %v1136
        %v1407 = vpack.c.b16 %v1146, %v1137
        %v1408 = vpack.c.b16 %v1147, %v1138
        %v1409 = vpack.c.b16 %v1148, %v1139
        %v1410 = vpack.c.b16 %v1149, %v1140
        %v1411 = vpack.c.b16 %v1150, %v1141
        %v1412 = vpack.c.b16 %v1151, %v1142
        %v1413 = vpack.c.b16 %v1152, %v1143
        %v1414 = vpack.c.b16 %v1162, %v1153
        %v1415 = vpack.c.b16 %v1163, %v1154
        %v1416 = vpack.c.b16 %v1164, %v1155
        %v1417 = vpack.c.b16 %v1165, %v1156
        %v1418 = vpack.c.b16 %v1166, %v1157
        %v1419 = vpack.c.b16 %v1167, %v1158
        %v1420 = vpack.c.b16 %v1168, %v1159
        %v1421 = vpack.c.b16 %v1169, %v1160
        %v1422 = vpack.c.b16 %v1170, %v1161
        %v1423 = vpack.c.b16 %v1180, %v1171
        %v1424 = vpack.c.b16 %v1181, %v1172
        %v1425 = vpack.c.b16 %v1182, %v1173
        %v1426 = vpack.c.b16 %v1183, %v1174
        %v1427 = vpack.c.b16 %v1184, %v1175
        %v1428 = vpack.c.b16 %v1185, %v1176
        %v1429 = vpack.c.b16 %v1186, %v1177
        %v1430 = vpack.c.b16 %v1187, %v1178
        %v1431 = vpack.c.b16 %v1188, %v1179
        %v1432 = vpack.c.b16 %v1198, %v1189
        %v1433 = vpack.c.b16 %v1199, %v1190
        %v1434 = vpack.c.b16 %v1200, %v1191
        %v1435 = vpack.c.b16 %v1201, %v1192
        %v1436 = vpack.c.b16 %v1202, %v1193
        %v1437 = vpack.c.b16 %v1203, %v1194
        %v1438 = vpack.c.b16 %v1204, %v1195
        %v1439 = vpack.c.b16 %v1205, %v1196
        %v1440 = vpack.c.b16 %v1206, %v1197
        %v1441 = vpack.c.b16 %v1216, %v1207
        %v1442 = vpack.c.b16 %v1217, %v1208
        %v1443 = vpack.c.b16 %v1218, %v1209
        %v1444 = vpack.c.b16 %v1219, %v1210
        %v1445 = vpack.c.b16 %v1220, %v1211
        %v1446 = vpack.c.b16 %v1221, %v1212
        %v1447 = vpack.c.b16 %v1222, %v1213
        %v1448 = vpack.c.b16 %v1223, %v1214
        %v1449 = vpack.c.b16 %v1224, %v1215
        %v1450 = vpack.c.b16 %v1234, %v1225
        %v1451 = vpack.c.b16 %v1235, %v1226
        %v1452 = vpack.c.b16 %v1236, %v1227
        %v1453 = vpack.c.b16 %v1237, %v1228
        %v1454 = vpack.c.b16 %v1238, %v1229
        %v1455 = vpack.c.b16 %v1239, %v1230
        %v1456 = vpack.c.b16 %v1240, %v1231
        %v1457 = vpack.c.b16 %v1241, %v1232
        %v1458 = vpack.c.b16 %v1242, %v1233
        %1675 = vmatprep.subr.bf16.mxu0 %v1307
        %1676 = vmatpush1.bf16.msra.mxu0 %v1306
        %1677 = vmatprep.subr.bf16.mxu0 %v1298
        %1678 = vmatpush1.bf16.msra.mxu0 %v1297
        %1679 = vmatprep.subr.bf16.mxu0 %v1289
        %1680 = vmatpush1.bf16.msra.mxu0 %v1288
        %1681 = vmatprep.subr.bf16.mxu0 %v1280
        %1682 = vmatpush1.bf16.msra.mxu0 %v1279
        %1683 = vmatprep.subr.bf16.mxu0 %v1271
        %1684 = vmatpush1.bf16.msra.mxu0 %v1270
        %1685 = vmatprep.subr.bf16.mxu0 %v1262
        %1686 = vmatpush1.bf16.msra.mxu0 %v1261
        %1687 = vmatprep.subr.bf16.mxu0 %v1253
        %1688 = vmatpush1.bf16.msra.mxu0 %v1252
        %1689 = vmatprep.subr.bf16.mxu0 %v1244
        %1690 = vmatpush1.bf16.msra.mxu0 %v1243
        %1691 = vmatprep.subr.bf16.mxu0 %v1379
        %1692 = vmatpush2.bf16.msra.mxu0 %v1378
        %1693 = vmatprep.subr.bf16.mxu0 %v1370
        %1694 = vmatpush2.bf16.msra.mxu0 %v1369
        %1695 = vmatprep.subr.bf16.mxu0 %v1361
        %1696 = vmatpush2.bf16.msra.mxu0 %v1360
        %1697 = vmatprep.subr.bf16.mxu0 %v1352
        %1698 = vmatpush2.bf16.msra.mxu0 %v1351
        %1699 = vmatprep.subr.bf16.mxu0 %v1343
        %1700 = vmatpush2.bf16.msra.mxu0 %v1342
        %1701 = vmatprep.subr.bf16.mxu0 %v1334
        %1702 = vmatpush2.bf16.msra.mxu0 %v1333
        %1703 = vmatprep.subr.bf16.mxu0 %v1325
        %1704 = vmatpush2.bf16.msra.mxu0 %v1324
        %1705 = vmatprep.subr.bf16.mxu0 %v1316
        %1706 = vmatpush2.bf16.msra.mxu0 %v1315
        %1707 = vmatprep.mubr.bf16.mxu0 %v308
        %1708 = vmatmul.mubr.bf16.gmra.mxu0 %v307
        %v1709 = vpop.f32.mrf.mxu0
        %v1710 = vadd.f32 0.0, %v1709
        %v1711 = vpop.f32.mrf.mxu0
        %v1712 = vadd.f32 0.0, %v1711
        %v1713 = vpop.f32.mrf.mxu0
        %v1714 = vadd.f32 0.0, %v1713
        %v1715 = vpop.f32.mrf.mxu0
        %v1716 = vadd.f32 0.0, %v1715
        %1717 = vmatprep.mubr.bf16.mxu0 %v311
        %1718 = vmatmul.mubr.bf16.gmra.mxu0 %v310
        %v1719 = vpop.f32.mrf.mxu0
        %v1720 = vadd.f32 0.0, %v1719
        %v1721 = vpop.f32.mrf.mxu0
        %v1722 = vadd.f32 0.0, %v1721
        %v1723 = vpop.f32.mrf.mxu0
        %v1724 = vadd.f32 0.0, %v1723
        %v1725 = vpop.f32.mrf.mxu0
        %v1726 = vadd.f32 0.0, %v1725
        %1727 = vmatprep.mubr.bf16.mxu0 %v314
        %1728 = vmatmul.mubr.bf16.gmra.mxu0 %v313
        %v1729 = vpop.f32.mrf.mxu0
        %v1730 = vadd.f32 0.0, %v1729
        %v1731 = vpop.f32.mrf.mxu0
        %v1732 = vadd.f32 0.0, %v1731
        %v1733 = vpop.f32.mrf.mxu0
        %v1734 = vadd.f32 0.0, %v1733
        %v1735 = vpop.f32.mrf.mxu0
        %v1736 = vadd.f32 0.0, %v1735
        %1737 = vmatprep.mubr.bf16.mxu0 %v317
        %1738 = vmatmul.mubr.bf16.gmra.mxu0 %v316
        %v1739 = vpop.f32.mrf.mxu0
        %v1740 = vadd.f32 0.0, %v1739
        %v1741 = vpop.f32.mrf.mxu0
        %v1742 = vadd.f32 0.0, %v1741
        %v1743 = vpop.f32.mrf.mxu0
        %v1744 = vadd.f32 0.0, %v1743
        %v1745 = vpop.f32.mrf.mxu0
        %v1746 = vadd.f32 0.0, %v1745
        %1747 = vmatprep.mubr.bf16.mxu0 %v320
        %1748 = vmatmul.mubr.bf16.gmra.mxu0 %v319
        %v1749 = vpop.f32.mrf.mxu0
        %v1750 = vadd.f32 0.0, %v1749
        %v1751 = vpop.f32.mrf.mxu0
        %v1752 = vadd.f32 0.0, %v1751
        %v1753 = vpop.f32.mrf.mxu0
        %v1754 = vadd.f32 0.0, %v1753
        %v1755 = vpop.f32.mrf.mxu0
        %v1756 = vadd.f32 0.0, %v1755
        %1757 = vmatprep.mubr.bf16.mxu0 %v323
        %1758 = vmatmul.mubr.bf16.gmra.mxu0 %v322
        %v1759 = vpop.f32.mrf.mxu0
        %v1760 = vadd.f32 0.0, %v1759
        %v1761 = vpop.f32.mrf.mxu0
        %v1762 = vadd.f32 0.0, %v1761
        %v1763 = vpop.f32.mrf.mxu0
        %v1764 = vadd.f32 0.0, %v1763
        %v1765 = vpop.f32.mrf.mxu0
        %v1766 = vadd.f32 0.0, %v1765
        %1767 = vmatprep.mubr.bf16.mxu0 %v326
        %1768 = vmatmul.mubr.bf16.gmra.mxu0 %v325
        %v1769 = vpop.f32.mrf.mxu0
        %v1770 = vadd.f32 0.0, %v1769
        %v1771 = vpop.f32.mrf.mxu0
        %v1772 = vadd.f32 0.0, %v1771
        %v1773 = vpop.f32.mrf.mxu0
        %v1774 = vadd.f32 0.0, %v1773
        %v1775 = vpop.f32.mrf.mxu0
        %v1776 = vadd.f32 0.0, %v1775
        %1777 = vmatprep.mubr.bf16.mxu0 %v329
        %1778 = vmatmul.mubr.bf16.gmra.mxu0 %v328
        %v1779 = vpop.f32.mrf.mxu0
        %v1780 = vadd.f32 0.0, %v1779
        %v1781 = vpop.f32.mrf.mxu0
        %v1782 = vadd.f32 0.0, %v1781
        %v1783 = vpop.f32.mrf.mxu0
        %v1784 = vadd.f32 0.0, %v1783
        %v1785 = vpop.f32.mrf.mxu0
        %v1786 = vadd.f32 0.0, %v1785
        %1787 = vdwg.mxu0
        %1788 = vmatprep.subr.bf16.mxu0 %v1451
        %1789 = vmatpush1.bf16.msra.mxu0 %v1450
        %1790 = vmatprep.subr.bf16.mxu0 %v1442
        %1791 = vmatpush1.bf16.msra.mxu0 %v1441
        %1792 = vmatprep.subr.bf16.mxu0 %v1433
        %1793 = vmatpush1.bf16.msra.mxu0 %v1432
        %1794 = vmatprep.subr.bf16.mxu0 %v1424
        %1795 = vmatpush1.bf16.msra.mxu0 %v1423
        %1796 = vmatprep.subr.bf16.mxu0 %v1415
        %1797 = vmatpush1.bf16.msra.mxu0 %v1414
        %1798 = vmatprep.subr.bf16.mxu0 %v1406
        %1799 = vmatpush1.bf16.msra.mxu0 %v1405
        %1800 = vmatprep.subr.bf16.mxu0 %v1397
        %1801 = vmatpush1.bf16.msra.mxu0 %v1396
        %1802 = vmatprep.subr.bf16.mxu0 %v1388
        %1803 = vmatpush1.bf16.msra.mxu0 %v1387
        %1804 = vmatprep.subr.bf16.mxu0 0
        %1805 = vmatpush2.bf16.msra.mxu0 0
        %1806 = vmatprep.subr.bf16.mxu0 0
        %1807 = vmatpush2.bf16.msra.mxu0 0
        %1808 = vmatprep.subr.bf16.mxu0 0
        %1809 = vmatpush2.bf16.msra.mxu0 0
        %1810 = vmatprep.subr.bf16.mxu0 0
        %1811 = vmatpush2.bf16.msra.mxu0 0
        %1812 = vmatprep.subr.bf16.mxu0 0
        %1813 = vmatpush2.bf16.msra.mxu0 0
        %1814 = vmatprep.subr.bf16.mxu0 0
        %1815 = vmatpush2.bf16.msra.mxu0 0
        %1816 = vmatprep.subr.bf16.mxu0 0
        %1817 = vmatpush2.bf16.msra.mxu0 0
        %1818 = vmatprep.subr.bf16.mxu0 0
        %1819 = vmatpush2.bf16.msra.mxu0 0
        %1820 = vmatprep.mubr.bf16.mxu0 0
        %1821 = vmatmul.mubr.bf16.gmra.mxu0 %v309
        %v1822 = vpop.f32.mrf.mxu0
        %v1823 = vadd.f32 %v1710, %v1822
        %v1824 = vpop.f32.mrf.mxu0
        %v1825 = vadd.f32 %v1712, %v1824
        %v1826 = vpop.f32.mrf.mxu0
        %v1827 = vadd.f32 %v1714, %v1826
        %v1828 = vpop.f32.mrf.mxu0
        %v1829 = vadd.f32 %v1716, %v1828
        %1830 = vmatprep.mubr.bf16.mxu0 0
        %1831 = vmatmul.mubr.bf16.gmra.mxu0 %v312
        %v1832 = vpop.f32.mrf.mxu0
        %v1833 = vadd.f32 %v1720, %v1832
        %v1834 = vpop.f32.mrf.mxu0
        %v1835 = vadd.f32 %v1722, %v1834
        %v1836 = vpop.f32.mrf.mxu0
        %v1837 = vadd.f32 %v1724, %v1836
        %v1838 = vpop.f32.mrf.mxu0
        %v1839 = vadd.f32 %v1726, %v1838
        %1840 = vmatprep.mubr.bf16.mxu0 0
        %1841 = vmatmul.mubr.bf16.gmra.mxu0 %v315
        %v1842 = vpop.f32.mrf.mxu0
        %v1843 = vadd.f32 %v1730, %v1842
        %v1844 = vpop.f32.mrf.mxu0
        %v1845 = vadd.f32 %v1732, %v1844
        %v1846 = vpop.f32.mrf.mxu0
        %v1847 = vadd.f32 %v1734, %v1846
        %v1848 = vpop.f32.mrf.mxu0
        %v1849 = vadd.f32 %v1736, %v1848
        %1850 = vmatprep.mubr.bf16.mxu0 0
        %1851 = vmatmul.mubr.bf16.gmra.mxu0 %v318
        %v1852 = vpop.f32.mrf.mxu0
        %v1853 = vadd.f32 %v1740, %v1852
        %v1854 = vpop.f32.mrf.mxu0
        %v1855 = vadd.f32 %v1742, %v1854
        %v1856 = vpop.f32.mrf.mxu0
        %v1857 = vadd.f32 %v1744, %v1856
        %v1858 = vpop.f32.mrf.mxu0
        %v1859 = vadd.f32 %v1746, %v1858
        %1860 = vmatprep.mubr.bf16.mxu0 0
        %1861 = vmatmul.mubr.bf16.gmra.mxu0 %v321
        %v1862 = vpop.f32.mrf.mxu0
        %v1863 = vadd.f32 %v1750, %v1862
        %v1864 = vpop.f32.mrf.mxu0
        %v1865 = vadd.f32 %v1752, %v1864
        %v1866 = vpop.f32.mrf.mxu0
        %v1867 = vadd.f32 %v1754, %v1866
        %v1868 = vpop.f32.mrf.mxu0
        %v1869 = vadd.f32 %v1756, %v1868
        %1870 = vmatprep.mubr.bf16.mxu0 0
        %1871 = vmatmul.mubr.bf16.gmra.mxu0 %v324
        %v1872 = vpop.f32.mrf.mxu0
        %v1873 = vadd.f32 %v1760, %v1872
        %v1874 = vpop.f32.mrf.mxu0
        %v1875 = vadd.f32 %v1762, %v1874
        %v1876 = vpop.f32.mrf.mxu0
        %v1877 = vadd.f32 %v1764, %v1876
        %v1878 = vpop.f32.mrf.mxu0
        %v1879 = vadd.f32 %v1766, %v1878
        %1880 = vmatprep.mubr.bf16.mxu0 0
        %1881 = vmatmul.mubr.bf16.gmra.mxu0 %v327
        %v1882 = vpop.f32.mrf.mxu0
        %v1883 = vadd.f32 %v1770, %v1882
        %v1884 = vpop.f32.mrf.mxu0
        %v1885 = vadd.f32 %v1772, %v1884
        %v1886 = vpop.f32.mrf.mxu0
        %v1887 = vadd.f32 %v1774, %v1886
        %v1888 = vpop.f32.mrf.mxu0
        %v1889 = vadd.f32 %v1776, %v1888
        %1890 = vmatprep.mubr.bf16.mxu0 0
        %1891 = vmatmul.mubr.bf16.gmra.mxu0 %v330
        %v1892 = vpop.f32.mrf.mxu0
        %v1893 = vadd.f32 %v1780, %v1892
        %v1894 = vpop.f32.mrf.mxu0
        %v1895 = vadd.f32 %v1782, %v1894
        %v1896 = vpop.f32.mrf.mxu0
        %v1897 = vadd.f32 %v1784, %v1896
        %v1898 = vpop.f32.mrf.mxu0
        %v1899 = vadd.f32 %v1786, %v1898
        %1900 = vdwg.mxu0
        %1901 = vmatprep.subr.bf16.mxu0 %v1309
        %1902 = vmatpush1.bf16.msra.mxu0 %v1308
        %1903 = vmatprep.subr.bf16.mxu0 %v1300
        %1904 = vmatpush1.bf16.msra.mxu0 %v1299
        %1905 = vmatprep.subr.bf16.mxu0 %v1291
        %1906 = vmatpush1.bf16.msra.mxu0 %v1290
        %1907 = vmatprep.subr.bf16.mxu0 %v1282
        %1908 = vmatpush1.bf16.msra.mxu0 %v1281
        %1909 = vmatprep.subr.bf16.mxu0 %v1273
        %1910 = vmatpush1.bf16.msra.mxu0 %v1272
        %1911 = vmatprep.subr.bf16.mxu0 %v1264
        %1912 = vmatpush1.bf16.msra.mxu0 %v1263
        %1913 = vmatprep.subr.bf16.mxu0 %v1255
        %1914 = vmatpush1.bf16.msra.mxu0 %v1254
        %1915 = vmatprep.subr.bf16.mxu0 %v1246
        %1916 = vmatpush1.bf16.msra.mxu0 %v1245
        %1917 = vmatprep.subr.bf16.mxu0 %v1381
        %1918 = vmatpush2.bf16.msra.mxu0 %v1380
        %1919 = vmatprep.subr.bf16.mxu0 %v1372
        %1920 = vmatpush2.bf16.msra.mxu0 %v1371
        %1921 = vmatprep.subr.bf16.mxu0 %v1363
        %1922 = vmatpush2.bf16.msra.mxu0 %v1362
        %1923 = vmatprep.subr.bf16.mxu0 %v1354
        %1924 = vmatpush2.bf16.msra.mxu0 %v1353
        %1925 = vmatprep.subr.bf16.mxu0 %v1345
        %1926 = vmatpush2.bf16.msra.mxu0 %v1344
        %1927 = vmatprep.subr.bf16.mxu0 %v1336
        %1928 = vmatpush2.bf16.msra.mxu0 %v1335
        %1929 = vmatprep.subr.bf16.mxu0 %v1327
        %1930 = vmatpush2.bf16.msra.mxu0 %v1326
        %1931 = vmatprep.subr.bf16.mxu0 %v1318
        %1932 = vmatpush2.bf16.msra.mxu0 %v1317
        %1933 = vmatprep.mubr.bf16.mxu0 %v308
        %1934 = vmatmul.mubr.bf16.gmra.mxu0 %v307
        %v1935 = vpop.f32.mrf.mxu0
        %v1936 = vadd.f32 0.0, %v1935
        %v1937 = vpop.f32.mrf.mxu0
        %v1938 = vadd.f32 0.0, %v1937
        %v1939 = vpop.f32.mrf.mxu0
        %v1940 = vadd.f32 0.0, %v1939
        %v1941 = vpop.f32.mrf.mxu0
        %v1942 = vadd.f32 0.0, %v1941
        %1943 = vmatprep.mubr.bf16.mxu0 %v311
        %1944 = vmatmul.mubr.bf16.gmra.mxu0 %v310
        %v1945 = vpop.f32.mrf.mxu0
        %v1946 = vadd.f32 0.0, %v1945
        %v1947 = vpop.f32.mrf.mxu0
        %v1948 = vadd.f32 0.0, %v1947
        %v1949 = vpop.f32.mrf.mxu0
        %v1950 = vadd.f32 0.0, %v1949
        %v1951 = vpop.f32.mrf.mxu0
        %v1952 = vadd.f32 0.0, %v1951
        %1953 = vmatprep.mubr.bf16.mxu0 %v314
        %1954 = vmatmul.mubr.bf16.gmra.mxu0 %v313
        %v1955 = vpop.f32.mrf.mxu0
        %v1956 = vadd.f32 0.0, %v1955
        %v1957 = vpop.f32.mrf.mxu0
        %v1958 = vadd.f32 0.0, %v1957
        %v1959 = vpop.f32.mrf.mxu0
        %v1960 = vadd.f32 0.0, %v1959
        %v1961 = vpop.f32.mrf.mxu0
        %v1962 = vadd.f32 0.0, %v1961
        %1963 = vmatprep.mubr.bf16.mxu0 %v317
        %1964 = vmatmul.mubr.bf16.gmra.mxu0 %v316
        %v1965 = vpop.f32.mrf.mxu0
        %v1966 = vadd.f32 0.0, %v1965
        %v1967 = vpop.f32.mrf.mxu0
        %v1968 = vadd.f32 0.0, %v1967
        %v1969 = vpop.f32.mrf.mxu0
        %v1970 = vadd.f32 0.0, %v1969
        %v1971 = vpop.f32.mrf.mxu0
        %v1972 = vadd.f32 0.0, %v1971
        %1973 = vmatprep.mubr.bf16.mxu0 %v320
        %1974 = vmatmul.mubr.bf16.gmra.mxu0 %v319
        %v1975 = vpop.f32.mrf.mxu0
        %v1976 = vadd.f32 0.0, %v1975
        %v1977 = vpop.f32.mrf.mxu0
        %v1978 = vadd.f32 0.0, %v1977
        %v1979 = vpop.f32.mrf.mxu0
        %v1980 = vadd.f32 0.0, %v1979
        %v1981 = vpop.f32.mrf.mxu0
        %v1982 = vadd.f32 0.0, %v1981
        %1983 = vmatprep.mubr.bf16.mxu0 %v323
        %1984 = vmatmul.mubr.bf16.gmra.mxu0 %v322
        %v1985 = vpop.f32.mrf.mxu0
        %v1986 = vadd.f32 0.0, %v1985
        %v1987 = vpop.f32.mrf.mxu0
        %v1988 = vadd.f32 0.0, %v1987
        %v1989 = vpop.f32.mrf.mxu0
        %v1990 = vadd.f32 0.0, %v1989
        %v1991 = vpop.f32.mrf.mxu0
        %v1992 = vadd.f32 0.0, %v1991
        %1993 = vmatprep.mubr.bf16.mxu0 %v326
        %1994 = vmatmul.mubr.bf16.gmra.mxu0 %v325
        %v1995 = vpop.f32.mrf.mxu0
        %v1996 = vadd.f32 0.0, %v1995
        %v1997 = vpop.f32.mrf.mxu0
        %v1998 = vadd.f32 0.0, %v1997
        %v1999 = vpop.f32.mrf.mxu0
        %v2000 = vadd.f32 0.0, %v1999
        %v2001 = vpop.f32.mrf.mxu0
        %v2002 = vadd.f32 0.0, %v2001
        %2003 = vmatprep.mubr.bf16.mxu0 %v329
        %2004 = vmatmul.mubr.bf16.gmra.mxu0 %v328
        %v2005 = vpop.f32.mrf.mxu0
        %v2006 = vadd.f32 0.0, %v2005
        %v2007 = vpop.f32.mrf.mxu0
        %v2008 = vadd.f32 0.0, %v2007
        %v2009 = vpop.f32.mrf.mxu0
        %v2010 = vadd.f32 0.0, %v2009
        %v2011 = vpop.f32.mrf.mxu0
        %v2012 = vadd.f32 0.0, %v2011
        %2013 = vdwg.mxu0
        %2014 = vmatprep.subr.bf16.mxu0 %v1453
        %2015 = vmatpush1.bf16.msra.mxu0 %v1452
        %2016 = vmatprep.subr.bf16.mxu0 %v1444
        %2017 = vmatpush1.bf16.msra.mxu0 %v1443
        %2018 = vmatprep.subr.bf16.mxu0 %v1435
        %2019 = vmatpush1.bf16.msra.mxu0 %v1434
        %2020 = vmatprep.subr.bf16.mxu0 %v1426
        %2021 = vmatpush1.bf16.msra.mxu0 %v1425
        %2022 = vmatprep.subr.bf16.mxu0 %v1417
        %2023 = vmatpush1.bf16.msra.mxu0 %v1416
        %2024 = vmatprep.subr.bf16.mxu0 %v1408
        %2025 = vmatpush1.bf16.msra.mxu0 %v1407
        %2026 = vmatprep.subr.bf16.mxu0 %v1399
        %2027 = vmatpush1.bf16.msra.mxu0 %v1398
        %2028 = vmatprep.subr.bf16.mxu0 %v1390
        %2029 = vmatpush1.bf16.msra.mxu0 %v1389
        %2030 = vmatprep.subr.bf16.mxu0 0
        %2031 = vmatpush2.bf16.msra.mxu0 0
        %2032 = vmatprep.subr.bf16.mxu0 0
        %2033 = vmatpush2.bf16.msra.mxu0 0
        %2034 = vmatprep.subr.bf16.mxu0 0
        %2035 = vmatpush2.bf16.msra.mxu0 0
        %2036 = vmatprep.subr.bf16.mxu0 0
        %2037 = vmatpush2.bf16.msra.mxu0 0
        %2038 = vmatprep.subr.bf16.mxu0 0
        %2039 = vmatpush2.bf16.msra.mxu0 0
        %2040 = vmatprep.subr.bf16.mxu0 0
        %2041 = vmatpush2.bf16.msra.mxu0 0
        %2042 = vmatprep.subr.bf16.mxu0 0
        %2043 = vmatpush2.bf16.msra.mxu0 0
        %2044 = vmatprep.subr.bf16.mxu0 0
        %2045 = vmatpush2.bf16.msra.mxu0 0
        %2046 = vmatprep.mubr.bf16.mxu0 0
        %2047 = vmatmul.mubr.bf16.gmra.mxu0 %v309
        %v2048 = vpop.f32.mrf.mxu0
        %v2049 = vadd.f32 %v1936, %v2048
        %v2050 = vpop.f32.mrf.mxu0
        %v2051 = vadd.f32 %v1938, %v2050
        %v2052 = vpop.f32.mrf.mxu0
        %v2053 = vadd.f32 %v1940, %v2052
        %v2054 = vpop.f32.mrf.mxu0
        %v2055 = vadd.f32 %v1942, %v2054
        %2056 = vmatprep.mubr.bf16.mxu0 0
        %2057 = vmatmul.mubr.bf16.gmra.mxu0 %v312
        %v2058 = vpop.f32.mrf.mxu0
        %v2059 = vadd.f32 %v1946, %v2058
        %v2060 = vpop.f32.mrf.mxu0
        %v2061 = vadd.f32 %v1948, %v2060
        %v2062 = vpop.f32.mrf.mxu0
        %v2063 = vadd.f32 %v1950, %v2062
        %v2064 = vpop.f32.mrf.mxu0
        %v2065 = vadd.f32 %v1952, %v2064
        %2066 = vmatprep.mubr.bf16.mxu0 0
        %2067 = vmatmul.mubr.bf16.gmra.mxu0 %v315
        %v2068 = vpop.f32.mrf.mxu0
        %v2069 = vadd.f32 %v1956, %v2068
        %v2070 = vpop.f32.mrf.mxu0
        %v2071 = vadd.f32 %v1958, %v2070
        %v2072 = vpop.f32.mrf.mxu0
        %v2073 = vadd.f32 %v1960, %v2072
        %v2074 = vpop.f32.mrf.mxu0
        %v2075 = vadd.f32 %v1962, %v2074
        %2076 = vmatprep.mubr.bf16.mxu0 0
        %2077 = vmatmul.mubr.bf16.gmra.mxu0 %v318
        %v2078 = vpop.f32.mrf.mxu0
        %v2079 = vadd.f32 %v1966, %v2078
        %v2080 = vpop.f32.mrf.mxu0
        %v2081 = vadd.f32 %v1968, %v2080
        %v2082 = vpop.f32.mrf.mxu0
        %v2083 = vadd.f32 %v1970, %v2082
        %v2084 = vpop.f32.mrf.mxu0
        %v2085 = vadd.f32 %v1972, %v2084
        %2086 = vmatprep.mubr.bf16.mxu0 0
        %2087 = vmatmul.mubr.bf16.gmra.mxu0 %v321
        %v2088 = vpop.f32.mrf.mxu0
        %v2089 = vadd.f32 %v1976, %v2088
        %v2090 = vpop.f32.mrf.mxu0
        %v2091 = vadd.f32 %v1978, %v2090
        %v2092 = vpop.f32.mrf.mxu0
        %v2093 = vadd.f32 %v1980, %v2092
        %v2094 = vpop.f32.mrf.mxu0
        %v2095 = vadd.f32 %v1982, %v2094
        %2096 = vmatprep.mubr.bf16.mxu0 0
        %2097 = vmatmul.mubr.bf16.gmra.mxu0 %v324
        %v2098 = vpop.f32.mrf.mxu0
        %v2099 = vadd.f32 %v1986, %v2098
        %v2100 = vpop.f32.mrf.mxu0
        %v2101 = vadd.f32 %v1988, %v2100
        %v2102 = vpop.f32.mrf.mxu0
        %v2103 = vadd.f32 %v1990, %v2102
        %v2104 = vpop.f32.mrf.mxu0
        %v2105 = vadd.f32 %v1992, %v2104
        %2106 = vmatprep.mubr.bf16.mxu0 0
        %2107 = vmatmul.mubr.bf16.gmra.mxu0 %v327
        %v2108 = vpop.f32.mrf.mxu0
        %v2109 = vadd.f32 %v1996, %v2108
        %v2110 = vpop.f32.mrf.mxu0
        %v2111 = vadd.f32 %v1998, %v2110
        %v2112 = vpop.f32.mrf.mxu0
        %v2113 = vadd.f32 %v2000, %v2112
        %v2114 = vpop.f32.mrf.mxu0
        %v2115 = vadd.f32 %v2002, %v2114
        %2116 = vmatprep.mubr.bf16.mxu0 0
        %2117 = vmatmul.mubr.bf16.gmra.mxu0 %v330
        %v2118 = vpop.f32.mrf.mxu0
        %v2119 = vadd.f32 %v2006, %v2118
        %v2120 = vpop.f32.mrf.mxu0
        %v2121 = vadd.f32 %v2008, %v2120
        %v2122 = vpop.f32.mrf.mxu0
        %v2123 = vadd.f32 %v2010, %v2122
        %v2124 = vpop.f32.mrf.mxu0
        %v2125 = vadd.f32 %v2012, %v2124
        %2126 = vdwg.mxu0
        %2127 = vmatprep.subr.bf16.mxu0 %v1311
        %2128 = vmatpush1.bf16.msra.mxu0 %v1310
        %2129 = vmatprep.subr.bf16.mxu0 %v1302
        %2130 = vmatpush1.bf16.msra.mxu0 %v1301
        %2131 = vmatprep.subr.bf16.mxu0 %v1293
        %2132 = vmatpush1.bf16.msra.mxu0 %v1292
        %2133 = vmatprep.subr.bf16.mxu0 %v1284
        %2134 = vmatpush1.bf16.msra.mxu0 %v1283
        %2135 = vmatprep.subr.bf16.mxu0 %v1275
        %2136 = vmatpush1.bf16.msra.mxu0 %v1274
        %2137 = vmatprep.subr.bf16.mxu0 %v1266
        %2138 = vmatpush1.bf16.msra.mxu0 %v1265
        %2139 = vmatprep.subr.bf16.mxu0 %v1257
        %2140 = vmatpush1.bf16.msra.mxu0 %v1256
        %2141 = vmatprep.subr.bf16.mxu0 %v1248
        %2142 = vmatpush1.bf16.msra.mxu0 %v1247
        %2143 = vmatprep.subr.bf16.mxu0 %v1383
        %2144 = vmatpush2.bf16.msra.mxu0 %v1382
        %2145 = vmatprep.subr.bf16.mxu0 %v1374
        %2146 = vmatpush2.bf16.msra.mxu0 %v1373
        %2147 = vmatprep.subr.bf16.mxu0 %v1365
        %2148 = vmatpush2.bf16.msra.mxu0 %v1364
        %2149 = vmatprep.subr.bf16.mxu0 %v1356
        %2150 = vmatpush2.bf16.msra.mxu0 %v1355
        %2151 = vmatprep.subr.bf16.mxu0 %v1347
        %2152 = vmatpush2.bf16.msra.mxu0 %v1346
        %2153 = vmatprep.subr.bf16.mxu0 %v1338
        %2154 = vmatpush2.bf16.msra.mxu0 %v1337
        %2155 = vmatprep.subr.bf16.mxu0 %v1329
        %2156 = vmatpush2.bf16.msra.mxu0 %v1328
        %2157 = vmatprep.subr.bf16.mxu0 %v1320
        %2158 = vmatpush2.bf16.msra.mxu0 %v1319
        %2159 = vmatprep.mubr.bf16.mxu0 %v308
        %2160 = vmatmul.mubr.bf16.gmra.mxu0 %v307
        %v2161 = vpop.f32.mrf.mxu0
        %v2162 = vadd.f32 0.0, %v2161
        %v2163 = vpop.f32.mrf.mxu0
        %v2164 = vadd.f32 0.0, %v2163
        %v2165 = vpop.f32.mrf.mxu0
        %v2166 = vadd.f32 0.0, %v2165
        %v2167 = vpop.f32.mrf.mxu0
        %v2168 = vadd.f32 0.0, %v2167
        %2169 = vmatprep.mubr.bf16.mxu0 %v311
        %2170 = vmatmul.mubr.bf16.gmra.mxu0 %v310
        %v2171 = vpop.f32.mrf.mxu0
        %v2172 = vadd.f32 0.0, %v2171
        %v2173 = vpop.f32.mrf.mxu0
        %v2174 = vadd.f32 0.0, %v2173
        %v2175 = vpop.f32.mrf.mxu0
        %v2176 = vadd.f32 0.0, %v2175
        %v2177 = vpop.f32.mrf.mxu0
        %v2178 = vadd.f32 0.0, %v2177
        %2179 = vmatprep.mubr.bf16.mxu0 %v314
        %2180 = vmatmul.mubr.bf16.gmra.mxu0 %v313
        %v2181 = vpop.f32.mrf.mxu0
        %v2182 = vadd.f32 0.0, %v2181
        %v2183 = vpop.f32.mrf.mxu0
        %v2184 = vadd.f32 0.0, %v2183
        %v2185 = vpop.f32.mrf.mxu0
        %v2186 = vadd.f32 0.0, %v2185
        %v2187 = vpop.f32.mrf.mxu0
        %v2188 = vadd.f32 0.0, %v2187
        %2189 = vmatprep.mubr.bf16.mxu0 %v317
        %2190 = vmatmul.mubr.bf16.gmra.mxu0 %v316
        %v2191 = vpop.f32.mrf.mxu0
        %v2192 = vadd.f32 0.0, %v2191
        %v2193 = vpop.f32.mrf.mxu0
        %v2194 = vadd.f32 0.0, %v2193
        %v2195 = vpop.f32.mrf.mxu0
        %v2196 = vadd.f32 0.0, %v2195
        %v2197 = vpop.f32.mrf.mxu0
        %v2198 = vadd.f32 0.0, %v2197
        %2199 = vmatprep.mubr.bf16.mxu0 %v320
        %2200 = vmatmul.mubr.bf16.gmra.mxu0 %v319
        %v2201 = vpop.f32.mrf.mxu0
        %v2202 = vadd.f32 0.0, %v2201
        %v2203 = vpop.f32.mrf.mxu0
        %v2204 = vadd.f32 0.0, %v2203
        %v2205 = vpop.f32.mrf.mxu0
        %v2206 = vadd.f32 0.0, %v2205
        %v2207 = vpop.f32.mrf.mxu0
        %v2208 = vadd.f32 0.0, %v2207
        %2209 = vmatprep.mubr.bf16.mxu0 %v323
        %2210 = vmatmul.mubr.bf16.gmra.mxu0 %v322
        %v2211 = vpop.f32.mrf.mxu0
        %v2212 = vadd.f32 0.0, %v2211
        %v2213 = vpop.f32.mrf.mxu0
        %v2214 = vadd.f32 0.0, %v2213
        %v2215 = vpop.f32.mrf.mxu0
        %v2216 = vadd.f32 0.0, %v2215
        %v2217 = vpop.f32.mrf.mxu0
        %v2218 = vadd.f32 0.0, %v2217
        %2219 = vmatprep.mubr.bf16.mxu0 %v326
        %2220 = vmatmul.mubr.bf16.gmra.mxu0 %v325
        %v2221 = vpop.f32.mrf.mxu0
        %v2222 = vadd.f32 0.0, %v2221
        %v2223 = vpop.f32.mrf.mxu0
        %v2224 = vadd.f32 0.0, %v2223
        %v2225 = vpop.f32.mrf.mxu0
        %v2226 = vadd.f32 0.0, %v2225
        %v2227 = vpop.f32.mrf.mxu0
        %v2228 = vadd.f32 0.0, %v2227
        %2229 = vmatprep.mubr.bf16.mxu0 %v329
        %2230 = vmatmul.mubr.bf16.gmra.mxu0 %v328
        %v2231 = vpop.f32.mrf.mxu0
        %v2232 = vadd.f32 0.0, %v2231
        %v2233 = vpop.f32.mrf.mxu0
        %v2234 = vadd.f32 0.0, %v2233
        %v2235 = vpop.f32.mrf.mxu0
        %v2236 = vadd.f32 0.0, %v2235
        %v2237 = vpop.f32.mrf.mxu0
        %v2238 = vadd.f32 0.0, %v2237
        %2239 = vdwg.mxu0
        %2240 = vmatprep.subr.bf16.mxu0 %v1455
        %2241 = vmatpush1.bf16.msra.mxu0 %v1454
        %2242 = vmatprep.subr.bf16.mxu0 %v1446
        %2243 = vmatpush1.bf16.msra.mxu0 %v1445
        %2244 = vmatprep.subr.bf16.mxu0 %v1437
        %2245 = vmatpush1.bf16.msra.mxu0 %v1436
        %2246 = vmatprep.subr.bf16.mxu0 %v1428
        %2247 = vmatpush1.bf16.msra.mxu0 %v1427
        %2248 = vmatprep.subr.bf16.mxu0 %v1419
        %2249 = vmatpush1.bf16.msra.mxu0 %v1418
        %2250 = vmatprep.subr.bf16.mxu0 %v1410
        %2251 = vmatpush1.bf16.msra.mxu0 %v1409
        %2252 = vmatprep.subr.bf16.mxu0 %v1401
        %2253 = vmatpush1.bf16.msra.mxu0 %v1400
        %2254 = vmatprep.subr.bf16.mxu0 %v1392
        %2255 = vmatpush1.bf16.msra.mxu0 %v1391
        %2256 = vmatprep.subr.bf16.mxu0 0
        %2257 = vmatpush2.bf16.msra.mxu0 0
        %2258 = vmatprep.subr.bf16.mxu0 0
        %2259 = vmatpush2.bf16.msra.mxu0 0
        %2260 = vmatprep.subr.bf16.mxu0 0
        %2261 = vmatpush2.bf16.msra.mxu0 0
        %2262 = vmatprep.subr.bf16.mxu0 0
        %2263 = vmatpush2.bf16.msra.mxu0 0
        %2264 = vmatprep.subr.bf16.mxu0 0
        %2265 = vmatpush2.bf16.msra.mxu0 0
        %2266 = vmatprep.subr.bf16.mxu0 0
        %2267 = vmatpush2.bf16.msra.mxu0 0
        %2268 = vmatprep.subr.bf16.mxu0 0
        %2269 = vmatpush2.bf16.msra.mxu0 0
        %2270 = vmatprep.subr.bf16.mxu0 0
        %2271 = vmatpush2.bf16.msra.mxu0 0
        %2272 = vmatprep.mubr.bf16.mxu0 0
        %2273 = vmatmul.mubr.bf16.gmra.mxu0 %v309
        %v2274 = vpop.f32.mrf.mxu0
        %v2275 = vadd.f32 %v2162, %v2274
        %v2276 = vpop.f32.mrf.mxu0
        %v2277 = vadd.f32 %v2164, %v2276
        %v2278 = vpop.f32.mrf.mxu0
        %v2279 = vadd.f32 %v2166, %v2278
        %v2280 = vpop.f32.mrf.mxu0
        %v2281 = vadd.f32 %v2168, %v2280
        %2282 = vmatprep.mubr.bf16.mxu0 0
        %2283 = vmatmul.mubr.bf16.gmra.mxu0 %v312
        %v2284 = vpop.f32.mrf.mxu0
        %v2285 = vadd.f32 %v2172, %v2284
        %v2286 = vpop.f32.mrf.mxu0
        %v2287 = vadd.f32 %v2174, %v2286
        %v2288 = vpop.f32.mrf.mxu0
        %v2289 = vadd.f32 %v2176, %v2288
        %v2290 = vpop.f32.mrf.mxu0
        %v2291 = vadd.f32 %v2178, %v2290
        %2292 = vmatprep.mubr.bf16.mxu0 0
        %2293 = vmatmul.mubr.bf16.gmra.mxu0 %v315
        %v2294 = vpop.f32.mrf.mxu0
        %v2295 = vadd.f32 %v2182, %v2294
        %v2296 = vpop.f32.mrf.mxu0
        %v2297 = vadd.f32 %v2184, %v2296
        %v2298 = vpop.f32.mrf.mxu0
        %v2299 = vadd.f32 %v2186, %v2298
        %v2300 = vpop.f32.mrf.mxu0
        %v2301 = vadd.f32 %v2188, %v2300
        %2302 = vmatprep.mubr.bf16.mxu0 0
        %2303 = vmatmul.mubr.bf16.gmra.mxu0 %v318
        %v2304 = vpop.f32.mrf.mxu0
        %v2305 = vadd.f32 %v2192, %v2304
        %v2306 = vpop.f32.mrf.mxu0
        %v2307 = vadd.f32 %v2194, %v2306
        %v2308 = vpop.f32.mrf.mxu0
        %v2309 = vadd.f32 %v2196, %v2308
        %v2310 = vpop.f32.mrf.mxu0
        %v2311 = vadd.f32 %v2198, %v2310
        %2312 = vmatprep.mubr.bf16.mxu0 0
        %2313 = vmatmul.mubr.bf16.gmra.mxu0 %v321
        %v2314 = vpop.f32.mrf.mxu0
        %v2315 = vadd.f32 %v2202, %v2314
        %v2316 = vpop.f32.mrf.mxu0
        %v2317 = vadd.f32 %v2204, %v2316
        %v2318 = vpop.f32.mrf.mxu0
        %v2319 = vadd.f32 %v2206, %v2318
        %v2320 = vpop.f32.mrf.mxu0
        %v2321 = vadd.f32 %v2208, %v2320
        %2322 = vmatprep.mubr.bf16.mxu0 0
        %2323 = vmatmul.mubr.bf16.gmra.mxu0 %v324
        %v2324 = vpop.f32.mrf.mxu0
        %v2325 = vadd.f32 %v2212, %v2324
        %v2326 = vpop.f32.mrf.mxu0
        %v2327 = vadd.f32 %v2214, %v2326
        %v2328 = vpop.f32.mrf.mxu0
        %v2329 = vadd.f32 %v2216, %v2328
        %v2330 = vpop.f32.mrf.mxu0
        %v2331 = vadd.f32 %v2218, %v2330
        %2332 = vmatprep.mubr.bf16.mxu0 0
        %2333 = vmatmul.mubr.bf16.gmra.mxu0 %v327
        %v2334 = vpop.f32.mrf.mxu0
        %v2335 = vadd.f32 %v2222, %v2334
        %v2336 = vpop.f32.mrf.mxu0
        %v2337 = vadd.f32 %v2224, %v2336
        %v2338 = vpop.f32.mrf.mxu0
        %v2339 = vadd.f32 %v2226, %v2338
        %v2340 = vpop.f32.mrf.mxu0
        %v2341 = vadd.f32 %v2228, %v2340
        %2342 = vmatprep.mubr.bf16.mxu0 0
        %2343 = vmatmul.mubr.bf16.gmra.mxu0 %v330
        %v2344 = vpop.f32.mrf.mxu0
        %v2345 = vadd.f32 %v2232, %v2344
        %v2346 = vpop.f32.mrf.mxu0
        %v2347 = vadd.f32 %v2234, %v2346
        %v2348 = vpop.f32.mrf.mxu0
        %v2349 = vadd.f32 %v2236, %v2348
        %v2350 = vpop.f32.mrf.mxu0
        %v2351 = vadd.f32 %v2238, %v2350
        %2352 = vdwg.mxu0
        %2353 = vmatprep.subr.bf16.mxu0 %v1313
        %2354 = vmatpush1.bf16.msra.mxu0 %v1312
        %2355 = vmatprep.subr.bf16.mxu0 %v1304
        %2356 = vmatpush1.bf16.msra.mxu0 %v1303
        %2357 = vmatprep.subr.bf16.mxu0 %v1295
        %2358 = vmatpush1.bf16.msra.mxu0 %v1294
        %2359 = vmatprep.subr.bf16.mxu0 %v1286
        %2360 = vmatpush1.bf16.msra.mxu0 %v1285
        %2361 = vmatprep.subr.bf16.mxu0 %v1277
        %2362 = vmatpush1.bf16.msra.mxu0 %v1276
        %2363 = vmatprep.subr.bf16.mxu0 %v1268
        %2364 = vmatpush1.bf16.msra.mxu0 %v1267
        %2365 = vmatprep.subr.bf16.mxu0 %v1259
        %2366 = vmatpush1.bf16.msra.mxu0 %v1258
        %2367 = vmatprep.subr.bf16.mxu0 %v1250
        %2368 = vmatpush1.bf16.msra.mxu0 %v1249
        %2369 = vmatprep.subr.bf16.mxu0 %v1385
        %2370 = vmatpush2.bf16.msra.mxu0 %v1384
        %2371 = vmatprep.subr.bf16.mxu0 %v1376
        %2372 = vmatpush2.bf16.msra.mxu0 %v1375
        %2373 = vmatprep.subr.bf16.mxu0 %v1367
        %2374 = vmatpush2.bf16.msra.mxu0 %v1366
        %2375 = vmatprep.subr.bf16.mxu0 %v1358
        %2376 = vmatpush2.bf16.msra.mxu0 %v1357
        %2377 = vmatprep.subr.bf16.mxu0 %v1349
        %2378 = vmatpush2.bf16.msra.mxu0 %v1348
        %2379 = vmatprep.subr.bf16.mxu0 %v1340
        %2380 = vmatpush2.bf16.msra.mxu0 %v1339
        %2381 = vmatprep.subr.bf16.mxu0 %v1331
        %2382 = vmatpush2.bf16.msra.mxu0 %v1330
        %2383 = vmatprep.subr.bf16.mxu0 %v1322
        %2384 = vmatpush2.bf16.msra.mxu0 %v1321
        %2385 = vmatprep.mubr.bf16.mxu0 %v308
        %2386 = vmatmul.mubr.bf16.gmra.mxu0 %v307
        %v2387 = vpop.f32.mrf.mxu0
        %v2388 = vadd.f32 0.0, %v2387
        %v2389 = vpop.f32.mrf.mxu0
        %v2390 = vadd.f32 0.0, %v2389
        %v2391 = vpop.f32.mrf.mxu0
        %v2392 = vadd.f32 0.0, %v2391
        %v2393 = vpop.f32.mrf.mxu0
        %v2394 = vadd.f32 0.0, %v2393
        %2395 = vmatprep.mubr.bf16.mxu0 %v311
        %2396 = vmatmul.mubr.bf16.gmra.mxu0 %v310
        %v2397 = vpop.f32.mrf.mxu0
        %v2398 = vadd.f32 0.0, %v2397
        %v2399 = vpop.f32.mrf.mxu0
        %v2400 = vadd.f32 0.0, %v2399
        %v2401 = vpop.f32.mrf.mxu0
        %v2402 = vadd.f32 0.0, %v2401
        %v2403 = vpop.f32.mrf.mxu0
        %v2404 = vadd.f32 0.0, %v2403
        %2405 = vmatprep.mubr.bf16.mxu0 %v314
        %2406 = vmatmul.mubr.bf16.gmra.mxu0 %v313
        %v2407 = vpop.f32.mrf.mxu0
        %v2408 = vadd.f32 0.0, %v2407
        %v2409 = vpop.f32.mrf.mxu0
        %v2410 = vadd.f32 0.0, %v2409
        %v2411 = vpop.f32.mrf.mxu0
        %v2412 = vadd.f32 0.0, %v2411
        %v2413 = vpop.f32.mrf.mxu0
        %v2414 = vadd.f32 0.0, %v2413
        %2415 = vmatprep.mubr.bf16.mxu0 %v317
        %2416 = vmatmul.mubr.bf16.gmra.mxu0 %v316
        %v2417 = vpop.f32.mrf.mxu0
        %v2418 = vadd.f32 0.0, %v2417
        %v2419 = vpop.f32.mrf.mxu0
        %v2420 = vadd.f32 0.0, %v2419
        %v2421 = vpop.f32.mrf.mxu0
        %v2422 = vadd.f32 0.0, %v2421
        %v2423 = vpop.f32.mrf.mxu0
        %v2424 = vadd.f32 0.0, %v2423
        %2425 = vmatprep.mubr.bf16.mxu0 %v320
        %2426 = vmatmul.mubr.bf16.gmra.mxu0 %v319
        %v2427 = vpop.f32.mrf.mxu0
        %v2428 = vadd.f32 0.0, %v2427
        %v2429 = vpop.f32.mrf.mxu0
        %v2430 = vadd.f32 0.0, %v2429
        %v2431 = vpop.f32.mrf.mxu0
        %v2432 = vadd.f32 0.0, %v2431
        %v2433 = vpop.f32.mrf.mxu0
        %v2434 = vadd.f32 0.0, %v2433
        %2435 = vmatprep.mubr.bf16.mxu0 %v323
        %2436 = vmatmul.mubr.bf16.gmra.mxu0 %v322
        %v2437 = vpop.f32.mrf.mxu0
        %v2438 = vadd.f32 0.0, %v2437
        %v2439 = vpop.f32.mrf.mxu0
        %v2440 = vadd.f32 0.0, %v2439
        %v2441 = vpop.f32.mrf.mxu0
        %v2442 = vadd.f32 0.0, %v2441
        %v2443 = vpop.f32.mrf.mxu0
        %v2444 = vadd.f32 0.0, %v2443
        %2445 = vmatprep.mubr.bf16.mxu0 %v326
        %2446 = vmatmul.mubr.bf16.gmra.mxu0 %v325
        %v2447 = vpop.f32.mrf.mxu0
        %v2448 = vadd.f32 0.0, %v2447
        %v2449 = vpop.f32.mrf.mxu0
        %v2450 = vadd.f32 0.0, %v2449
        %v2451 = vpop.f32.mrf.mxu0
        %v2452 = vadd.f32 0.0, %v2451
        %v2453 = vpop.f32.mrf.mxu0
        %v2454 = vadd.f32 0.0, %v2453
        %2455 = vmatprep.mubr.bf16.mxu0 %v329
        %2456 = vmatmul.mubr.bf16.gmra.mxu0 %v328
        %v2457 = vpop.f32.mrf.mxu0
        %v2458 = vadd.f32 0.0, %v2457
        %v2459 = vpop.f32.mrf.mxu0
        %v2460 = vadd.f32 0.0, %v2459
        %v2461 = vpop.f32.mrf.mxu0
        %v2462 = vadd.f32 0.0, %v2461
        %v2463 = vpop.f32.mrf.mxu0
        %v2464 = vadd.f32 0.0, %v2463
        %2465 = vdwg.mxu0
        %2466 = vmatprep.subr.bf16.mxu0 %v1457
        %2467 = vmatpush1.bf16.msra.mxu0 %v1456
        %2468 = vmatprep.subr.bf16.mxu0 %v1448
        %2469 = vmatpush1.bf16.msra.mxu0 %v1447
        %2470 = vmatprep.subr.bf16.mxu0 %v1439
        %2471 = vmatpush1.bf16.msra.mxu0 %v1438
        %2472 = vmatprep.subr.bf16.mxu0 %v1430
        %2473 = vmatpush1.bf16.msra.mxu0 %v1429
        %2474 = vmatprep.subr.bf16.mxu0 %v1421
        %2475 = vmatpush1.bf16.msra.mxu0 %v1420
        %2476 = vmatprep.subr.bf16.mxu0 %v1412
        %2477 = vmatpush1.bf16.msra.mxu0 %v1411
        %2478 = vmatprep.subr.bf16.mxu0 %v1403
        %2479 = vmatpush1.bf16.msra.mxu0 %v1402
        %2480 = vmatprep.subr.bf16.mxu0 %v1394
        %2481 = vmatpush1.bf16.msra.mxu0 %v1393
        %2482 = vmatprep.subr.bf16.mxu0 0
        %2483 = vmatpush2.bf16.msra.mxu0 0
        %2484 = vmatprep.subr.bf16.mxu0 0
        %2485 = vmatpush2.bf16.msra.mxu0 0
        %2486 = vmatprep.subr.bf16.mxu0 0
        %2487 = vmatpush2.bf16.msra.mxu0 0
        %2488 = vmatprep.subr.bf16.mxu0 0
        %2489 = vmatpush2.bf16.msra.mxu0 0
        %2490 = vmatprep.subr.bf16.mxu0 0
        %2491 = vmatpush2.bf16.msra.mxu0 0
        %2492 = vmatprep.subr.bf16.mxu0 0
        %2493 = vmatpush2.bf16.msra.mxu0 0
        %2494 = vmatprep.subr.bf16.mxu0 0
        %2495 = vmatpush2.bf16.msra.mxu0 0
        %2496 = vmatprep.subr.bf16.mxu0 0
        %2497 = vmatpush2.bf16.msra.mxu0 0
        %2498 = vmatprep.mubr.bf16.mxu0 0
        %2499 = vmatmul.mubr.bf16.gmra.mxu0 %v309
        %v2500 = vpop.f32.mrf.mxu0
        %v2501 = vadd.f32 %v2388, %v2500
        %v2502 = vpop.f32.mrf.mxu0
        %v2503 = vadd.f32 %v2390, %v2502
        %v2504 = vpop.f32.mrf.mxu0
        %v2505 = vadd.f32 %v2392, %v2504
        %v2506 = vpop.f32.mrf.mxu0
        %v2507 = vadd.f32 %v2394, %v2506
        %2508 = vmatprep.mubr.bf16.mxu0 0
        %2509 = vmatmul.mubr.bf16.gmra.mxu0 %v312
        %v2510 = vpop.f32.mrf.mxu0
        %v2511 = vadd.f32 %v2398, %v2510
        %v2512 = vpop.f32.mrf.mxu0
        %v2513 = vadd.f32 %v2400, %v2512
        %v2514 = vpop.f32.mrf.mxu0
        %v2515 = vadd.f32 %v2402, %v2514
        %v2516 = vpop.f32.mrf.mxu0
        %v2517 = vadd.f32 %v2404, %v2516
        %2518 = vmatprep.mubr.bf16.mxu0 0
        %2519 = vmatmul.mubr.bf16.gmra.mxu0 %v315
        %v2520 = vpop.f32.mrf.mxu0
        %v2521 = vadd.f32 %v2408, %v2520
        %v2522 = vpop.f32.mrf.mxu0
        %v2523 = vadd.f32 %v2410, %v2522
        %v2524 = vpop.f32.mrf.mxu0
        %v2525 = vadd.f32 %v2412, %v2524
        %v2526 = vpop.f32.mrf.mxu0
        %v2527 = vadd.f32 %v2414, %v2526
        %2528 = vmatprep.mubr.bf16.mxu0 0
        %2529 = vmatmul.mubr.bf16.gmra.mxu0 %v318
        %v2530 = vpop.f32.mrf.mxu0
        %v2531 = vadd.f32 %v2418, %v2530
        %v2532 = vpop.f32.mrf.mxu0
        %v2533 = vadd.f32 %v2420, %v2532
        %v2534 = vpop.f32.mrf.mxu0
        %v2535 = vadd.f32 %v2422, %v2534
        %v2536 = vpop.f32.mrf.mxu0
        %v2537 = vadd.f32 %v2424, %v2536
        %2538 = vmatprep.mubr.bf16.mxu0 0
        %2539 = vmatmul.mubr.bf16.gmra.mxu0 %v321
        %v2540 = vpop.f32.mrf.mxu0
        %v2541 = vadd.f32 %v2428, %v2540
        %v2542 = vpop.f32.mrf.mxu0
        %v2543 = vadd.f32 %v2430, %v2542
        %v2544 = vpop.f32.mrf.mxu0
        %v2545 = vadd.f32 %v2432, %v2544
        %v2546 = vpop.f32.mrf.mxu0
        %v2547 = vadd.f32 %v2434, %v2546
        %2548 = vmatprep.mubr.bf16.mxu0 0
        %2549 = vmatmul.mubr.bf16.gmra.mxu0 %v324
        %v2550 = vpop.f32.mrf.mxu0
        %v2551 = vadd.f32 %v2438, %v2550
        %v2552 = vpop.f32.mrf.mxu0
        %v2553 = vadd.f32 %v2440, %v2552
        %v2554 = vpop.f32.mrf.mxu0
        %v2555 = vadd.f32 %v2442, %v2554
        %v2556 = vpop.f32.mrf.mxu0
        %v2557 = vadd.f32 %v2444, %v2556
        %2558 = vmatprep.mubr.bf16.mxu0 0
        %2559 = vmatmul.mubr.bf16.gmra.mxu0 %v327
        %v2560 = vpop.f32.mrf.mxu0
        %v2561 = vadd.f32 %v2448, %v2560
        %v2562 = vpop.f32.mrf.mxu0
        %v2563 = vadd.f32 %v2450, %v2562
        %v2564 = vpop.f32.mrf.mxu0
        %v2565 = vadd.f32 %v2452, %v2564
        %v2566 = vpop.f32.mrf.mxu0
        %v2567 = vadd.f32 %v2454, %v2566
        %2568 = vmatprep.mubr.bf16.mxu0 0
        %2569 = vmatmul.mubr.bf16.gmra.mxu0 %v330
        %v2570 = vpop.f32.mrf.mxu0
        %v2571 = vadd.f32 %v2458, %v2570
        %v2572 = vpop.f32.mrf.mxu0
        %v2573 = vadd.f32 %v2460, %v2572
        %v2574 = vpop.f32.mrf.mxu0
        %v2575 = vadd.f32 %v2462, %v2574
        %v2576 = vpop.f32.mrf.mxu0
        %v2577 = vadd.f32 %v2464, %v2576
        %2578 = vdwg.mxu0
        %2579 = vmatprep.subr.bf16.mxu0 0
        %2580 = vmatpush1.bf16.msra.mxu0 %v1314
        %2581 = vmatprep.subr.bf16.mxu0 0
        %2582 = vmatpush1.bf16.msra.mxu0 %v1305
        %2583 = vmatprep.subr.bf16.mxu0 0
        %2584 = vmatpush1.bf16.msra.mxu0 %v1296
        %2585 = vmatprep.subr.bf16.mxu0 0
        %2586 = vmatpush1.bf16.msra.mxu0 %v1287
        %2587 = vmatprep.subr.bf16.mxu0 0
        %2588 = vmatpush1.bf16.msra.mxu0 %v1278
        %2589 = vmatprep.subr.bf16.mxu0 0
        %2590 = vmatpush1.bf16.msra.mxu0 %v1269
        %2591 = vmatprep.subr.bf16.mxu0 0
        %2592 = vmatpush1.bf16.msra.mxu0 %v1260
        %2593 = vmatprep.subr.bf16.mxu0 0
        %2594 = vmatpush1.bf16.msra.mxu0 %v1251
        %2595 = vmatprep.subr.bf16.mxu0 0
        %2596 = vmatpush2.bf16.msra.mxu0 %v1386
        %2597 = vmatprep.subr.bf16.mxu0 0
        %2598 = vmatpush2.bf16.msra.mxu0 %v1377
        %2599 = vmatprep.subr.bf16.mxu0 0
        %2600 = vmatpush2.bf16.msra.mxu0 %v1368
        %2601 = vmatprep.subr.bf16.mxu0 0
        %2602 = vmatpush2.bf16.msra.mxu0 %v1359
        %2603 = vmatprep.subr.bf16.mxu0 0
        %2604 = vmatpush2.bf16.msra.mxu0 %v1350
        %2605 = vmatprep.subr.bf16.mxu0 0
        %2606 = vmatpush2.bf16.msra.mxu0 %v1341
        %2607 = vmatprep.subr.bf16.mxu0 0
        %2608 = vmatpush2.bf16.msra.mxu0 %v1332
        %2609 = vmatprep.subr.bf16.mxu0 0
        %2610 = vmatpush2.bf16.msra.mxu0 %v1323
        %2611 = vmatprep.mubr.bf16.mxu0 %v308
        %2612 = vmatmul.mubr.bf16.gmra.mxu0 %v307
        %v2613 = vpop.f32.mrf.mxu0
        %v2614 = vadd.f32 0.0, %v2613
        %v2615 = vpop.f32.mrf.mxu0
        %v2616 = vpop.f32.mrf.mxu0
        %v2617 = vadd.f32 0.0, %v2616
        %v2618 = vpop.f32.mrf.mxu0
        %2619 = vmatprep.mubr.bf16.mxu0 %v311
        %2620 = vmatmul.mubr.bf16.gmra.mxu0 %v310
        %v2621 = vpop.f32.mrf.mxu0
        %v2622 = vadd.f32 0.0, %v2621
        %v2623 = vpop.f32.mrf.mxu0
        %v2624 = vpop.f32.mrf.mxu0
        %v2625 = vadd.f32 0.0, %v2624
        %v2626 = vpop.f32.mrf.mxu0
        %2627 = vmatprep.mubr.bf16.mxu0 %v314
        %2628 = vmatmul.mubr.bf16.gmra.mxu0 %v313
        %v2629 = vpop.f32.mrf.mxu0
        %v2630 = vadd.f32 0.0, %v2629
        %v2631 = vpop.f32.mrf.mxu0
        %v2632 = vpop.f32.mrf.mxu0
        %v2633 = vadd.f32 0.0, %v2632
        %v2634 = vpop.f32.mrf.mxu0
        %2635 = vmatprep.mubr.bf16.mxu0 %v317
        %2636 = vmatmul.mubr.bf16.gmra.mxu0 %v316
        %v2637 = vpop.f32.mrf.mxu0
        %v2638 = vadd.f32 0.0, %v2637
        %v2639 = vpop.f32.mrf.mxu0
        %v2640 = vpop.f32.mrf.mxu0
        %v2641 = vadd.f32 0.0, %v2640
        %v2642 = vpop.f32.mrf.mxu0
        %2643 = vmatprep.mubr.bf16.mxu0 %v320
        %2644 = vmatmul.mubr.bf16.gmra.mxu0 %v319
        %v2645 = vpop.f32.mrf.mxu0
        %v2646 = vadd.f32 0.0, %v2645
        %v2647 = vpop.f32.mrf.mxu0
        %v2648 = vpop.f32.mrf.mxu0
        %v2649 = vadd.f32 0.0, %v2648
        %v2650 = vpop.f32.mrf.mxu0
        %2651 = vmatprep.mubr.bf16.mxu0 %v323
        %2652 = vmatmul.mubr.bf16.gmra.mxu0 %v322
        %v2653 = vpop.f32.mrf.mxu0
        %v2654 = vadd.f32 0.0, %v2653
        %v2655 = vpop.f32.mrf.mxu0
        %v2656 = vpop.f32.mrf.mxu0
        %v2657 = vadd.f32 0.0, %v2656
        %v2658 = vpop.f32.mrf.mxu0
        %2659 = vmatprep.mubr.bf16.mxu0 %v326
        %2660 = vmatmul.mubr.bf16.gmra.mxu0 %v325
        %v2661 = vpop.f32.mrf.mxu0
        %v2662 = vadd.f32 0.0, %v2661
        %v2663 = vpop.f32.mrf.mxu0
        %v2664 = vpop.f32.mrf.mxu0
        %v2665 = vadd.f32 0.0, %v2664
        %v2666 = vpop.f32.mrf.mxu0
        %2667 = vmatprep.mubr.bf16.mxu0 %v329
        %2668 = vmatmul.mubr.bf16.gmra.mxu0 %v328
        %v2669 = vpop.f32.mrf.mxu0
        %v2670 = vadd.f32 0.0, %v2669
        %v2671 = vpop.f32.mrf.mxu0
        %v2672 = vpop.f32.mrf.mxu0
        %v2673 = vadd.f32 0.0, %v2672
        %v2674 = vpop.f32.mrf.mxu0
        %2675 = vdwg.mxu0
        %2676 = vmatprep.subr.bf16.mxu0 0
        %2677 = vmatpush1.bf16.msra.mxu0 %v1458
        %2678 = vmatprep.subr.bf16.mxu0 0
        %2679 = vmatpush1.bf16.msra.mxu0 %v1449
        %2680 = vmatprep.subr.bf16.mxu0 0
        %2681 = vmatpush1.bf16.msra.mxu0 %v1440
        %2682 = vmatprep.subr.bf16.mxu0 0
        %2683 = vmatpush1.bf16.msra.mxu0 %v1431
        %2684 = vmatprep.subr.bf16.mxu0 0
        %2685 = vmatpush1.bf16.msra.mxu0 %v1422
        %2686 = vmatprep.subr.bf16.mxu0 0
        %2687 = vmatpush1.bf16.msra.mxu0 %v1413
        %2688 = vmatprep.subr.bf16.mxu0 0
        %2689 = vmatpush1.bf16.msra.mxu0 %v1404
        %2690 = vmatprep.subr.bf16.mxu0 0
        %2691 = vmatpush1.bf16.msra.mxu0 %v1395
        %2692 = vmatprep.subr.bf16.mxu0 0
        %2693 = vmatpush2.bf16.msra.mxu0 0
        %2694 = vmatprep.subr.bf16.mxu0 0
        %2695 = vmatpush2.bf16.msra.mxu0 0
        %2696 = vmatprep.subr.bf16.mxu0 0
        %2697 = vmatpush2.bf16.msra.mxu0 0
        %2698 = vmatprep.subr.bf16.mxu0 0
        %2699 = vmatpush2.bf16.msra.mxu0 0
        %2700 = vmatprep.subr.bf16.mxu0 0
        %2701 = vmatpush2.bf16.msra.mxu0 0
        %2702 = vmatprep.subr.bf16.mxu0 0
        %2703 = vmatpush2.bf16.msra.mxu0 0
        %2704 = vmatprep.subr.bf16.mxu0 0
        %2705 = vmatpush2.bf16.msra.mxu0 0
        %2706 = vmatprep.subr.bf16.mxu0 0
        %2707 = vmatpush2.bf16.msra.mxu0 0
        %2708 = vmatprep.mubr.bf16.mxu0 0
        %2709 = vmatmul.mubr.bf16.gmra.mxu0 %v309
        %v2710 = vpop.f32.mrf.mxu0
        %v2711 = vadd.f32 %v2614, %v2710
        %v2712 = vpop.f32.mrf.mxu0
        %v2713 = vpop.f32.mrf.mxu0
        %v2714 = vadd.f32 %v2617, %v2713
        %v2715 = vpop.f32.mrf.mxu0
        %2716 = vmatprep.mubr.bf16.mxu0 0
        %2717 = vmatmul.mubr.bf16.gmra.mxu0 %v312
        %v2718 = vpop.f32.mrf.mxu0
        %v2719 = vadd.f32 %v2622, %v2718
        %v2720 = vpop.f32.mrf.mxu0
        %v2721 = vpop.f32.mrf.mxu0
        %v2722 = vadd.f32 %v2625, %v2721
        %v2723 = vpop.f32.mrf.mxu0
        %2724 = vmatprep.mubr.bf16.mxu0 0
        %2725 = vmatmul.mubr.bf16.gmra.mxu0 %v315
        %v2726 = vpop.f32.mrf.mxu0
        %v2727 = vadd.f32 %v2630, %v2726
        %v2728 = vpop.f32.mrf.mxu0
        %v2729 = vpop.f32.mrf.mxu0
        %v2730 = vadd.f32 %v2633, %v2729
        %v2731 = vpop.f32.mrf.mxu0
        %2732 = vmatprep.mubr.bf16.mxu0 0
        %2733 = vmatmul.mubr.bf16.gmra.mxu0 %v318
        %v2734 = vpop.f32.mrf.mxu0
        %v2735 = vadd.f32 %v2638, %v2734
        %v2736 = vpop.f32.mrf.mxu0
        %v2737 = vpop.f32.mrf.mxu0
        %v2738 = vadd.f32 %v2641, %v2737
        %v2739 = vpop.f32.mrf.mxu0
        %2740 = vmatprep.mubr.bf16.mxu0 0
        %2741 = vmatmul.mubr.bf16.gmra.mxu0 %v321
        %v2742 = vpop.f32.mrf.mxu0
        %v2743 = vadd.f32 %v2646, %v2742
        %v2744 = vpop.f32.mrf.mxu0
        %v2745 = vpop.f32.mrf.mxu0
        %v2746 = vadd.f32 %v2649, %v2745
        %v2747 = vpop.f32.mrf.mxu0
        %2748 = vmatprep.mubr.bf16.mxu0 0
        %2749 = vmatmul.mubr.bf16.gmra.mxu0 %v324
        %v2750 = vpop.f32.mrf.mxu0
        %v2751 = vadd.f32 %v2654, %v2750
        %v2752 = vpop.f32.mrf.mxu0
        %v2753 = vpop.f32.mrf.mxu0
        %v2754 = vadd.f32 %v2657, %v2753
        %v2755 = vpop.f32.mrf.mxu0
        %2756 = vmatprep.mubr.bf16.mxu0 0
        %2757 = vmatmul.mubr.bf16.gmra.mxu0 %v327
        %v2758 = vpop.f32.mrf.mxu0
        %v2759 = vadd.f32 %v2662, %v2758
        %v2760 = vpop.f32.mrf.mxu0
        %v2761 = vpop.f32.mrf.mxu0
        %v2762 = vadd.f32 %v2665, %v2761
        %v2763 = vpop.f32.mrf.mxu0
        %2764 = vmatprep.mubr.bf16.mxu0 0
        %2765 = vmatmul.mubr.bf16.gmra.mxu0 %v330
        %v2766 = vpop.f32.mrf.mxu0
        %v2767 = vadd.f32 %v2670, %v2766
        %v2768 = vpop.f32.mrf.mxu0
        %v2769 = vpop.f32.mrf.mxu0
        %v2770 = vadd.f32 %v2673, %v2769
        %v2771 = vpop.f32.mrf.mxu0
        %2772 = vdwg.mxu0
        %v2773 = vpack.c.bf16 %v1827, %v1823
        %v2774 = vpack.c.bf16 %v1829, %v1825
        %v2775 = vpack.c.bf16 %v2053, %v2049
        %v2776 = vpack.c.bf16 %v2055, %v2051
        %v2777 = vpack.c.bf16 %v2279, %v2275
        %v2778 = vpack.c.bf16 %v2281, %v2277
        %v2779 = vpack.c.bf16 %v2505, %v2501
        %v2780 = vpack.c.bf16 %v2507, %v2503
        %v2781 = vpack.c.bf16 %v2714, %v2711
        %v2782 = vpack.c.bf16 %v1837, %v1833
        %v2783 = vpack.c.bf16 %v1839, %v1835
        %v2784 = vpack.c.bf16 %v2063, %v2059
        %v2785 = vpack.c.bf16 %v2065, %v2061
        %v2786 = vpack.c.bf16 %v2289, %v2285
        %v2787 = vpack.c.bf16 %v2291, %v2287
        %v2788 = vpack.c.bf16 %v2515, %v2511
        %v2789 = vpack.c.bf16 %v2517, %v2513
        %v2790 = vpack.c.bf16 %v2722, %v2719
        %v2791 = vpack.c.bf16 %v1847, %v1843
        %v2792 = vpack.c.bf16 %v1849, %v1845
        %v2793 = vpack.c.bf16 %v2073, %v2069
        %v2794 = vpack.c.bf16 %v2075, %v2071
        %v2795 = vpack.c.bf16 %v2299, %v2295
        %v2796 = vpack.c.bf16 %v2301, %v2297
        %v2797 = vpack.c.bf16 %v2525, %v2521
        %v2798 = vpack.c.bf16 %v2527, %v2523
        %v2799 = vpack.c.bf16 %v2730, %v2727
        %v2800 = vpack.c.bf16 %v1857, %v1853
        %v2801 = vpack.c.bf16 %v1859, %v1855
        %v2802 = vpack.c.bf16 %v2083, %v2079
        %v2803 = vpack.c.bf16 %v2085, %v2081
        %v2804 = vpack.c.bf16 %v2309, %v2305
        %v2805 = vpack.c.bf16 %v2311, %v2307
        %v2806 = vpack.c.bf16 %v2535, %v2531
        %v2807 = vpack.c.bf16 %v2537, %v2533
        %v2808 = vpack.c.bf16 %v2738, %v2735
        %v2809 = vpack.c.bf16 %v1867, %v1863
        %v2810 = vpack.c.bf16 %v1869, %v1865
        %v2811 = vpack.c.bf16 %v2093, %v2089
        %v2812 = vpack.c.bf16 %v2095, %v2091
        %v2813 = vpack.c.bf16 %v2319, %v2315
        %v2814 = vpack.c.bf16 %v2321, %v2317
        %v2815 = vpack.c.bf16 %v2545, %v2541
        %v2816 = vpack.c.bf16 %v2547, %v2543
        %v2817 = vpack.c.bf16 %v2746, %v2743
        %v2818 = vpack.c.bf16 %v1877, %v1873
        %v2819 = vpack.c.bf16 %v1879, %v1875
        %v2820 = vpack.c.bf16 %v2103, %v2099
        %v2821 = vpack.c.bf16 %v2105, %v2101
        %v2822 = vpack.c.bf16 %v2329, %v2325
        %v2823 = vpack.c.bf16 %v2331, %v2327
        %v2824 = vpack.c.bf16 %v2555, %v2551
        %v2825 = vpack.c.bf16 %v2557, %v2553
        %v2826 = vpack.c.bf16 %v2754, %v2751
        %v2827 = vpack.c.bf16 %v1887, %v1883
        %v2828 = vpack.c.bf16 %v1889, %v1885
        %v2829 = vpack.c.bf16 %v2113, %v2109
        %v2830 = vpack.c.bf16 %v2115, %v2111
        %v2831 = vpack.c.bf16 %v2339, %v2335
        %v2832 = vpack.c.bf16 %v2341, %v2337
        %v2833 = vpack.c.bf16 %v2565, %v2561
        %v2834 = vpack.c.bf16 %v2567, %v2563
        %v2835 = vpack.c.bf16 %v2762, %v2759
        %v2836 = vpack.c.bf16 %v1897, %v1893
        %v2837 = vpack.c.bf16 %v1899, %v1895
        %v2838 = vpack.c.bf16 %v2123, %v2119
        %v2839 = vpack.c.bf16 %v2125, %v2121
        %v2840 = vpack.c.bf16 %v2349, %v2345
        %v2841 = vpack.c.bf16 %v2351, %v2347
        %v2842 = vpack.c.bf16 %v2575, %v2571
        %v2843 = vpack.c.bf16 %v2577, %v2573
        %v2844 = vpack.c.bf16 %v2770, %v2767
        %v2845 = vlaneseq
        %v2846 = vshrl.u32 %v2845, 7
        %v2847 = vadd.s32 %v2846, 8
        %v2848 = vadd.s32 %v2846, 16
        %v2849 = vadd.s32 %v2846, 24
        %v2850 = vadd.s32 %v2846, 32
        %v2851 = vadd.s32 %v2846, 40
        %v2852 = vadd.s32 %v2846, 48
        %v2853 = vadd.s32 %v2846, 56
        %v2854 = vadd.s32 %v2846, 64
        %v2855 = vadd.s32 %v2846, 72
        %v2856 = vadd.s32 %v2846, 80
        %v2857 = vadd.s32 %v2846, 88
        %v2858 = vadd.s32 %v2846, 96
        %v2859 = vadd.s32 %v2846, 104
        %v2860 = vadd.s32 %v2846, 112
        %v2861 = vadd.s32 %v2846, 120
        %v2862 = vlaneseq
        %v2863 = vand.u32 %v2862, 127
        %vm2864 = vcmp.le.s32.totalorder %v2863, %v2846
        %vm2865 = vcmp.le.s32.totalorder %v2863, %v2847
        %vm2866 = vcmp.le.s32.totalorder %v2863, %v2848
        %vm2867 = vcmp.le.s32.totalorder %v2863, %v2849
        %vm2868 = vcmp.le.s32.totalorder %v2863, %v2850
        %vm2869 = vcmp.le.s32.totalorder %v2863, %v2851
        %vm2870 = vcmp.le.s32.totalorder %v2863, %v2852
        %vm2871 = vcmp.le.s32.totalorder %v2863, %v2853
        %vm2872 = vcmp.le.s32.totalorder %v2863, %v2854
        %vm2873 = vcmp.le.s32.totalorder %v2863, %v2855
        %vm2874 = vcmp.le.s32.totalorder %v2863, %v2856
        %vm2875 = vcmp.le.s32.totalorder %v2863, %v2857
        %vm2876 = vcmp.le.s32.totalorder %v2863, %v2858
        %vm2877 = vcmp.le.s32.totalorder %v2863, %v2859
        %vm2878 = vcmp.le.s32.totalorder %v2863, %v2860
        %vm2879 = vcmp.le.s32.totalorder %v2863, %v2861
        %vm2880 = vcmask 523264
        %v2882 = vsel %vm2880, %v2773, 0
        %v2885 = vsel %vm2880, %v2782, 0
        %v2888 = vsel %vm2880, %v2791, 0
        %v2891 = vsel %vm2880, %v2800, 0
        %v2894 = vsel %vm2880, %v2809, 0
        %v2897 = vsel %vm2880, %v2818, 0
        %v2900 = vsel %vm2880, %v2827, 0
        %v2903 = vsel %vm2880, %v2836, 0
        %v2906 = vsel %vm2880, %v2776, 0
        %v2909 = vsel %vm2880, %v2785, 0
        %v2912 = vsel %vm2880, %v2794, 0
        %v2915 = vsel %vm2880, %v2803, 0
        %v2918 = vsel %vm2880, %v2812, 0
        %v2921 = vsel %vm2880, %v2821, 0
        %v2924 = vsel %vm2880, %v2830, 0
        %v2927 = vsel %vm2880, %v2839, 0
        %2929 = vmatprep.subr.bf16.mxu0 0
        %2930 = vmatpush1.bf16.xpose.msra.mxu0 %v2927
        %2931 = vmatprep.subr.bf16.mxu0 0
        %2932 = vmatpush1.bf16.xpose.msra.mxu0 %v2924
        %2933 = vmatprep.subr.bf16.mxu0 0
        %2934 = vmatpush1.bf16.xpose.msra.mxu0 %v2921
        %2935 = vmatprep.subr.bf16.mxu0 0
        %2936 = vmatpush1.bf16.xpose.msra.mxu0 %v2918
        %2937 = vmatprep.subr.bf16.mxu0 0
        %2938 = vmatpush1.bf16.xpose.msra.mxu0 %v2915
        %2939 = vmatprep.subr.bf16.mxu0 0
        %2940 = vmatpush1.bf16.xpose.msra.mxu0 %v2912
        %2941 = vmatprep.subr.bf16.mxu0 0
        %2942 = vmatpush1.bf16.xpose.msra.mxu0 %v2909
        %2943 = vmatprep.subr.bf16.mxu0 0
        %2944 = vmatpush1.bf16.xpose.msra.mxu0 %v2906
        %2945 = vmatprep.subr.bf16.mxu0 0
        %2946 = vmatpush2.bf16.xpose.msra.mxu0 0
        %2947 = vmatprep.subr.bf16.mxu0 0
        %2948 = vmatpush2.bf16.xpose.msra.mxu0 0
        %2949 = vmatprep.subr.bf16.mxu0 0
        %2950 = vmatpush2.bf16.xpose.msra.mxu0 0
        %2951 = vmatprep.subr.bf16.mxu0 0
        %2952 = vmatpush2.bf16.xpose.msra.mxu0 0
        %2953 = vmatprep.subr.bf16.mxu0 0
        %2954 = vmatpush2.bf16.xpose.msra.mxu0 0
        %2955 = vmatprep.subr.bf16.mxu0 0
        %2956 = vmatpush2.bf16.xpose.msra.mxu0 0
        %2957 = vmatprep.subr.bf16.mxu0 0
        %2958 = vmatpush2.bf16.xpose.msra.mxu0 0
        %2959 = vmatprep.subr.bf16.mxu0 0
        %2960 = vmatpush2.bf16.xpose.msra.mxu0 0
        %2961 = vmatprep.mubr.bf16.mxu0 0
        %2962 = vmatmul.mubr.bf16.gmra.mxu0 %v2882
        %v2963 = vpop.f32.mrf.mxu0
        %v2964 = vadd.f32 0.0, %v2963
        %v2965 = vpop.f32.mrf.mxu0
        %v2966 = vpop.f32.mrf.mxu0
        %v2967 = vadd.f32 0.0, %v2966
        %v2968 = vpop.f32.mrf.mxu0
        %2969 = vmatprep.mubr.bf16.mxu0 0
        %2970 = vmatmul.mubr.bf16.gmra.mxu0 %v2885
        %v2971 = vpop.f32.mrf.mxu0
        %v2972 = vadd.f32 0.0, %v2971
        %v2973 = vpop.f32.mrf.mxu0
        %v2974 = vpop.f32.mrf.mxu0
        %v2975 = vadd.f32 0.0, %v2974
        %v2976 = vpop.f32.mrf.mxu0
        %2977 = vmatprep.mubr.bf16.mxu0 0
        %2978 = vmatmul.mubr.bf16.gmra.mxu0 %v2888
        %v2979 = vpop.f32.mrf.mxu0
        %v2980 = vadd.f32 0.0, %v2979
        %v2981 = vpop.f32.mrf.mxu0
        %v2982 = vpop.f32.mrf.mxu0
        %v2983 = vadd.f32 0.0, %v2982
        %v2984 = vpop.f32.mrf.mxu0
        %2985 = vmatprep.mubr.bf16.mxu0 0
        %2986 = vmatmul.mubr.bf16.gmra.mxu0 %v2891
        %v2987 = vpop.f32.mrf.mxu0
        %v2988 = vadd.f32 0.0, %v2987
        %v2989 = vpop.f32.mrf.mxu0
        %v2990 = vpop.f32.mrf.mxu0
        %v2991 = vadd.f32 0.0, %v2990
        %v2992 = vpop.f32.mrf.mxu0
        %2993 = vmatprep.mubr.bf16.mxu0 0
        %2994 = vmatmul.mubr.bf16.gmra.mxu0 %v2894
        %v2995 = vpop.f32.mrf.mxu0
        %v2996 = vadd.f32 0.0, %v2995
        %v2997 = vpop.f32.mrf.mxu0
        %v2998 = vpop.f32.mrf.mxu0
        %v2999 = vadd.f32 0.0, %v2998
        %v3000 = vpop.f32.mrf.mxu0
        %3001 = vmatprep.mubr.bf16.mxu0 0
        %3002 = vmatmul.mubr.bf16.gmra.mxu0 %v2897
        %v3003 = vpop.f32.mrf.mxu0
        %v3004 = vadd.f32 0.0, %v3003
        %v3005 = vpop.f32.mrf.mxu0
        %v3006 = vpop.f32.mrf.mxu0
        %v3007 = vadd.f32 0.0, %v3006
        %v3008 = vpop.f32.mrf.mxu0
        %3009 = vmatprep.mubr.bf16.mxu0 0
        %3010 = vmatmul.mubr.bf16.gmra.mxu0 %v2900
        %v3011 = vpop.f32.mrf.mxu0
        %v3012 = vadd.f32 0.0, %v3011
        %v3013 = vpop.f32.mrf.mxu0
        %v3014 = vpop.f32.mrf.mxu0
        %v3015 = vadd.f32 0.0, %v3014
        %v3016 = vpop.f32.mrf.mxu0
        %3017 = vmatprep.mubr.bf16.mxu0 0
        %3018 = vmatmul.mubr.bf16.gmra.mxu0 %v2903
        %v3019 = vpop.f32.mrf.mxu0
        %v3020 = vadd.f32 0.0, %v3019
        %v3021 = vpop.f32.mrf.mxu0
        %v3022 = vpop.f32.mrf.mxu0
        %v3023 = vadd.f32 0.0, %v3022
        %v3024 = vpop.f32.mrf.mxu0
        %3025 = vdwg.mxu0
        %v3026 = vsel %vm2864, %v2964, -1e+30
        %v3027 = vsel %vm2865, %v2967, -1e+30
        %v3028 = vsel %vm2866, %v2972, -1e+30
        %v3029 = vsel %vm2867, %v2975, -1e+30
        %v3030 = vsel %vm2868, %v2980, -1e+30
        %v3031 = vsel %vm2869, %v2983, -1e+30
        %v3032 = vsel %vm2870, %v2988, -1e+30
        %v3033 = vsel %vm2871, %v2991, -1e+30
        %v3034 = vsel %vm2872, %v2996, -1e+30
        %v3035 = vsel %vm2873, %v2999, -1e+30
        %v3036 = vsel %vm2874, %v3004, -1e+30
        %v3037 = vsel %vm2875, %v3007, -1e+30
        %v3038 = vsel %vm2876, %v3012, -1e+30
        %v3039 = vsel %vm2877, %v3015, -1e+30
        %v3040 = vsel %vm2878, %v3020, -1e+30
        %v3041 = vsel %vm2879, %v3023, -1e+30
        %3042 = vmax.xlane.f32.xlu0 %v3026
        %v3043 = vpop.xlane.xlu0 %3042
        %3044 = vmax.xlane.f32.xlu0 %v3027
        %v3045 = vpop.xlane.xlu0 %3044
        %3046 = vmax.xlane.f32.xlu0 %v3028
        %v3047 = vpop.xlane.xlu0 %3046
        %3048 = vmax.xlane.f32.xlu0 %v3029
        %v3049 = vpop.xlane.xlu0 %3048
        %3050 = vmax.xlane.f32.xlu0 %v3030
        %v3051 = vpop.xlane.xlu0 %3050
        %3052 = vmax.xlane.f32.xlu0 %v3031
        %v3053 = vpop.xlane.xlu0 %3052
        %3054 = vmax.xlane.f32.xlu0 %v3032
        %v3055 = vpop.xlane.xlu0 %3054
        %3056 = vmax.xlane.f32.xlu0 %v3033
        %v3057 = vpop.xlane.xlu0 %3056
        %3058 = vmax.xlane.f32.xlu0 %v3034
        %v3059 = vpop.xlane.xlu0 %3058
        %3060 = vmax.xlane.f32.xlu0 %v3035
        %v3061 = vpop.xlane.xlu0 %3060
        %3062 = vmax.xlane.f32.xlu0 %v3036
        %v3063 = vpop.xlane.xlu0 %3062
        %3064 = vmax.xlane.f32.xlu0 %v3037
        %v3065 = vpop.xlane.xlu0 %3064
        %3066 = vmax.xlane.f32.xlu0 %v3038
        %v3067 = vpop.xlane.xlu0 %3066
        %3068 = vmax.xlane.f32.xlu0 %v3039
        %v3069 = vpop.xlane.xlu0 %3068
        %3070 = vmax.xlane.f32.xlu0 %v3040
        %v3071 = vpop.xlane.xlu0 %3070
        %3072 = vmax.xlane.f32.xlu0 %v3041
        %v3073 = vpop.xlane.xlu0 %3072
        %v3074 = vsub.f32 %v3026, %v3043
        %v3075 = vsub.f32 %v3027, %v3045
        %v3076 = vsub.f32 %v3028, %v3047
        %v3077 = vsub.f32 %v3029, %v3049
        %v3078 = vsub.f32 %v3030, %v3051
        %v3079 = vsub.f32 %v3031, %v3053
        %v3080 = vsub.f32 %v3032, %v3055
        %v3081 = vsub.f32 %v3033, %v3057
        %v3082 = vsub.f32 %v3034, %v3059
        %v3083 = vsub.f32 %v3035, %v3061
        %v3084 = vsub.f32 %v3036, %v3063
        %v3085 = vsub.f32 %v3037, %v3065
        %v3086 = vsub.f32 %v3038, %v3067
        %v3087 = vsub.f32 %v3039, %v3069
        %v3088 = vsub.f32 %v3040, %v3071
        %v3089 = vsub.f32 %v3041, %v3073
        %v3090 = vmul.f32 %v3074, 1.442695
        %v3091 = vpow.pop %v3090
        %v3092 = vmul.f32 %v3075, 1.442695
        %v3093 = vpow.pop %v3092
        %v3094 = vmul.f32 %v3076, 1.442695
        %v3095 = vpow.pop %v3094
        %v3096 = vmul.f32 %v3077, 1.442695
        %v3097 = vpow.pop %v3096
        %v3098 = vmul.f32 %v3078, 1.442695
        %v3099 = vpow.pop %v3098
        %v3100 = vmul.f32 %v3079, 1.442695
        %v3101 = vpow.pop %v3100
        %v3102 = vmul.f32 %v3080, 1.442695
        %v3103 = vpow.pop %v3102
        %v3104 = vmul.f32 %v3081, 1.442695
        %v3105 = vpow.pop %v3104
        %v3106 = vmul.f32 %v3082, 1.442695
        %v3107 = vpow.pop %v3106
        %v3108 = vmul.f32 %v3083, 1.442695
        %v3109 = vpow.pop %v3108
        %v3110 = vmul.f32 %v3084, 1.442695
        %v3111 = vpow.pop %v3110
        %v3112 = vmul.f32 %v3085, 1.442695
        %v3113 = vpow.pop %v3112
        %v3114 = vmul.f32 %v3086, 1.442695
        %v3115 = vpow.pop %v3114
        %v3116 = vmul.f32 %v3087, 1.442695
        %v3117 = vpow.pop %v3116
        %v3118 = vmul.f32 %v3088, 1.442695
        %v3119 = vpow.pop %v3118
        %v3120 = vmul.f32 %v3089, 1.442695
        %v3121 = vpow.pop %v3120
        %3122 = vadd.xlane.f32.xlu0 %v3091
        %v3123 = vpop.xlane.xlu0 %3122
        %3124 = vadd.xlane.f32.xlu0 %v3093
        %v3125 = vpop.xlane.xlu0 %3124
        %3126 = vadd.xlane.f32.xlu0 %v3095
        %v3127 = vpop.xlane.xlu0 %3126
        %3128 = vadd.xlane.f32.xlu0 %v3097
        %v3129 = vpop.xlane.xlu0 %3128
        %3130 = vadd.xlane.f32.xlu0 %v3099
        %v3131 = vpop.xlane.xlu0 %3130
        %3132 = vadd.xlane.f32.xlu0 %v3101
        %v3133 = vpop.xlane.xlu0 %3132
        %3134 = vadd.xlane.f32.xlu0 %v3103
        %v3135 = vpop.xlane.xlu0 %3134
        %3136 = vadd.xlane.f32.xlu0 %v3105
        %v3137 = vpop.xlane.xlu0 %3136
        %3138 = vadd.xlane.f32.xlu0 %v3107
        %v3139 = vpop.xlane.xlu0 %3138
        %3140 = vadd.xlane.f32.xlu0 %v3109
        %v3141 = vpop.xlane.xlu0 %3140
        %3142 = vadd.xlane.f32.xlu0 %v3111
        %v3143 = vpop.xlane.xlu0 %3142
        %3144 = vadd.xlane.f32.xlu0 %v3113
        %v3145 = vpop.xlane.xlu0 %3144
        %3146 = vadd.xlane.f32.xlu0 %v3115
        %v3147 = vpop.xlane.xlu0 %3146
        %3148 = vadd.xlane.f32.xlu0 %v3117
        %v3149 = vpop.xlane.xlu0 %3148
        %3150 = vadd.xlane.f32.xlu0 %v3119
        %v3151 = vpop.xlane.xlu0 %3150
        %3152 = vadd.xlane.f32.xlu0 %v3121
        %v3153 = vpop.xlane.xlu0 %3152
        %v3154 = vrcp.pop %v3123
        %v3155 = vrcp.pop %v3125
        %v3156 = vrcp.pop %v3127
        %v3157 = vrcp.pop %v3129
        %v3158 = vrcp.pop %v3131
        %v3159 = vrcp.pop %v3133
        %v3160 = vrcp.pop %v3135
        %v3161 = vrcp.pop %v3137
        %v3162 = vrcp.pop %v3139
        %v3163 = vrcp.pop %v3141
        %v3164 = vrcp.pop %v3143
        %v3165 = vrcp.pop %v3145
        %v3166 = vrcp.pop %v3147
        %v3167 = vrcp.pop %v3149
        %v3168 = vrcp.pop %v3151
        %v3169 = vrcp.pop %v3153
        %v3170 = vmul.f32 %v3091, %v3154
        %v3171 = vmul.f32 %v3093, %v3155
        %v3172 = vmul.f32 %v3095, %v3156
        %v3173 = vmul.f32 %v3097, %v3157
        %v3174 = vmul.f32 %v3099, %v3158
        %v3175 = vmul.f32 %v3101, %v3159
        %v3176 = vmul.f32 %v3103, %v3160
        %v3177 = vmul.f32 %v3105, %v3161
        %v3178 = vmul.f32 %v3107, %v3162
        %v3179 = vmul.f32 %v3109, %v3163
        %v3180 = vmul.f32 %v3111, %v3164
        %v3181 = vmul.f32 %v3113, %v3165
        %v3182 = vmul.f32 %v3115, %v3166
        %v3183 = vmul.f32 %v3117, %v3167
        %v3184 = vmul.f32 %v3119, %v3168
        %v3185 = vmul.f32 %v3121, %v3169
        %v3186 = vpack.c.bf16 %v3171, %v3170
        %v3187 = vpack.c.bf16 %v3173, %v3172
        %v3188 = vpack.c.bf16 %v3175, %v3174
        %v3189 = vpack.c.bf16 %v3177, %v3176
        %v3190 = vpack.c.bf16 %v3179, %v3178
        %v3191 = vpack.c.bf16 %v3181, %v3180
        %v3192 = vpack.c.bf16 %v3183, %v3182
        %v3193 = vpack.c.bf16 %v3185, %v3184
        %3194 = vmatprep.subr.bf16.mxu0 0
        %3195 = vmatpush1.bf16.msra.mxu0 %v2842
        %3196 = vmatprep.subr.bf16.mxu0 0
        %3197 = vmatpush1.bf16.msra.mxu0 %v2833
        %3198 = vmatprep.subr.bf16.mxu0 0
        %3199 = vmatpush1.bf16.msra.mxu0 %v2824
        %3200 = vmatprep.subr.bf16.mxu0 0
        %3201 = vmatpush1.bf16.msra.mxu0 %v2815
        %3202 = vmatprep.subr.bf16.mxu0 0
        %3203 = vmatpush1.bf16.msra.mxu0 %v2806
        %3204 = vmatprep.subr.bf16.mxu0 0
        %3205 = vmatpush1.bf16.msra.mxu0 %v2797
        %3206 = vmatprep.subr.bf16.mxu0 0
        %3207 = vmatpush1.bf16.msra.mxu0 %v2788
        %3208 = vmatprep.subr.bf16.mxu0 0
        %3209 = vmatpush1.bf16.msra.mxu0 %v2779
        %3210 = vmatprep.subr.bf16.mxu0 0
        %3211 = vmatpush2.bf16.msra.mxu0 0
        %3212 = vmatprep.subr.bf16.mxu0 0
        %3213 = vmatpush2.bf16.msra.mxu0 0
        %3214 = vmatprep.subr.bf16.mxu0 0
        %3215 = vmatpush2.bf16.msra.mxu0 0
        %3216 = vmatprep.subr.bf16.mxu0 0
        %3217 = vmatpush2.bf16.msra.mxu0 0
        %3218 = vmatprep.subr.bf16.mxu0 0
        %3219 = vmatpush2.bf16.msra.mxu0 0
        %3220 = vmatprep.subr.bf16.mxu0 0
        %3221 = vmatpush2.bf16.msra.mxu0 0
        %3222 = vmatprep.subr.bf16.mxu0 0
        %3223 = vmatpush2.bf16.msra.mxu0 0
        %3224 = vmatprep.subr.bf16.mxu0 0
        %3225 = vmatpush2.bf16.msra.mxu0 0
        %3226 = vmatprep.mubr.bf16.mxu0 0
        %3227 = vmatmul.mubr.bf16.gmra.mxu0 %v3186
        %v3228 = vpop.f32.mrf.mxu0
        %v3229 = vadd.f32 0.0, %v3228
        %v3230 = vpop.f32.mrf.mxu0
        %v3231 = vpop.f32.mrf.mxu0
        %v3232 = vadd.f32 0.0, %v3231
        %v3233 = vpop.f32.mrf.mxu0
        %3234 = vmatprep.mubr.bf16.mxu0 0
        %3235 = vmatmul.mubr.bf16.gmra.mxu0 %v3187
        %v3236 = vpop.f32.mrf.mxu0
        %v3237 = vadd.f32 0.0, %v3236
        %v3238 = vpop.f32.mrf.mxu0
        %v3239 = vpop.f32.mrf.mxu0
        %v3240 = vadd.f32 0.0, %v3239
        %v3241 = vpop.f32.mrf.mxu0
        %3242 = vmatprep.mubr.bf16.mxu0 0
        %3243 = vmatmul.mubr.bf16.gmra.mxu0 %v3188
        %v3244 = vpop.f32.mrf.mxu0
        %v3245 = vadd.f32 0.0, %v3244
        %v3246 = vpop.f32.mrf.mxu0
        %v3247 = vpop.f32.mrf.mxu0
        %v3248 = vadd.f32 0.0, %v3247
        %v3249 = vpop.f32.mrf.mxu0
        %3250 = vmatprep.mubr.bf16.mxu0 0
        %3251 = vmatmul.mubr.bf16.gmra.mxu0 %v3189
        %v3252 = vpop.f32.mrf.mxu0
        %v3253 = vadd.f32 0.0, %v3252
        %v3254 = vpop.f32.mrf.mxu0
        %v3255 = vpop.f32.mrf.mxu0
        %v3256 = vadd.f32 0.0, %v3255
        %v3257 = vpop.f32.mrf.mxu0
        %3258 = vmatprep.mubr.bf16.mxu0 0
        %3259 = vmatmul.mubr.bf16.gmra.mxu0 %v3190
        %v3260 = vpop.f32.mrf.mxu0
        %v3261 = vadd.f32 0.0, %v3260
        %v3262 = vpop.f32.mrf.mxu0
        %v3263 = vpop.f32.mrf.mxu0
        %v3264 = vadd.f32 0.0, %v3263
        %v3265 = vpop.f32.mrf.mxu0
        %3266 = vmatprep.mubr.bf16.mxu0 0
        %3267 = vmatmul.mubr.bf16.gmra.mxu0 %v3191
        %v3268 = vpop.f32.mrf.mxu0
        %v3269 = vadd.f32 0.0, %v3268
        %v3270 = vpop.f32.mrf.mxu0
        %v3271 = vpop.f32.mrf.mxu0
        %v3272 = vadd.f32 0.0, %v3271
        %v3273 = vpop.f32.mrf.mxu0
        %3274 = vmatprep.mubr.bf16.mxu0 0
        %3275 = vmatmul.mubr.bf16.gmra.mxu0 %v3192
        %v3276 = vpop.f32.mrf.mxu0
        %v3277 = vadd.f32 0.0, %v3276
        %v3278 = vpop.f32.mrf.mxu0
        %v3279 = vpop.f32.mrf.mxu0
        %v3280 = vadd.f32 0.0, %v3279
        %v3281 = vpop.f32.mrf.mxu0
        %3282 = vmatprep.mubr.bf16.mxu0 0
        %3283 = vmatmul.mubr.bf16.gmra.mxu0 %v3193
        %v3284 = vpop.f32.mrf.mxu0
        %v3285 = vadd.f32 0.0, %v3284
        %v3286 = vpop.f32.mrf.mxu0
        %v3287 = vpop.f32.mrf.mxu0
        %v3288 = vadd.f32 0.0, %v3287
        %v3289 = vpop.f32.mrf.mxu0
        %3290 = vdwg.mxu0
        %v3291 = vpack.c.bf16 %v3232, %v3229
        %v3292 = vpack.c.bf16 %v3240, %v3237
        %v3293 = vpack.c.bf16 %v3248, %v3245
        %v3294 = vpack.c.bf16 %v3256, %v3253
        %v3295 = vpack.c.bf16 %v3264, %v3261
        %v3296 = vpack.c.bf16 %v3272, %v3269
        %v3297 = vpack.c.bf16 %v3280, %v3277
        %v3298 = vpack.c.bf16 %v3288, %v3285
        %v3299 = vld [vmem:[#allocation7] sm:$0xff]
        %v3300 = vld [vmem:[#allocation7 + $0x8] sm:$0xf]
        %v3301 = vld [vmem:[#allocation7 + $0xc] sm:$0xff]
        %v3302 = vld [vmem:[#allocation7 + $0x14] sm:$0xf]
        %v3303 = vld [vmem:[#allocation7 + $0x18] sm:$0xff]
        %v3304 = vld [vmem:[#allocation7 + $0x20] sm:$0xf]
        %v3305 = vld [vmem:[#allocation7 + $0x24] sm:$0xff]
        %v3306 = vld [vmem:[#allocation7 + $0x2c] sm:$0xf]
        %v3307 = vld [vmem:[#allocation7 + $0x30] sm:$0xff]
        %v3308 = vld [vmem:[#allocation7 + $0x38] sm:$0xf]
        %v3309 = vld [vmem:[#allocation7 + $0x3c] sm:$0xff]
        %v3310 = vld [vmem:[#allocation7 + $0x44] sm:$0xf]
        %v3311 = vld [vmem:[#allocation7 + $0x48] sm:$0xff]
        %v3312 = vld [vmem:[#allocation7 + $0x50] sm:$0xf]
        %v3313 = vld [vmem:[#allocation7 + $0x54] sm:$0xff]
        %v3314 = vld [vmem:[#allocation7 + $0x5c] sm:$0xf]
        %3323 = vrot.lane.b32.xlu0 %v2773, 64
        %v3324 = vpop.permute.xlu0 %3323
        %3325 = vrot.lane.b32.xlu0 %v2782, 64
        %v3326 = vpop.permute.xlu0 %3325
        %3327 = vrot.lane.b32.xlu0 %v2791, 64
        %v3328 = vpop.permute.xlu0 %3327
        %3329 = vrot.lane.b32.xlu0 %v2800, 64
        %v3330 = vpop.permute.xlu0 %3329
        %3331 = vrot.lane.b32.xlu0 %v2809, 64
        %v3332 = vpop.permute.xlu0 %3331
        %3333 = vrot.lane.b32.xlu0 %v2818, 64
        %v3334 = vpop.permute.xlu0 %3333
        %3335 = vrot.lane.b32.xlu0 %v2827, 64
        %v3336 = vpop.permute.xlu0 %3335
        %3337 = vrot.lane.b32.xlu0 %v2836, 64
        %v3338 = vpop.permute.xlu0 %3337
        %3347 = vrot.lane.b32.xlu0 %v2776, 64
        %v3348 = vpop.permute.xlu0 %3347
        %3349 = vrot.lane.b32.xlu0 %v2785, 64
        %v3350 = vpop.permute.xlu0 %3349
        %3351 = vrot.lane.b32.xlu0 %v2794, 64
        %v3352 = vpop.permute.xlu0 %3351
        %3353 = vrot.lane.b32.xlu0 %v2803, 64
        %v3354 = vpop.permute.xlu0 %3353
        %3355 = vrot.lane.b32.xlu0 %v2812, 64
        %v3356 = vpop.permute.xlu0 %3355
        %3357 = vrot.lane.b32.xlu0 %v2821, 64
        %v3358 = vpop.permute.xlu0 %3357
        %3359 = vrot.lane.b32.xlu0 %v2830, 64
        %v3360 = vpop.permute.xlu0 %3359
        %3361 = vrot.lane.b32.xlu0 %v2839, 64
        %v3362 = vpop.permute.xlu0 %3361
        %v3364 = vsel %vm2880, %v3324, 0
        %v3367 = vsel %vm2880, %v3326, 0
        %v3370 = vsel %vm2880, %v3328, 0
        %v3373 = vsel %vm2880, %v3330, 0
        %v3376 = vsel %vm2880, %v3332, 0
        %v3379 = vsel %vm2880, %v3334, 0
        %v3382 = vsel %vm2880, %v3336, 0
        %v3385 = vsel %vm2880, %v3338, 0
        %v3388 = vsel %vm2880, %v3348, 0
        %v3391 = vsel %vm2880, %v3350, 0
        %v3394 = vsel %vm2880, %v3352, 0
        %v3397 = vsel %vm2880, %v3354, 0
        %v3400 = vsel %vm2880, %v3356, 0
        %v3403 = vsel %vm2880, %v3358, 0
        %v3406 = vsel %vm2880, %v3360, 0
        %v3409 = vsel %vm2880, %v3362, 0
        %3411 = vmatprep.subr.bf16.mxu0 0
        %3412 = vmatpush1.bf16.xpose.msra.mxu0 %v3409
        %3413 = vmatprep.subr.bf16.mxu0 0
        %3414 = vmatpush1.bf16.xpose.msra.mxu0 %v3406
        %3415 = vmatprep.subr.bf16.mxu0 0
        %3416 = vmatpush1.bf16.xpose.msra.mxu0 %v3403
        %3417 = vmatprep.subr.bf16.mxu0 0
        %3418 = vmatpush1.bf16.xpose.msra.mxu0 %v3400
        %3419 = vmatprep.subr.bf16.mxu0 0
        %3420 = vmatpush1.bf16.xpose.msra.mxu0 %v3397
        %3421 = vmatprep.subr.bf16.mxu0 0
        %3422 = vmatpush1.bf16.xpose.msra.mxu0 %v3394
        %3423 = vmatprep.subr.bf16.mxu0 0
        %3424 = vmatpush1.bf16.xpose.msra.mxu0 %v3391
        %3425 = vmatprep.subr.bf16.mxu0 0
        %3426 = vmatpush1.bf16.xpose.msra.mxu0 %v3388
        %3427 = vmatprep.subr.bf16.mxu0 0
        %3428 = vmatpush2.bf16.xpose.msra.mxu0 0
        %3429 = vmatprep.subr.bf16.mxu0 0
        %3430 = vmatpush2.bf16.xpose.msra.mxu0 0
        %3431 = vmatprep.subr.bf16.mxu0 0
        %3432 = vmatpush2.bf16.xpose.msra.mxu0 0
        %3433 = vmatprep.subr.bf16.mxu0 0
        %3434 = vmatpush2.bf16.xpose.msra.mxu0 0
        %3435 = vmatprep.subr.bf16.mxu0 0
        %3436 = vmatpush2.bf16.xpose.msra.mxu0 0
        %3437 = vmatprep.subr.bf16.mxu0 0
        %3438 = vmatpush2.bf16.xpose.msra.mxu0 0
        %3439 = vmatprep.subr.bf16.mxu0 0
        %3440 = vmatpush2.bf16.xpose.msra.mxu0 0
        %3441 = vmatprep.subr.bf16.mxu0 0
        %3442 = vmatpush2.bf16.xpose.msra.mxu0 0
        %3443 = vmatprep.mubr.bf16.mxu0 0
        %3444 = vmatmul.mubr.bf16.gmra.mxu0 %v3364
        %v3445 = vpop.f32.mrf.mxu0
        %v3446 = vadd.f32 0.0, %v3445
        %v3447 = vpop.f32.mrf.mxu0
        %v3448 = vpop.f32.mrf.mxu0
        %v3449 = vadd.f32 0.0, %v3448
        %v3450 = vpop.f32.mrf.mxu0
        %3451 = vmatprep.mubr.bf16.mxu0 0
        %3452 = vmatmul.mubr.bf16.gmra.mxu0 %v3367
        %v3453 = vpop.f32.mrf.mxu0
        %v3454 = vadd.f32 0.0, %v3453
        %v3455 = vpop.f32.mrf.mxu0
        %v3456 = vpop.f32.mrf.mxu0
        %v3457 = vadd.f32 0.0, %v3456
        %v3458 = vpop.f32.mrf.mxu0
        %3459 = vmatprep.mubr.bf16.mxu0 0
        %3460 = vmatmul.mubr.bf16.gmra.mxu0 %v3370
        %v3461 = vpop.f32.mrf.mxu0
        %v3462 = vadd.f32 0.0, %v3461
        %v3463 = vpop.f32.mrf.mxu0
        %v3464 = vpop.f32.mrf.mxu0
        %v3465 = vadd.f32 0.0, %v3464
        %v3466 = vpop.f32.mrf.mxu0
        %3467 = vmatprep.mubr.bf16.mxu0 0
        %3468 = vmatmul.mubr.bf16.gmra.mxu0 %v3373
        %v3469 = vpop.f32.mrf.mxu0
        %v3470 = vadd.f32 0.0, %v3469
        %v3471 = vpop.f32.mrf.mxu0
        %v3472 = vpop.f32.mrf.mxu0
        %v3473 = vadd.f32 0.0, %v3472
        %v3474 = vpop.f32.mrf.mxu0
        %3475 = vmatprep.mubr.bf16.mxu0 0
        %3476 = vmatmul.mubr.bf16.gmra.mxu0 %v3376
        %v3477 = vpop.f32.mrf.mxu0
        %v3478 = vadd.f32 0.0, %v3477
        %v3479 = vpop.f32.mrf.mxu0
        %v3480 = vpop.f32.mrf.mxu0
        %v3481 = vadd.f32 0.0, %v3480
        %v3482 = vpop.f32.mrf.mxu0
        %3483 = vmatprep.mubr.bf16.mxu0 0
        %3484 = vmatmul.mubr.bf16.gmra.mxu0 %v3379
        %v3485 = vpop.f32.mrf.mxu0
        %v3486 = vadd.f32 0.0, %v3485
        %v3487 = vpop.f32.mrf.mxu0
        %v3488 = vpop.f32.mrf.mxu0
        %v3489 = vadd.f32 0.0, %v3488
        %v3490 = vpop.f32.mrf.mxu0
        %3491 = vmatprep.mubr.bf16.mxu0 0
        %3492 = vmatmul.mubr.bf16.gmra.mxu0 %v3382
        %v3493 = vpop.f32.mrf.mxu0
        %v3494 = vadd.f32 0.0, %v3493
        %v3495 = vpop.f32.mrf.mxu0
        %v3496 = vpop.f32.mrf.mxu0
        %v3497 = vadd.f32 0.0, %v3496
        %v3498 = vpop.f32.mrf.mxu0
        %3499 = vmatprep.mubr.bf16.mxu0 0
        %3500 = vmatmul.mubr.bf16.gmra.mxu0 %v3385
        %v3501 = vpop.f32.mrf.mxu0
        %v3502 = vadd.f32 0.0, %v3501
        %v3503 = vpop.f32.mrf.mxu0
        %v3504 = vpop.f32.mrf.mxu0
        %v3505 = vadd.f32 0.0, %v3504
        %v3506 = vpop.f32.mrf.mxu0
        %3507 = vdwg.mxu0
        %v3508 = vsel %vm2864, %v3446, -1e+30
        %v3509 = vsel %vm2865, %v3449, -1e+30
        %v3510 = vsel %vm2866, %v3454, -1e+30
        %v3511 = vsel %vm2867, %v3457, -1e+30
        %v3512 = vsel %vm2868, %v3462, -1e+30
        %v3513 = vsel %vm2869, %v3465, -1e+30
        %v3514 = vsel %vm2870, %v3470, -1e+30
        %v3515 = vsel %vm2871, %v3473, -1e+30
        %v3516 = vsel %vm2872, %v3478, -1e+30
        %v3517 = vsel %vm2873, %v3481, -1e+30
        %v3518 = vsel %vm2874, %v3486, -1e+30
        %v3519 = vsel %vm2875, %v3489, -1e+30
        %v3520 = vsel %vm2876, %v3494, -1e+30
        %v3521 = vsel %vm2877, %v3497, -1e+30
        %v3522 = vsel %vm2878, %v3502, -1e+30
        %v3523 = vsel %vm2879, %v3505, -1e+30
        %3524 = vmax.xlane.f32.xlu0 %v3508
        %v3525 = vpop.xlane.xlu0 %3524
        %3526 = vmax.xlane.f32.xlu0 %v3509
        %v3527 = vpop.xlane.xlu0 %3526
        %3528 = vmax.xlane.f32.xlu0 %v3510
        %v3529 = vpop.xlane.xlu0 %3528
        %3530 = vmax.xlane.f32.xlu0 %v3511
        %v3531 = vpop.xlane.xlu0 %3530
        %3532 = vmax.xlane.f32.xlu0 %v3512
        %v3533 = vpop.xlane.xlu0 %3532
        %3534 = vmax.xlane.f32.xlu0 %v3513
        %v3535 = vpop.xlane.xlu0 %3534
        %3536 = vmax.xlane.f32.xlu0 %v3514
        %v3537 = vpop.xlane.xlu0 %3536
        %3538 = vmax.xlane.f32.xlu0 %v3515
        %v3539 = vpop.xlane.xlu0 %3538
        %3540 = vmax.xlane.f32.xlu0 %v3516
        %v3541 = vpop.xlane.xlu0 %3540
        %3542 = vmax.xlane.f32.xlu0 %v3517
        %v3543 = vpop.xlane.xlu0 %3542
        %3544 = vmax.xlane.f32.xlu0 %v3518
        %v3545 = vpop.xlane.xlu0 %3544
        %3546 = vmax.xlane.f32.xlu0 %v3519
        %v3547 = vpop.xlane.xlu0 %3546
        %3548 = vmax.xlane.f32.xlu0 %v3520
        %v3549 = vpop.xlane.xlu0 %3548
        %3550 = vmax.xlane.f32.xlu0 %v3521
        %v3551 = vpop.xlane.xlu0 %3550
        %3552 = vmax.xlane.f32.xlu0 %v3522
        %v3553 = vpop.xlane.xlu0 %3552
        %3554 = vmax.xlane.f32.xlu0 %v3523
        %v3555 = vpop.xlane.xlu0 %3554
        %v3556 = vsub.f32 %v3508, %v3525
        %v3557 = vsub.f32 %v3509, %v3527
        %v3558 = vsub.f32 %v3510, %v3529
        %v3559 = vsub.f32 %v3511, %v3531
        %v3560 = vsub.f32 %v3512, %v3533
        %v3561 = vsub.f32 %v3513, %v3535
        %v3562 = vsub.f32 %v3514, %v3537
        %v3563 = vsub.f32 %v3515, %v3539
        %v3564 = vsub.f32 %v3516, %v3541
        %v3565 = vsub.f32 %v3517, %v3543
        %v3566 = vsub.f32 %v3518, %v3545
        %v3567 = vsub.f32 %v3519, %v3547
        %v3568 = vsub.f32 %v3520, %v3549
        %v3569 = vsub.f32 %v3521, %v3551
        %v3570 = vsub.f32 %v3522, %v3553
        %v3571 = vsub.f32 %v3523, %v3555
        %v3572 = vmul.f32 %v3556, 1.442695
        %v3573 = vpow.pop %v3572
        %v3574 = vmul.f32 %v3557, 1.442695
        %v3575 = vpow.pop %v3574
        %v3576 = vmul.f32 %v3558, 1.442695
        %v3577 = vpow.pop %v3576
        %v3578 = vmul.f32 %v3559, 1.442695
        %v3579 = vpow.pop %v3578
        %v3580 = vmul.f32 %v3560, 1.442695
        %v3581 = vpow.pop %v3580
        %v3582 = vmul.f32 %v3561, 1.442695
        %v3583 = vpow.pop %v3582
        %v3584 = vmul.f32 %v3562, 1.442695
        %v3585 = vpow.pop %v3584
        %v3586 = vmul.f32 %v3563, 1.442695
        %v3587 = vpow.pop %v3586
        %v3588 = vmul.f32 %v3564, 1.442695
        %v3589 = vpow.pop %v3588
        %v3590 = vmul.f32 %v3565, 1.442695
        %v3591 = vpow.pop %v3590
        %v3592 = vmul.f32 %v3566, 1.442695
        %v3593 = vpow.pop %v3592
        %v3594 = vmul.f32 %v3567, 1.442695
        %v3595 = vpow.pop %v3594
        %v3596 = vmul.f32 %v3568, 1.442695
        %v3597 = vpow.pop %v3596
        %v3598 = vmul.f32 %v3569, 1.442695
        %v3599 = vpow.pop %v3598
        %v3600 = vmul.f32 %v3570, 1.442695
        %v3601 = vpow.pop %v3600
        %v3602 = vmul.f32 %v3571, 1.442695
        %v3603 = vpow.pop %v3602
        %3604 = vadd.xlane.f32.xlu0 %v3573
        %v3605 = vpop.xlane.xlu0 %3604
        %3606 = vadd.xlane.f32.xlu0 %v3575
        %v3607 = vpop.xlane.xlu0 %3606
        %3608 = vadd.xlane.f32.xlu0 %v3577
        %v3609 = vpop.xlane.xlu0 %3608
        %3610 = vadd.xlane.f32.xlu0 %v3579
        %v3611 = vpop.xlane.xlu0 %3610
        %3612 = vadd.xlane.f32.xlu0 %v3581
        %v3613 = vpop.xlane.xlu0 %3612
        %3614 = vadd.xlane.f32.xlu0 %v3583
        %v3615 = vpop.xlane.xlu0 %3614
        %3616 = vadd.xlane.f32.xlu0 %v3585
        %v3617 = vpop.xlane.xlu0 %3616
        %3618 = vadd.xlane.f32.xlu0 %v3587
        %v3619 = vpop.xlane.xlu0 %3618
        %3620 = vadd.xlane.f32.xlu0 %v3589
        %v3621 = vpop.xlane.xlu0 %3620
        %3622 = vadd.xlane.f32.xlu0 %v3591
        %v3623 = vpop.xlane.xlu0 %3622
        %3624 = vadd.xlane.f32.xlu0 %v3593
        %v3625 = vpop.xlane.xlu0 %3624
        %3626 = vadd.xlane.f32.xlu0 %v3595
        %v3627 = vpop.xlane.xlu0 %3626
        %3628 = vadd.xlane.f32.xlu0 %v3597
        %v3629 = vpop.xlane.xlu0 %3628
        %3630 = vadd.xlane.f32.xlu0 %v3599
        %v3631 = vpop.xlane.xlu0 %3630
        %3632 = vadd.xlane.f32.xlu0 %v3601
        %v3633 = vpop.xlane.xlu0 %3632
        %3634 = vadd.xlane.f32.xlu0 %v3603
        %v3635 = vpop.xlane.xlu0 %3634
        %v3636 = vrcp.pop %v3605
        %v3637 = vrcp.pop %v3607
        %v3638 = vrcp.pop %v3609
        %v3639 = vrcp.pop %v3611
        %v3640 = vrcp.pop %v3613
        %v3641 = vrcp.pop %v3615
        %v3642 = vrcp.pop %v3617
        %v3643 = vrcp.pop %v3619
        %v3644 = vrcp.pop %v3621
        %v3645 = vrcp.pop %v3623
        %v3646 = vrcp.pop %v3625
        %v3647 = vrcp.pop %v3627
        %v3648 = vrcp.pop %v3629
        %v3649 = vrcp.pop %v3631
        %v3650 = vrcp.pop %v3633
        %v3651 = vrcp.pop %v3635
        %v3652 = vmul.f32 %v3573, %v3636
        %v3653 = vmul.f32 %v3575, %v3637
        %v3654 = vmul.f32 %v3577, %v3638
        %v3655 = vmul.f32 %v3579, %v3639
        %v3656 = vmul.f32 %v3581, %v3640
        %v3657 = vmul.f32 %v3583, %v3641
        %v3658 = vmul.f32 %v3585, %v3642
        %v3659 = vmul.f32 %v3587, %v3643
        %v3660 = vmul.f32 %v3589, %v3644
        %v3661 = vmul.f32 %v3591, %v3645
        %v3662 = vmul.f32 %v3593, %v3646
        %v3663 = vmul.f32 %v3595, %v3647
        %v3664 = vmul.f32 %v3597, %v3648
        %v3665 = vmul.f32 %v3599, %v3649
        %v3666 = vmul.f32 %v3601, %v3650
        %v3667 = vmul.f32 %v3603, %v3651
        %v3668 = vpack.c.bf16 %v3653, %v3652
        %v3669 = vpack.c.bf16 %v3655, %v3654
        %v3670 = vpack.c.bf16 %v3657, %v3656
        %v3671 = vpack.c.bf16 %v3659, %v3658
        %v3672 = vpack.c.bf16 %v3661, %v3660
        %v3673 = vpack.c.bf16 %v3663, %v3662
        %v3674 = vpack.c.bf16 %v3665, %v3664
        %v3675 = vpack.c.bf16 %v3667, %v3666
        %3684 = vrot.lane.b32.xlu0 %v2779, 64
        %v3685 = vpop.permute.xlu0 %3684
        %3686 = vrot.lane.b32.xlu0 %v2788, 64
        %v3687 = vpop.permute.xlu0 %3686
        %3688 = vrot.lane.b32.xlu0 %v2797, 64
        %v3689 = vpop.permute.xlu0 %3688
        %3690 = vrot.lane.b32.xlu0 %v2806, 64
        %v3691 = vpop.permute.xlu0 %3690
        %3692 = vrot.lane.b32.xlu0 %v2815, 64
        %v3693 = vpop.permute.xlu0 %3692
        %3694 = vrot.lane.b32.xlu0 %v2824, 64
        %v3695 = vpop.permute.xlu0 %3694
        %3696 = vrot.lane.b32.xlu0 %v2833, 64
        %v3697 = vpop.permute.xlu0 %3696
        %3698 = vrot.lane.b32.xlu0 %v2842, 64
        %v3699 = vpop.permute.xlu0 %3698
        %3708 = vmatprep.subr.bf16.mxu0 0
        %3709 = vmatpush1.bf16.msra.mxu0 %v3699
        %3710 = vmatprep.subr.bf16.mxu0 0
        %3711 = vmatpush1.bf16.msra.mxu0 %v3697
        %3712 = vmatprep.subr.bf16.mxu0 0
        %3713 = vmatpush1.bf16.msra.mxu0 %v3695
        %3714 = vmatprep.subr.bf16.mxu0 0
        %3715 = vmatpush1.bf16.msra.mxu0 %v3693
        %3716 = vmatprep.subr.bf16.mxu0 0
        %3717 = vmatpush1.bf16.msra.mxu0 %v3691
        %3718 = vmatprep.subr.bf16.mxu0 0
        %3719 = vmatpush1.bf16.msra.mxu0 %v3689
        %3720 = vmatprep.subr.bf16.mxu0 0
        %3721 = vmatpush1.bf16.msra.mxu0 %v3687
        %3722 = vmatprep.subr.bf16.mxu0 0
        %3723 = vmatpush1.bf16.msra.mxu0 %v3685
        %3724 = vmatprep.subr.bf16.mxu0 0
        %3725 = vmatpush2.bf16.msra.mxu0 0
        %3726 = vmatprep.subr.bf16.mxu0 0
        %3727 = vmatpush2.bf16.msra.mxu0 0
        %3728 = vmatprep.subr.bf16.mxu0 0
        %3729 = vmatpush2.bf16.msra.mxu0 0
        %3730 = vmatprep.subr.bf16.mxu0 0
        %3731 = vmatpush2.bf16.msra.mxu0 0
        %3732 = vmatprep.subr.bf16.mxu0 0
        %3733 = vmatpush2.bf16.msra.mxu0 0
        %3734 = vmatprep.subr.bf16.mxu0 0
        %3735 = vmatpush2.bf16.msra.mxu0 0
        %3736 = vmatprep.subr.bf16.mxu0 0
        %3737 = vmatpush2.bf16.msra.mxu0 0
        %3738 = vmatprep.subr.bf16.mxu0 0
        %3739 = vmatpush2.bf16.msra.mxu0 0
        %3740 = vmatprep.mubr.bf16.mxu0 0
        %3741 = vmatmul.mubr.bf16.gmra.mxu0 %v3668
        %v3742 = vpop.f32.mrf.mxu0
        %v3743 = vadd.f32 0.0, %v3742
        %v3744 = vpop.f32.mrf.mxu0
        %v3745 = vpop.f32.mrf.mxu0
        %v3746 = vadd.f32 0.0, %v3745
        %v3747 = vpop.f32.mrf.mxu0
        %3748 = vmatprep.mubr.bf16.mxu0 0
        %3749 = vmatmul.mubr.bf16.gmra.mxu0 %v3669
        %v3750 = vpop.f32.mrf.mxu0
        %v3751 = vadd.f32 0.0, %v3750
        %v3752 = vpop.f32.mrf.mxu0
        %v3753 = vpop.f32.mrf.mxu0
        %v3754 = vadd.f32 0.0, %v3753
        %v3755 = vpop.f32.mrf.mxu0
        %3756 = vmatprep.mubr.bf16.mxu0 0
        %3757 = vmatmul.mubr.bf16.gmra.mxu0 %v3670
        %v3758 = vpop.f32.mrf.mxu0
        %v3759 = vadd.f32 0.0, %v3758
        %v3760 = vpop.f32.mrf.mxu0
        %v3761 = vpop.f32.mrf.mxu0
        %v3762 = vadd.f32 0.0, %v3761
        %v3763 = vpop.f32.mrf.mxu0
        %3764 = vmatprep.mubr.bf16.mxu0 0
        %3765 = vmatmul.mubr.bf16.gmra.mxu0 %v3671
        %v3766 = vpop.f32.mrf.mxu0
        %v3767 = vadd.f32 0.0, %v3766
        %v3768 = vpop.f32.mrf.mxu0
        %v3769 = vpop.f32.mrf.mxu0
        %v3770 = vadd.f32 0.0, %v3769
        %v3771 = vpop.f32.mrf.mxu0
        %3772 = vmatprep.mubr.bf16.mxu0 0
        %3773 = vmatmul.mubr.bf16.gmra.mxu0 %v3672
        %v3774 = vpop.f32.mrf.mxu0
        %v3775 = vadd.f32 0.0, %v3774
        %v3776 = vpop.f32.mrf.mxu0
        %v3777 = vpop.f32.mrf.mxu0
        %v3778 = vadd.f32 0.0, %v3777
        %v3779 = vpop.f32.mrf.mxu0
        %3780 = vmatprep.mubr.bf16.mxu0 0
        %3781 = vmatmul.mubr.bf16.gmra.mxu0 %v3673
        %v3782 = vpop.f32.mrf.mxu0
        %v3783 = vadd.f32 0.0, %v3782
        %v3784 = vpop.f32.mrf.mxu0
        %v3785 = vpop.f32.mrf.mxu0
        %v3786 = vadd.f32 0.0, %v3785
        %v3787 = vpop.f32.mrf.mxu0
        %3788 = vmatprep.mubr.bf16.mxu0 0
        %3789 = vmatmul.mubr.bf16.gmra.mxu0 %v3674
        %v3790 = vpop.f32.mrf.mxu0
        %v3791 = vadd.f32 0.0, %v3790
        %v3792 = vpop.f32.mrf.mxu0
        %v3793 = vpop.f32.mrf.mxu0
        %v3794 = vadd.f32 0.0, %v3793
        %v3795 = vpop.f32.mrf.mxu0
        %3796 = vmatprep.mubr.bf16.mxu0 0
        %3797 = vmatmul.mubr.bf16.gmra.mxu0 %v3675
        %v3798 = vpop.f32.mrf.mxu0
        %v3799 = vadd.f32 0.0, %v3798
        %v3800 = vpop.f32.mrf.mxu0
        %v3801 = vpop.f32.mrf.mxu0
        %v3802 = vadd.f32 0.0, %v3801
        %v3803 = vpop.f32.mrf.mxu0
        %3804 = vdwg.mxu0
        %v3805 = vpack.c.bf16 %v3746, %v3743
        %v3806 = vpack.c.bf16 %v3754, %v3751
        %v3807 = vpack.c.bf16 %v3762, %v3759
        %v3808 = vpack.c.bf16 %v3770, %v3767
        %v3809 = vpack.c.bf16 %v3778, %v3775
        %v3810 = vpack.c.bf16 %v3786, %v3783
        %v3811 = vpack.c.bf16 %v3794, %v3791
        %v3812 = vpack.c.bf16 %v3802, %v3799
        %v3813 = vld [vmem:[#allocation7 + $0x60] sm:$0xff]
        %v3814 = vld [vmem:[#allocation7 + $0x68] sm:$0xf]
        %v3815 = vld [vmem:[#allocation7 + $0x6c] sm:$0xff]
        %v3816 = vld [vmem:[#allocation7 + $0x74] sm:$0xf]
        %v3817 = vld [vmem:[#allocation7 + $0x78] sm:$0xff]
        %v3818 = vld [vmem:[#allocation7 + $0x80] sm:$0xf]
        %v3819 = vld [vmem:[#allocation7 + $0x84] sm:$0xff]
        %v3820 = vld [vmem:[#allocation7 + $0x8c] sm:$0xf]
        %v3821 = vld [vmem:[#allocation7 + $0x90] sm:$0xff]
        %v3822 = vld [vmem:[#allocation7 + $0x98] sm:$0xf]
        %v3823 = vld [vmem:[#allocation7 + $0x9c] sm:$0xff]
        %v3824 = vld [vmem:[#allocation7 + $0xa4] sm:$0xf]
        %v3825 = vld [vmem:[#allocation7 + $0xa8] sm:$0xff]
        %v3826 = vld [vmem:[#allocation7 + $0xb0] sm:$0xf]
        %v3827 = vld [vmem:[#allocation7 + $0xb4] sm:$0xff]
        %v3828 = vld [vmem:[#allocation7 + $0xbc] sm:$0xf]
        %v3845 = vunpack.c.l.b16 %v3813
        %v3846 = vunpack.c.h.b16 %v3813
        %v3847 = vunpack.c.l.b16 %v3814
        %v3848 = vunpack.c.l.b16 %v3815
        %v3849 = vunpack.c.h.b16 %v3815
        %v3850 = vunpack.c.l.b16 %v3816
        %v3851 = vunpack.c.l.b16 %v3817
        %v3852 = vunpack.c.h.b16 %v3817
        %v3853 = vunpack.c.l.b16 %v3818
        %v3854 = vunpack.c.l.b16 %v3819
        %v3855 = vunpack.c.h.b16 %v3819
        %v3856 = vunpack.c.l.b16 %v3820
        %v3857 = vunpack.c.l.b16 %v3821
        %v3858 = vunpack.c.h.b16 %v3821
        %v3859 = vunpack.c.l.b16 %v3822
        %v3860 = vunpack.c.l.b16 %v3823
        %v3861 = vunpack.c.h.b16 %v3823
        %v3862 = vunpack.c.l.b16 %v3824
        %v3863 = vunpack.c.l.b16 %v3825
        %v3864 = vunpack.c.h.b16 %v3825
        %v3865 = vunpack.c.l.b16 %v3826
        %v3866 = vunpack.c.l.b16 %v3827
        %v3867 = vunpack.c.h.b16 %v3827
        %v3868 = vunpack.c.l.b16 %v3828
        %v3869 = vpack.c.b16 %v3848, %v3845
        %v3870 = vpack.c.b16 %v3849, %v3846
        %v3871 = vpack.c.b16 %v3850, %v3847
        %v3872 = vpack.c.b16 %v3854, %v3851
        %v3873 = vpack.c.b16 %v3855, %v3852
        %v3874 = vpack.c.b16 %v3856, %v3853
        %v3875 = vpack.c.b16 %v3860, %v3857
        %v3876 = vpack.c.b16 %v3861, %v3858
        %v3877 = vpack.c.b16 %v3862, %v3859
        %v3878 = vpack.c.b16 %v3866, %v3863
        %v3879 = vpack.c.b16 %v3867, %v3864
        %v3880 = vpack.c.b16 %v3868, %v3865
        %v3894 = vsel %vm2880, %v3805, 0
        %v3897 = vsel %vm2880, %v3806, 0
        %v3900 = vsel %vm2880, %v3807, 0
        %v3903 = vsel %vm2880, %v3808, 0
        %v3906 = vsel %vm2880, %v3809, 0
        %v3909 = vsel %vm2880, %v3810, 0
        %v3912 = vsel %vm2880, %v3811, 0
        %v3915 = vsel %vm2880, %v3812, 0
        %3917 = vmatprep.subr.bf16.mxu0 0
        %3918 = vmatpush1.bf16.msra.mxu0 0
        %3919 = vmatprep.subr.bf16.mxu0 0
        %3920 = vmatpush1.bf16.msra.mxu0 0
        %3921 = vmatprep.subr.bf16.mxu0 0
        %3922 = vmatpush1.bf16.msra.mxu0 0
        %3923 = vmatprep.subr.bf16.mxu0 0
        %3924 = vmatpush1.bf16.msra.mxu0 0
        %3925 = vmatprep.subr.bf16.mxu0 %v3879
        %3926 = vmatpush1.bf16.msra.mxu0 %v3878
        %3927 = vmatprep.subr.bf16.mxu0 %v3876
        %3928 = vmatpush1.bf16.msra.mxu0 %v3875
        %3929 = vmatprep.subr.bf16.mxu0 %v3873
        %3930 = vmatpush1.bf16.msra.mxu0 %v3872
        %3931 = vmatprep.subr.bf16.mxu0 %v3870
        %3932 = vmatpush1.bf16.msra.mxu0 %v3869
        %3933 = vmatprep.subr.bf16.mxu0 0
        %3934 = vmatpush2.bf16.msra.mxu0 0
        %3935 = vmatprep.subr.bf16.mxu0 0
        %3936 = vmatpush2.bf16.msra.mxu0 0
        %3937 = vmatprep.subr.bf16.mxu0 0
        %3938 = vmatpush2.bf16.msra.mxu0 0
        %3939 = vmatprep.subr.bf16.mxu0 0
        %3940 = vmatpush2.bf16.msra.mxu0 0
        %3941 = vmatprep.subr.bf16.mxu0 0
        %3942 = vmatpush2.bf16.msra.mxu0 0
        %3943 = vmatprep.subr.bf16.mxu0 0
        %3944 = vmatpush2.bf16.msra.mxu0 0
        %3945 = vmatprep.subr.bf16.mxu0 0
        %3946 = vmatpush2.bf16.msra.mxu0 0
        %3947 = vmatprep.subr.bf16.mxu0 0
        %3948 = vmatpush2.bf16.msra.mxu0 0
        %3949 = vmatprep.mubr.bf16.mxu0 0
        %3950 = vmatmul.mubr.bf16.gmra.mxu0 %v3894
        %v3951 = vpop.f32.mrf.mxu0
        %v3952 = vadd.f32 0.0, %v3951
        %v3953 = vpop.f32.mrf.mxu0
        %v3954 = vadd.f32 0.0, %v3953
        %v3955 = vpop.f32.mrf.mxu0
        %v3956 = vadd.f32 0.0, %v3955
        %v3957 = vpop.f32.mrf.mxu0
        %v3958 = vadd.f32 0.0, %v3957
        %3959 = vmatprep.mubr.bf16.mxu0 0
        %3960 = vmatmul.mubr.bf16.gmra.mxu0 %v3897
        %v3961 = vpop.f32.mrf.mxu0
        %v3962 = vadd.f32 0.0, %v3961
        %v3963 = vpop.f32.mrf.mxu0
        %v3964 = vadd.f32 0.0, %v3963
        %v3965 = vpop.f32.mrf.mxu0
        %v3966 = vadd.f32 0.0, %v3965
        %v3967 = vpop.f32.mrf.mxu0
        %v3968 = vadd.f32 0.0, %v3967
        %3969 = vmatprep.mubr.bf16.mxu0 0
        %3970 = vmatmul.mubr.bf16.gmra.mxu0 %v3900
        %v3971 = vpop.f32.mrf.mxu0
        %v3972 = vadd.f32 0.0, %v3971
        %v3973 = vpop.f32.mrf.mxu0
        %v3974 = vadd.f32 0.0, %v3973
        %v3975 = vpop.f32.mrf.mxu0
        %v3976 = vadd.f32 0.0, %v3975
        %v3977 = vpop.f32.mrf.mxu0
        %v3978 = vadd.f32 0.0, %v3977
        %3979 = vmatprep.mubr.bf16.mxu0 0
        %3980 = vmatmul.mubr.bf16.gmra.mxu0 %v3903
        %v3981 = vpop.f32.mrf.mxu0
        %v3982 = vadd.f32 0.0, %v3981
        %v3983 = vpop.f32.mrf.mxu0
        %v3984 = vadd.f32 0.0, %v3983
        %v3985 = vpop.f32.mrf.mxu0
        %v3986 = vadd.f32 0.0, %v3985
        %v3987 = vpop.f32.mrf.mxu0
        %v3988 = vadd.f32 0.0, %v3987
        %3989 = vmatprep.mubr.bf16.mxu0 0
        %3990 = vmatmul.mubr.bf16.gmra.mxu0 %v3906
        %v3991 = vpop.f32.mrf.mxu0
        %v3992 = vadd.f32 0.0, %v3991
        %v3993 = vpop.f32.mrf.mxu0
        %v3994 = vadd.f32 0.0, %v3993
        %v3995 = vpop.f32.mrf.mxu0
        %v3996 = vadd.f32 0.0, %v3995
        %v3997 = vpop.f32.mrf.mxu0
        %v3998 = vadd.f32 0.0, %v3997
        %3999 = vmatprep.mubr.bf16.mxu0 0
        %4000 = vmatmul.mubr.bf16.gmra.mxu0 %v3909
        %v4001 = vpop.f32.mrf.mxu0
        %v4002 = vadd.f32 0.0, %v4001
        %v4003 = vpop.f32.mrf.mxu0
        %v4004 = vadd.f32 0.0, %v4003
        %v4005 = vpop.f32.mrf.mxu0
        %v4006 = vadd.f32 0.0, %v4005
        %v4007 = vpop.f32.mrf.mxu0
        %v4008 = vadd.f32 0.0, %v4007
        %4009 = vmatprep.mubr.bf16.mxu0 0
        %4010 = vmatmul.mubr.bf16.gmra.mxu0 %v3912
        %v4011 = vpop.f32.mrf.mxu0
        %v4012 = vadd.f32 0.0, %v4011
        %v4013 = vpop.f32.mrf.mxu0
        %v4014 = vadd.f32 0.0, %v4013
        %v4015 = vpop.f32.mrf.mxu0
        %v4016 = vadd.f32 0.0, %v4015
        %v4017 = vpop.f32.mrf.mxu0
        %v4018 = vadd.f32 0.0, %v4017
        %4019 = vmatprep.mubr.bf16.mxu0 0
        %4020 = vmatmul.mubr.bf16.gmra.mxu0 %v3915
        %v4021 = vpop.f32.mrf.mxu0
        %v4022 = vadd.f32 0.0, %v4021
        %v4023 = vpop.f32.mrf.mxu0
        %v4024 = vadd.f32 0.0, %v4023
        %v4025 = vpop.f32.mrf.mxu0
        %v4026 = vadd.f32 0.0, %v4025
        %v4027 = vpop.f32.mrf.mxu0
        %v4028 = vadd.f32 0.0, %v4027
        %4029 = vdwg.mxu0
        %4030 = vmatprep.subr.bf16.mxu0 0
        %4031 = vmatpush1.bf16.msra.mxu0 0
        %4032 = vmatprep.subr.bf16.mxu0 0
        %4033 = vmatpush1.bf16.msra.mxu0 0
        %4034 = vmatprep.subr.bf16.mxu0 0
        %4035 = vmatpush1.bf16.msra.mxu0 0
        %4036 = vmatprep.subr.bf16.mxu0 0
        %4037 = vmatpush1.bf16.msra.mxu0 0
        %4038 = vmatprep.subr.bf16.mxu0 0
        %4039 = vmatpush1.bf16.msra.mxu0 %v3880
        %4040 = vmatprep.subr.bf16.mxu0 0
        %4041 = vmatpush1.bf16.msra.mxu0 %v3877
        %4042 = vmatprep.subr.bf16.mxu0 0
        %4043 = vmatpush1.bf16.msra.mxu0 %v3874
        %4044 = vmatprep.subr.bf16.mxu0 0
        %4045 = vmatpush1.bf16.msra.mxu0 %v3871
        %4046 = vmatprep.subr.bf16.mxu0 0
        %4047 = vmatpush2.bf16.msra.mxu0 0
        %4048 = vmatprep.subr.bf16.mxu0 0
        %4049 = vmatpush2.bf16.msra.mxu0 0
        %4050 = vmatprep.subr.bf16.mxu0 0
        %4051 = vmatpush2.bf16.msra.mxu0 0
        %4052 = vmatprep.subr.bf16.mxu0 0
        %4053 = vmatpush2.bf16.msra.mxu0 0
        %4054 = vmatprep.subr.bf16.mxu0 0
        %4055 = vmatpush2.bf16.msra.mxu0 0
        %4056 = vmatprep.subr.bf16.mxu0 0
        %4057 = vmatpush2.bf16.msra.mxu0 0
        %4058 = vmatprep.subr.bf16.mxu0 0
        %4059 = vmatpush2.bf16.msra.mxu0 0
        %4060 = vmatprep.subr.bf16.mxu0 0
        %4061 = vmatpush2.bf16.msra.mxu0 0
        %4062 = vmatprep.mubr.bf16.mxu0 0
        %4063 = vmatmul.mubr.bf16.gmra.mxu0 %v3894
        %v4064 = vpop.f32.mrf.mxu0
        %v4065 = vadd.f32 0.0, %v4064
        %v4066 = vpop.f32.mrf.mxu0
        %v4067 = vpop.f32.mrf.mxu0
        %v4068 = vadd.f32 0.0, %v4067
        %v4069 = vpop.f32.mrf.mxu0
        %4070 = vmatprep.mubr.bf16.mxu0 0
        %4071 = vmatmul.mubr.bf16.gmra.mxu0 %v3897
        %v4072 = vpop.f32.mrf.mxu0
        %v4073 = vadd.f32 0.0, %v4072
        %v4074 = vpop.f32.mrf.mxu0
        %v4075 = vpop.f32.mrf.mxu0
        %v4076 = vadd.f32 0.0, %v4075
        %v4077 = vpop.f32.mrf.mxu0
        %4078 = vmatprep.mubr.bf16.mxu0 0
        %4079 = vmatmul.mubr.bf16.gmra.mxu0 %v3900
        %v4080 = vpop.f32.mrf.mxu0
        %v4081 = vadd.f32 0.0, %v4080
        %v4082 = vpop.f32.mrf.mxu0
        %v4083 = vpop.f32.mrf.mxu0
        %v4084 = vadd.f32 0.0, %v4083
        %v4085 = vpop.f32.mrf.mxu0
        %4086 = vmatprep.mubr.bf16.mxu0 0
        %4087 = vmatmul.mubr.bf16.gmra.mxu0 %v3903
        %v4088 = vpop.f32.mrf.mxu0
        %v4089 = vadd.f32 0.0, %v4088
        %v4090 = vpop.f32.mrf.mxu0
        %v4091 = vpop.f32.mrf.mxu0
        %v4092 = vadd.f32 0.0, %v4091
        %v4093 = vpop.f32.mrf.mxu0
        %4094 = vmatprep.mubr.bf16.mxu0 0
        %4095 = vmatmul.mubr.bf16.gmra.mxu0 %v3906
        %v4096 = vpop.f32.mrf.mxu0
        %v4097 = vadd.f32 0.0, %v4096
        %v4098 = vpop.f32.mrf.mxu0
        %v4099 = vpop.f32.mrf.mxu0
        %v4100 = vadd.f32 0.0, %v4099
        %v4101 = vpop.f32.mrf.mxu0
        %4102 = vmatprep.mubr.bf16.mxu0 0
        %4103 = vmatmul.mubr.bf16.gmra.mxu0 %v3909
        %v4104 = vpop.f32.mrf.mxu0
        %v4105 = vadd.f32 0.0, %v4104
        %v4106 = vpop.f32.mrf.mxu0
        %v4107 = vpop.f32.mrf.mxu0
        %v4108 = vadd.f32 0.0, %v4107
        %v4109 = vpop.f32.mrf.mxu0
        %4110 = vmatprep.mubr.bf16.mxu0 0
        %4111 = vmatmul.mubr.bf16.gmra.mxu0 %v3912
        %v4112 = vpop.f32.mrf.mxu0
        %v4113 = vadd.f32 0.0, %v4112
        %v4114 = vpop.f32.mrf.mxu0
        %v4115 = vpop.f32.mrf.mxu0
        %v4116 = vadd.f32 0.0, %v4115
        %v4117 = vpop.f32.mrf.mxu0
        %4118 = vmatprep.mubr.bf16.mxu0 0
        %4119 = vmatmul.mubr.bf16.gmra.mxu0 %v3915
        %v4120 = vpop.f32.mrf.mxu0
        %v4121 = vadd.f32 0.0, %v4120
        %v4122 = vpop.f32.mrf.mxu0
        %v4123 = vpop.f32.mrf.mxu0
        %v4124 = vadd.f32 0.0, %v4123
        %v4125 = vpop.f32.mrf.mxu0
        %4126 = vdwg.mxu0
        %v4143 = vunpack.c.l.b16 %v3299
        %v4144 = vunpack.c.h.b16 %v3299
        %v4145 = vunpack.c.l.b16 %v3300
        %v4146 = vunpack.c.l.b16 %v3301
        %v4147 = vunpack.c.h.b16 %v3301
        %v4148 = vunpack.c.l.b16 %v3302
        %v4149 = vunpack.c.l.b16 %v3303
        %v4150 = vunpack.c.h.b16 %v3303
        %v4151 = vunpack.c.l.b16 %v3304
        %v4152 = vunpack.c.l.b16 %v3305
        %v4153 = vunpack.c.h.b16 %v3305
        %v4154 = vunpack.c.l.b16 %v3306
        %v4155 = vunpack.c.l.b16 %v3307
        %v4156 = vunpack.c.h.b16 %v3307
        %v4157 = vunpack.c.l.b16 %v3308
        %v4158 = vunpack.c.l.b16 %v3309
        %v4159 = vunpack.c.h.b16 %v3309
        %v4160 = vunpack.c.l.b16 %v3310
        %v4161 = vunpack.c.l.b16 %v3311
        %v4162 = vunpack.c.h.b16 %v3311
        %v4163 = vunpack.c.l.b16 %v3312
        %v4164 = vunpack.c.l.b16 %v3313
        %v4165 = vunpack.c.h.b16 %v3313
        %v4166 = vunpack.c.l.b16 %v3314
        %v4167 = vpack.c.b16 %v4146, %v4143
        %v4168 = vpack.c.b16 %v4147, %v4144
        %v4169 = vpack.c.b16 %v4148, %v4145
        %v4170 = vpack.c.b16 %v4152, %v4149
        %v4171 = vpack.c.b16 %v4153, %v4150
        %v4172 = vpack.c.b16 %v4154, %v4151
        %v4173 = vpack.c.b16 %v4158, %v4155
        %v4174 = vpack.c.b16 %v4159, %v4156
        %v4175 = vpack.c.b16 %v4160, %v4157
        %v4176 = vpack.c.b16 %v4164, %v4161
        %v4177 = vpack.c.b16 %v4165, %v4162
        %v4178 = vpack.c.b16 %v4166, %v4163
        %v4192 = vsel %vm2880, %v3291, 0
        %v4195 = vsel %vm2880, %v3292, 0
        %v4198 = vsel %vm2880, %v3293, 0
        %v4201 = vsel %vm2880, %v3294, 0
        %v4204 = vsel %vm2880, %v3295, 0
        %v4207 = vsel %vm2880, %v3296, 0
        %v4210 = vsel %vm2880, %v3297, 0
        %v4213 = vsel %vm2880, %v3298, 0
        %4215 = vmatprep.subr.bf16.mxu0 0
        %4216 = vmatpush1.bf16.msra.mxu0 0
        %4217 = vmatprep.subr.bf16.mxu0 0
        %4218 = vmatpush1.bf16.msra.mxu0 0
        %4219 = vmatprep.subr.bf16.mxu0 0
        %4220 = vmatpush1.bf16.msra.mxu0 0
        %4221 = vmatprep.subr.bf16.mxu0 0
        %4222 = vmatpush1.bf16.msra.mxu0 0
        %4223 = vmatprep.subr.bf16.mxu0 %v4177
        %4224 = vmatpush1.bf16.msra.mxu0 %v4176
        %4225 = vmatprep.subr.bf16.mxu0 %v4174
        %4226 = vmatpush1.bf16.msra.mxu0 %v4173
        %4227 = vmatprep.subr.bf16.mxu0 %v4171
        %4228 = vmatpush1.bf16.msra.mxu0 %v4170
        %4229 = vmatprep.subr.bf16.mxu0 %v4168
        %4230 = vmatpush1.bf16.msra.mxu0 %v4167
        %4231 = vmatprep.subr.bf16.mxu0 0
        %4232 = vmatpush2.bf16.msra.mxu0 0
        %4233 = vmatprep.subr.bf16.mxu0 0
        %4234 = vmatpush2.bf16.msra.mxu0 0
        %4235 = vmatprep.subr.bf16.mxu0 0
        %4236 = vmatpush2.bf16.msra.mxu0 0
        %4237 = vmatprep.subr.bf16.mxu0 0
        %4238 = vmatpush2.bf16.msra.mxu0 0
        %4239 = vmatprep.subr.bf16.mxu0 0
        %4240 = vmatpush2.bf16.msra.mxu0 0
        %4241 = vmatprep.subr.bf16.mxu0 0
        %4242 = vmatpush2.bf16.msra.mxu0 0
        %4243 = vmatprep.subr.bf16.mxu0 0
        %4244 = vmatpush2.bf16.msra.mxu0 0
        %4245 = vmatprep.subr.bf16.mxu0 0
        %4246 = vmatpush2.bf16.msra.mxu0 0
        %4247 = vmatprep.mubr.bf16.mxu0 0
        %4248 = vmatmul.mubr.bf16.gmra.mxu0 %v4192
        %v4249 = vpop.f32.mrf.mxu0
        %v4250 = vadd.f32 %v3952, %v4249
        %v4251 = vpop.f32.mrf.mxu0
        %v4252 = vadd.f32 %v3954, %v4251
        %v4253 = vpop.f32.mrf.mxu0
        %v4254 = vadd.f32 %v3956, %v4253
        %v4255 = vpop.f32.mrf.mxu0
        %v4256 = vadd.f32 %v3958, %v4255
        %4257 = vmatprep.mubr.bf16.mxu0 0
        %4258 = vmatmul.mubr.bf16.gmra.mxu0 %v4195
        %v4259 = vpop.f32.mrf.mxu0
        %v4260 = vadd.f32 %v3962, %v4259
        %v4261 = vpop.f32.mrf.mxu0
        %v4262 = vadd.f32 %v3964, %v4261
        %v4263 = vpop.f32.mrf.mxu0
        %v4264 = vadd.f32 %v3966, %v4263
        %v4265 = vpop.f32.mrf.mxu0
        %v4266 = vadd.f32 %v3968, %v4265
        %4267 = vmatprep.mubr.bf16.mxu0 0
        %4268 = vmatmul.mubr.bf16.gmra.mxu0 %v4198
        %v4269 = vpop.f32.mrf.mxu0
        %v4270 = vadd.f32 %v3972, %v4269
        %v4271 = vpop.f32.mrf.mxu0
        %v4272 = vadd.f32 %v3974, %v4271
        %v4273 = vpop.f32.mrf.mxu0
        %v4274 = vadd.f32 %v3976, %v4273
        %v4275 = vpop.f32.mrf.mxu0
        %v4276 = vadd.f32 %v3978, %v4275
        %4277 = vmatprep.mubr.bf16.mxu0 0
        %4278 = vmatmul.mubr.bf16.gmra.mxu0 %v4201
        %v4279 = vpop.f32.mrf.mxu0
        %v4280 = vadd.f32 %v3982, %v4279
        %v4281 = vpop.f32.mrf.mxu0
        %v4282 = vadd.f32 %v3984, %v4281
        %v4283 = vpop.f32.mrf.mxu0
        %v4284 = vadd.f32 %v3986, %v4283
        %v4285 = vpop.f32.mrf.mxu0
        %v4286 = vadd.f32 %v3988, %v4285
        %4287 = vmatprep.mubr.bf16.mxu0 0
        %4288 = vmatmul.mubr.bf16.gmra.mxu0 %v4204
        %v4289 = vpop.f32.mrf.mxu0
        %v4290 = vadd.f32 %v3992, %v4289
        %v4291 = vpop.f32.mrf.mxu0
        %v4292 = vadd.f32 %v3994, %v4291
        %v4293 = vpop.f32.mrf.mxu0
        %v4294 = vadd.f32 %v3996, %v4293
        %v4295 = vpop.f32.mrf.mxu0
        %v4296 = vadd.f32 %v3998, %v4295
        %4297 = vmatprep.mubr.bf16.mxu0 0
        %4298 = vmatmul.mubr.bf16.gmra.mxu0 %v4207
        %v4299 = vpop.f32.mrf.mxu0
        %v4300 = vadd.f32 %v4002, %v4299
        %v4301 = vpop.f32.mrf.mxu0
        %v4302 = vadd.f32 %v4004, %v4301
        %v4303 = vpop.f32.mrf.mxu0
        %v4304 = vadd.f32 %v4006, %v4303
        %v4305 = vpop.f32.mrf.mxu0
        %v4306 = vadd.f32 %v4008, %v4305
        %4307 = vmatprep.mubr.bf16.mxu0 0
        %4308 = vmatmul.mubr.bf16.gmra.mxu0 %v4210
        %v4309 = vpop.f32.mrf.mxu0
        %v4310 = vadd.f32 %v4012, %v4309
        %v4311 = vpop.f32.mrf.mxu0
        %v4312 = vadd.f32 %v4014, %v4311
        %v4313 = vpop.f32.mrf.mxu0
        %v4314 = vadd.f32 %v4016, %v4313
        %v4315 = vpop.f32.mrf.mxu0
        %v4316 = vadd.f32 %v4018, %v4315
        %4317 = vmatprep.mubr.bf16.mxu0 0
        %4318 = vmatmul.mubr.bf16.gmra.mxu0 %v4213
        %v4319 = vpop.f32.mrf.mxu0
        %v4320 = vadd.f32 %v4022, %v4319
        %v4321 = vpop.f32.mrf.mxu0
        %v4322 = vadd.f32 %v4024, %v4321
        %v4323 = vpop.f32.mrf.mxu0
        %v4324 = vadd.f32 %v4026, %v4323
        %v4325 = vpop.f32.mrf.mxu0
        %v4326 = vadd.f32 %v4028, %v4325
        %4327 = vdwg.mxu0
        %4328 = vmatprep.subr.bf16.mxu0 0
        %4329 = vmatpush1.bf16.msra.mxu0 0
        %4330 = vmatprep.subr.bf16.mxu0 0
        %4331 = vmatpush1.bf16.msra.mxu0 0
        %4332 = vmatprep.subr.bf16.mxu0 0
        %4333 = vmatpush1.bf16.msra.mxu0 0
        %4334 = vmatprep.subr.bf16.mxu0 0
        %4335 = vmatpush1.bf16.msra.mxu0 0
        %4336 = vmatprep.subr.bf16.mxu0 0
        %4337 = vmatpush1.bf16.msra.mxu0 %v4178
        %4338 = vmatprep.subr.bf16.mxu0 0
        %4339 = vmatpush1.bf16.msra.mxu0 %v4175
        %4340 = vmatprep.subr.bf16.mxu0 0
        %4341 = vmatpush1.bf16.msra.mxu0 %v4172
        %4342 = vmatprep.subr.bf16.mxu0 0
        %4343 = vmatpush1.bf16.msra.mxu0 %v4169
        %4344 = vmatprep.subr.bf16.mxu0 0
        %4345 = vmatpush2.bf16.msra.mxu0 0
        %4346 = vmatprep.subr.bf16.mxu0 0
        %4347 = vmatpush2.bf16.msra.mxu0 0
        %4348 = vmatprep.subr.bf16.mxu0 0
        %4349 = vmatpush2.bf16.msra.mxu0 0
        %4350 = vmatprep.subr.bf16.mxu0 0
        %4351 = vmatpush2.bf16.msra.mxu0 0
        %4352 = vmatprep.subr.bf16.mxu0 0
        %4353 = vmatpush2.bf16.msra.mxu0 0
        %4354 = vmatprep.subr.bf16.mxu0 0
        %4355 = vmatpush2.bf16.msra.mxu0 0
        %4356 = vmatprep.subr.bf16.mxu0 0
        %4357 = vmatpush2.bf16.msra.mxu0 0
        %4358 = vmatprep.subr.bf16.mxu0 0
        %4359 = vmatpush2.bf16.msra.mxu0 0
        %4360 = vmatprep.mubr.bf16.mxu0 0
        %4361 = vmatmul.mubr.bf16.gmra.mxu0 %v4192
        %v4362 = vpop.f32.mrf.mxu0
        %v4363 = vadd.f32 %v4065, %v4362
        %v4364 = vpop.f32.mrf.mxu0
        %v4365 = vpop.f32.mrf.mxu0
        %v4366 = vadd.f32 %v4068, %v4365
        %v4367 = vpop.f32.mrf.mxu0
        %4368 = vmatprep.mubr.bf16.mxu0 0
        %4369 = vmatmul.mubr.bf16.gmra.mxu0 %v4195
        %v4370 = vpop.f32.mrf.mxu0
        %v4371 = vadd.f32 %v4073, %v4370
        %v4372 = vpop.f32.mrf.mxu0
        %v4373 = vpop.f32.mrf.mxu0
        %v4374 = vadd.f32 %v4076, %v4373
        %v4375 = vpop.f32.mrf.mxu0
        %4376 = vmatprep.mubr.bf16.mxu0 0
        %4377 = vmatmul.mubr.bf16.gmra.mxu0 %v4198
        %v4378 = vpop.f32.mrf.mxu0
        %v4379 = vadd.f32 %v4081, %v4378
        %v4380 = vpop.f32.mrf.mxu0
        %v4381 = vpop.f32.mrf.mxu0
        %v4382 = vadd.f32 %v4084, %v4381
        %v4383 = vpop.f32.mrf.mxu0
        %4384 = vmatprep.mubr.bf16.mxu0 0
        %4385 = vmatmul.mubr.bf16.gmra.mxu0 %v4201
        %v4386 = vpop.f32.mrf.mxu0
        %v4387 = vadd.f32 %v4089, %v4386
        %v4388 = vpop.f32.mrf.mxu0
        %v4389 = vpop.f32.mrf.mxu0
        %v4390 = vadd.f32 %v4092, %v4389
        %v4391 = vpop.f32.mrf.mxu0
        %4392 = vmatprep.mubr.bf16.mxu0 0
        %4393 = vmatmul.mubr.bf16.gmra.mxu0 %v4204
        %v4394 = vpop.f32.mrf.mxu0
        %v4395 = vadd.f32 %v4097, %v4394
        %v4396 = vpop.f32.mrf.mxu0
        %v4397 = vpop.f32.mrf.mxu0
        %v4398 = vadd.f32 %v4100, %v4397
        %v4399 = vpop.f32.mrf.mxu0
        %4400 = vmatprep.mubr.bf16.mxu0 0
        %4401 = vmatmul.mubr.bf16.gmra.mxu0 %v4207
        %v4402 = vpop.f32.mrf.mxu0
        %v4403 = vadd.f32 %v4105, %v4402
        %v4404 = vpop.f32.mrf.mxu0
        %v4405 = vpop.f32.mrf.mxu0
        %v4406 = vadd.f32 %v4108, %v4405
        %v4407 = vpop.f32.mrf.mxu0
        %4408 = vmatprep.mubr.bf16.mxu0 0
        %4409 = vmatmul.mubr.bf16.gmra.mxu0 %v4210
        %v4410 = vpop.f32.mrf.mxu0
        %v4411 = vadd.f32 %v4113, %v4410
        %v4412 = vpop.f32.mrf.mxu0
        %v4413 = vpop.f32.mrf.mxu0
        %v4414 = vadd.f32 %v4116, %v4413
        %v4415 = vpop.f32.mrf.mxu0
        %4416 = vmatprep.mubr.bf16.mxu0 0
        %4417 = vmatmul.mubr.bf16.gmra.mxu0 %v4213
        %v4418 = vpop.f32.mrf.mxu0
        %v4419 = vadd.f32 %v4121, %v4418
        %v4420 = vpop.f32.mrf.mxu0
        %v4421 = vpop.f32.mrf.mxu0
        %v4422 = vadd.f32 %v4124, %v4421
        %v4423 = vpop.f32.mrf.mxu0
        %4424 = vdwg.mxu0
        %v4426 = vsel %vm2880, %v2774, 0
        %v4429 = vsel %vm2880, %v2783, 0
        %v4432 = vsel %vm2880, %v2792, 0
        %v4435 = vsel %vm2880, %v2801, 0
        %v4438 = vsel %vm2880, %v2810, 0
        %v4441 = vsel %vm2880, %v2819, 0
        %v4444 = vsel %vm2880, %v2828, 0
        %v4447 = vsel %vm2880, %v2837, 0
        %v4450 = vsel %vm2880, %v2777, 0
        %v4453 = vsel %vm2880, %v2786, 0
        %v4456 = vsel %vm2880, %v2795, 0
        %v4459 = vsel %vm2880, %v2804, 0
        %v4462 = vsel %vm2880, %v2813, 0
        %v4465 = vsel %vm2880, %v2822, 0
        %v4468 = vsel %vm2880, %v2831, 0
        %v4471 = vsel %vm2880, %v2840, 0
        %4473 = vmatprep.subr.bf16.mxu0 0
        %4474 = vmatpush1.bf16.xpose.msra.mxu0 %v4471
        %4475 = vmatprep.subr.bf16.mxu0 0
        %4476 = vmatpush1.bf16.xpose.msra.mxu0 %v4468
        %4477 = vmatprep.subr.bf16.mxu0 0
        %4478 = vmatpush1.bf16.xpose.msra.mxu0 %v4465
        %4479 = vmatprep.subr.bf16.mxu0 0
        %4480 = vmatpush1.bf16.xpose.msra.mxu0 %v4462
        %4481 = vmatprep.subr.bf16.mxu0 0
        %4482 = vmatpush1.bf16.xpose.msra.mxu0 %v4459
        %4483 = vmatprep.subr.bf16.mxu0 0
        %4484 = vmatpush1.bf16.xpose.msra.mxu0 %v4456
        %4485 = vmatprep.subr.bf16.mxu0 0
        %4486 = vmatpush1.bf16.xpose.msra.mxu0 %v4453
        %4487 = vmatprep.subr.bf16.mxu0 0
        %4488 = vmatpush1.bf16.xpose.msra.mxu0 %v4450
        %4489 = vmatprep.subr.bf16.mxu0 0
        %4490 = vmatpush2.bf16.xpose.msra.mxu0 0
        %4491 = vmatprep.subr.bf16.mxu0 0
        %4492 = vmatpush2.bf16.xpose.msra.mxu0 0
        %4493 = vmatprep.subr.bf16.mxu0 0
        %4494 = vmatpush2.bf16.xpose.msra.mxu0 0
        %4495 = vmatprep.subr.bf16.mxu0 0
        %4496 = vmatpush2.bf16.xpose.msra.mxu0 0
        %4497 = vmatprep.subr.bf16.mxu0 0
        %4498 = vmatpush2.bf16.xpose.msra.mxu0 0
        %4499 = vmatprep.subr.bf16.mxu0 0
        %4500 = vmatpush2.bf16.xpose.msra.mxu0 0
        %4501 = vmatprep.subr.bf16.mxu0 0
        %4502 = vmatpush2.bf16.xpose.msra.mxu0 0
        %4503 = vmatprep.subr.bf16.mxu0 0
        %4504 = vmatpush2.bf16.xpose.msra.mxu0 0
        %4505 = vmatprep.mubr.bf16.mxu0 0
        %4506 = vmatmul.mubr.bf16.gmra.mxu0 %v4426
        %v4507 = vpop.f32.mrf.mxu0
        %v4508 = vadd.f32 0.0, %v4507
        %v4509 = vpop.f32.mrf.mxu0
        %v4510 = vpop.f32.mrf.mxu0
        %v4511 = vadd.f32 0.0, %v4510
        %v4512 = vpop.f32.mrf.mxu0
        %4513 = vmatprep.mubr.bf16.mxu0 0
        %4514 = vmatmul.mubr.bf16.gmra.mxu0 %v4429
        %v4515 = vpop.f32.mrf.mxu0
        %v4516 = vadd.f32 0.0, %v4515
        %v4517 = vpop.f32.mrf.mxu0
        %v4518 = vpop.f32.mrf.mxu0
        %v4519 = vadd.f32 0.0, %v4518
        %v4520 = vpop.f32.mrf.mxu0
        %4521 = vmatprep.mubr.bf16.mxu0 0
        %4522 = vmatmul.mubr.bf16.gmra.mxu0 %v4432
        %v4523 = vpop.f32.mrf.mxu0
        %v4524 = vadd.f32 0.0, %v4523
        %v4525 = vpop.f32.mrf.mxu0
        %v4526 = vpop.f32.mrf.mxu0
        %v4527 = vadd.f32 0.0, %v4526
        %v4528 = vpop.f32.mrf.mxu0
        %4529 = vmatprep.mubr.bf16.mxu0 0
        %4530 = vmatmul.mubr.bf16.gmra.mxu0 %v4435
        %v4531 = vpop.f32.mrf.mxu0
        %v4532 = vadd.f32 0.0, %v4531
        %v4533 = vpop.f32.mrf.mxu0
        %v4534 = vpop.f32.mrf.mxu0
        %v4535 = vadd.f32 0.0, %v4534
        %v4536 = vpop.f32.mrf.mxu0
        %4537 = vmatprep.mubr.bf16.mxu0 0
        %4538 = vmatmul.mubr.bf16.gmra.mxu0 %v4438
        %v4539 = vpop.f32.mrf.mxu0
        %v4540 = vadd.f32 0.0, %v4539
        %v4541 = vpop.f32.mrf.mxu0
        %v4542 = vpop.f32.mrf.mxu0
        %v4543 = vadd.f32 0.0, %v4542
        %v4544 = vpop.f32.mrf.mxu0
        %4545 = vmatprep.mubr.bf16.mxu0 0
        %4546 = vmatmul.mubr.bf16.gmra.mxu0 %v4441
        %v4547 = vpop.f32.mrf.mxu0
        %v4548 = vadd.f32 0.0, %v4547
        %v4549 = vpop.f32.mrf.mxu0
        %v4550 = vpop.f32.mrf.mxu0
        %v4551 = vadd.f32 0.0, %v4550
        %v4552 = vpop.f32.mrf.mxu0
        %4553 = vmatprep.mubr.bf16.mxu0 0
        %4554 = vmatmul.mubr.bf16.gmra.mxu0 %v4444
        %v4555 = vpop.f32.mrf.mxu0
        %v4556 = vadd.f32 0.0, %v4555
        %v4557 = vpop.f32.mrf.mxu0
        %v4558 = vpop.f32.mrf.mxu0
        %v4559 = vadd.f32 0.0, %v4558
        %v4560 = vpop.f32.mrf.mxu0
        %4561 = vmatprep.mubr.bf16.mxu0 0
        %4562 = vmatmul.mubr.bf16.gmra.mxu0 %v4447
        %v4563 = vpop.f32.mrf.mxu0
        %v4564 = vadd.f32 0.0, %v4563
        %v4565 = vpop.f32.mrf.mxu0
        %v4566 = vpop.f32.mrf.mxu0
        %v4567 = vadd.f32 0.0, %v4566
        %v4568 = vpop.f32.mrf.mxu0
        %4569 = vdwg.mxu0
        %v4570 = vsel %vm2864, %v4508, -1e+30
        %v4571 = vsel %vm2865, %v4511, -1e+30
        %v4572 = vsel %vm2866, %v4516, -1e+30
        %v4573 = vsel %vm2867, %v4519, -1e+30
        %v4574 = vsel %vm2868, %v4524, -1e+30
        %v4575 = vsel %vm2869, %v4527, -1e+30
        %v4576 = vsel %vm2870, %v4532, -1e+30
        %v4577 = vsel %vm2871, %v4535, -1e+30
        %v4578 = vsel %vm2872, %v4540, -1e+30
        %v4579 = vsel %vm2873, %v4543, -1e+30
        %v4580 = vsel %vm2874, %v4548, -1e+30
        %v4581 = vsel %vm2875, %v4551, -1e+30
        %v4582 = vsel %vm2876, %v4556, -1e+30
        %v4583 = vsel %vm2877, %v4559, -1e+30
        %v4584 = vsel %vm2878, %v4564, -1e+30
        %v4585 = vsel %vm2879, %v4567, -1e+30
        %4586 = vmax.xlane.f32.xlu0 %v4570
        %v4587 = vpop.xlane.xlu0 %4586
        %4588 = vmax.xlane.f32.xlu0 %v4571
        %v4589 = vpop.xlane.xlu0 %4588
        %4590 = vmax.xlane.f32.xlu0 %v4572
        %v4591 = vpop.xlane.xlu0 %4590
        %4592 = vmax.xlane.f32.xlu0 %v4573
        %v4593 = vpop.xlane.xlu0 %4592
        %4594 = vmax.xlane.f32.xlu0 %v4574
        %v4595 = vpop.xlane.xlu0 %4594
        %4596 = vmax.xlane.f32.xlu0 %v4575
        %v4597 = vpop.xlane.xlu0 %4596
        %4598 = vmax.xlane.f32.xlu0 %v4576
        %v4599 = vpop.xlane.xlu0 %4598
        %4600 = vmax.xlane.f32.xlu0 %v4577
        %v4601 = vpop.xlane.xlu0 %4600
        %4602 = vmax.xlane.f32.xlu0 %v4578
        %v4603 = vpop.xlane.xlu0 %4602
        %4604 = vmax.xlane.f32.xlu0 %v4579
        %v4605 = vpop.xlane.xlu0 %4604
        %4606 = vmax.xlane.f32.xlu0 %v4580
        %v4607 = vpop.xlane.xlu0 %4606
        %4608 = vmax.xlane.f32.xlu0 %v4581
        %v4609 = vpop.xlane.xlu0 %4608
        %4610 = vmax.xlane.f32.xlu0 %v4582
        %v4611 = vpop.xlane.xlu0 %4610
        %4612 = vmax.xlane.f32.xlu0 %v4583
        %v4613 = vpop.xlane.xlu0 %4612
        %4614 = vmax.xlane.f32.xlu0 %v4584
        %v4615 = vpop.xlane.xlu0 %4614
        %4616 = vmax.xlane.f32.xlu0 %v4585
        %v4617 = vpop.xlane.xlu0 %4616
        %v4618 = vsub.f32 %v4570, %v4587
        %v4619 = vsub.f32 %v4571, %v4589
        %v4620 = vsub.f32 %v4572, %v4591
        %v4621 = vsub.f32 %v4573, %v4593
        %v4622 = vsub.f32 %v4574, %v4595
        %v4623 = vsub.f32 %v4575, %v4597
        %v4624 = vsub.f32 %v4576, %v4599
        %v4625 = vsub.f32 %v4577, %v4601
        %v4626 = vsub.f32 %v4578, %v4603
        %v4627 = vsub.f32 %v4579, %v4605
        %v4628 = vsub.f32 %v4580, %v4607
        %v4629 = vsub.f32 %v4581, %v4609
        %v4630 = vsub.f32 %v4582, %v4611
        %v4631 = vsub.f32 %v4583, %v4613
        %v4632 = vsub.f32 %v4584, %v4615
        %v4633 = vsub.f32 %v4585, %v4617
        %v4634 = vmul.f32 %v4618, 1.442695
        %v4635 = vpow.pop %v4634
        %v4636 = vmul.f32 %v4619, 1.442695
        %v4637 = vpow.pop %v4636
        %v4638 = vmul.f32 %v4620, 1.442695
        %v4639 = vpow.pop %v4638
        %v4640 = vmul.f32 %v4621, 1.442695
        %v4641 = vpow.pop %v4640
        %v4642 = vmul.f32 %v4622, 1.442695
        %v4643 = vpow.pop %v4642
        %v4644 = vmul.f32 %v4623, 1.442695
        %v4645 = vpow.pop %v4644
        %v4646 = vmul.f32 %v4624, 1.442695
        %v4647 = vpow.pop %v4646
        %v4648 = vmul.f32 %v4625, 1.442695
        %v4649 = vpow.pop %v4648
        %v4650 = vmul.f32 %v4626, 1.442695
        %v4651 = vpow.pop %v4650
        %v4652 = vmul.f32 %v4627, 1.442695
        %v4653 = vpow.pop %v4652
        %v4654 = vmul.f32 %v4628, 1.442695
        %v4655 = vpow.pop %v4654
        %v4656 = vmul.f32 %v4629, 1.442695
        %v4657 = vpow.pop %v4656
        %v4658 = vmul.f32 %v4630, 1.442695
        %v4659 = vpow.pop %v4658
        %v4660 = vmul.f32 %v4631, 1.442695
        %v4661 = vpow.pop %v4660
        %v4662 = vmul.f32 %v4632, 1.442695
        %v4663 = vpow.pop %v4662
        %v4664 = vmul.f32 %v4633, 1.442695
        %v4665 = vpow.pop %v4664
        %4666 = vadd.xlane.f32.xlu0 %v4635
        %v4667 = vpop.xlane.xlu0 %4666
        %4668 = vadd.xlane.f32.xlu0 %v4637
        %v4669 = vpop.xlane.xlu0 %4668
        %4670 = vadd.xlane.f32.xlu0 %v4639
        %v4671 = vpop.xlane.xlu0 %4670
        %4672 = vadd.xlane.f32.xlu0 %v4641
        %v4673 = vpop.xlane.xlu0 %4672
        %4674 = vadd.xlane.f32.xlu0 %v4643
        %v4675 = vpop.xlane.xlu0 %4674
        %4676 = vadd.xlane.f32.xlu0 %v4645
        %v4677 = vpop.xlane.xlu0 %4676
        %4678 = vadd.xlane.f32.xlu0 %v4647
        %v4679 = vpop.xlane.xlu0 %4678
        %4680 = vadd.xlane.f32.xlu0 %v4649
        %v4681 = vpop.xlane.xlu0 %4680
        %4682 = vadd.xlane.f32.xlu0 %v4651
        %v4683 = vpop.xlane.xlu0 %4682
        %4684 = vadd.xlane.f32.xlu0 %v4653
        %v4685 = vpop.xlane.xlu0 %4684
        %4686 = vadd.xlane.f32.xlu0 %v4655
        %v4687 = vpop.xlane.xlu0 %4686
        %4688 = vadd.xlane.f32.xlu0 %v4657
        %v4689 = vpop.xlane.xlu0 %4688
        %4690 = vadd.xlane.f32.xlu0 %v4659
        %v4691 = vpop.xlane.xlu0 %4690
        %4692 = vadd.xlane.f32.xlu0 %v4661
        %v4693 = vpop.xlane.xlu0 %4692
        %4694 = vadd.xlane.f32.xlu0 %v4663
        %v4695 = vpop.xlane.xlu0 %4694
        %4696 = vadd.xlane.f32.xlu0 %v4665
        %v4697 = vpop.xlane.xlu0 %4696
        %v4698 = vrcp.pop %v4667
        %v4699 = vrcp.pop %v4669
        %v4700 = vrcp.pop %v4671
        %v4701 = vrcp.pop %v4673
        %v4702 = vrcp.pop %v4675
        %v4703 = vrcp.pop %v4677
        %v4704 = vrcp.pop %v4679
        %v4705 = vrcp.pop %v4681
        %v4706 = vrcp.pop %v4683
        %v4707 = vrcp.pop %v4685
        %v4708 = vrcp.pop %v4687
        %v4709 = vrcp.pop %v4689
        %v4710 = vrcp.pop %v4691
        %v4711 = vrcp.pop %v4693
        %v4712 = vrcp.pop %v4695
        %v4713 = vrcp.pop %v4697
        %v4714 = vmul.f32 %v4635, %v4698
        %v4715 = vmul.f32 %v4637, %v4699
        %v4716 = vmul.f32 %v4639, %v4700
        %v4717 = vmul.f32 %v4641, %v4701
        %v4718 = vmul.f32 %v4643, %v4702
        %v4719 = vmul.f32 %v4645, %v4703
        %v4720 = vmul.f32 %v4647, %v4704
        %v4721 = vmul.f32 %v4649, %v4705
        %v4722 = vmul.f32 %v4651, %v4706
        %v4723 = vmul.f32 %v4653, %v4707
        %v4724 = vmul.f32 %v4655, %v4708
        %v4725 = vmul.f32 %v4657, %v4709
        %v4726 = vmul.f32 %v4659, %v4710
        %v4727 = vmul.f32 %v4661, %v4711
        %v4728 = vmul.f32 %v4663, %v4712
        %v4729 = vmul.f32 %v4665, %v4713
        %v4730 = vpack.c.bf16 %v4715, %v4714
        %v4731 = vpack.c.bf16 %v4717, %v4716
        %v4732 = vpack.c.bf16 %v4719, %v4718
        %v4733 = vpack.c.bf16 %v4721, %v4720
        %v4734 = vpack.c.bf16 %v4723, %v4722
        %v4735 = vpack.c.bf16 %v4725, %v4724
        %v4736 = vpack.c.bf16 %v4727, %v4726
        %v4737 = vpack.c.bf16 %v4729, %v4728
        %4738 = vmatprep.subr.bf16.mxu0 0
        %4739 = vmatpush1.bf16.msra.mxu0 %v2843
        %4740 = vmatprep.subr.bf16.mxu0 0
        %4741 = vmatpush1.bf16.msra.mxu0 %v2834
        %4742 = vmatprep.subr.bf16.mxu0 0
        %4743 = vmatpush1.bf16.msra.mxu0 %v2825
        %4744 = vmatprep.subr.bf16.mxu0 0
        %4745 = vmatpush1.bf16.msra.mxu0 %v2816
        %4746 = vmatprep.subr.bf16.mxu0 0
        %4747 = vmatpush1.bf16.msra.mxu0 %v2807
        %4748 = vmatprep.subr.bf16.mxu0 0
        %4749 = vmatpush1.bf16.msra.mxu0 %v2798
        %4750 = vmatprep.subr.bf16.mxu0 0
        %4751 = vmatpush1.bf16.msra.mxu0 %v2789
        %4752 = vmatprep.subr.bf16.mxu0 0
        %4753 = vmatpush1.bf16.msra.mxu0 %v2780
        %4754 = vmatprep.subr.bf16.mxu0 0
        %4755 = vmatpush2.bf16.msra.mxu0 0
        %4756 = vmatprep.subr.bf16.mxu0 0
        %4757 = vmatpush2.bf16.msra.mxu0 0
        %4758 = vmatprep.subr.bf16.mxu0 0
        %4759 = vmatpush2.bf16.msra.mxu0 0
        %4760 = vmatprep.subr.bf16.mxu0 0
        %4761 = vmatpush2.bf16.msra.mxu0 0
        %4762 = vmatprep.subr.bf16.mxu0 0
        %4763 = vmatpush2.bf16.msra.mxu0 0
        %4764 = vmatprep.subr.bf16.mxu0 0
        %4765 = vmatpush2.bf16.msra.mxu0 0
        %4766 = vmatprep.subr.bf16.mxu0 0
        %4767 = vmatpush2.bf16.msra.mxu0 0
        %4768 = vmatprep.subr.bf16.mxu0 0
        %4769 = vmatpush2.bf16.msra.mxu0 0
        %4770 = vmatprep.mubr.bf16.mxu0 0
        %4771 = vmatmul.mubr.bf16.gmra.mxu0 %v4730
        %v4772 = vpop.f32.mrf.mxu0
        %v4773 = vadd.f32 0.0, %v4772
        %v4774 = vpop.f32.mrf.mxu0
        %v4775 = vpop.f32.mrf.mxu0
        %v4776 = vadd.f32 0.0, %v4775
        %v4777 = vpop.f32.mrf.mxu0
        %4778 = vmatprep.mubr.bf16.mxu0 0
        %4779 = vmatmul.mubr.bf16.gmra.mxu0 %v4731
        %v4780 = vpop.f32.mrf.mxu0
        %v4781 = vadd.f32 0.0, %v4780
        %v4782 = vpop.f32.mrf.mxu0
        %v4783 = vpop.f32.mrf.mxu0
        %v4784 = vadd.f32 0.0, %v4783
        %v4785 = vpop.f32.mrf.mxu0
        %4786 = vmatprep.mubr.bf16.mxu0 0
        %4787 = vmatmul.mubr.bf16.gmra.mxu0 %v4732
        %v4788 = vpop.f32.mrf.mxu0
        %v4789 = vadd.f32 0.0, %v4788
        %v4790 = vpop.f32.mrf.mxu0
        %v4791 = vpop.f32.mrf.mxu0
        %v4792 = vadd.f32 0.0, %v4791
        %v4793 = vpop.f32.mrf.mxu0
        %4794 = vmatprep.mubr.bf16.mxu0 0
        %4795 = vmatmul.mubr.bf16.gmra.mxu0 %v4733
        %v4796 = vpop.f32.mrf.mxu0
        %v4797 = vadd.f32 0.0, %v4796
        %v4798 = vpop.f32.mrf.mxu0
        %v4799 = vpop.f32.mrf.mxu0
        %v4800 = vadd.f32 0.0, %v4799
        %v4801 = vpop.f32.mrf.mxu0
        %4802 = vmatprep.mubr.bf16.mxu0 0
        %4803 = vmatmul.mubr.bf16.gmra.mxu0 %v4734
        %v4804 = vpop.f32.mrf.mxu0
        %v4805 = vadd.f32 0.0, %v4804
        %v4806 = vpop.f32.mrf.mxu0
        %v4807 = vpop.f32.mrf.mxu0
        %v4808 = vadd.f32 0.0, %v4807
        %v4809 = vpop.f32.mrf.mxu0
        %4810 = vmatprep.mubr.bf16.mxu0 0
        %4811 = vmatmul.mubr.bf16.gmra.mxu0 %v4735
        %v4812 = vpop.f32.mrf.mxu0
        %v4813 = vadd.f32 0.0, %v4812
        %v4814 = vpop.f32.mrf.mxu0
        %v4815 = vpop.f32.mrf.mxu0
        %v4816 = vadd.f32 0.0, %v4815
        %v4817 = vpop.f32.mrf.mxu0
        %4818 = vmatprep.mubr.bf16.mxu0 0
        %4819 = vmatmul.mubr.bf16.gmra.mxu0 %v4736
        %v4820 = vpop.f32.mrf.mxu0
        %v4821 = vadd.f32 0.0, %v4820
        %v4822 = vpop.f32.mrf.mxu0
        %v4823 = vpop.f32.mrf.mxu0
        %v4824 = vadd.f32 0.0, %v4823
        %v4825 = vpop.f32.mrf.mxu0
        %4826 = vmatprep.mubr.bf16.mxu0 0
        %4827 = vmatmul.mubr.bf16.gmra.mxu0 %v4737
        %v4828 = vpop.f32.mrf.mxu0
        %v4829 = vadd.f32 0.0, %v4828
        %v4830 = vpop.f32.mrf.mxu0
        %v4831 = vpop.f32.mrf.mxu0
        %v4832 = vadd.f32 0.0, %v4831
        %v4833 = vpop.f32.mrf.mxu0
        %4834 = vdwg.mxu0
        %v4835 = vpack.c.bf16 %v4776, %v4773
        %v4836 = vpack.c.bf16 %v4784, %v4781
        %v4837 = vpack.c.bf16 %v4792, %v4789
        %v4838 = vpack.c.bf16 %v4800, %v4797
        %v4839 = vpack.c.bf16 %v4808, %v4805
        %v4840 = vpack.c.bf16 %v4816, %v4813
        %v4841 = vpack.c.bf16 %v4824, %v4821
        %v4842 = vpack.c.bf16 %v4832, %v4829
        %v4843 = vld [vmem:[#allocation7 + $0xc0] sm:$0xff]
        %v4844 = vld [vmem:[#allocation7 + $0xc8] sm:$0xf]
        %v4845 = vld [vmem:[#allocation7 + $0xcc] sm:$0xff]
        %v4846 = vld [vmem:[#allocation7 + $0xd4] sm:$0xf]
        %v4847 = vld [vmem:[#allocation7 + $0xd8] sm:$0xff]
        %v4848 = vld [vmem:[#allocation7 + $0xe0] sm:$0xf]
        %v4849 = vld [vmem:[#allocation7 + $0xe4] sm:$0xff]
        %v4850 = vld [vmem:[#allocation7 + $0xec] sm:$0xf]
        %v4851 = vld [vmem:[#allocation7 + $0xf0] sm:$0xff]
        %v4852 = vld [vmem:[#allocation7 + $0xf8] sm:$0xf]
        %v4853 = vld [vmem:[#allocation7 + $0xfc] sm:$0xff]
        %v4854 = vld [vmem:[#allocation7 + $0x104] sm:$0xf]
        %v4855 = vld [vmem:[#allocation7 + $0x108] sm:$0xff]
        %v4856 = vld [vmem:[#allocation7 + $0x110] sm:$0xf]
        %v4857 = vld [vmem:[#allocation7 + $0x114] sm:$0xff]
        %v4858 = vld [vmem:[#allocation7 + $0x11c] sm:$0xf]
        %v4875 = vunpack.c.l.b16 %v4843
        %v4876 = vunpack.c.h.b16 %v4843
        %v4877 = vunpack.c.l.b16 %v4844
        %v4878 = vunpack.c.l.b16 %v4845
        %v4879 = vunpack.c.h.b16 %v4845
        %v4880 = vunpack.c.l.b16 %v4846
        %v4881 = vunpack.c.l.b16 %v4847
        %v4882 = vunpack.c.h.b16 %v4847
        %v4883 = vunpack.c.l.b16 %v4848
        %v4884 = vunpack.c.l.b16 %v4849
        %v4885 = vunpack.c.h.b16 %v4849
        %v4886 = vunpack.c.l.b16 %v4850
        %v4887 = vunpack.c.l.b16 %v4851
        %v4888 = vunpack.c.h.b16 %v4851
        %v4889 = vunpack.c.l.b16 %v4852
        %v4890 = vunpack.c.l.b16 %v4853
        %v4891 = vunpack.c.h.b16 %v4853
        %v4892 = vunpack.c.l.b16 %v4854
        %v4893 = vunpack.c.l.b16 %v4855
        %v4894 = vunpack.c.h.b16 %v4855
        %v4895 = vunpack.c.l.b16 %v4856
        %v4896 = vunpack.c.l.b16 %v4857
        %v4897 = vunpack.c.h.b16 %v4857
        %v4898 = vunpack.c.l.b16 %v4858
        %v4899 = vpack.c.b16 %v4878, %v4875
        %v4900 = vpack.c.b16 %v4879, %v4876
        %v4901 = vpack.c.b16 %v4880, %v4877
        %v4902 = vpack.c.b16 %v4884, %v4881
        %v4903 = vpack.c.b16 %v4885, %v4882
        %v4904 = vpack.c.b16 %v4886, %v4883
        %v4905 = vpack.c.b16 %v4890, %v4887
        %v4906 = vpack.c.b16 %v4891, %v4888
        %v4907 = vpack.c.b16 %v4892, %v4889
        %v4908 = vpack.c.b16 %v4896, %v4893
        %v4909 = vpack.c.b16 %v4897, %v4894
        %v4910 = vpack.c.b16 %v4898, %v4895
        %v4924 = vsel %vm2880, %v4835, 0
        %v4927 = vsel %vm2880, %v4836, 0
        %v4930 = vsel %vm2880, %v4837, 0
        %v4933 = vsel %vm2880, %v4838, 0
        %v4936 = vsel %vm2880, %v4839, 0
        %v4939 = vsel %vm2880, %v4840, 0
        %v4942 = vsel %vm2880, %v4841, 0
        %v4945 = vsel %vm2880, %v4842, 0
        %4947 = vmatprep.subr.bf16.mxu0 0
        %4948 = vmatpush1.bf16.msra.mxu0 0
        %4949 = vmatprep.subr.bf16.mxu0 0
        %4950 = vmatpush1.bf16.msra.mxu0 0
        %4951 = vmatprep.subr.bf16.mxu0 0
        %4952 = vmatpush1.bf16.msra.mxu0 0
        %4953 = vmatprep.subr.bf16.mxu0 0
        %4954 = vmatpush1.bf16.msra.mxu0 0
        %4955 = vmatprep.subr.bf16.mxu0 %v4909
        %4956 = vmatpush1.bf16.msra.mxu0 %v4908
        %4957 = vmatprep.subr.bf16.mxu0 %v4906
        %4958 = vmatpush1.bf16.msra.mxu0 %v4905
        %4959 = vmatprep.subr.bf16.mxu0 %v4903
        %4960 = vmatpush1.bf16.msra.mxu0 %v4902
        %4961 = vmatprep.subr.bf16.mxu0 %v4900
        %4962 = vmatpush1.bf16.msra.mxu0 %v4899
        %4963 = vmatprep.subr.bf16.mxu0 0
        %4964 = vmatpush2.bf16.msra.mxu0 0
        %4965 = vmatprep.subr.bf16.mxu0 0
        %4966 = vmatpush2.bf16.msra.mxu0 0
        %4967 = vmatprep.subr.bf16.mxu0 0
        %4968 = vmatpush2.bf16.msra.mxu0 0
        %4969 = vmatprep.subr.bf16.mxu0 0
        %4970 = vmatpush2.bf16.msra.mxu0 0
        %4971 = vmatprep.subr.bf16.mxu0 0
        %4972 = vmatpush2.bf16.msra.mxu0 0
        %4973 = vmatprep.subr.bf16.mxu0 0
        %4974 = vmatpush2.bf16.msra.mxu0 0
        %4975 = vmatprep.subr.bf16.mxu0 0
        %4976 = vmatpush2.bf16.msra.mxu0 0
        %4977 = vmatprep.subr.bf16.mxu0 0
        %4978 = vmatpush2.bf16.msra.mxu0 0
        %4979 = vmatprep.mubr.bf16.mxu0 0
        %4980 = vmatmul.mubr.bf16.gmra.mxu0 %v4924
        %v4981 = vpop.f32.mrf.mxu0
        %v4982 = vadd.f32 0.0, %v4981
        %v4983 = vpop.f32.mrf.mxu0
        %v4984 = vadd.f32 0.0, %v4983
        %v4985 = vpop.f32.mrf.mxu0
        %v4986 = vadd.f32 0.0, %v4985
        %v4987 = vpop.f32.mrf.mxu0
        %v4988 = vadd.f32 0.0, %v4987
        %4989 = vmatprep.mubr.bf16.mxu0 0
        %4990 = vmatmul.mubr.bf16.gmra.mxu0 %v4927
        %v4991 = vpop.f32.mrf.mxu0
        %v4992 = vadd.f32 0.0, %v4991
        %v4993 = vpop.f32.mrf.mxu0
        %v4994 = vadd.f32 0.0, %v4993
        %v4995 = vpop.f32.mrf.mxu0
        %v4996 = vadd.f32 0.0, %v4995
        %v4997 = vpop.f32.mrf.mxu0
        %v4998 = vadd.f32 0.0, %v4997
        %4999 = vmatprep.mubr.bf16.mxu0 0
        %5000 = vmatmul.mubr.bf16.gmra.mxu0 %v4930
        %v5001 = vpop.f32.mrf.mxu0
        %v5002 = vadd.f32 0.0, %v5001
        %v5003 = vpop.f32.mrf.mxu0
        %v5004 = vadd.f32 0.0, %v5003
        %v5005 = vpop.f32.mrf.mxu0
        %v5006 = vadd.f32 0.0, %v5005
        %v5007 = vpop.f32.mrf.mxu0
        %v5008 = vadd.f32 0.0, %v5007
        %5009 = vmatprep.mubr.bf16.mxu0 0
        %5010 = vmatmul.mubr.bf16.gmra.mxu0 %v4933
        %v5011 = vpop.f32.mrf.mxu0
        %v5012 = vadd.f32 0.0, %v5011
        %v5013 = vpop.f32.mrf.mxu0
        %v5014 = vadd.f32 0.0, %v5013
        %v5015 = vpop.f32.mrf.mxu0
        %v5016 = vadd.f32 0.0, %v5015
        %v5017 = vpop.f32.mrf.mxu0
        %v5018 = vadd.f32 0.0, %v5017
        %5019 = vmatprep.mubr.bf16.mxu0 0
        %5020 = vmatmul.mubr.bf16.gmra.mxu0 %v4936
        %v5021 = vpop.f32.mrf.mxu0
        %v5022 = vadd.f32 0.0, %v5021
        %v5023 = vpop.f32.mrf.mxu0
        %v5024 = vadd.f32 0.0, %v5023
        %v5025 = vpop.f32.mrf.mxu0
        %v5026 = vadd.f32 0.0, %v5025
        %v5027 = vpop.f32.mrf.mxu0
        %v5028 = vadd.f32 0.0, %v5027
        %5029 = vmatprep.mubr.bf16.mxu0 0
        %5030 = vmatmul.mubr.bf16.gmra.mxu0 %v4939
        %v5031 = vpop.f32.mrf.mxu0
        %v5032 = vadd.f32 0.0, %v5031
        %v5033 = vpop.f32.mrf.mxu0
        %v5034 = vadd.f32 0.0, %v5033
        %v5035 = vpop.f32.mrf.mxu0
        %v5036 = vadd.f32 0.0, %v5035
        %v5037 = vpop.f32.mrf.mxu0
        %v5038 = vadd.f32 0.0, %v5037
        %5039 = vmatprep.mubr.bf16.mxu0 0
        %5040 = vmatmul.mubr.bf16.gmra.mxu0 %v4942
        %v5041 = vpop.f32.mrf.mxu0
        %v5042 = vadd.f32 0.0, %v5041
        %v5043 = vpop.f32.mrf.mxu0
        %v5044 = vadd.f32 0.0, %v5043
        %v5045 = vpop.f32.mrf.mxu0
        %v5046 = vadd.f32 0.0, %v5045
        %v5047 = vpop.f32.mrf.mxu0
        %v5048 = vadd.f32 0.0, %v5047
        %5049 = vmatprep.mubr.bf16.mxu0 0
        %5050 = vmatmul.mubr.bf16.gmra.mxu0 %v4945
        %v5051 = vpop.f32.mrf.mxu0
        %v5052 = vadd.f32 0.0, %v5051
        %v5053 = vpop.f32.mrf.mxu0
        %v5054 = vadd.f32 0.0, %v5053
        %v5055 = vpop.f32.mrf.mxu0
        %v5056 = vadd.f32 0.0, %v5055
        %v5057 = vpop.f32.mrf.mxu0
        %v5058 = vadd.f32 0.0, %v5057
        %5059 = vdwg.mxu0
        %5060 = vmatprep.subr.bf16.mxu0 0
        %5061 = vmatpush1.bf16.msra.mxu0 0
        %5062 = vmatprep.subr.bf16.mxu0 0
        %5063 = vmatpush1.bf16.msra.mxu0 0
        %5064 = vmatprep.subr.bf16.mxu0 0
        %5065 = vmatpush1.bf16.msra.mxu0 0
        %5066 = vmatprep.subr.bf16.mxu0 0
        %5067 = vmatpush1.bf16.msra.mxu0 0
        %5068 = vmatprep.subr.bf16.mxu0 0
        %5069 = vmatpush1.bf16.msra.mxu0 %v4910
        %5070 = vmatprep.subr.bf16.mxu0 0
        %5071 = vmatpush1.bf16.msra.mxu0 %v4907
        %5072 = vmatprep.subr.bf16.mxu0 0
        %5073 = vmatpush1.bf16.msra.mxu0 %v4904
        %5074 = vmatprep.subr.bf16.mxu0 0
        %5075 = vmatpush1.bf16.msra.mxu0 %v4901
        %5076 = vmatprep.subr.bf16.mxu0 0
        %5077 = vmatpush2.bf16.msra.mxu0 0
        %5078 = vmatprep.subr.bf16.mxu0 0
        %5079 = vmatpush2.bf16.msra.mxu0 0
        %5080 = vmatprep.subr.bf16.mxu0 0
        %5081 = vmatpush2.bf16.msra.mxu0 0
        %5082 = vmatprep.subr.bf16.mxu0 0
        %5083 = vmatpush2.bf16.msra.mxu0 0
        %5084 = vmatprep.subr.bf16.mxu0 0
        %5085 = vmatpush2.bf16.msra.mxu0 0
        %5086 = vmatprep.subr.bf16.mxu0 0
        %5087 = vmatpush2.bf16.msra.mxu0 0
        %5088 = vmatprep.subr.bf16.mxu0 0
        %5089 = vmatpush2.bf16.msra.mxu0 0
        %5090 = vmatprep.subr.bf16.mxu0 0
        %5091 = vmatpush2.bf16.msra.mxu0 0
        %5092 = vmatprep.mubr.bf16.mxu0 0
        %5093 = vmatmul.mubr.bf16.gmra.mxu0 %v4924
        %v5094 = vpop.f32.mrf.mxu0
        %v5095 = vadd.f32 0.0, %v5094
        %v5096 = vpop.f32.mrf.mxu0
        %v5097 = vpop.f32.mrf.mxu0
        %v5098 = vadd.f32 0.0, %v5097
        %v5099 = vpop.f32.mrf.mxu0
        %5100 = vmatprep.mubr.bf16.mxu0 0
        %5101 = vmatmul.mubr.bf16.gmra.mxu0 %v4927
        %v5102 = vpop.f32.mrf.mxu0
        %v5103 = vadd.f32 0.0, %v5102
        %v5104 = vpop.f32.mrf.mxu0
        %v5105 = vpop.f32.mrf.mxu0
        %v5106 = vadd.f32 0.0, %v5105
        %v5107 = vpop.f32.mrf.mxu0
        %5108 = vmatprep.mubr.bf16.mxu0 0
        %5109 = vmatmul.mubr.bf16.gmra.mxu0 %v4930
        %v5110 = vpop.f32.mrf.mxu0
        %v5111 = vadd.f32 0.0, %v5110
        %v5112 = vpop.f32.mrf.mxu0
        %v5113 = vpop.f32.mrf.mxu0
        %v5114 = vadd.f32 0.0, %v5113
        %v5115 = vpop.f32.mrf.mxu0
        %5116 = vmatprep.mubr.bf16.mxu0 0
        %5117 = vmatmul.mubr.bf16.gmra.mxu0 %v4933
        %v5118 = vpop.f32.mrf.mxu0
        %v5119 = vadd.f32 0.0, %v5118
        %v5120 = vpop.f32.mrf.mxu0
        %v5121 = vpop.f32.mrf.mxu0
        %v5122 = vadd.f32 0.0, %v5121
        %v5123 = vpop.f32.mrf.mxu0
        %5124 = vmatprep.mubr.bf16.mxu0 0
        %5125 = vmatmul.mubr.bf16.gmra.mxu0 %v4936
        %v5126 = vpop.f32.mrf.mxu0
        %v5127 = vadd.f32 0.0, %v5126
        %v5128 = vpop.f32.mrf.mxu0
        %v5129 = vpop.f32.mrf.mxu0
        %v5130 = vadd.f32 0.0, %v5129
        %v5131 = vpop.f32.mrf.mxu0
        %5132 = vmatprep.mubr.bf16.mxu0 0
        %5133 = vmatmul.mubr.bf16.gmra.mxu0 %v4939
        %v5134 = vpop.f32.mrf.mxu0
        %v5135 = vadd.f32 0.0, %v5134
        %v5136 = vpop.f32.mrf.mxu0
        %v5137 = vpop.f32.mrf.mxu0
        %v5138 = vadd.f32 0.0, %v5137
        %v5139 = vpop.f32.mrf.mxu0
        %5140 = vmatprep.mubr.bf16.mxu0 0
        %5141 = vmatmul.mubr.bf16.gmra.mxu0 %v4942
        %v5142 = vpop.f32.mrf.mxu0
        %v5143 = vadd.f32 0.0, %v5142
        %v5144 = vpop.f32.mrf.mxu0
        %v5145 = vpop.f32.mrf.mxu0
        %v5146 = vadd.f32 0.0, %v5145
        %v5147 = vpop.f32.mrf.mxu0
        %5148 = vmatprep.mubr.bf16.mxu0 0
        %5149 = vmatmul.mubr.bf16.gmra.mxu0 %v4945
        %v5150 = vpop.f32.mrf.mxu0
        %v5151 = vadd.f32 0.0, %v5150
        %v5152 = vpop.f32.mrf.mxu0
        %v5153 = vpop.f32.mrf.mxu0
        %v5154 = vadd.f32 0.0, %v5153
        %v5155 = vpop.f32.mrf.mxu0
        %5156 = vdwg.mxu0
        %v5157 = vadd.f32 %v4250, %v4982
        %v5158 = vadd.f32 %v4252, %v4984
        %v5159 = vadd.f32 %v4363, %v5095
        %v5160 = vadd.f32 %v4254, %v4986
        %v5161 = vadd.f32 %v4256, %v4988
        %v5162 = vadd.f32 %v4366, %v5098
        %v5163 = vadd.f32 %v4260, %v4992
        %v5164 = vadd.f32 %v4262, %v4994
        %v5165 = vadd.f32 %v4371, %v5103
        %v5166 = vadd.f32 %v4264, %v4996
        %v5167 = vadd.f32 %v4266, %v4998
        %v5168 = vadd.f32 %v4374, %v5106
        %v5169 = vadd.f32 %v4270, %v5002
        %v5170 = vadd.f32 %v4272, %v5004
        %v5171 = vadd.f32 %v4379, %v5111
        %v5172 = vadd.f32 %v4274, %v5006
        %v5173 = vadd.f32 %v4276, %v5008
        %v5174 = vadd.f32 %v4382, %v5114
        %v5175 = vadd.f32 %v4280, %v5012
        %v5176 = vadd.f32 %v4282, %v5014
        %v5177 = vadd.f32 %v4387, %v5119
        %v5178 = vadd.f32 %v4284, %v5016
        %v5179 = vadd.f32 %v4286, %v5018
        %v5180 = vadd.f32 %v4390, %v5122
        %v5181 = vadd.f32 %v4290, %v5022
        %v5182 = vadd.f32 %v4292, %v5024
        %v5183 = vadd.f32 %v4395, %v5127
        %v5184 = vadd.f32 %v4294, %v5026
        %v5185 = vadd.f32 %v4296, %v5028
        %v5186 = vadd.f32 %v4398, %v5130
        %v5187 = vadd.f32 %v4300, %v5032
        %v5188 = vadd.f32 %v4302, %v5034
        %v5189 = vadd.f32 %v4403, %v5135
        %v5190 = vadd.f32 %v4304, %v5036
        %v5191 = vadd.f32 %v4306, %v5038
        %v5192 = vadd.f32 %v4406, %v5138
        %v5193 = vadd.f32 %v4310, %v5042
        %v5194 = vadd.f32 %v4312, %v5044
        %v5195 = vadd.f32 %v4411, %v5143
        %v5196 = vadd.f32 %v4314, %v5046
        %v5197 = vadd.f32 %v4316, %v5048
        %v5198 = vadd.f32 %v4414, %v5146
        %v5199 = vadd.f32 %v4320, %v5052
        %v5200 = vadd.f32 %v4322, %v5054
        %v5201 = vadd.f32 %v4419, %v5151
        %v5202 = vadd.f32 %v4324, %v5056
        %v5203 = vadd.f32 %v4326, %v5058
        %v5204 = vadd.f32 %v4422, %v5154
        %5213 = vrot.lane.b32.xlu0 %v2774, 64
        %v5214 = vpop.permute.xlu0 %5213
        %5215 = vrot.lane.b32.xlu0 %v2783, 64
        %v5216 = vpop.permute.xlu0 %5215
        %5217 = vrot.lane.b32.xlu0 %v2792, 64
        %v5218 = vpop.permute.xlu0 %5217
        %5219 = vrot.lane.b32.xlu0 %v2801, 64
        %v5220 = vpop.permute.xlu0 %5219
        %5221 = vrot.lane.b32.xlu0 %v2810, 64
        %v5222 = vpop.permute.xlu0 %5221
        %5223 = vrot.lane.b32.xlu0 %v2819, 64
        %v5224 = vpop.permute.xlu0 %5223
        %5225 = vrot.lane.b32.xlu0 %v2828, 64
        %v5226 = vpop.permute.xlu0 %5225
        %5227 = vrot.lane.b32.xlu0 %v2837, 64
        %v5228 = vpop.permute.xlu0 %5227
        %5237 = vrot.lane.b32.xlu0 %v2777, 64
        %v5238 = vpop.permute.xlu0 %5237
        %5239 = vrot.lane.b32.xlu0 %v2786, 64
        %v5240 = vpop.permute.xlu0 %5239
        %5241 = vrot.lane.b32.xlu0 %v2795, 64
        %v5242 = vpop.permute.xlu0 %5241
        %5243 = vrot.lane.b32.xlu0 %v2804, 64
        %v5244 = vpop.permute.xlu0 %5243
        %5245 = vrot.lane.b32.xlu0 %v2813, 64
        %v5246 = vpop.permute.xlu0 %5245
        %5247 = vrot.lane.b32.xlu0 %v2822, 64
        %v5248 = vpop.permute.xlu0 %5247
        %5249 = vrot.lane.b32.xlu0 %v2831, 64
        %v5250 = vpop.permute.xlu0 %5249
        %5251 = vrot.lane.b32.xlu0 %v2840, 64
        %v5252 = vpop.permute.xlu0 %5251
        %v5254 = vsel %vm2880, %v5214, 0
        %v5257 = vsel %vm2880, %v5216, 0
        %v5260 = vsel %vm2880, %v5218, 0
        %v5263 = vsel %vm2880, %v5220, 0
        %v5266 = vsel %vm2880, %v5222, 0
        %v5269 = vsel %vm2880, %v5224, 0
        %v5272 = vsel %vm2880, %v5226, 0
        %v5275 = vsel %vm2880, %v5228, 0
        %v5278 = vsel %vm2880, %v5238, 0
        %v5281 = vsel %vm2880, %v5240, 0
        %v5284 = vsel %vm2880, %v5242, 0
        %v5287 = vsel %vm2880, %v5244, 0
        %v5290 = vsel %vm2880, %v5246, 0
        %v5293 = vsel %vm2880, %v5248, 0
        %v5296 = vsel %vm2880, %v5250, 0
        %v5299 = vsel %vm2880, %v5252, 0
        %5301 = vmatprep.subr.bf16.mxu0 0
        %5302 = vmatpush1.bf16.xpose.msra.mxu0 %v5299
        %5303 = vmatprep.subr.bf16.mxu0 0
        %5304 = vmatpush1.bf16.xpose.msra.mxu0 %v5296
        %5305 = vmatprep.subr.bf16.mxu0 0
        %5306 = vmatpush1.bf16.xpose.msra.mxu0 %v5293
        %5307 = vmatprep.subr.bf16.mxu0 0
        %5308 = vmatpush1.bf16.xpose.msra.mxu0 %v5290
        %5309 = vmatprep.subr.bf16.mxu0 0
        %5310 = vmatpush1.bf16.xpose.msra.mxu0 %v5287
        %5311 = vmatprep.subr.bf16.mxu0 0
        %5312 = vmatpush1.bf16.xpose.msra.mxu0 %v5284
        %5313 = vmatprep.subr.bf16.mxu0 0
        %5314 = vmatpush1.bf16.xpose.msra.mxu0 %v5281
        %5315 = vmatprep.subr.bf16.mxu0 0
        %5316 = vmatpush1.bf16.xpose.msra.mxu0 %v5278
        %5317 = vmatprep.subr.bf16.mxu0 0
        %5318 = vmatpush2.bf16.xpose.msra.mxu0 0
        %5319 = vmatprep.subr.bf16.mxu0 0
        %5320 = vmatpush2.bf16.xpose.msra.mxu0 0
        %5321 = vmatprep.subr.bf16.mxu0 0
        %5322 = vmatpush2.bf16.xpose.msra.mxu0 0
        %5323 = vmatprep.subr.bf16.mxu0 0
        %5324 = vmatpush2.bf16.xpose.msra.mxu0 0
        %5325 = vmatprep.subr.bf16.mxu0 0
        %5326 = vmatpush2.bf16.xpose.msra.mxu0 0
        %5327 = vmatprep.subr.bf16.mxu0 0
        %5328 = vmatpush2.bf16.xpose.msra.mxu0 0
        %5329 = vmatprep.subr.bf16.mxu0 0
        %5330 = vmatpush2.bf16.xpose.msra.mxu0 0
        %5331 = vmatprep.subr.bf16.mxu0 0
        %5332 = vmatpush2.bf16.xpose.msra.mxu0 0
        %5333 = vmatprep.mubr.bf16.mxu0 0
        %5334 = vmatmul.mubr.bf16.gmra.mxu0 %v5254
        %v5335 = vpop.f32.mrf.mxu0
        %v5336 = vadd.f32 0.0, %v5335
        %v5337 = vpop.f32.mrf.mxu0
        %v5338 = vpop.f32.mrf.mxu0
        %v5339 = vadd.f32 0.0, %v5338
        %v5340 = vpop.f32.mrf.mxu0
        %5341 = vmatprep.mubr.bf16.mxu0 0
        %5342 = vmatmul.mubr.bf16.gmra.mxu0 %v5257
        %v5343 = vpop.f32.mrf.mxu0
        %v5344 = vadd.f32 0.0, %v5343
        %v5345 = vpop.f32.mrf.mxu0
        %v5346 = vpop.f32.mrf.mxu0
        %v5347 = vadd.f32 0.0, %v5346
        %v5348 = vpop.f32.mrf.mxu0
        %5349 = vmatprep.mubr.bf16.mxu0 0
        %5350 = vmatmul.mubr.bf16.gmra.mxu0 %v5260
        %v5351 = vpop.f32.mrf.mxu0
        %v5352 = vadd.f32 0.0, %v5351
        %v5353 = vpop.f32.mrf.mxu0
        %v5354 = vpop.f32.mrf.mxu0
        %v5355 = vadd.f32 0.0, %v5354
        %v5356 = vpop.f32.mrf.mxu0
        %5357 = vmatprep.mubr.bf16.mxu0 0
        %5358 = vmatmul.mubr.bf16.gmra.mxu0 %v5263
        %v5359 = vpop.f32.mrf.mxu0
        %v5360 = vadd.f32 0.0, %v5359
        %v5361 = vpop.f32.mrf.mxu0
        %v5362 = vpop.f32.mrf.mxu0
        %v5363 = vadd.f32 0.0, %v5362
        %v5364 = vpop.f32.mrf.mxu0
        %5365 = vmatprep.mubr.bf16.mxu0 0
        %5366 = vmatmul.mubr.bf16.gmra.mxu0 %v5266
        %v5367 = vpop.f32.mrf.mxu0
        %v5368 = vadd.f32 0.0, %v5367
        %v5369 = vpop.f32.mrf.mxu0
        %v5370 = vpop.f32.mrf.mxu0
        %v5371 = vadd.f32 0.0, %v5370
        %v5372 = vpop.f32.mrf.mxu0
        %5373 = vmatprep.mubr.bf16.mxu0 0
        %5374 = vmatmul.mubr.bf16.gmra.mxu0 %v5269
        %v5375 = vpop.f32.mrf.mxu0
        %v5376 = vadd.f32 0.0, %v5375
        %v5377 = vpop.f32.mrf.mxu0
        %v5378 = vpop.f32.mrf.mxu0
        %v5379 = vadd.f32 0.0, %v5378
        %v5380 = vpop.f32.mrf.mxu0
        %5381 = vmatprep.mubr.bf16.mxu0 0
        %5382 = vmatmul.mubr.bf16.gmra.mxu0 %v5272
        %v5383 = vpop.f32.mrf.mxu0
        %v5384 = vadd.f32 0.0, %v5383
        %v5385 = vpop.f32.mrf.mxu0
        %v5386 = vpop.f32.mrf.mxu0
        %v5387 = vadd.f32 0.0, %v5386
        %v5388 = vpop.f32.mrf.mxu0
        %5389 = vmatprep.mubr.bf16.mxu0 0
        %5390 = vmatmul.mubr.bf16.gmra.mxu0 %v5275
        %v5391 = vpop.f32.mrf.mxu0
        %v5392 = vadd.f32 0.0, %v5391
        %v5393 = vpop.f32.mrf.mxu0
        %v5394 = vpop.f32.mrf.mxu0
        %v5395 = vadd.f32 0.0, %v5394
        %v5396 = vpop.f32.mrf.mxu0
        %5397 = vdwg.mxu0
        %v5398 = vsel %vm2864, %v5336, -1e+30
        %v5399 = vsel %vm2865, %v5339, -1e+30
        %v5400 = vsel %vm2866, %v5344, -1e+30
        %v5401 = vsel %vm2867, %v5347, -1e+30
        %v5402 = vsel %vm2868, %v5352, -1e+30
        %v5403 = vsel %vm2869, %v5355, -1e+30
        %v5404 = vsel %vm2870, %v5360, -1e+30
        %v5405 = vsel %vm2871, %v5363, -1e+30
        %v5406 = vsel %vm2872, %v5368, -1e+30
        %v5407 = vsel %vm2873, %v5371, -1e+30
        %v5408 = vsel %vm2874, %v5376, -1e+30
        %v5409 = vsel %vm2875, %v5379, -1e+30
        %v5410 = vsel %vm2876, %v5384, -1e+30
        %v5411 = vsel %vm2877, %v5387, -1e+30
        %v5412 = vsel %vm2878, %v5392, -1e+30
        %v5413 = vsel %vm2879, %v5395, -1e+30
        %5414 = vmax.xlane.f32.xlu0 %v5398
        %v5415 = vpop.xlane.xlu0 %5414
        %5416 = vmax.xlane.f32.xlu0 %v5399
        %v5417 = vpop.xlane.xlu0 %5416
        %5418 = vmax.xlane.f32.xlu0 %v5400
        %v5419 = vpop.xlane.xlu0 %5418
        %5420 = vmax.xlane.f32.xlu0 %v5401
        %v5421 = vpop.xlane.xlu0 %5420
        %5422 = vmax.xlane.f32.xlu0 %v5402
        %v5423 = vpop.xlane.xlu0 %5422
        %5424 = vmax.xlane.f32.xlu0 %v5403
        %v5425 = vpop.xlane.xlu0 %5424
        %5426 = vmax.xlane.f32.xlu0 %v5404
        %v5427 = vpop.xlane.xlu0 %5426
        %5428 = vmax.xlane.f32.xlu0 %v5405
        %v5429 = vpop.xlane.xlu0 %5428
        %5430 = vmax.xlane.f32.xlu0 %v5406
        %v5431 = vpop.xlane.xlu0 %5430
        %5432 = vmax.xlane.f32.xlu0 %v5407
        %v5433 = vpop.xlane.xlu0 %5432
        %5434 = vmax.xlane.f32.xlu0 %v5408
        %v5435 = vpop.xlane.xlu0 %5434
        %5436 = vmax.xlane.f32.xlu0 %v5409
        %v5437 = vpop.xlane.xlu0 %5436
        %5438 = vmax.xlane.f32.xlu0 %v5410
        %v5439 = vpop.xlane.xlu0 %5438
        %5440 = vmax.xlane.f32.xlu0 %v5411
        %v5441 = vpop.xlane.xlu0 %5440
        %5442 = vmax.xlane.f32.xlu0 %v5412
        %v5443 = vpop.xlane.xlu0 %5442
        %5444 = vmax.xlane.f32.xlu0 %v5413
        %v5445 = vpop.xlane.xlu0 %5444
        %v5446 = vsub.f32 %v5398, %v5415
        %v5447 = vsub.f32 %v5399, %v5417
        %v5448 = vsub.f32 %v5400, %v5419
        %v5449 = vsub.f32 %v5401, %v5421
        %v5450 = vsub.f32 %v5402, %v5423
        %v5451 = vsub.f32 %v5403, %v5425
        %v5452 = vsub.f32 %v5404, %v5427
        %v5453 = vsub.f32 %v5405, %v5429
        %v5454 = vsub.f32 %v5406, %v5431
        %v5455 = vsub.f32 %v5407, %v5433
        %v5456 = vsub.f32 %v5408, %v5435
        %v5457 = vsub.f32 %v5409, %v5437
        %v5458 = vsub.f32 %v5410, %v5439
        %v5459 = vsub.f32 %v5411, %v5441
        %v5460 = vsub.f32 %v5412, %v5443
        %v5461 = vsub.f32 %v5413, %v5445
        %v5462 = vmul.f32 %v5446, 1.442695
        %v5463 = vpow.pop %v5462
        %v5464 = vmul.f32 %v5447, 1.442695
        %v5465 = vpow.pop %v5464
        %v5466 = vmul.f32 %v5448, 1.442695
        %v5467 = vpow.pop %v5466
        %v5468 = vmul.f32 %v5449, 1.442695
        %v5469 = vpow.pop %v5468
        %v5470 = vmul.f32 %v5450, 1.442695
        %v5471 = vpow.pop %v5470
        %v5472 = vmul.f32 %v5451, 1.442695
        %v5473 = vpow.pop %v5472
        %v5474 = vmul.f32 %v5452, 1.442695
        %v5475 = vpow.pop %v5474
        %v5476 = vmul.f32 %v5453, 1.442695
        %v5477 = vpow.pop %v5476
        %v5478 = vmul.f32 %v5454, 1.442695
        %v5479 = vpow.pop %v5478
        %v5480 = vmul.f32 %v5455, 1.442695
        %v5481 = vpow.pop %v5480
        %v5482 = vmul.f32 %v5456, 1.442695
        %v5483 = vpow.pop %v5482
        %v5484 = vmul.f32 %v5457, 1.442695
        %v5485 = vpow.pop %v5484
        %v5486 = vmul.f32 %v5458, 1.442695
        %v5487 = vpow.pop %v5486
        %v5488 = vmul.f32 %v5459, 1.442695
        %v5489 = vpow.pop %v5488
        %v5490 = vmul.f32 %v5460, 1.442695
        %v5491 = vpow.pop %v5490
        %v5492 = vmul.f32 %v5461, 1.442695
        %v5493 = vpow.pop %v5492
        %5494 = vadd.xlane.f32.xlu0 %v5463
        %v5495 = vpop.xlane.xlu0 %5494
        %5496 = vadd.xlane.f32.xlu0 %v5465
        %v5497 = vpop.xlane.xlu0 %5496
        %5498 = vadd.xlane.f32.xlu0 %v5467
        %v5499 = vpop.xlane.xlu0 %5498
        %5500 = vadd.xlane.f32.xlu0 %v5469
        %v5501 = vpop.xlane.xlu0 %5500
        %5502 = vadd.xlane.f32.xlu0 %v5471
        %v5503 = vpop.xlane.xlu0 %5502
        %5504 = vadd.xlane.f32.xlu0 %v5473
        %v5505 = vpop.xlane.xlu0 %5504
        %5506 = vadd.xlane.f32.xlu0 %v5475
        %v5507 = vpop.xlane.xlu0 %5506
        %5508 = vadd.xlane.f32.xlu0 %v5477
        %v5509 = vpop.xlane.xlu0 %5508
        %5510 = vadd.xlane.f32.xlu0 %v5479
        %v5511 = vpop.xlane.xlu0 %5510
        %5512 = vadd.xlane.f32.xlu0 %v5481
        %v5513 = vpop.xlane.xlu0 %5512
        %5514 = vadd.xlane.f32.xlu0 %v5483
        %v5515 = vpop.xlane.xlu0 %5514
        %5516 = vadd.xlane.f32.xlu0 %v5485
        %v5517 = vpop.xlane.xlu0 %5516
        %5518 = vadd.xlane.f32.xlu0 %v5487
        %v5519 = vpop.xlane.xlu0 %5518
        %5520 = vadd.xlane.f32.xlu0 %v5489
        %v5521 = vpop.xlane.xlu0 %5520
        %5522 = vadd.xlane.f32.xlu0 %v5491
        %v5523 = vpop.xlane.xlu0 %5522
        %5524 = vadd.xlane.f32.xlu0 %v5493
        %v5525 = vpop.xlane.xlu0 %5524
        %v5526 = vrcp.pop %v5495
        %v5527 = vrcp.pop %v5497
        %v5528 = vrcp.pop %v5499
        %v5529 = vrcp.pop %v5501
        %v5530 = vrcp.pop %v5503
        %v5531 = vrcp.pop %v5505
        %v5532 = vrcp.pop %v5507
        %v5533 = vrcp.pop %v5509
        %v5534 = vrcp.pop %v5511
        %v5535 = vrcp.pop %v5513
        %v5536 = vrcp.pop %v5515
        %v5537 = vrcp.pop %v5517
        %v5538 = vrcp.pop %v5519
        %v5539 = vrcp.pop %v5521
        %v5540 = vrcp.pop %v5523
        %v5541 = vrcp.pop %v5525
        %v5542 = vmul.f32 %v5463, %v5526
        %v5543 = vmul.f32 %v5465, %v5527
        %v5544 = vmul.f32 %v5467, %v5528
        %v5545 = vmul.f32 %v5469, %v5529
        %v5546 = vmul.f32 %v5471, %v5530
        %v5547 = vmul.f32 %v5473, %v5531
        %v5548 = vmul.f32 %v5475, %v5532
        %v5549 = vmul.f32 %v5477, %v5533
        %v5550 = vmul.f32 %v5479, %v5534
        %v5551 = vmul.f32 %v5481, %v5535
        %v5552 = vmul.f32 %v5483, %v5536
        %v5553 = vmul.f32 %v5485, %v5537
        %v5554 = vmul.f32 %v5487, %v5538
        %v5555 = vmul.f32 %v5489, %v5539
        %v5556 = vmul.f32 %v5491, %v5540
        %v5557 = vmul.f32 %v5493, %v5541
        %v5558 = vpack.c.bf16 %v5543, %v5542
        %v5559 = vpack.c.bf16 %v5545, %v5544
        %v5560 = vpack.c.bf16 %v5547, %v5546
        %v5561 = vpack.c.bf16 %v5549, %v5548
        %v5562 = vpack.c.bf16 %v5551, %v5550
        %v5563 = vpack.c.bf16 %v5553, %v5552
        %v5564 = vpack.c.bf16 %v5555, %v5554
        %v5565 = vpack.c.bf16 %v5557, %v5556
        %5574 = vrot.lane.b32.xlu0 %v2780, 64
        %v5575 = vpop.permute.xlu0 %5574
        %5576 = vrot.lane.b32.xlu0 %v2789, 64
        %v5577 = vpop.permute.xlu0 %5576
        %5578 = vrot.lane.b32.xlu0 %v2798, 64
        %v5579 = vpop.permute.xlu0 %5578
        %5580 = vrot.lane.b32.xlu0 %v2807, 64
        %v5581 = vpop.permute.xlu0 %5580
        %5582 = vrot.lane.b32.xlu0 %v2816, 64
        %v5583 = vpop.permute.xlu0 %5582
        %5584 = vrot.lane.b32.xlu0 %v2825, 64
        %v5585 = vpop.permute.xlu0 %5584
        %5586 = vrot.lane.b32.xlu0 %v2834, 64
        %v5587 = vpop.permute.xlu0 %5586
        %5588 = vrot.lane.b32.xlu0 %v2843, 64
        %v5589 = vpop.permute.xlu0 %5588
        %5598 = vmatprep.subr.bf16.mxu0 0
        %5599 = vmatpush1.bf16.msra.mxu0 %v5589
        %5600 = vmatprep.subr.bf16.mxu0 0
        %5601 = vmatpush1.bf16.msra.mxu0 %v5587
        %5602 = vmatprep.subr.bf16.mxu0 0
        %5603 = vmatpush1.bf16.msra.mxu0 %v5585
        %5604 = vmatprep.subr.bf16.mxu0 0
        %5605 = vmatpush1.bf16.msra.mxu0 %v5583
        %5606 = vmatprep.subr.bf16.mxu0 0
        %5607 = vmatpush1.bf16.msra.mxu0 %v5581
        %5608 = vmatprep.subr.bf16.mxu0 0
        %5609 = vmatpush1.bf16.msra.mxu0 %v5579
        %5610 = vmatprep.subr.bf16.mxu0 0
        %5611 = vmatpush1.bf16.msra.mxu0 %v5577
        %5612 = vmatprep.subr.bf16.mxu0 0
        %5613 = vmatpush1.bf16.msra.mxu0 %v5575
        %5614 = vmatprep.subr.bf16.mxu0 0
        %5615 = vmatpush2.bf16.msra.mxu0 0
        %5616 = vmatprep.subr.bf16.mxu0 0
        %5617 = vmatpush2.bf16.msra.mxu0 0
        %5618 = vmatprep.subr.bf16.mxu0 0
        %5619 = vmatpush2.bf16.msra.mxu0 0
        %5620 = vmatprep.subr.bf16.mxu0 0
        %5621 = vmatpush2.bf16.msra.mxu0 0
        %5622 = vmatprep.subr.bf16.mxu0 0
        %5623 = vmatpush2.bf16.msra.mxu0 0
        %5624 = vmatprep.subr.bf16.mxu0 0
        %5625 = vmatpush2.bf16.msra.mxu0 0
        %5626 = vmatprep.subr.bf16.mxu0 0
        %5627 = vmatpush2.bf16.msra.mxu0 0
        %5628 = vmatprep.subr.bf16.mxu0 0
        %5629 = vmatpush2.bf16.msra.mxu0 0
        %5630 = vmatprep.mubr.bf16.mxu0 0
        %5631 = vmatmul.mubr.bf16.gmra.mxu0 %v5558
        %v5632 = vpop.f32.mrf.mxu0
        %v5633 = vadd.f32 0.0, %v5632
        %v5634 = vpop.f32.mrf.mxu0
        %v5635 = vpop.f32.mrf.mxu0
        %v5636 = vadd.f32 0.0, %v5635
        %v5637 = vpop.f32.mrf.mxu0
        %5638 = vmatprep.mubr.bf16.mxu0 0
        %5639 = vmatmul.mubr.bf16.gmra.mxu0 %v5559
        %v5640 = vpop.f32.mrf.mxu0
        %v5641 = vadd.f32 0.0, %v5640
        %v5642 = vpop.f32.mrf.mxu0
        %v5643 = vpop.f32.mrf.mxu0
        %v5644 = vadd.f32 0.0, %v5643
        %v5645 = vpop.f32.mrf.mxu0
        %5646 = vmatprep.mubr.bf16.mxu0 0
        %5647 = vmatmul.mubr.bf16.gmra.mxu0 %v5560
        %v5648 = vpop.f32.mrf.mxu0
        %v5649 = vadd.f32 0.0, %v5648
        %v5650 = vpop.f32.mrf.mxu0
        %v5651 = vpop.f32.mrf.mxu0
        %v5652 = vadd.f32 0.0, %v5651
        %v5653 = vpop.f32.mrf.mxu0
        %5654 = vmatprep.mubr.bf16.mxu0 0
        %5655 = vmatmul.mubr.bf16.gmra.mxu0 %v5561
        %v5656 = vpop.f32.mrf.mxu0
        %v5657 = vadd.f32 0.0, %v5656
        %v5658 = vpop.f32.mrf.mxu0
        %v5659 = vpop.f32.mrf.mxu0
        %v5660 = vadd.f32 0.0, %v5659
        %v5661 = vpop.f32.mrf.mxu0
        %5662 = vmatprep.mubr.bf16.mxu0 0
        %5663 = vmatmul.mubr.bf16.gmra.mxu0 %v5562
        %v5664 = vpop.f32.mrf.mxu0
        %v5665 = vadd.f32 0.0, %v5664
        %v5666 = vpop.f32.mrf.mxu0
        %v5667 = vpop.f32.mrf.mxu0
        %v5668 = vadd.f32 0.0, %v5667
        %v5669 = vpop.f32.mrf.mxu0
        %5670 = vmatprep.mubr.bf16.mxu0 0
        %5671 = vmatmul.mubr.bf16.gmra.mxu0 %v5563
        %v5672 = vpop.f32.mrf.mxu0
        %v5673 = vadd.f32 0.0, %v5672
        %v5674 = vpop.f32.mrf.mxu0
        %v5675 = vpop.f32.mrf.mxu0
        %v5676 = vadd.f32 0.0, %v5675
        %v5677 = vpop.f32.mrf.mxu0
        %5678 = vmatprep.mubr.bf16.mxu0 0
        %5679 = vmatmul.mubr.bf16.gmra.mxu0 %v5564
        %v5680 = vpop.f32.mrf.mxu0
        %v5681 = vadd.f32 0.0, %v5680
        %v5682 = vpop.f32.mrf.mxu0
        %v5683 = vpop.f32.mrf.mxu0
        %v5684 = vadd.f32 0.0, %v5683
        %v5685 = vpop.f32.mrf.mxu0
        %5686 = vmatprep.mubr.bf16.mxu0 0
        %5687 = vmatmul.mubr.bf16.gmra.mxu0 %v5565
        %v5688 = vpop.f32.mrf.mxu0
        %v5689 = vadd.f32 0.0, %v5688
        %v5690 = vpop.f32.mrf.mxu0
        %v5691 = vpop.f32.mrf.mxu0
        %v5692 = vadd.f32 0.0, %v5691
        %v5693 = vpop.f32.mrf.mxu0
        %5694 = vdwg.mxu0
        %v5695 = vpack.c.bf16 %v5636, %v5633
        %v5696 = vpack.c.bf16 %v5644, %v5641
        %v5697 = vpack.c.bf16 %v5652, %v5649
        %v5698 = vpack.c.bf16 %v5660, %v5657
        %v5699 = vpack.c.bf16 %v5668, %v5665
        %v5700 = vpack.c.bf16 %v5676, %v5673
        %v5701 = vpack.c.bf16 %v5684, %v5681
        %v5702 = vpack.c.bf16 %v5692, %v5689
        %v5703 = vld [vmem:[#allocation7 + $0x120] sm:$0xff]
        %v5704 = vld [vmem:[#allocation7 + $0x128] sm:$0xf]
        %v5705 = vld [vmem:[#allocation7 + $0x12c] sm:$0xff]
        %v5706 = vld [vmem:[#allocation7 + $0x134] sm:$0xf]
        %v5707 = vld [vmem:[#allocation7 + $0x138] sm:$0xff]
        %v5708 = vld [vmem:[#allocation7 + $0x140] sm:$0xf]
        %v5709 = vld [vmem:[#allocation7 + $0x144] sm:$0xff]
        %v5710 = vld [vmem:[#allocation7 + $0x14c] sm:$0xf]
        %v5711 = vld [vmem:[#allocation7 + $0x150] sm:$0xff]
        %v5712 = vld [vmem:[#allocation7 + $0x158] sm:$0xf]
        %v5713 = vld [vmem:[#allocation7 + $0x15c] sm:$0xff]
        %v5714 = vld [vmem:[#allocation7 + $0x164] sm:$0xf]
        %v5715 = vld [vmem:[#allocation7 + $0x168] sm:$0xff]
        %v5716 = vld [vmem:[#allocation7 + $0x170] sm:$0xf]
        %v5717 = vld [vmem:[#allocation7 + $0x174] sm:$0xff]
        %v5718 = vld [vmem:[#allocation7 + $0x17c] sm:$0xf]
        %v5735 = vunpack.c.l.b16 %v5703
        %v5736 = vunpack.c.h.b16 %v5703
        %v5737 = vunpack.c.l.b16 %v5704
        %v5738 = vunpack.c.l.b16 %v5705
        %v5739 = vunpack.c.h.b16 %v5705
        %v5740 = vunpack.c.l.b16 %v5706
        %v5741 = vunpack.c.l.b16 %v5707
        %v5742 = vunpack.c.h.b16 %v5707
        %v5743 = vunpack.c.l.b16 %v5708
        %v5744 = vunpack.c.l.b16 %v5709
        %v5745 = vunpack.c.h.b16 %v5709
        %v5746 = vunpack.c.l.b16 %v5710
        %v5747 = vunpack.c.l.b16 %v5711
        %v5748 = vunpack.c.h.b16 %v5711
        %v5749 = vunpack.c.l.b16 %v5712
        %v5750 = vunpack.c.l.b16 %v5713
        %v5751 = vunpack.c.h.b16 %v5713
        %v5752 = vunpack.c.l.b16 %v5714
        %v5753 = vunpack.c.l.b16 %v5715
        %v5754 = vunpack.c.h.b16 %v5715
        %v5755 = vunpack.c.l.b16 %v5716
        %v5756 = vunpack.c.l.b16 %v5717
        %v5757 = vunpack.c.h.b16 %v5717
        %v5758 = vunpack.c.l.b16 %v5718
        %v5759 = vpack.c.b16 %v5738, %v5735
        %v5760 = vpack.c.b16 %v5739, %v5736
        %v5761 = vpack.c.b16 %v5740, %v5737
        %v5762 = vpack.c.b16 %v5744, %v5741
        %v5763 = vpack.c.b16 %v5745, %v5742
        %v5764 = vpack.c.b16 %v5746, %v5743
        %v5765 = vpack.c.b16 %v5750, %v5747
        %v5766 = vpack.c.b16 %v5751, %v5748
        %v5767 = vpack.c.b16 %v5752, %v5749
        %v5768 = vpack.c.b16 %v5756, %v5753
        %v5769 = vpack.c.b16 %v5757, %v5754
        %v5770 = vpack.c.b16 %v5758, %v5755
        %v5784 = vsel %vm2880, %v5695, 0
        %v5787 = vsel %vm2880, %v5696, 0
        %v5790 = vsel %vm2880, %v5697, 0
        %v5793 = vsel %vm2880, %v5698, 0
        %v5796 = vsel %vm2880, %v5699, 0
        %v5799 = vsel %vm2880, %v5700, 0
        %v5802 = vsel %vm2880, %v5701, 0
        %v5805 = vsel %vm2880, %v5702, 0
        %5807 = vmatprep.subr.bf16.mxu0 0
        %5808 = vmatpush1.bf16.msra.mxu0 0
        %5809 = vmatprep.subr.bf16.mxu0 0
        %5810 = vmatpush1.bf16.msra.mxu0 0
        %5811 = vmatprep.subr.bf16.mxu0 0
        %5812 = vmatpush1.bf16.msra.mxu0 0
        %5813 = vmatprep.subr.bf16.mxu0 0
        %5814 = vmatpush1.bf16.msra.mxu0 0
        %5815 = vmatprep.subr.bf16.mxu0 %v5769
        %5816 = vmatpush1.bf16.msra.mxu0 %v5768
        %5817 = vmatprep.subr.bf16.mxu0 %v5766
        %5818 = vmatpush1.bf16.msra.mxu0 %v5765
        %5819 = vmatprep.subr.bf16.mxu0 %v5763
        %5820 = vmatpush1.bf16.msra.mxu0 %v5762
        %5821 = vmatprep.subr.bf16.mxu0 %v5760
        %5822 = vmatpush1.bf16.msra.mxu0 %v5759
        %5823 = vmatprep.subr.bf16.mxu0 0
        %5824 = vmatpush2.bf16.msra.mxu0 0
        %5825 = vmatprep.subr.bf16.mxu0 0
        %5826 = vmatpush2.bf16.msra.mxu0 0
        %5827 = vmatprep.subr.bf16.mxu0 0
        %5828 = vmatpush2.bf16.msra.mxu0 0
        %5829 = vmatprep.subr.bf16.mxu0 0
        %5830 = vmatpush2.bf16.msra.mxu0 0
        %5831 = vmatprep.subr.bf16.mxu0 0
        %5832 = vmatpush2.bf16.msra.mxu0 0
        %5833 = vmatprep.subr.bf16.mxu0 0
        %5834 = vmatpush2.bf16.msra.mxu0 0
        %5835 = vmatprep.subr.bf16.mxu0 0
        %5836 = vmatpush2.bf16.msra.mxu0 0
        %5837 = vmatprep.subr.bf16.mxu0 0
        %5838 = vmatpush2.bf16.msra.mxu0 0
        %5839 = vmatprep.mubr.bf16.mxu0 0
        %5840 = vmatmul.mubr.bf16.gmra.mxu0 %v5784
        %v5841 = vpop.f32.mrf.mxu0
        %v5842 = vadd.f32 0.0, %v5841
        %v5843 = vpop.f32.mrf.mxu0
        %v5844 = vadd.f32 0.0, %v5843
        %v5845 = vpop.f32.mrf.mxu0
        %v5846 = vadd.f32 0.0, %v5845
        %v5847 = vpop.f32.mrf.mxu0
        %v5848 = vadd.f32 0.0, %v5847
        %5849 = vmatprep.mubr.bf16.mxu0 0
        %5850 = vmatmul.mubr.bf16.gmra.mxu0 %v5787
        %v5851 = vpop.f32.mrf.mxu0
        %v5852 = vadd.f32 0.0, %v5851
        %v5853 = vpop.f32.mrf.mxu0
        %v5854 = vadd.f32 0.0, %v5853
        %v5855 = vpop.f32.mrf.mxu0
        %v5856 = vadd.f32 0.0, %v5855
        %v5857 = vpop.f32.mrf.mxu0
        %v5858 = vadd.f32 0.0, %v5857
        %5859 = vmatprep.mubr.bf16.mxu0 0
        %5860 = vmatmul.mubr.bf16.gmra.mxu0 %v5790
        %v5861 = vpop.f32.mrf.mxu0
        %v5862 = vadd.f32 0.0, %v5861
        %v5863 = vpop.f32.mrf.mxu0
        %v5864 = vadd.f32 0.0, %v5863
        %v5865 = vpop.f32.mrf.mxu0
        %v5866 = vadd.f32 0.0, %v5865
        %v5867 = vpop.f32.mrf.mxu0
        %v5868 = vadd.f32 0.0, %v5867
        %5869 = vmatprep.mubr.bf16.mxu0 0
        %5870 = vmatmul.mubr.bf16.gmra.mxu0 %v5793
        %v5871 = vpop.f32.mrf.mxu0
        %v5872 = vadd.f32 0.0, %v5871
        %v5873 = vpop.f32.mrf.mxu0
        %v5874 = vadd.f32 0.0, %v5873
        %v5875 = vpop.f32.mrf.mxu0
        %v5876 = vadd.f32 0.0, %v5875
        %v5877 = vpop.f32.mrf.mxu0
        %v5878 = vadd.f32 0.0, %v5877
        %5879 = vmatprep.mubr.bf16.mxu0 0
        %5880 = vmatmul.mubr.bf16.gmra.mxu0 %v5796
        %v5881 = vpop.f32.mrf.mxu0
        %v5882 = vadd.f32 0.0, %v5881
        %v5883 = vpop.f32.mrf.mxu0
        %v5884 = vadd.f32 0.0, %v5883
        %v5885 = vpop.f32.mrf.mxu0
        %v5886 = vadd.f32 0.0, %v5885
        %v5887 = vpop.f32.mrf.mxu0
        %v5888 = vadd.f32 0.0, %v5887
        %5889 = vmatprep.mubr.bf16.mxu0 0
        %5890 = vmatmul.mubr.bf16.gmra.mxu0 %v5799
        %v5891 = vpop.f32.mrf.mxu0
        %v5892 = vadd.f32 0.0, %v5891
        %v5893 = vpop.f32.mrf.mxu0
        %v5894 = vadd.f32 0.0, %v5893
        %v5895 = vpop.f32.mrf.mxu0
        %v5896 = vadd.f32 0.0, %v5895
        %v5897 = vpop.f32.mrf.mxu0
        %v5898 = vadd.f32 0.0, %v5897
        %5899 = vmatprep.mubr.bf16.mxu0 0
        %5900 = vmatmul.mubr.bf16.gmra.mxu0 %v5802
        %v5901 = vpop.f32.mrf.mxu0
        %v5902 = vadd.f32 0.0, %v5901
        %v5903 = vpop.f32.mrf.mxu0
        %v5904 = vadd.f32 0.0, %v5903
        %v5905 = vpop.f32.mrf.mxu0
        %v5906 = vadd.f32 0.0, %v5905
        %v5907 = vpop.f32.mrf.mxu0
        %v5908 = vadd.f32 0.0, %v5907
        %5909 = vmatprep.mubr.bf16.mxu0 0
        %5910 = vmatmul.mubr.bf16.gmra.mxu0 %v5805
        %v5911 = vpop.f32.mrf.mxu0
        %v5912 = vadd.f32 0.0, %v5911
        %v5913 = vpop.f32.mrf.mxu0
        %v5914 = vadd.f32 0.0, %v5913
        %v5915 = vpop.f32.mrf.mxu0
        %v5916 = vadd.f32 0.0, %v5915
        %v5917 = vpop.f32.mrf.mxu0
        %v5918 = vadd.f32 0.0, %v5917
        %5919 = vdwg.mxu0
        %5920 = vmatprep.subr.bf16.mxu0 0
        %5921 = vmatpush1.bf16.msra.mxu0 0
        %5922 = vmatprep.subr.bf16.mxu0 0
        %5923 = vmatpush1.bf16.msra.mxu0 0
        %5924 = vmatprep.subr.bf16.mxu0 0
        %5925 = vmatpush1.bf16.msra.mxu0 0
        %5926 = vmatprep.subr.bf16.mxu0 0
        %5927 = vmatpush1.bf16.msra.mxu0 0
        %5928 = vmatprep.subr.bf16.mxu0 0
        %5929 = vmatpush1.bf16.msra.mxu0 %v5770
        %5930 = vmatprep.subr.bf16.mxu0 0
        %5931 = vmatpush1.bf16.msra.mxu0 %v5767
        %5932 = vmatprep.subr.bf16.mxu0 0
        %5933 = vmatpush1.bf16.msra.mxu0 %v5764
        %5934 = vmatprep.subr.bf16.mxu0 0
        %5935 = vmatpush1.bf16.msra.mxu0 %v5761
        %5936 = vmatprep.subr.bf16.mxu0 0
        %5937 = vmatpush2.bf16.msra.mxu0 0
        %5938 = vmatprep.subr.bf16.mxu0 0
        %5939 = vmatpush2.bf16.msra.mxu0 0
        %5940 = vmatprep.subr.bf16.mxu0 0
        %5941 = vmatpush2.bf16.msra.mxu0 0
        %5942 = vmatprep.subr.bf16.mxu0 0
        %5943 = vmatpush2.bf16.msra.mxu0 0
        %5944 = vmatprep.subr.bf16.mxu0 0
        %5945 = vmatpush2.bf16.msra.mxu0 0
        %5946 = vmatprep.subr.bf16.mxu0 0
        %5947 = vmatpush2.bf16.msra.mxu0 0
        %5948 = vmatprep.subr.bf16.mxu0 0
        %5949 = vmatpush2.bf16.msra.mxu0 0
        %5950 = vmatprep.subr.bf16.mxu0 0
        %5951 = vmatpush2.bf16.msra.mxu0 0
        %5952 = vmatprep.mubr.bf16.mxu0 0
        %5953 = vmatmul.mubr.bf16.gmra.mxu0 %v5784
        %v5954 = vpop.f32.mrf.mxu0
        %v5955 = vadd.f32 0.0, %v5954
        %v5956 = vpop.f32.mrf.mxu0
        %v5957 = vpop.f32.mrf.mxu0
        %v5958 = vadd.f32 0.0, %v5957
        %v5959 = vpop.f32.mrf.mxu0
        %5960 = vmatprep.mubr.bf16.mxu0 0
        %5961 = vmatmul.mubr.bf16.gmra.mxu0 %v5787
        %v5962 = vpop.f32.mrf.mxu0
        %v5963 = vadd.f32 0.0, %v5962
        %v5964 = vpop.f32.mrf.mxu0
        %v5965 = vpop.f32.mrf.mxu0
        %v5966 = vadd.f32 0.0, %v5965
        %v5967 = vpop.f32.mrf.mxu0
        %5968 = vmatprep.mubr.bf16.mxu0 0
        %5969 = vmatmul.mubr.bf16.gmra.mxu0 %v5790
        %v5970 = vpop.f32.mrf.mxu0
        %v5971 = vadd.f32 0.0, %v5970
        %v5972 = vpop.f32.mrf.mxu0
        %v5973 = vpop.f32.mrf.mxu0
        %v5974 = vadd.f32 0.0, %v5973
        %v5975 = vpop.f32.mrf.mxu0
        %5976 = vmatprep.mubr.bf16.mxu0 0
        %5977 = vmatmul.mubr.bf16.gmra.mxu0 %v5793
        %v5978 = vpop.f32.mrf.mxu0
        %v5979 = vadd.f32 0.0, %v5978
        %v5980 = vpop.f32.mrf.mxu0
        %v5981 = vpop.f32.mrf.mxu0
        %v5982 = vadd.f32 0.0, %v5981
        %v5983 = vpop.f32.mrf.mxu0
        %5984 = vmatprep.mubr.bf16.mxu0 0
        %5985 = vmatmul.mubr.bf16.gmra.mxu0 %v5796
        %v5986 = vpop.f32.mrf.mxu0
        %v5987 = vadd.f32 0.0, %v5986
        %v5988 = vpop.f32.mrf.mxu0
        %v5989 = vpop.f32.mrf.mxu0
        %v5990 = vadd.f32 0.0, %v5989
        %v5991 = vpop.f32.mrf.mxu0
        %5992 = vmatprep.mubr.bf16.mxu0 0
        %5993 = vmatmul.mubr.bf16.gmra.mxu0 %v5799
        %v5994 = vpop.f32.mrf.mxu0
        %v5995 = vadd.f32 0.0, %v5994
        %v5996 = vpop.f32.mrf.mxu0
        %v5997 = vpop.f32.mrf.mxu0
        %v5998 = vadd.f32 0.0, %v5997
        %v5999 = vpop.f32.mrf.mxu0
        %6000 = vmatprep.mubr.bf16.mxu0 0
        %6001 = vmatmul.mubr.bf16.gmra.mxu0 %v5802
        %v6002 = vpop.f32.mrf.mxu0
        %v6003 = vadd.f32 0.0, %v6002
        %v6004 = vpop.f32.mrf.mxu0
        %v6005 = vpop.f32.mrf.mxu0
        %v6006 = vadd.f32 0.0, %v6005
        %v6007 = vpop.f32.mrf.mxu0
        %6008 = vmatprep.mubr.bf16.mxu0 0
        %6009 = vmatmul.mubr.bf16.gmra.mxu0 %v5805
        %v6010 = vpop.f32.mrf.mxu0
        %v6011 = vadd.f32 0.0, %v6010
        %v6012 = vpop.f32.mrf.mxu0
        %v6013 = vpop.f32.mrf.mxu0
        %v6014 = vadd.f32 0.0, %v6013
        %v6015 = vpop.f32.mrf.mxu0
        %6016 = vdwg.mxu0
        %v6017 = vadd.f32 %v5157, %v5842
        %v6018 = vadd.f32 %v5158, %v5844
        %v6019 = vadd.f32 %v5159, %v5955
        %v6020 = vadd.f32 %v5160, %v5846
        %v6021 = vadd.f32 %v5161, %v5848
        %v6022 = vadd.f32 %v5162, %v5958
        %v6023 = vadd.f32 %v5163, %v5852
        %v6024 = vadd.f32 %v5164, %v5854
        %v6025 = vadd.f32 %v5165, %v5963
        %v6026 = vadd.f32 %v5166, %v5856
        %v6027 = vadd.f32 %v5167, %v5858
        %v6028 = vadd.f32 %v5168, %v5966
        %v6029 = vadd.f32 %v5169, %v5862
        %v6030 = vadd.f32 %v5170, %v5864
        %v6031 = vadd.f32 %v5171, %v5971
        %v6032 = vadd.f32 %v5172, %v5866
        %v6033 = vadd.f32 %v5173, %v5868
        %v6034 = vadd.f32 %v5174, %v5974
        %v6035 = vadd.f32 %v5175, %v5872
        %v6036 = vadd.f32 %v5176, %v5874
        %v6037 = vadd.f32 %v5177, %v5979
        %v6038 = vadd.f32 %v5178, %v5876
        %v6039 = vadd.f32 %v5179, %v5878
        %v6040 = vadd.f32 %v5180, %v5982
        %v6041 = vadd.f32 %v5181, %v5882
        %v6042 = vadd.f32 %v5182, %v5884
        %v6043 = vadd.f32 %v5183, %v5987
        %v6044 = vadd.f32 %v5184, %v5886
        %v6045 = vadd.f32 %v5185, %v5888
        %v6046 = vadd.f32 %v5186, %v5990
        %v6047 = vadd.f32 %v5187, %v5892
        %v6048 = vadd.f32 %v5188, %v5894
        %v6049 = vadd.f32 %v5189, %v5995
        %v6050 = vadd.f32 %v5190, %v5896
        %v6051 = vadd.f32 %v5191, %v5898
        %v6052 = vadd.f32 %v5192, %v5998
        %v6053 = vadd.f32 %v5193, %v5902
        %v6054 = vadd.f32 %v5194, %v5904
        %v6055 = vadd.f32 %v5195, %v6003
        %v6056 = vadd.f32 %v5196, %v5906
        %v6057 = vadd.f32 %v5197, %v5908
        %v6058 = vadd.f32 %v5198, %v6006
        %v6059 = vadd.f32 %v5199, %v5912
        %v6060 = vadd.f32 %v5200, %v5914
        %v6061 = vadd.f32 %v5201, %v6011
        %v6062 = vadd.f32 %v5202, %v5916
        %v6063 = vadd.f32 %v5203, %v5918
        %v6064 = vadd.f32 %v5204, %v6014
        %v6066 = vsel %vm2880, %v2775, 0
        %v6069 = vsel %vm2880, %v2784, 0
        %v6072 = vsel %vm2880, %v2793, 0
        %v6075 = vsel %vm2880, %v2802, 0
        %v6078 = vsel %vm2880, %v2811, 0
        %v6081 = vsel %vm2880, %v2820, 0
        %v6084 = vsel %vm2880, %v2829, 0
        %v6087 = vsel %vm2880, %v2838, 0
        %v6090 = vsel %vm2880, %v2778, 0
        %v6093 = vsel %vm2880, %v2787, 0
        %v6096 = vsel %vm2880, %v2796, 0
        %v6099 = vsel %vm2880, %v2805, 0
        %v6102 = vsel %vm2880, %v2814, 0
        %v6105 = vsel %vm2880, %v2823, 0
        %v6108 = vsel %vm2880, %v2832, 0
        %v6111 = vsel %vm2880, %v2841, 0
        %6113 = vmatprep.subr.bf16.mxu0 0
        %6114 = vmatpush1.bf16.xpose.msra.mxu0 %v6111
        %6115 = vmatprep.subr.bf16.mxu0 0
        %6116 = vmatpush1.bf16.xpose.msra.mxu0 %v6108
        %6117 = vmatprep.subr.bf16.mxu0 0
        %6118 = vmatpush1.bf16.xpose.msra.mxu0 %v6105
        %6119 = vmatprep.subr.bf16.mxu0 0
        %6120 = vmatpush1.bf16.xpose.msra.mxu0 %v6102
        %6121 = vmatprep.subr.bf16.mxu0 0
        %6122 = vmatpush1.bf16.xpose.msra.mxu0 %v6099
        %6123 = vmatprep.subr.bf16.mxu0 0
        %6124 = vmatpush1.bf16.xpose.msra.mxu0 %v6096
        %6125 = vmatprep.subr.bf16.mxu0 0
        %6126 = vmatpush1.bf16.xpose.msra.mxu0 %v6093
        %6127 = vmatprep.subr.bf16.mxu0 0
        %6128 = vmatpush1.bf16.xpose.msra.mxu0 %v6090
        %6129 = vmatprep.subr.bf16.mxu0 0
        %6130 = vmatpush2.bf16.xpose.msra.mxu0 0
        %6131 = vmatprep.subr.bf16.mxu0 0
        %6132 = vmatpush2.bf16.xpose.msra.mxu0 0
        %6133 = vmatprep.subr.bf16.mxu0 0
        %6134 = vmatpush2.bf16.xpose.msra.mxu0 0
        %6135 = vmatprep.subr.bf16.mxu0 0
        %6136 = vmatpush2.bf16.xpose.msra.mxu0 0
        %6137 = vmatprep.subr.bf16.mxu0 0
        %6138 = vmatpush2.bf16.xpose.msra.mxu0 0
        %6139 = vmatprep.subr.bf16.mxu0 0
        %6140 = vmatpush2.bf16.xpose.msra.mxu0 0
        %6141 = vmatprep.subr.bf16.mxu0 0
        %6142 = vmatpush2.bf16.xpose.msra.mxu0 0
        %6143 = vmatprep.subr.bf16.mxu0 0
        %6144 = vmatpush2.bf16.xpose.msra.mxu0 0
        %6145 = vmatprep.mubr.bf16.mxu0 0
        %6146 = vmatmul.mubr.bf16.gmra.mxu0 %v6066
        %v6147 = vpop.f32.mrf.mxu0
        %v6148 = vadd.f32 0.0, %v6147
        %v6149 = vpop.f32.mrf.mxu0
        %v6150 = vpop.f32.mrf.mxu0
        %v6151 = vadd.f32 0.0, %v6150
        %v6152 = vpop.f32.mrf.mxu0
        %6153 = vmatprep.mubr.bf16.mxu0 0
        %6154 = vmatmul.mubr.bf16.gmra.mxu0 %v6069
        %v6155 = vpop.f32.mrf.mxu0
        %v6156 = vadd.f32 0.0, %v6155
        %v6157 = vpop.f32.mrf.mxu0
        %v6158 = vpop.f32.mrf.mxu0
        %v6159 = vadd.f32 0.0, %v6158
        %v6160 = vpop.f32.mrf.mxu0
        %6161 = vmatprep.mubr.bf16.mxu0 0
        %6162 = vmatmul.mubr.bf16.gmra.mxu0 %v6072
        %v6163 = vpop.f32.mrf.mxu0
        %v6164 = vadd.f32 0.0, %v6163
        %v6165 = vpop.f32.mrf.mxu0
        %v6166 = vpop.f32.mrf.mxu0
        %v6167 = vadd.f32 0.0, %v6166
        %v6168 = vpop.f32.mrf.mxu0
        %6169 = vmatprep.mubr.bf16.mxu0 0
        %6170 = vmatmul.mubr.bf16.gmra.mxu0 %v6075
        %v6171 = vpop.f32.mrf.mxu0
        %v6172 = vadd.f32 0.0, %v6171
        %v6173 = vpop.f32.mrf.mxu0
        %v6174 = vpop.f32.mrf.mxu0
        %v6175 = vadd.f32 0.0, %v6174
        %v6176 = vpop.f32.mrf.mxu0
        %6177 = vmatprep.mubr.bf16.mxu0 0
        %6178 = vmatmul.mubr.bf16.gmra.mxu0 %v6078
        %v6179 = vpop.f32.mrf.mxu0
        %v6180 = vadd.f32 0.0, %v6179
        %v6181 = vpop.f32.mrf.mxu0
        %v6182 = vpop.f32.mrf.mxu0
        %v6183 = vadd.f32 0.0, %v6182
        %v6184 = vpop.f32.mrf.mxu0
        %6185 = vmatprep.mubr.bf16.mxu0 0
        %6186 = vmatmul.mubr.bf16.gmra.mxu0 %v6081
        %v6187 = vpop.f32.mrf.mxu0
        %v6188 = vadd.f32 0.0, %v6187
        %v6189 = vpop.f32.mrf.mxu0
        %v6190 = vpop.f32.mrf.mxu0
        %v6191 = vadd.f32 0.0, %v6190
        %v6192 = vpop.f32.mrf.mxu0
        %6193 = vmatprep.mubr.bf16.mxu0 0
        %6194 = vmatmul.mubr.bf16.gmra.mxu0 %v6084
        %v6195 = vpop.f32.mrf.mxu0
        %v6196 = vadd.f32 0.0, %v6195
        %v6197 = vpop.f32.mrf.mxu0
        %v6198 = vpop.f32.mrf.mxu0
        %v6199 = vadd.f32 0.0, %v6198
        %v6200 = vpop.f32.mrf.mxu0
        %6201 = vmatprep.mubr.bf16.mxu0 0
        %6202 = vmatmul.mubr.bf16.gmra.mxu0 %v6087
        %v6203 = vpop.f32.mrf.mxu0
        %v6204 = vadd.f32 0.0, %v6203
        %v6205 = vpop.f32.mrf.mxu0
        %v6206 = vpop.f32.mrf.mxu0
        %v6207 = vadd.f32 0.0, %v6206
        %v6208 = vpop.f32.mrf.mxu0
        %6209 = vdwg.mxu0
        %v6210 = vsel %vm2864, %v6148, -1e+30
        %v6211 = vsel %vm2865, %v6151, -1e+30
        %v6212 = vsel %vm2866, %v6156, -1e+30
        %v6213 = vsel %vm2867, %v6159, -1e+30
        %v6214 = vsel %vm2868, %v6164, -1e+30
        %v6215 = vsel %vm2869, %v6167, -1e+30
        %v6216 = vsel %vm2870, %v6172, -1e+30
        %v6217 = vsel %vm2871, %v6175, -1e+30
        %v6218 = vsel %vm2872, %v6180, -1e+30
        %v6219 = vsel %vm2873, %v6183, -1e+30
        %v6220 = vsel %vm2874, %v6188, -1e+30
        %v6221 = vsel %vm2875, %v6191, -1e+30
        %v6222 = vsel %vm2876, %v6196, -1e+30
        %v6223 = vsel %vm2877, %v6199, -1e+30
        %v6224 = vsel %vm2878, %v6204, -1e+30
        %v6225 = vsel %vm2879, %v6207, -1e+30
        %6226 = vmax.xlane.f32.xlu0 %v6210
        %v6227 = vpop.xlane.xlu0 %6226
        %6228 = vmax.xlane.f32.xlu0 %v6211
        %v6229 = vpop.xlane.xlu0 %6228
        %6230 = vmax.xlane.f32.xlu0 %v6212
        %v6231 = vpop.xlane.xlu0 %6230
        %6232 = vmax.xlane.f32.xlu0 %v6213
        %v6233 = vpop.xlane.xlu0 %6232
        %6234 = vmax.xlane.f32.xlu0 %v6214
        %v6235 = vpop.xlane.xlu0 %6234
        %6236 = vmax.xlane.f32.xlu0 %v6215
        %v6237 = vpop.xlane.xlu0 %6236
        %6238 = vmax.xlane.f32.xlu0 %v6216
        %v6239 = vpop.xlane.xlu0 %6238
        %6240 = vmax.xlane.f32.xlu0 %v6217
        %v6241 = vpop.xlane.xlu0 %6240
        %6242 = vmax.xlane.f32.xlu0 %v6218
        %v6243 = vpop.xlane.xlu0 %6242
        %6244 = vmax.xlane.f32.xlu0 %v6219
        %v6245 = vpop.xlane.xlu0 %6244
        %6246 = vmax.xlane.f32.xlu0 %v6220
        %v6247 = vpop.xlane.xlu0 %6246
        %6248 = vmax.xlane.f32.xlu0 %v6221
        %v6249 = vpop.xlane.xlu0 %6248
        %6250 = vmax.xlane.f32.xlu0 %v6222
        %v6251 = vpop.xlane.xlu0 %6250
        %6252 = vmax.xlane.f32.xlu0 %v6223
        %v6253 = vpop.xlane.xlu0 %6252
        %6254 = vmax.xlane.f32.xlu0 %v6224
        %v6255 = vpop.xlane.xlu0 %6254
        %6256 = vmax.xlane.f32.xlu0 %v6225
        %v6257 = vpop.xlane.xlu0 %6256
        %v6258 = vsub.f32 %v6210, %v6227
        %v6259 = vsub.f32 %v6211, %v6229
        %v6260 = vsub.f32 %v6212, %v6231
        %v6261 = vsub.f32 %v6213, %v6233
        %v6262 = vsub.f32 %v6214, %v6235
        %v6263 = vsub.f32 %v6215, %v6237
        %v6264 = vsub.f32 %v6216, %v6239
        %v6265 = vsub.f32 %v6217, %v6241
        %v6266 = vsub.f32 %v6218, %v6243
        %v6267 = vsub.f32 %v6219, %v6245
        %v6268 = vsub.f32 %v6220, %v6247
        %v6269 = vsub.f32 %v6221, %v6249
        %v6270 = vsub.f32 %v6222, %v6251
        %v6271 = vsub.f32 %v6223, %v6253
        %v6272 = vsub.f32 %v6224, %v6255
        %v6273 = vsub.f32 %v6225, %v6257
        %v6274 = vmul.f32 %v6258, 1.442695
        %v6275 = vpow.pop %v6274
        %v6276 = vmul.f32 %v6259, 1.442695
        %v6277 = vpow.pop %v6276
        %v6278 = vmul.f32 %v6260, 1.442695
        %v6279 = vpow.pop %v6278
        %v6280 = vmul.f32 %v6261, 1.442695
        %v6281 = vpow.pop %v6280
        %v6282 = vmul.f32 %v6262, 1.442695
        %v6283 = vpow.pop %v6282
        %v6284 = vmul.f32 %v6263, 1.442695
        %v6285 = vpow.pop %v6284
        %v6286 = vmul.f32 %v6264, 1.442695
        %v6287 = vpow.pop %v6286
        %v6288 = vmul.f32 %v6265, 1.442695
        %v6289 = vpow.pop %v6288
        %v6290 = vmul.f32 %v6266, 1.442695
        %v6291 = vpow.pop %v6290
        %v6292 = vmul.f32 %v6267, 1.442695
        %v6293 = vpow.pop %v6292
        %v6294 = vmul.f32 %v6268, 1.442695
        %v6295 = vpow.pop %v6294
        %v6296 = vmul.f32 %v6269, 1.442695
        %v6297 = vpow.pop %v6296
        %v6298 = vmul.f32 %v6270, 1.442695
        %v6299 = vpow.pop %v6298
        %v6300 = vmul.f32 %v6271, 1.442695
        %v6301 = vpow.pop %v6300
        %v6302 = vmul.f32 %v6272, 1.442695
        %v6303 = vpow.pop %v6302
        %v6304 = vmul.f32 %v6273, 1.442695
        %v6305 = vpow.pop %v6304
        %6306 = vadd.xlane.f32.xlu0 %v6275
        %v6307 = vpop.xlane.xlu0 %6306
        %6308 = vadd.xlane.f32.xlu0 %v6277
        %v6309 = vpop.xlane.xlu0 %6308
        %6310 = vadd.xlane.f32.xlu0 %v6279
        %v6311 = vpop.xlane.xlu0 %6310
        %6312 = vadd.xlane.f32.xlu0 %v6281
        %v6313 = vpop.xlane.xlu0 %6312
        %6314 = vadd.xlane.f32.xlu0 %v6283
        %v6315 = vpop.xlane.xlu0 %6314
        %6316 = vadd.xlane.f32.xlu0 %v6285
        %v6317 = vpop.xlane.xlu0 %6316
        %6318 = vadd.xlane.f32.xlu0 %v6287
        %v6319 = vpop.xlane.xlu0 %6318
        %6320 = vadd.xlane.f32.xlu0 %v6289
        %v6321 = vpop.xlane.xlu0 %6320
        %6322 = vadd.xlane.f32.xlu0 %v6291
        %v6323 = vpop.xlane.xlu0 %6322
        %6324 = vadd.xlane.f32.xlu0 %v6293
        %v6325 = vpop.xlane.xlu0 %6324
        %6326 = vadd.xlane.f32.xlu0 %v6295
        %v6327 = vpop.xlane.xlu0 %6326
        %6328 = vadd.xlane.f32.xlu0 %v6297
        %v6329 = vpop.xlane.xlu0 %6328
        %6330 = vadd.xlane.f32.xlu0 %v6299
        %v6331 = vpop.xlane.xlu0 %6330
        %6332 = vadd.xlane.f32.xlu0 %v6301
        %v6333 = vpop.xlane.xlu0 %6332
        %6334 = vadd.xlane.f32.xlu0 %v6303
        %v6335 = vpop.xlane.xlu0 %6334
        %6336 = vadd.xlane.f32.xlu0 %v6305
        %v6337 = vpop.xlane.xlu0 %6336
        %v6338 = vrcp.pop %v6307
        %v6339 = vrcp.pop %v6309
        %v6340 = vrcp.pop %v6311
        %v6341 = vrcp.pop %v6313
        %v6342 = vrcp.pop %v6315
        %v6343 = vrcp.pop %v6317
        %v6344 = vrcp.pop %v6319
        %v6345 = vrcp.pop %v6321
        %v6346 = vrcp.pop %v6323
        %v6347 = vrcp.pop %v6325
        %v6348 = vrcp.pop %v6327
        %v6349 = vrcp.pop %v6329
        %v6350 = vrcp.pop %v6331
        %v6351 = vrcp.pop %v6333
        %v6352 = vrcp.pop %v6335
        %v6353 = vrcp.pop %v6337
        %v6354 = vmul.f32 %v6275, %v6338
        %v6355 = vmul.f32 %v6277, %v6339
        %v6356 = vmul.f32 %v6279, %v6340
        %v6357 = vmul.f32 %v6281, %v6341
        %v6358 = vmul.f32 %v6283, %v6342
        %v6359 = vmul.f32 %v6285, %v6343
        %v6360 = vmul.f32 %v6287, %v6344
        %v6361 = vmul.f32 %v6289, %v6345
        %v6362 = vmul.f32 %v6291, %v6346
        %v6363 = vmul.f32 %v6293, %v6347
        %v6364 = vmul.f32 %v6295, %v6348
        %v6365 = vmul.f32 %v6297, %v6349
        %v6366 = vmul.f32 %v6299, %v6350
        %v6367 = vmul.f32 %v6301, %v6351
        %v6368 = vmul.f32 %v6303, %v6352
        %v6369 = vmul.f32 %v6305, %v6353
        %v6370 = vpack.c.bf16 %v6355, %v6354
        %v6371 = vpack.c.bf16 %v6357, %v6356
        %v6372 = vpack.c.bf16 %v6359, %v6358
        %v6373 = vpack.c.bf16 %v6361, %v6360
        %v6374 = vpack.c.bf16 %v6363, %v6362
        %v6375 = vpack.c.bf16 %v6365, %v6364
        %v6376 = vpack.c.bf16 %v6367, %v6366
        %v6377 = vpack.c.bf16 %v6369, %v6368
        %6378 = vmatprep.subr.bf16.mxu0 0
        %6379 = vmatpush1.bf16.msra.mxu0 %v2844
        %6380 = vmatprep.subr.bf16.mxu0 0
        %6381 = vmatpush1.bf16.msra.mxu0 %v2835
        %6382 = vmatprep.subr.bf16.mxu0 0
        %6383 = vmatpush1.bf16.msra.mxu0 %v2826
        %6384 = vmatprep.subr.bf16.mxu0 0
        %6385 = vmatpush1.bf16.msra.mxu0 %v2817
        %6386 = vmatprep.subr.bf16.mxu0 0
        %6387 = vmatpush1.bf16.msra.mxu0 %v2808
        %6388 = vmatprep.subr.bf16.mxu0 0
        %6389 = vmatpush1.bf16.msra.mxu0 %v2799
        %6390 = vmatprep.subr.bf16.mxu0 0
        %6391 = vmatpush1.bf16.msra.mxu0 %v2790
        %6392 = vmatprep.subr.bf16.mxu0 0
        %6393 = vmatpush1.bf16.msra.mxu0 %v2781
        %6394 = vmatprep.subr.bf16.mxu0 0
        %6395 = vmatpush2.bf16.msra.mxu0 0
        %6396 = vmatprep.subr.bf16.mxu0 0
        %6397 = vmatpush2.bf16.msra.mxu0 0
        %6398 = vmatprep.subr.bf16.mxu0 0
        %6399 = vmatpush2.bf16.msra.mxu0 0
        %6400 = vmatprep.subr.bf16.mxu0 0
        %6401 = vmatpush2.bf16.msra.mxu0 0
        %6402 = vmatprep.subr.bf16.mxu0 0
        %6403 = vmatpush2.bf16.msra.mxu0 0
        %6404 = vmatprep.subr.bf16.mxu0 0
        %6405 = vmatpush2.bf16.msra.mxu0 0
        %6406 = vmatprep.subr.bf16.mxu0 0
        %6407 = vmatpush2.bf16.msra.mxu0 0
        %6408 = vmatprep.subr.bf16.mxu0 0
        %6409 = vmatpush2.bf16.msra.mxu0 0
        %6410 = vmatprep.mubr.bf16.mxu0 0
        %6411 = vmatmul.mubr.bf16.gmra.mxu0 %v6370
        %v6412 = vpop.f32.mrf.mxu0
        %v6413 = vadd.f32 0.0, %v6412
        %v6414 = vpop.f32.mrf.mxu0
        %v6415 = vpop.f32.mrf.mxu0
        %v6416 = vadd.f32 0.0, %v6415
        %v6417 = vpop.f32.mrf.mxu0
        %6418 = vmatprep.mubr.bf16.mxu0 0
        %6419 = vmatmul.mubr.bf16.gmra.mxu0 %v6371
        %v6420 = vpop.f32.mrf.mxu0
        %v6421 = vadd.f32 0.0, %v6420
        %v6422 = vpop.f32.mrf.mxu0
        %v6423 = vpop.f32.mrf.mxu0
        %v6424 = vadd.f32 0.0, %v6423
        %v6425 = vpop.f32.mrf.mxu0
        %6426 = vmatprep.mubr.bf16.mxu0 0
        %6427 = vmatmul.mubr.bf16.gmra.mxu0 %v6372
        %v6428 = vpop.f32.mrf.mxu0
        %v6429 = vadd.f32 0.0, %v6428
        %v6430 = vpop.f32.mrf.mxu0
        %v6431 = vpop.f32.mrf.mxu0
        %v6432 = vadd.f32 0.0, %v6431
        %v6433 = vpop.f32.mrf.mxu0
        %6434 = vmatprep.mubr.bf16.mxu0 0
        %6435 = vmatmul.mubr.bf16.gmra.mxu0 %v6373
        %v6436 = vpop.f32.mrf.mxu0
        %v6437 = vadd.f32 0.0, %v6436
        %v6438 = vpop.f32.mrf.mxu0
        %v6439 = vpop.f32.mrf.mxu0
        %v6440 = vadd.f32 0.0, %v6439
        %v6441 = vpop.f32.mrf.mxu0
        %6442 = vmatprep.mubr.bf16.mxu0 0
        %6443 = vmatmul.mubr.bf16.gmra.mxu0 %v6374
        %v6444 = vpop.f32.mrf.mxu0
        %v6445 = vadd.f32 0.0, %v6444
        %v6446 = vpop.f32.mrf.mxu0
        %v6447 = vpop.f32.mrf.mxu0
        %v6448 = vadd.f32 0.0, %v6447
        %v6449 = vpop.f32.mrf.mxu0
        %6450 = vmatprep.mubr.bf16.mxu0 0
        %6451 = vmatmul.mubr.bf16.gmra.mxu0 %v6375
        %v6452 = vpop.f32.mrf.mxu0
        %v6453 = vadd.f32 0.0, %v6452
        %v6454 = vpop.f32.mrf.mxu0
        %v6455 = vpop.f32.mrf.mxu0
        %v6456 = vadd.f32 0.0, %v6455
        %v6457 = vpop.f32.mrf.mxu0
        %6458 = vmatprep.mubr.bf16.mxu0 0
        %6459 = vmatmul.mubr.bf16.gmra.mxu0 %v6376
        %v6460 = vpop.f32.mrf.mxu0
        %v6461 = vadd.f32 0.0, %v6460
        %v6462 = vpop.f32.mrf.mxu0
        %v6463 = vpop.f32.mrf.mxu0
        %v6464 = vadd.f32 0.0, %v6463
        %v6465 = vpop.f32.mrf.mxu0
        %6466 = vmatprep.mubr.bf16.mxu0 0
        %6467 = vmatmul.mubr.bf16.gmra.mxu0 %v6377
        %v6468 = vpop.f32.mrf.mxu0
        %v6469 = vadd.f32 0.0, %v6468
        %v6470 = vpop.f32.mrf.mxu0
        %v6471 = vpop.f32.mrf.mxu0
        %v6472 = vadd.f32 0.0, %v6471
        %v6473 = vpop.f32.mrf.mxu0
        %6474 = vdwg.mxu0
        %v6475 = vpack.c.bf16 %v6416, %v6413
        %v6476 = vpack.c.bf16 %v6424, %v6421
        %v6477 = vpack.c.bf16 %v6432, %v6429
        %v6478 = vpack.c.bf16 %v6440, %v6437
        %v6479 = vpack.c.bf16 %v6448, %v6445
        %v6480 = vpack.c.bf16 %v6456, %v6453
        %v6481 = vpack.c.bf16 %v6464, %v6461
        %v6482 = vpack.c.bf16 %v6472, %v6469
        %v6483 = vld [vmem:[#allocation7 + $0x180] sm:$0xff]
        %v6484 = vld [vmem:[#allocation7 + $0x188] sm:$0xf]
        %v6485 = vld [vmem:[#allocation7 + $0x18c] sm:$0xff]
        %v6486 = vld [vmem:[#allocation7 + $0x194] sm:$0xf]
        %v6487 = vld [vmem:[#allocation7 + $0x198] sm:$0xff]
        %v6488 = vld [vmem:[#allocation7 + $0x1a0] sm:$0xf]
        %v6489 = vld [vmem:[#allocation7 + $0x1a4] sm:$0xff]
        %v6490 = vld [vmem:[#allocation7 + $0x1ac] sm:$0xf]
        %v6491 = vld [vmem:[#allocation7 + $0x1b0] sm:$0xff]
        %v6492 = vld [vmem:[#allocation7 + $0x1b8] sm:$0xf]
        %v6493 = vld [vmem:[#allocation7 + $0x1bc] sm:$0xff]
        %v6494 = vld [vmem:[#allocation7 + $0x1c4] sm:$0xf]
        %v6495 = vld [vmem:[#allocation7 + $0x1c8] sm:$0xff]
        %v6496 = vld [vmem:[#allocation7 + $0x1d0] sm:$0xf]
        %v6497 = vld [vmem:[#allocation7 + $0x1d4] sm:$0xff]
        %v6498 = vld [vmem:[#allocation7 + $0x1dc] sm:$0xf]
        %v6515 = vunpack.c.l.b16 %v6483
        %v6516 = vunpack.c.h.b16 %v6483
        %v6517 = vunpack.c.l.b16 %v6484
        %v6518 = vunpack.c.l.b16 %v6485
        %v6519 = vunpack.c.h.b16 %v6485
        %v6520 = vunpack.c.l.b16 %v6486
        %v6521 = vunpack.c.l.b16 %v6487
        %v6522 = vunpack.c.h.b16 %v6487
        %v6523 = vunpack.c.l.b16 %v6488
        %v6524 = vunpack.c.l.b16 %v6489
        %v6525 = vunpack.c.h.b16 %v6489
        %v6526 = vunpack.c.l.b16 %v6490
        %v6527 = vunpack.c.l.b16 %v6491
        %v6528 = vunpack.c.h.b16 %v6491
        %v6529 = vunpack.c.l.b16 %v6492
        %v6530 = vunpack.c.l.b16 %v6493
        %v6531 = vunpack.c.h.b16 %v6493
        %v6532 = vunpack.c.l.b16 %v6494
        %v6533 = vunpack.c.l.b16 %v6495
        %v6534 = vunpack.c.h.b16 %v6495
        %v6535 = vunpack.c.l.b16 %v6496
        %v6536 = vunpack.c.l.b16 %v6497
        %v6537 = vunpack.c.h.b16 %v6497
        %v6538 = vunpack.c.l.b16 %v6498
        %v6539 = vpack.c.b16 %v6518, %v6515
        %v6540 = vpack.c.b16 %v6519, %v6516
        %v6541 = vpack.c.b16 %v6520, %v6517
        %v6542 = vpack.c.b16 %v6524, %v6521
        %v6543 = vpack.c.b16 %v6525, %v6522
        %v6544 = vpack.c.b16 %v6526, %v6523
        %v6545 = vpack.c.b16 %v6530, %v6527
        %v6546 = vpack.c.b16 %v6531, %v6528
        %v6547 = vpack.c.b16 %v6532, %v6529
        %v6548 = vpack.c.b16 %v6536, %v6533
        %v6549 = vpack.c.b16 %v6537, %v6534
        %v6550 = vpack.c.b16 %v6538, %v6535
        %v6564 = vsel %vm2880, %v6475, 0
        %v6567 = vsel %vm2880, %v6476, 0
        %v6570 = vsel %vm2880, %v6477, 0
        %v6573 = vsel %vm2880, %v6478, 0
        %v6576 = vsel %vm2880, %v6479, 0
        %v6579 = vsel %vm2880, %v6480, 0
        %v6582 = vsel %vm2880, %v6481, 0
        %v6585 = vsel %vm2880, %v6482, 0
        %6587 = vmatprep.subr.bf16.mxu0 0
        %6588 = vmatpush1.bf16.msra.mxu0 0
        %6589 = vmatprep.subr.bf16.mxu0 0
        %6590 = vmatpush1.bf16.msra.mxu0 0
        %6591 = vmatprep.subr.bf16.mxu0 0
        %6592 = vmatpush1.bf16.msra.mxu0 0
        %6593 = vmatprep.subr.bf16.mxu0 0
        %6594 = vmatpush1.bf16.msra.mxu0 0
        %6595 = vmatprep.subr.bf16.mxu0 %v6549
        %6596 = vmatpush1.bf16.msra.mxu0 %v6548
        %6597 = vmatprep.subr.bf16.mxu0 %v6546
        %6598 = vmatpush1.bf16.msra.mxu0 %v6545
        %6599 = vmatprep.subr.bf16.mxu0 %v6543
        %6600 = vmatpush1.bf16.msra.mxu0 %v6542
        %6601 = vmatprep.subr.bf16.mxu0 %v6540
        %6602 = vmatpush1.bf16.msra.mxu0 %v6539
        %6603 = vmatprep.subr.bf16.mxu0 0
        %6604 = vmatpush2.bf16.msra.mxu0 0
        %6605 = vmatprep.subr.bf16.mxu0 0
        %6606 = vmatpush2.bf16.msra.mxu0 0
        %6607 = vmatprep.subr.bf16.mxu0 0
        %6608 = vmatpush2.bf16.msra.mxu0 0
        %6609 = vmatprep.subr.bf16.mxu0 0
        %6610 = vmatpush2.bf16.msra.mxu0 0
        %6611 = vmatprep.subr.bf16.mxu0 0
        %6612 = vmatpush2.bf16.msra.mxu0 0
        %6613 = vmatprep.subr.bf16.mxu0 0
        %6614 = vmatpush2.bf16.msra.mxu0 0
        %6615 = vmatprep.subr.bf16.mxu0 0
        %6616 = vmatpush2.bf16.msra.mxu0 0
        %6617 = vmatprep.subr.bf16.mxu0 0
        %6618 = vmatpush2.bf16.msra.mxu0 0
        %6619 = vmatprep.mubr.bf16.mxu0 0
        %6620 = vmatmul.mubr.bf16.gmra.mxu0 %v6564
        %v6621 = vpop.f32.mrf.mxu0
        %v6622 = vadd.f32 0.0, %v6621
        %v6623 = vpop.f32.mrf.mxu0
        %v6624 = vadd.f32 0.0, %v6623
        %v6625 = vpop.f32.mrf.mxu0
        %v6626 = vadd.f32 0.0, %v6625
        %v6627 = vpop.f32.mrf.mxu0
        %v6628 = vadd.f32 0.0, %v6627
        %6629 = vmatprep.mubr.bf16.mxu0 0
        %6630 = vmatmul.mubr.bf16.gmra.mxu0 %v6567
        %v6631 = vpop.f32.mrf.mxu0
        %v6632 = vadd.f32 0.0, %v6631
        %v6633 = vpop.f32.mrf.mxu0
        %v6634 = vadd.f32 0.0, %v6633
        %v6635 = vpop.f32.mrf.mxu0
        %v6636 = vadd.f32 0.0, %v6635
        %v6637 = vpop.f32.mrf.mxu0
        %v6638 = vadd.f32 0.0, %v6637
        %6639 = vmatprep.mubr.bf16.mxu0 0
        %6640 = vmatmul.mubr.bf16.gmra.mxu0 %v6570
        %v6641 = vpop.f32.mrf.mxu0
        %v6642 = vadd.f32 0.0, %v6641
        %v6643 = vpop.f32.mrf.mxu0
        %v6644 = vadd.f32 0.0, %v6643
        %v6645 = vpop.f32.mrf.mxu0
        %v6646 = vadd.f32 0.0, %v6645
        %v6647 = vpop.f32.mrf.mxu0
        %v6648 = vadd.f32 0.0, %v6647
        %6649 = vmatprep.mubr.bf16.mxu0 0
        %6650 = vmatmul.mubr.bf16.gmra.mxu0 %v6573
        %v6651 = vpop.f32.mrf.mxu0
        %v6652 = vadd.f32 0.0, %v6651
        %v6653 = vpop.f32.mrf.mxu0
        %v6654 = vadd.f32 0.0, %v6653
        %v6655 = vpop.f32.mrf.mxu0
        %v6656 = vadd.f32 0.0, %v6655
        %v6657 = vpop.f32.mrf.mxu0
        %v6658 = vadd.f32 0.0, %v6657
        %6659 = vmatprep.mubr.bf16.mxu0 0
        %6660 = vmatmul.mubr.bf16.gmra.mxu0 %v6576
        %v6661 = vpop.f32.mrf.mxu0
        %v6662 = vadd.f32 0.0, %v6661
        %v6663 = vpop.f32.mrf.mxu0
        %v6664 = vadd.f32 0.0, %v6663
        %v6665 = vpop.f32.mrf.mxu0
        %v6666 = vadd.f32 0.0, %v6665
        %v6667 = vpop.f32.mrf.mxu0
        %v6668 = vadd.f32 0.0, %v6667
        %6669 = vmatprep.mubr.bf16.mxu0 0
        %6670 = vmatmul.mubr.bf16.gmra.mxu0 %v6579
        %v6671 = vpop.f32.mrf.mxu0
        %v6672 = vadd.f32 0.0, %v6671
        %v6673 = vpop.f32.mrf.mxu0
        %v6674 = vadd.f32 0.0, %v6673
        %v6675 = vpop.f32.mrf.mxu0
        %v6676 = vadd.f32 0.0, %v6675
        %v6677 = vpop.f32.mrf.mxu0
        %v6678 = vadd.f32 0.0, %v6677
        %6679 = vmatprep.mubr.bf16.mxu0 0
        %6680 = vmatmul.mubr.bf16.gmra.mxu0 %v6582
        %v6681 = vpop.f32.mrf.mxu0
        %v6682 = vadd.f32 0.0, %v6681
        %v6683 = vpop.f32.mrf.mxu0
        %v6684 = vadd.f32 0.0, %v6683
        %v6685 = vpop.f32.mrf.mxu0
        %v6686 = vadd.f32 0.0, %v6685
        %v6687 = vpop.f32.mrf.mxu0
        %v6688 = vadd.f32 0.0, %v6687
        %6689 = vmatprep.mubr.bf16.mxu0 0
        %6690 = vmatmul.mubr.bf16.gmra.mxu0 %v6585
        %v6691 = vpop.f32.mrf.mxu0
        %v6692 = vadd.f32 0.0, %v6691
        %v6693 = vpop.f32.mrf.mxu0
        %v6694 = vadd.f32 0.0, %v6693
        %v6695 = vpop.f32.mrf.mxu0
        %v6696 = vadd.f32 0.0, %v6695
        %v6697 = vpop.f32.mrf.mxu0
        %v6698 = vadd.f32 0.0, %v6697
        %6699 = vdwg.mxu0
        %6700 = vmatprep.subr.bf16.mxu0 0
        %6701 = vmatpush1.bf16.msra.mxu0 0
        %6702 = vmatprep.subr.bf16.mxu0 0
        %6703 = vmatpush1.bf16.msra.mxu0 0
        %6704 = vmatprep.subr.bf16.mxu0 0
        %6705 = vmatpush1.bf16.msra.mxu0 0
        %6706 = vmatprep.subr.bf16.mxu0 0
        %6707 = vmatpush1.bf16.msra.mxu0 0
        %6708 = vmatprep.subr.bf16.mxu0 0
        %6709 = vmatpush1.bf16.msra.mxu0 %v6550
        %6710 = vmatprep.subr.bf16.mxu0 0
        %6711 = vmatpush1.bf16.msra.mxu0 %v6547
        %6712 = vmatprep.subr.bf16.mxu0 0
        %6713 = vmatpush1.bf16.msra.mxu0 %v6544
        %6714 = vmatprep.subr.bf16.mxu0 0
        %6715 = vmatpush1.bf16.msra.mxu0 %v6541
        %6716 = vmatprep.subr.bf16.mxu0 0
        %6717 = vmatpush2.bf16.msra.mxu0 0
        %6718 = vmatprep.subr.bf16.mxu0 0
        %6719 = vmatpush2.bf16.msra.mxu0 0
        %6720 = vmatprep.subr.bf16.mxu0 0
        %6721 = vmatpush2.bf16.msra.mxu0 0
        %6722 = vmatprep.subr.bf16.mxu0 0
        %6723 = vmatpush2.bf16.msra.mxu0 0
        %6724 = vmatprep.subr.bf16.mxu0 0
        %6725 = vmatpush2.bf16.msra.mxu0 0
        %6726 = vmatprep.subr.bf16.mxu0 0
        %6727 = vmatpush2.bf16.msra.mxu0 0
        %6728 = vmatprep.subr.bf16.mxu0 0
        %6729 = vmatpush2.bf16.msra.mxu0 0
        %6730 = vmatprep.subr.bf16.mxu0 0
        %6731 = vmatpush2.bf16.msra.mxu0 0
        %6732 = vmatprep.mubr.bf16.mxu0 0
        %6733 = vmatmul.mubr.bf16.gmra.mxu0 %v6564
        %v6734 = vpop.f32.mrf.mxu0
        %v6735 = vadd.f32 0.0, %v6734
        %v6736 = vpop.f32.mrf.mxu0
        %v6737 = vpop.f32.mrf.mxu0
        %v6738 = vadd.f32 0.0, %v6737
        %v6739 = vpop.f32.mrf.mxu0
        %6740 = vmatprep.mubr.bf16.mxu0 0
        %6741 = vmatmul.mubr.bf16.gmra.mxu0 %v6567
        %v6742 = vpop.f32.mrf.mxu0
        %v6743 = vadd.f32 0.0, %v6742
        %v6744 = vpop.f32.mrf.mxu0
        %v6745 = vpop.f32.mrf.mxu0
        %v6746 = vadd.f32 0.0, %v6745
        %v6747 = vpop.f32.mrf.mxu0
        %6748 = vmatprep.mubr.bf16.mxu0 0
        %6749 = vmatmul.mubr.bf16.gmra.mxu0 %v6570
        %v6750 = vpop.f32.mrf.mxu0
        %v6751 = vadd.f32 0.0, %v6750
        %v6752 = vpop.f32.mrf.mxu0
        %v6753 = vpop.f32.mrf.mxu0
        %v6754 = vadd.f32 0.0, %v6753
        %v6755 = vpop.f32.mrf.mxu0
        %6756 = vmatprep.mubr.bf16.mxu0 0
        %6757 = vmatmul.mubr.bf16.gmra.mxu0 %v6573
        %v6758 = vpop.f32.mrf.mxu0
        %v6759 = vadd.f32 0.0, %v6758
        %v6760 = vpop.f32.mrf.mxu0
        %v6761 = vpop.f32.mrf.mxu0
        %v6762 = vadd.f32 0.0, %v6761
        %v6763 = vpop.f32.mrf.mxu0
        %6764 = vmatprep.mubr.bf16.mxu0 0
        %6765 = vmatmul.mubr.bf16.gmra.mxu0 %v6576
        %v6766 = vpop.f32.mrf.mxu0
        %v6767 = vadd.f32 0.0, %v6766
        %v6768 = vpop.f32.mrf.mxu0
        %v6769 = vpop.f32.mrf.mxu0
        %v6770 = vadd.f32 0.0, %v6769
        %v6771 = vpop.f32.mrf.mxu0
        %6772 = vmatprep.mubr.bf16.mxu0 0
        %6773 = vmatmul.mubr.bf16.gmra.mxu0 %v6579
        %v6774 = vpop.f32.mrf.mxu0
        %v6775 = vadd.f32 0.0, %v6774
        %v6776 = vpop.f32.mrf.mxu0
        %v6777 = vpop.f32.mrf.mxu0
        %v6778 = vadd.f32 0.0, %v6777
        %v6779 = vpop.f32.mrf.mxu0
        %6780 = vmatprep.mubr.bf16.mxu0 0
        %6781 = vmatmul.mubr.bf16.gmra.mxu0 %v6582
        %v6782 = vpop.f32.mrf.mxu0
        %v6783 = vadd.f32 0.0, %v6782
        %v6784 = vpop.f32.mrf.mxu0
        %v6785 = vpop.f32.mrf.mxu0
        %v6786 = vadd.f32 0.0, %v6785
        %v6787 = vpop.f32.mrf.mxu0
        %6788 = vmatprep.mubr.bf16.mxu0 0
        %6789 = vmatmul.mubr.bf16.gmra.mxu0 %v6585
        %v6790 = vpop.f32.mrf.mxu0
        %v6791 = vadd.f32 0.0, %v6790
        %v6792 = vpop.f32.mrf.mxu0
        %v6793 = vpop.f32.mrf.mxu0
        %v6794 = vadd.f32 0.0, %v6793
        %v6795 = vpop.f32.mrf.mxu0
        %6796 = vdwg.mxu0
        %v6797 = vadd.f32 %v6017, %v6622
        %v6798 = vadd.f32 %v6018, %v6624
        %v6799 = vadd.f32 %v6019, %v6735
        %v6800 = vadd.f32 %v6020, %v6626
        %v6801 = vadd.f32 %v6021, %v6628
        %v6802 = vadd.f32 %v6022, %v6738
        %v6803 = vadd.f32 %v6023, %v6632
        %v6804 = vadd.f32 %v6024, %v6634
        %v6805 = vadd.f32 %v6025, %v6743
        %v6806 = vadd.f32 %v6026, %v6636
        %v6807 = vadd.f32 %v6027, %v6638
        %v6808 = vadd.f32 %v6028, %v6746
        %v6809 = vadd.f32 %v6029, %v6642
        %v6810 = vadd.f32 %v6030, %v6644
        %v6811 = vadd.f32 %v6031, %v6751
        %v6812 = vadd.f32 %v6032, %v6646
        %v6813 = vadd.f32 %v6033, %v6648
        %v6814 = vadd.f32 %v6034, %v6754
        %v6815 = vadd.f32 %v6035, %v6652
        %v6816 = vadd.f32 %v6036, %v6654
        %v6817 = vadd.f32 %v6037, %v6759
        %v6818 = vadd.f32 %v6038, %v6656
        %v6819 = vadd.f32 %v6039, %v6658
        %v6820 = vadd.f32 %v6040, %v6762
        %v6821 = vadd.f32 %v6041, %v6662
        %v6822 = vadd.f32 %v6042, %v6664
        %v6823 = vadd.f32 %v6043, %v6767
        %v6824 = vadd.f32 %v6044, %v6666
        %v6825 = vadd.f32 %v6045, %v6668
        %v6826 = vadd.f32 %v6046, %v6770
        %v6827 = vadd.f32 %v6047, %v6672
        %v6828 = vadd.f32 %v6048, %v6674
        %v6829 = vadd.f32 %v6049, %v6775
        %v6830 = vadd.f32 %v6050, %v6676
        %v6831 = vadd.f32 %v6051, %v6678
        %v6832 = vadd.f32 %v6052, %v6778
        %v6833 = vadd.f32 %v6053, %v6682
        %v6834 = vadd.f32 %v6054, %v6684
        %v6835 = vadd.f32 %v6055, %v6783
        %v6836 = vadd.f32 %v6056, %v6686
        %v6837 = vadd.f32 %v6057, %v6688
        %v6838 = vadd.f32 %v6058, %v6786
        %v6839 = vadd.f32 %v6059, %v6692
        %v6840 = vadd.f32 %v6060, %v6694
        %v6841 = vadd.f32 %v6061, %v6791
        %v6842 = vadd.f32 %v6062, %v6696
        %v6843 = vadd.f32 %v6063, %v6698
        %v6844 = vadd.f32 %v6064, %v6794
        %6853 = vrot.lane.b32.xlu0 %v2775, 64
        %v6854 = vpop.permute.xlu0 %6853
        %6855 = vrot.lane.b32.xlu0 %v2784, 64
        %v6856 = vpop.permute.xlu0 %6855
        %6857 = vrot.lane.b32.xlu0 %v2793, 64
        %v6858 = vpop.permute.xlu0 %6857
        %6859 = vrot.lane.b32.xlu0 %v2802, 64
        %v6860 = vpop.permute.xlu0 %6859
        %6861 = vrot.lane.b32.xlu0 %v2811, 64
        %v6862 = vpop.permute.xlu0 %6861
        %6863 = vrot.lane.b32.xlu0 %v2820, 64
        %v6864 = vpop.permute.xlu0 %6863
        %6865 = vrot.lane.b32.xlu0 %v2829, 64
        %v6866 = vpop.permute.xlu0 %6865
        %6867 = vrot.lane.b32.xlu0 %v2838, 64
        %v6868 = vpop.permute.xlu0 %6867
        %6877 = vrot.lane.b32.xlu0 %v2778, 64
        %v6878 = vpop.permute.xlu0 %6877
        %6879 = vrot.lane.b32.xlu0 %v2787, 64
        %v6880 = vpop.permute.xlu0 %6879
        %6881 = vrot.lane.b32.xlu0 %v2796, 64
        %v6882 = vpop.permute.xlu0 %6881
        %6883 = vrot.lane.b32.xlu0 %v2805, 64
        %v6884 = vpop.permute.xlu0 %6883
        %6885 = vrot.lane.b32.xlu0 %v2814, 64
        %v6886 = vpop.permute.xlu0 %6885
        %6887 = vrot.lane.b32.xlu0 %v2823, 64
        %v6888 = vpop.permute.xlu0 %6887
        %6889 = vrot.lane.b32.xlu0 %v2832, 64
        %v6890 = vpop.permute.xlu0 %6889
        %6891 = vrot.lane.b32.xlu0 %v2841, 64
        %v6892 = vpop.permute.xlu0 %6891
        %v6894 = vsel %vm2880, %v6854, 0
        %v6897 = vsel %vm2880, %v6856, 0
        %v6900 = vsel %vm2880, %v6858, 0
        %v6903 = vsel %vm2880, %v6860, 0
        %v6906 = vsel %vm2880, %v6862, 0
        %v6909 = vsel %vm2880, %v6864, 0
        %v6912 = vsel %vm2880, %v6866, 0
        %v6915 = vsel %vm2880, %v6868, 0
        %v6918 = vsel %vm2880, %v6878, 0
        %v6921 = vsel %vm2880, %v6880, 0
        %v6924 = vsel %vm2880, %v6882, 0
        %v6927 = vsel %vm2880, %v6884, 0
        %v6930 = vsel %vm2880, %v6886, 0
        %v6933 = vsel %vm2880, %v6888, 0
        %v6936 = vsel %vm2880, %v6890, 0
        %v6939 = vsel %vm2880, %v6892, 0
        %6941 = vmatprep.subr.bf16.mxu0 0
        %6942 = vmatpush1.bf16.xpose.msra.mxu0 %v6939
        %6943 = vmatprep.subr.bf16.mxu0 0
        %6944 = vmatpush1.bf16.xpose.msra.mxu0 %v6936
        %6945 = vmatprep.subr.bf16.mxu0 0
        %6946 = vmatpush1.bf16.xpose.msra.mxu0 %v6933
        %6947 = vmatprep.subr.bf16.mxu0 0
        %6948 = vmatpush1.bf16.xpose.msra.mxu0 %v6930
        %6949 = vmatprep.subr.bf16.mxu0 0
        %6950 = vmatpush1.bf16.xpose.msra.mxu0 %v6927
        %6951 = vmatprep.subr.bf16.mxu0 0
        %6952 = vmatpush1.bf16.xpose.msra.mxu0 %v6924
        %6953 = vmatprep.subr.bf16.mxu0 0
        %6954 = vmatpush1.bf16.xpose.msra.mxu0 %v6921
        %6955 = vmatprep.subr.bf16.mxu0 0
        %6956 = vmatpush1.bf16.xpose.msra.mxu0 %v6918
        %6957 = vmatprep.subr.bf16.mxu0 0
        %6958 = vmatpush2.bf16.xpose.msra.mxu0 0
        %6959 = vmatprep.subr.bf16.mxu0 0
        %6960 = vmatpush2.bf16.xpose.msra.mxu0 0
        %6961 = vmatprep.subr.bf16.mxu0 0
        %6962 = vmatpush2.bf16.xpose.msra.mxu0 0
        %6963 = vmatprep.subr.bf16.mxu0 0
        %6964 = vmatpush2.bf16.xpose.msra.mxu0 0
        %6965 = vmatprep.subr.bf16.mxu0 0
        %6966 = vmatpush2.bf16.xpose.msra.mxu0 0
        %6967 = vmatprep.subr.bf16.mxu0 0
        %6968 = vmatpush2.bf16.xpose.msra.mxu0 0
        %6969 = vmatprep.subr.bf16.mxu0 0
        %6970 = vmatpush2.bf16.xpose.msra.mxu0 0
        %6971 = vmatprep.subr.bf16.mxu0 0
        %6972 = vmatpush2.bf16.xpose.msra.mxu0 0
        %6973 = vmatprep.mubr.bf16.mxu0 0
        %6974 = vmatmul.mubr.bf16.gmra.mxu0 %v6894
        %v6975 = vpop.f32.mrf.mxu0
        %v6976 = vadd.f32 0.0, %v6975
        %v6977 = vpop.f32.mrf.mxu0
        %v6978 = vpop.f32.mrf.mxu0
        %v6979 = vadd.f32 0.0, %v6978
        %v6980 = vpop.f32.mrf.mxu0
        %6981 = vmatprep.mubr.bf16.mxu0 0
        %6982 = vmatmul.mubr.bf16.gmra.mxu0 %v6897
        %v6983 = vpop.f32.mrf.mxu0
        %v6984 = vadd.f32 0.0, %v6983
        %v6985 = vpop.f32.mrf.mxu0
        %v6986 = vpop.f32.mrf.mxu0
        %v6987 = vadd.f32 0.0, %v6986
        %v6988 = vpop.f32.mrf.mxu0
        %6989 = vmatprep.mubr.bf16.mxu0 0
        %6990 = vmatmul.mubr.bf16.gmra.mxu0 %v6900
        %v6991 = vpop.f32.mrf.mxu0
        %v6992 = vadd.f32 0.0, %v6991
        %v6993 = vpop.f32.mrf.mxu0
        %v6994 = vpop.f32.mrf.mxu0
        %v6995 = vadd.f32 0.0, %v6994
        %v6996 = vpop.f32.mrf.mxu0
        %6997 = vmatprep.mubr.bf16.mxu0 0
        %6998 = vmatmul.mubr.bf16.gmra.mxu0 %v6903
        %v6999 = vpop.f32.mrf.mxu0
        %v7000 = vadd.f32 0.0, %v6999
        %v7001 = vpop.f32.mrf.mxu0
        %v7002 = vpop.f32.mrf.mxu0
        %v7003 = vadd.f32 0.0, %v7002
        %v7004 = vpop.f32.mrf.mxu0
        %7005 = vmatprep.mubr.bf16.mxu0 0
        %7006 = vmatmul.mubr.bf16.gmra.mxu0 %v6906
        %v7007 = vpop.f32.mrf.mxu0
        %v7008 = vadd.f32 0.0, %v7007
        %v7009 = vpop.f32.mrf.mxu0
        %v7010 = vpop.f32.mrf.mxu0
        %v7011 = vadd.f32 0.0, %v7010
        %v7012 = vpop.f32.mrf.mxu0
        %7013 = vmatprep.mubr.bf16.mxu0 0
        %7014 = vmatmul.mubr.bf16.gmra.mxu0 %v6909
        %v7015 = vpop.f32.mrf.mxu0
        %v7016 = vadd.f32 0.0, %v7015
        %v7017 = vpop.f32.mrf.mxu0
        %v7018 = vpop.f32.mrf.mxu0
        %v7019 = vadd.f32 0.0, %v7018
        %v7020 = vpop.f32.mrf.mxu0
        %7021 = vmatprep.mubr.bf16.mxu0 0
        %7022 = vmatmul.mubr.bf16.gmra.mxu0 %v6912
        %v7023 = vpop.f32.mrf.mxu0
        %v7024 = vadd.f32 0.0, %v7023
        %v7025 = vpop.f32.mrf.mxu0
        %v7026 = vpop.f32.mrf.mxu0
        %v7027 = vadd.f32 0.0, %v7026
        %v7028 = vpop.f32.mrf.mxu0
        %7029 = vmatprep.mubr.bf16.mxu0 0
        %7030 = vmatmul.mubr.bf16.gmra.mxu0 %v6915
        %v7031 = vpop.f32.mrf.mxu0
        %v7032 = vadd.f32 0.0, %v7031
        %v7033 = vpop.f32.mrf.mxu0
        %v7034 = vpop.f32.mrf.mxu0
        %v7035 = vadd.f32 0.0, %v7034
        %v7036 = vpop.f32.mrf.mxu0
        %7037 = vdwg.mxu0
        %v7038 = vsel %vm2864, %v6976, -1e+30
        %v7039 = vsel %vm2865, %v6979, -1e+30
        %v7040 = vsel %vm2866, %v6984, -1e+30
        %v7041 = vsel %vm2867, %v6987, -1e+30
        %v7042 = vsel %vm2868, %v6992, -1e+30
        %v7043 = vsel %vm2869, %v6995, -1e+30
        %v7044 = vsel %vm2870, %v7000, -1e+30
        %v7045 = vsel %vm2871, %v7003, -1e+30
        %v7046 = vsel %vm2872, %v7008, -1e+30
        %v7047 = vsel %vm2873, %v7011, -1e+30
        %v7048 = vsel %vm2874, %v7016, -1e+30
        %v7049 = vsel %vm2875, %v7019, -1e+30
        %v7050 = vsel %vm2876, %v7024, -1e+30
        %v7051 = vsel %vm2877, %v7027, -1e+30
        %v7052 = vsel %vm2878, %v7032, -1e+30
        %v7053 = vsel %vm2879, %v7035, -1e+30
        %7054 = vmax.xlane.f32.xlu0 %v7038
        %v7055 = vpop.xlane.xlu0 %7054
        %7056 = vmax.xlane.f32.xlu0 %v7039
        %v7057 = vpop.xlane.xlu0 %7056
        %7058 = vmax.xlane.f32.xlu0 %v7040
        %v7059 = vpop.xlane.xlu0 %7058
        %7060 = vmax.xlane.f32.xlu0 %v7041
        %v7061 = vpop.xlane.xlu0 %7060
        %7062 = vmax.xlane.f32.xlu0 %v7042
        %v7063 = vpop.xlane.xlu0 %7062
        %7064 = vmax.xlane.f32.xlu0 %v7043
        %v7065 = vpop.xlane.xlu0 %7064
        %7066 = vmax.xlane.f32.xlu0 %v7044
        %v7067 = vpop.xlane.xlu0 %7066
        %7068 = vmax.xlane.f32.xlu0 %v7045
        %v7069 = vpop.xlane.xlu0 %7068
        %7070 = vmax.xlane.f32.xlu0 %v7046
        %v7071 = vpop.xlane.xlu0 %7070
        %7072 = vmax.xlane.f32.xlu0 %v7047
        %v7073 = vpop.xlane.xlu0 %7072
        %7074 = vmax.xlane.f32.xlu0 %v7048
        %v7075 = vpop.xlane.xlu0 %7074
        %7076 = vmax.xlane.f32.xlu0 %v7049
        %v7077 = vpop.xlane.xlu0 %7076
        %7078 = vmax.xlane.f32.xlu0 %v7050
        %v7079 = vpop.xlane.xlu0 %7078
        %7080 = vmax.xlane.f32.xlu0 %v7051
        %v7081 = vpop.xlane.xlu0 %7080
        %7082 = vmax.xlane.f32.xlu0 %v7052
        %v7083 = vpop.xlane.xlu0 %7082
        %7084 = vmax.xlane.f32.xlu0 %v7053
        %v7085 = vpop.xlane.xlu0 %7084
        %v7086 = vsub.f32 %v7038, %v7055
        %v7087 = vsub.f32 %v7039, %v7057
        %v7088 = vsub.f32 %v7040, %v7059
        %v7089 = vsub.f32 %v7041, %v7061
        %v7090 = vsub.f32 %v7042, %v7063
        %v7091 = vsub.f32 %v7043, %v7065
        %v7092 = vsub.f32 %v7044, %v7067
        %v7093 = vsub.f32 %v7045, %v7069
        %v7094 = vsub.f32 %v7046, %v7071
        %v7095 = vsub.f32 %v7047, %v7073
        %v7096 = vsub.f32 %v7048, %v7075
        %v7097 = vsub.f32 %v7049, %v7077
        %v7098 = vsub.f32 %v7050, %v7079
        %v7099 = vsub.f32 %v7051, %v7081
        %v7100 = vsub.f32 %v7052, %v7083
        %v7101 = vsub.f32 %v7053, %v7085
        %v7102 = vmul.f32 %v7086, 1.442695
        %v7103 = vpow.pop %v7102
        %v7104 = vmul.f32 %v7087, 1.442695
        %v7105 = vpow.pop %v7104
        %v7106 = vmul.f32 %v7088, 1.442695
        %v7107 = vpow.pop %v7106
        %v7108 = vmul.f32 %v7089, 1.442695
        %v7109 = vpow.pop %v7108
        %v7110 = vmul.f32 %v7090, 1.442695
        %v7111 = vpow.pop %v7110
        %v7112 = vmul.f32 %v7091, 1.442695
        %v7113 = vpow.pop %v7112
        %v7114 = vmul.f32 %v7092, 1.442695
        %v7115 = vpow.pop %v7114
        %v7116 = vmul.f32 %v7093, 1.442695
        %v7117 = vpow.pop %v7116
        %v7118 = vmul.f32 %v7094, 1.442695
        %v7119 = vpow.pop %v7118
        %v7120 = vmul.f32 %v7095, 1.442695
        %v7121 = vpow.pop %v7120
        %v7122 = vmul.f32 %v7096, 1.442695
        %v7123 = vpow.pop %v7122
        %v7124 = vmul.f32 %v7097, 1.442695
        %v7125 = vpow.pop %v7124
        %v7126 = vmul.f32 %v7098, 1.442695
        %v7127 = vpow.pop %v7126
        %v7128 = vmul.f32 %v7099, 1.442695
        %v7129 = vpow.pop %v7128
        %v7130 = vmul.f32 %v7100, 1.442695
        %v7131 = vpow.pop %v7130
        %v7132 = vmul.f32 %v7101, 1.442695
        %v7133 = vpow.pop %v7132
        %7134 = vadd.xlane.f32.xlu0 %v7103
        %v7135 = vpop.xlane.xlu0 %7134
        %7136 = vadd.xlane.f32.xlu0 %v7105
        %v7137 = vpop.xlane.xlu0 %7136
        %7138 = vadd.xlane.f32.xlu0 %v7107
        %v7139 = vpop.xlane.xlu0 %7138
        %7140 = vadd.xlane.f32.xlu0 %v7109
        %v7141 = vpop.xlane.xlu0 %7140
        %7142 = vadd.xlane.f32.xlu0 %v7111
        %v7143 = vpop.xlane.xlu0 %7142
        %7144 = vadd.xlane.f32.xlu0 %v7113
        %v7145 = vpop.xlane.xlu0 %7144
        %7146 = vadd.xlane.f32.xlu0 %v7115
        %v7147 = vpop.xlane.xlu0 %7146
        %7148 = vadd.xlane.f32.xlu0 %v7117
        %v7149 = vpop.xlane.xlu0 %7148
        %7150 = vadd.xlane.f32.xlu0 %v7119
        %v7151 = vpop.xlane.xlu0 %7150
        %7152 = vadd.xlane.f32.xlu0 %v7121
        %v7153 = vpop.xlane.xlu0 %7152
        %7154 = vadd.xlane.f32.xlu0 %v7123
        %v7155 = vpop.xlane.xlu0 %7154
        %7156 = vadd.xlane.f32.xlu0 %v7125
        %v7157 = vpop.xlane.xlu0 %7156
        %7158 = vadd.xlane.f32.xlu0 %v7127
        %v7159 = vpop.xlane.xlu0 %7158
        %7160 = vadd.xlane.f32.xlu0 %v7129
        %v7161 = vpop.xlane.xlu0 %7160
        %7162 = vadd.xlane.f32.xlu0 %v7131
        %v7163 = vpop.xlane.xlu0 %7162
        %7164 = vadd.xlane.f32.xlu0 %v7133
        %v7165 = vpop.xlane.xlu0 %7164
        %v7166 = vrcp.pop %v7135
        %v7167 = vrcp.pop %v7137
        %v7168 = vrcp.pop %v7139
        %v7169 = vrcp.pop %v7141
        %v7170 = vrcp.pop %v7143
        %v7171 = vrcp.pop %v7145
        %v7172 = vrcp.pop %v7147
        %v7173 = vrcp.pop %v7149
        %v7174 = vrcp.pop %v7151
        %v7175 = vrcp.pop %v7153
        %v7176 = vrcp.pop %v7155
        %v7177 = vrcp.pop %v7157
        %v7178 = vrcp.pop %v7159
        %v7179 = vrcp.pop %v7161
        %v7180 = vrcp.pop %v7163
        %v7181 = vrcp.pop %v7165
        %v7182 = vmul.f32 %v7103, %v7166
        %v7183 = vmul.f32 %v7105, %v7167
        %v7184 = vmul.f32 %v7107, %v7168
        %v7185 = vmul.f32 %v7109, %v7169
        %v7186 = vmul.f32 %v7111, %v7170
        %v7187 = vmul.f32 %v7113, %v7171
        %v7188 = vmul.f32 %v7115, %v7172
        %v7189 = vmul.f32 %v7117, %v7173
        %v7190 = vmul.f32 %v7119, %v7174
        %v7191 = vmul.f32 %v7121, %v7175
        %v7192 = vmul.f32 %v7123, %v7176
        %v7193 = vmul.f32 %v7125, %v7177
        %v7194 = vmul.f32 %v7127, %v7178
        %v7195 = vmul.f32 %v7129, %v7179
        %v7196 = vmul.f32 %v7131, %v7180
        %v7197 = vmul.f32 %v7133, %v7181
        %v7198 = vpack.c.bf16 %v7183, %v7182
        %v7199 = vpack.c.bf16 %v7185, %v7184
        %v7200 = vpack.c.bf16 %v7187, %v7186
        %v7201 = vpack.c.bf16 %v7189, %v7188
        %v7202 = vpack.c.bf16 %v7191, %v7190
        %v7203 = vpack.c.bf16 %v7193, %v7192
        %v7204 = vpack.c.bf16 %v7195, %v7194
        %v7205 = vpack.c.bf16 %v7197, %v7196
        %7214 = vrot.lane.b32.xlu0 %v2781, 64
        %v7215 = vpop.permute.xlu0 %7214
        %7216 = vrot.lane.b32.xlu0 %v2790, 64
        %v7217 = vpop.permute.xlu0 %7216
        %7218 = vrot.lane.b32.xlu0 %v2799, 64
        %v7219 = vpop.permute.xlu0 %7218
        %7220 = vrot.lane.b32.xlu0 %v2808, 64
        %v7221 = vpop.permute.xlu0 %7220
        %7222 = vrot.lane.b32.xlu0 %v2817, 64
        %v7223 = vpop.permute.xlu0 %7222
        %7224 = vrot.lane.b32.xlu0 %v2826, 64
        %v7225 = vpop.permute.xlu0 %7224
        %7226 = vrot.lane.b32.xlu0 %v2835, 64
        %v7227 = vpop.permute.xlu0 %7226
        %7228 = vrot.lane.b32.xlu0 %v2844, 64
        %v7229 = vpop.permute.xlu0 %7228
        %7238 = vmatprep.subr.bf16.mxu0 0
        %7239 = vmatpush1.bf16.msra.mxu0 %v7229
        %7240 = vmatprep.subr.bf16.mxu0 0
        %7241 = vmatpush1.bf16.msra.mxu0 %v7227
        %7242 = vmatprep.subr.bf16.mxu0 0
        %7243 = vmatpush1.bf16.msra.mxu0 %v7225
        %7244 = vmatprep.subr.bf16.mxu0 0
        %7245 = vmatpush1.bf16.msra.mxu0 %v7223
        %7246 = vmatprep.subr.bf16.mxu0 0
        %7247 = vmatpush1.bf16.msra.mxu0 %v7221
        %7248 = vmatprep.subr.bf16.mxu0 0
        %7249 = vmatpush1.bf16.msra.mxu0 %v7219
        %7250 = vmatprep.subr.bf16.mxu0 0
        %7251 = vmatpush1.bf16.msra.mxu0 %v7217
        %7252 = vmatprep.subr.bf16.mxu0 0
        %7253 = vmatpush1.bf16.msra.mxu0 %v7215
        %7254 = vmatprep.subr.bf16.mxu0 0
        %7255 = vmatpush2.bf16.msra.mxu0 0
        %7256 = vmatprep.subr.bf16.mxu0 0
        %7257 = vmatpush2.bf16.msra.mxu0 0
        %7258 = vmatprep.subr.bf16.mxu0 0
        %7259 = vmatpush2.bf16.msra.mxu0 0
        %7260 = vmatprep.subr.bf16.mxu0 0
        %7261 = vmatpush2.bf16.msra.mxu0 0
        %7262 = vmatprep.subr.bf16.mxu0 0
        %7263 = vmatpush2.bf16.msra.mxu0 0
        %7264 = vmatprep.subr.bf16.mxu0 0
        %7265 = vmatpush2.bf16.msra.mxu0 0
        %7266 = vmatprep.subr.bf16.mxu0 0
        %7267 = vmatpush2.bf16.msra.mxu0 0
        %7268 = vmatprep.subr.bf16.mxu0 0
        %7269 = vmatpush2.bf16.msra.mxu0 0
        %7270 = vmatprep.mubr.bf16.mxu0 0
        %7271 = vmatmul.mubr.bf16.gmra.mxu0 %v7198
        %v7272 = vpop.f32.mrf.mxu0
        %v7273 = vadd.f32 0.0, %v7272
        %v7274 = vpop.f32.mrf.mxu0
        %v7275 = vpop.f32.mrf.mxu0
        %v7276 = vadd.f32 0.0, %v7275
        %v7277 = vpop.f32.mrf.mxu0
        %7278 = vmatprep.mubr.bf16.mxu0 0
        %7279 = vmatmul.mubr.bf16.gmra.mxu0 %v7199
        %v7280 = vpop.f32.mrf.mxu0
        %v7281 = vadd.f32 0.0, %v7280
        %v7282 = vpop.f32.mrf.mxu0
        %v7283 = vpop.f32.mrf.mxu0
        %v7284 = vadd.f32 0.0, %v7283
        %v7285 = vpop.f32.mrf.mxu0
        %7286 = vmatprep.mubr.bf16.mxu0 0
        %7287 = vmatmul.mubr.bf16.gmra.mxu0 %v7200
        %v7288 = vpop.f32.mrf.mxu0
        %v7289 = vadd.f32 0.0, %v7288
        %v7290 = vpop.f32.mrf.mxu0
        %v7291 = vpop.f32.mrf.mxu0
        %v7292 = vadd.f32 0.0, %v7291
        %v7293 = vpop.f32.mrf.mxu0
        %7294 = vmatprep.mubr.bf16.mxu0 0
        %7295 = vmatmul.mubr.bf16.gmra.mxu0 %v7201
        %v7296 = vpop.f32.mrf.mxu0
        %v7297 = vadd.f32 0.0, %v7296
        %v7298 = vpop.f32.mrf.mxu0
        %v7299 = vpop.f32.mrf.mxu0
        %v7300 = vadd.f32 0.0, %v7299
        %v7301 = vpop.f32.mrf.mxu0
        %7302 = vmatprep.mubr.bf16.mxu0 0
        %7303 = vmatmul.mubr.bf16.gmra.mxu0 %v7202
        %v7304 = vpop.f32.mrf.mxu0
        %v7305 = vadd.f32 0.0, %v7304
        %v7306 = vpop.f32.mrf.mxu0
        %v7307 = vpop.f32.mrf.mxu0
        %v7308 = vadd.f32 0.0, %v7307
        %v7309 = vpop.f32.mrf.mxu0
        %7310 = vmatprep.mubr.bf16.mxu0 0
        %7311 = vmatmul.mubr.bf16.gmra.mxu0 %v7203
        %v7312 = vpop.f32.mrf.mxu0
        %v7313 = vadd.f32 0.0, %v7312
        %v7314 = vpop.f32.mrf.mxu0
        %v7315 = vpop.f32.mrf.mxu0
        %v7316 = vadd.f32 0.0, %v7315
        %v7317 = vpop.f32.mrf.mxu0
        %7318 = vmatprep.mubr.bf16.mxu0 0
        %7319 = vmatmul.mubr.bf16.gmra.mxu0 %v7204
        %v7320 = vpop.f32.mrf.mxu0
        %v7321 = vadd.f32 0.0, %v7320
        %v7322 = vpop.f32.mrf.mxu0
        %v7323 = vpop.f32.mrf.mxu0
        %v7324 = vadd.f32 0.0, %v7323
        %v7325 = vpop.f32.mrf.mxu0
        %7326 = vmatprep.mubr.bf16.mxu0 0
        %7327 = vmatmul.mubr.bf16.gmra.mxu0 %v7205
        %v7328 = vpop.f32.mrf.mxu0
        %v7329 = vadd.f32 0.0, %v7328
        %v7330 = vpop.f32.mrf.mxu0
        %v7331 = vpop.f32.mrf.mxu0
        %v7332 = vadd.f32 0.0, %v7331
        %v7333 = vpop.f32.mrf.mxu0
        %7334 = vdwg.mxu0
        %v7335 = vpack.c.bf16 %v7276, %v7273
        %v7336 = vpack.c.bf16 %v7284, %v7281
        %v7337 = vpack.c.bf16 %v7292, %v7289
        %v7338 = vpack.c.bf16 %v7300, %v7297
        %v7339 = vpack.c.bf16 %v7308, %v7305
        %v7340 = vpack.c.bf16 %v7316, %v7313
        %v7341 = vpack.c.bf16 %v7324, %v7321
        %v7342 = vpack.c.bf16 %v7332, %v7329
        %v7343 = vld [vmem:[#allocation7 + $0x1e0] sm:$0xff]
        %v7344 = vld [vmem:[#allocation7 + $0x1e8] sm:$0xf]
        %v7345 = vld [vmem:[#allocation7 + $0x1ec] sm:$0xff]
        %v7346 = vld [vmem:[#allocation7 + $0x1f4] sm:$0xf]
        %v7347 = vld [vmem:[#allocation7 + $0x1f8] sm:$0xff]
        %v7348 = vld [vmem:[#allocation7 + $0x200] sm:$0xf]
        %v7349 = vld [vmem:[#allocation7 + $0x204] sm:$0xff]
        %v7350 = vld [vmem:[#allocation7 + $0x20c] sm:$0xf]
        %v7351 = vld [vmem:[#allocation7 + $0x210] sm:$0xff]
        %v7352 = vld [vmem:[#allocation7 + $0x218] sm:$0xf]
        %v7353 = vld [vmem:[#allocation7 + $0x21c] sm:$0xff]
        %v7354 = vld [vmem:[#allocation7 + $0x224] sm:$0xf]
        %v7355 = vld [vmem:[#allocation7 + $0x228] sm:$0xff]
        %v7356 = vld [vmem:[#allocation7 + $0x230] sm:$0xf]
        %v7357 = vld [vmem:[#allocation7 + $0x234] sm:$0xff]
        %v7358 = vld [vmem:[#allocation7 + $0x23c] sm:$0xf]
        %v7375 = vunpack.c.l.b16 %v7343
        %v7376 = vunpack.c.h.b16 %v7343
        %v7377 = vunpack.c.l.b16 %v7344
        %v7378 = vunpack.c.l.b16 %v7345
        %v7379 = vunpack.c.h.b16 %v7345
        %v7380 = vunpack.c.l.b16 %v7346
        %v7381 = vunpack.c.l.b16 %v7347
        %v7382 = vunpack.c.h.b16 %v7347
        %v7383 = vunpack.c.l.b16 %v7348
        %v7384 = vunpack.c.l.b16 %v7349
        %v7385 = vunpack.c.h.b16 %v7349
        %v7386 = vunpack.c.l.b16 %v7350
        %v7387 = vunpack.c.l.b16 %v7351
        %v7388 = vunpack.c.h.b16 %v7351
        %v7389 = vunpack.c.l.b16 %v7352
        %v7390 = vunpack.c.l.b16 %v7353
        %v7391 = vunpack.c.h.b16 %v7353
        %v7392 = vunpack.c.l.b16 %v7354
        %v7393 = vunpack.c.l.b16 %v7355
        %v7394 = vunpack.c.h.b16 %v7355
        %v7395 = vunpack.c.l.b16 %v7356
        %v7396 = vunpack.c.l.b16 %v7357
        %v7397 = vunpack.c.h.b16 %v7357
        %v7398 = vunpack.c.l.b16 %v7358
        %v7399 = vpack.c.b16 %v7378, %v7375
        %v7400 = vpack.c.b16 %v7379, %v7376
        %v7401 = vpack.c.b16 %v7380, %v7377
        %v7402 = vpack.c.b16 %v7384, %v7381
        %v7403 = vpack.c.b16 %v7385, %v7382
        %v7404 = vpack.c.b16 %v7386, %v7383
        %v7405 = vpack.c.b16 %v7390, %v7387
        %v7406 = vpack.c.b16 %v7391, %v7388
        %v7407 = vpack.c.b16 %v7392, %v7389
        %v7408 = vpack.c.b16 %v7396, %v7393
        %v7409 = vpack.c.b16 %v7397, %v7394
        %v7410 = vpack.c.b16 %v7398, %v7395
        %v7424 = vsel %vm2880, %v7335, 0
        %v7427 = vsel %vm2880, %v7336, 0
        %v7430 = vsel %vm2880, %v7337, 0
        %v7433 = vsel %vm2880, %v7338, 0
        %v7436 = vsel %vm2880, %v7339, 0
        %v7439 = vsel %vm2880, %v7340, 0
        %v7442 = vsel %vm2880, %v7341, 0
        %v7445 = vsel %vm2880, %v7342, 0
        %7447 = vmatprep.subr.bf16.mxu0 0
        %7448 = vmatpush1.bf16.msra.mxu0 0
        %7449 = vmatprep.subr.bf16.mxu0 0
        %7450 = vmatpush1.bf16.msra.mxu0 0
        %7451 = vmatprep.subr.bf16.mxu0 0
        %7452 = vmatpush1.bf16.msra.mxu0 0
        %7453 = vmatprep.subr.bf16.mxu0 0
        %7454 = vmatpush1.bf16.msra.mxu0 0
        %7455 = vmatprep.subr.bf16.mxu0 %v7409
        %7456 = vmatpush1.bf16.msra.mxu0 %v7408
        %7457 = vmatprep.subr.bf16.mxu0 %v7406
        %7458 = vmatpush1.bf16.msra.mxu0 %v7405
        %7459 = vmatprep.subr.bf16.mxu0 %v7403
        %7460 = vmatpush1.bf16.msra.mxu0 %v7402
        %7461 = vmatprep.subr.bf16.mxu0 %v7400
        %7462 = vmatpush1.bf16.msra.mxu0 %v7399
        %7463 = vmatprep.subr.bf16.mxu0 0
        %7464 = vmatpush2.bf16.msra.mxu0 0
        %7465 = vmatprep.subr.bf16.mxu0 0
        %7466 = vmatpush2.bf16.msra.mxu0 0
        %7467 = vmatprep.subr.bf16.mxu0 0
        %7468 = vmatpush2.bf16.msra.mxu0 0
        %7469 = vmatprep.subr.bf16.mxu0 0
        %7470 = vmatpush2.bf16.msra.mxu0 0
        %7471 = vmatprep.subr.bf16.mxu0 0
        %7472 = vmatpush2.bf16.msra.mxu0 0
        %7473 = vmatprep.subr.bf16.mxu0 0
        %7474 = vmatpush2.bf16.msra.mxu0 0
        %7475 = vmatprep.subr.bf16.mxu0 0
        %7476 = vmatpush2.bf16.msra.mxu0 0
        %7477 = vmatprep.subr.bf16.mxu0 0
        %7478 = vmatpush2.bf16.msra.mxu0 0
        %7479 = vmatprep.mubr.bf16.mxu0 0
        %7480 = vmatmul.mubr.bf16.gmra.mxu0 %v7424
        %v7481 = vpop.f32.mrf.mxu0
        %v7482 = vadd.f32 0.0, %v7481
        %v7483 = vpop.f32.mrf.mxu0
        %v7484 = vadd.f32 0.0, %v7483
        %v7485 = vpop.f32.mrf.mxu0
        %v7486 = vadd.f32 0.0, %v7485
        %v7487 = vpop.f32.mrf.mxu0
        %v7488 = vadd.f32 0.0, %v7487
        %7489 = vmatprep.mubr.bf16.mxu0 0
        %7490 = vmatmul.mubr.bf16.gmra.mxu0 %v7427
        %v7491 = vpop.f32.mrf.mxu0
        %v7492 = vadd.f32 0.0, %v7491
        %v7493 = vpop.f32.mrf.mxu0
        %v7494 = vadd.f32 0.0, %v7493
        %v7495 = vpop.f32.mrf.mxu0
        %v7496 = vadd.f32 0.0, %v7495
        %v7497 = vpop.f32.mrf.mxu0
        %v7498 = vadd.f32 0.0, %v7497
        %7499 = vmatprep.mubr.bf16.mxu0 0
        %7500 = vmatmul.mubr.bf16.gmra.mxu0 %v7430
        %v7501 = vpop.f32.mrf.mxu0
        %v7502 = vadd.f32 0.0, %v7501
        %v7503 = vpop.f32.mrf.mxu0
        %v7504 = vadd.f32 0.0, %v7503
        %v7505 = vpop.f32.mrf.mxu0
        %v7506 = vadd.f32 0.0, %v7505
        %v7507 = vpop.f32.mrf.mxu0
        %v7508 = vadd.f32 0.0, %v7507
        %7509 = vmatprep.mubr.bf16.mxu0 0
        %7510 = vmatmul.mubr.bf16.gmra.mxu0 %v7433
        %v7511 = vpop.f32.mrf.mxu0
        %v7512 = vadd.f32 0.0, %v7511
        %v7513 = vpop.f32.mrf.mxu0
        %v7514 = vadd.f32 0.0, %v7513
        %v7515 = vpop.f32.mrf.mxu0
        %v7516 = vadd.f32 0.0, %v7515
        %v7517 = vpop.f32.mrf.mxu0
        %v7518 = vadd.f32 0.0, %v7517
        %7519 = vmatprep.mubr.bf16.mxu0 0
        %7520 = vmatmul.mubr.bf16.gmra.mxu0 %v7436
        %v7521 = vpop.f32.mrf.mxu0
        %v7522 = vadd.f32 0.0, %v7521
        %v7523 = vpop.f32.mrf.mxu0
        %v7524 = vadd.f32 0.0, %v7523
        %v7525 = vpop.f32.mrf.mxu0
        %v7526 = vadd.f32 0.0, %v7525
        %v7527 = vpop.f32.mrf.mxu0
        %v7528 = vadd.f32 0.0, %v7527
        %7529 = vmatprep.mubr.bf16.mxu0 0
        %7530 = vmatmul.mubr.bf16.gmra.mxu0 %v7439
        %v7531 = vpop.f32.mrf.mxu0
        %v7532 = vadd.f32 0.0, %v7531
        %v7533 = vpop.f32.mrf.mxu0
        %v7534 = vadd.f32 0.0, %v7533
        %v7535 = vpop.f32.mrf.mxu0
        %v7536 = vadd.f32 0.0, %v7535
        %v7537 = vpop.f32.mrf.mxu0
        %v7538 = vadd.f32 0.0, %v7537
        %7539 = vmatprep.mubr.bf16.mxu0 0
        %7540 = vmatmul.mubr.bf16.gmra.mxu0 %v7442
        %v7541 = vpop.f32.mrf.mxu0
        %v7542 = vadd.f32 0.0, %v7541
        %v7543 = vpop.f32.mrf.mxu0
        %v7544 = vadd.f32 0.0, %v7543
        %v7545 = vpop.f32.mrf.mxu0
        %v7546 = vadd.f32 0.0, %v7545
        %v7547 = vpop.f32.mrf.mxu0
        %v7548 = vadd.f32 0.0, %v7547
        %7549 = vmatprep.mubr.bf16.mxu0 0
        %7550 = vmatmul.mubr.bf16.gmra.mxu0 %v7445
        %v7551 = vpop.f32.mrf.mxu0
        %v7552 = vadd.f32 0.0, %v7551
        %v7553 = vpop.f32.mrf.mxu0
        %v7554 = vadd.f32 0.0, %v7553
        %v7555 = vpop.f32.mrf.mxu0
        %v7556 = vadd.f32 0.0, %v7555
        %v7557 = vpop.f32.mrf.mxu0
        %v7558 = vadd.f32 0.0, %v7557
        %7559 = vdwg.mxu0
        %7560 = vmatprep.subr.bf16.mxu0 0
        %7561 = vmatpush1.bf16.msra.mxu0 0
        %7562 = vmatprep.subr.bf16.mxu0 0
        %7563 = vmatpush1.bf16.msra.mxu0 0
        %7564 = vmatprep.subr.bf16.mxu0 0
        %7565 = vmatpush1.bf16.msra.mxu0 0
        %7566 = vmatprep.subr.bf16.mxu0 0
        %7567 = vmatpush1.bf16.msra.mxu0 0
        %7568 = vmatprep.subr.bf16.mxu0 0
        %7569 = vmatpush1.bf16.msra.mxu0 %v7410
        %7570 = vmatprep.subr.bf16.mxu0 0
        %7571 = vmatpush1.bf16.msra.mxu0 %v7407
        %7572 = vmatprep.subr.bf16.mxu0 0
        %7573 = vmatpush1.bf16.msra.mxu0 %v7404
        %7574 = vmatprep.subr.bf16.mxu0 0
        %7575 = vmatpush1.bf16.msra.mxu0 %v7401
        %7576 = vmatprep.subr.bf16.mxu0 0
        %7577 = vmatpush2.bf16.msra.mxu0 0
        %7578 = vmatprep.subr.bf16.mxu0 0
        %7579 = vmatpush2.bf16.msra.mxu0 0
        %7580 = vmatprep.subr.bf16.mxu0 0
        %7581 = vmatpush2.bf16.msra.mxu0 0
        %7582 = vmatprep.subr.bf16.mxu0 0
        %7583 = vmatpush2.bf16.msra.mxu0 0
        %7584 = vmatprep.subr.bf16.mxu0 0
        %7585 = vmatpush2.bf16.msra.mxu0 0
        %7586 = vmatprep.subr.bf16.mxu0 0
        %7587 = vmatpush2.bf16.msra.mxu0 0
        %7588 = vmatprep.subr.bf16.mxu0 0
        %7589 = vmatpush2.bf16.msra.mxu0 0
        %7590 = vmatprep.subr.bf16.mxu0 0
        %7591 = vmatpush2.bf16.msra.mxu0 0
        %7592 = vmatprep.mubr.bf16.mxu0 0
        %7593 = vmatmul.mubr.bf16.gmra.mxu0 %v7424
        %v7594 = vpop.f32.mrf.mxu0
        %v7595 = vadd.f32 0.0, %v7594
        %v7596 = vpop.f32.mrf.mxu0
        %v7597 = vpop.f32.mrf.mxu0
        %v7598 = vadd.f32 0.0, %v7597
        %v7599 = vpop.f32.mrf.mxu0
        %7600 = vmatprep.mubr.bf16.mxu0 0
        %7601 = vmatmul.mubr.bf16.gmra.mxu0 %v7427
        %v7602 = vpop.f32.mrf.mxu0
        %v7603 = vadd.f32 0.0, %v7602
        %v7604 = vpop.f32.mrf.mxu0
        %v7605 = vpop.f32.mrf.mxu0
        %v7606 = vadd.f32 0.0, %v7605
        %v7607 = vpop.f32.mrf.mxu0
        %7608 = vmatprep.mubr.bf16.mxu0 0
        %7609 = vmatmul.mubr.bf16.gmra.mxu0 %v7430
        %v7610 = vpop.f32.mrf.mxu0
        %v7611 = vadd.f32 0.0, %v7610
        %v7612 = vpop.f32.mrf.mxu0
        %v7613 = vpop.f32.mrf.mxu0
        %v7614 = vadd.f32 0.0, %v7613
        %v7615 = vpop.f32.mrf.mxu0
        %7616 = vmatprep.mubr.bf16.mxu0 0
        %7617 = vmatmul.mubr.bf16.gmra.mxu0 %v7433
        %v7618 = vpop.f32.mrf.mxu0
        %v7619 = vadd.f32 0.0, %v7618
        %v7620 = vpop.f32.mrf.mxu0
        %v7621 = vpop.f32.mrf.mxu0
        %v7622 = vadd.f32 0.0, %v7621
        %v7623 = vpop.f32.mrf.mxu0
        %7624 = vmatprep.mubr.bf16.mxu0 0
        %7625 = vmatmul.mubr.bf16.gmra.mxu0 %v7436
        %v7626 = vpop.f32.mrf.mxu0
        %v7627 = vadd.f32 0.0, %v7626
        %v7628 = vpop.f32.mrf.mxu0
        %v7629 = vpop.f32.mrf.mxu0
        %v7630 = vadd.f32 0.0, %v7629
        %v7631 = vpop.f32.mrf.mxu0
        %7632 = vmatprep.mubr.bf16.mxu0 0
        %7633 = vmatmul.mubr.bf16.gmra.mxu0 %v7439
        %v7634 = vpop.f32.mrf.mxu0
        %v7635 = vadd.f32 0.0, %v7634
        %v7636 = vpop.f32.mrf.mxu0
        %v7637 = vpop.f32.mrf.mxu0
        %v7638 = vadd.f32 0.0, %v7637
        %v7639 = vpop.f32.mrf.mxu0
        %7640 = vmatprep.mubr.bf16.mxu0 0
        %7641 = vmatmul.mubr.bf16.gmra.mxu0 %v7442
        %v7642 = vpop.f32.mrf.mxu0
        %v7643 = vadd.f32 0.0, %v7642
        %v7644 = vpop.f32.mrf.mxu0
        %v7645 = vpop.f32.mrf.mxu0
        %v7646 = vadd.f32 0.0, %v7645
        %v7647 = vpop.f32.mrf.mxu0
        %7648 = vmatprep.mubr.bf16.mxu0 0
        %7649 = vmatmul.mubr.bf16.gmra.mxu0 %v7445
        %v7650 = vpop.f32.mrf.mxu0
        %v7651 = vadd.f32 0.0, %v7650
        %v7652 = vpop.f32.mrf.mxu0
        %v7653 = vpop.f32.mrf.mxu0
        %v7654 = vadd.f32 0.0, %v7653
        %v7655 = vpop.f32.mrf.mxu0
        %7656 = vdwg.mxu0
        %v7657 = vadd.f32 %v6797, %v7482
        %v7658 = vadd.f32 %v6798, %v7484
        %v7659 = vadd.f32 %v6799, %v7595
        %v7660 = vadd.f32 %v6800, %v7486
        %v7661 = vadd.f32 %v6801, %v7488
        %v7662 = vadd.f32 %v6802, %v7598
        %v7663 = vadd.f32 %v6803, %v7492
        %v7664 = vadd.f32 %v6804, %v7494
        %v7665 = vadd.f32 %v6805, %v7603
        %v7666 = vadd.f32 %v6806, %v7496
        %v7667 = vadd.f32 %v6807, %v7498
        %v7668 = vadd.f32 %v6808, %v7606
        %v7669 = vadd.f32 %v6809, %v7502
        %v7670 = vadd.f32 %v6810, %v7504
        %v7671 = vadd.f32 %v6811, %v7611
        %v7672 = vadd.f32 %v6812, %v7506
        %v7673 = vadd.f32 %v6813, %v7508
        %v7674 = vadd.f32 %v6814, %v7614
        %v7675 = vadd.f32 %v6815, %v7512
        %v7676 = vadd.f32 %v6816, %v7514
        %v7677 = vadd.f32 %v6817, %v7619
        %v7678 = vadd.f32 %v6818, %v7516
        %v7679 = vadd.f32 %v6819, %v7518
        %v7680 = vadd.f32 %v6820, %v7622
        %v7681 = vadd.f32 %v6821, %v7522
        %v7682 = vadd.f32 %v6822, %v7524
        %v7683 = vadd.f32 %v6823, %v7627
        %v7684 = vadd.f32 %v6824, %v7526
        %v7685 = vadd.f32 %v6825, %v7528
        %v7686 = vadd.f32 %v6826, %v7630
        %v7687 = vadd.f32 %v6827, %v7532
        %v7688 = vadd.f32 %v6828, %v7534
        %v7689 = vadd.f32 %v6829, %v7635
        %v7690 = vadd.f32 %v6830, %v7536
        %v7691 = vadd.f32 %v6831, %v7538
        %v7692 = vadd.f32 %v6832, %v7638
        %v7693 = vadd.f32 %v6833, %v7542
        %v7694 = vadd.f32 %v6834, %v7544
        %v7695 = vadd.f32 %v6835, %v7643
        %v7696 = vadd.f32 %v6836, %v7546
        %v7697 = vadd.f32 %v6837, %v7548
        %v7698 = vadd.f32 %v6838, %v7646
        %v7699 = vadd.f32 %v6839, %v7552
        %v7700 = vadd.f32 %v6840, %v7554
        %v7701 = vadd.f32 %v6841, %v7651
        %v7702 = vadd.f32 %v6842, %v7556
        %v7703 = vadd.f32 %v6843, %v7558
        %v7704 = vadd.f32 %v6844, %v7654
        %v7705 = vld [vmem:[#allocation8] sm:$0x7]
        %v7707 = vlaneseq
        %v7708 = vshrl.u32 %v7707, 7
        %v7709 = vsub.s32 0, %v7708
        %v7710 = vrot.slane %v7705, %v7709
        %v7711 = vlaneseq
        %v7712 = vshrl.u32 %v7711, 7
        %v7713 = vsub.s32 1, %v7712
        %v7714 = vrot.slane %v7705, %v7713
        %v7715 = vlaneseq
        %v7716 = vshrl.u32 %v7715, 7
        %v7717 = vsub.s32 2, %v7716
        %v7718 = vrot.slane %v7705, %v7717
        %v7722 = vadd.f32 %v7657, %v7710
        %v7723 = vadd.f32 %v7658, %v7714
        %v7724 = vadd.f32 %v7659, %v7718
        %v7725 = vadd.f32 %v7660, %v7710
        %v7726 = vadd.f32 %v7661, %v7714
        %v7727 = vadd.f32 %v7662, %v7718
        %v7728 = vadd.f32 %v7663, %v7710
        %v7729 = vadd.f32 %v7664, %v7714
        %v7730 = vadd.f32 %v7665, %v7718
        %v7731 = vadd.f32 %v7666, %v7710
        %v7732 = vadd.f32 %v7667, %v7714
        %v7733 = vadd.f32 %v7668, %v7718
        %v7734 = vadd.f32 %v7669, %v7710
        %v7735 = vadd.f32 %v7670, %v7714
        %v7736 = vadd.f32 %v7671, %v7718
        %v7737 = vadd.f32 %v7672, %v7710
        %v7738 = vadd.f32 %v7673, %v7714
        %v7739 = vadd.f32 %v7674, %v7718
        %v7740 = vadd.f32 %v7675, %v7710
        %v7741 = vadd.f32 %v7676, %v7714
        %v7742 = vadd.f32 %v7677, %v7718
        %v7743 = vadd.f32 %v7678, %v7710
        %v7744 = vadd.f32 %v7679, %v7714
        %v7745 = vadd.f32 %v7680, %v7718
        %v7746 = vadd.f32 %v7681, %v7710
        %v7747 = vadd.f32 %v7682, %v7714
        %v7748 = vadd.f32 %v7683, %v7718
        %v7749 = vadd.f32 %v7684, %v7710
        %v7750 = vadd.f32 %v7685, %v7714
        %v7751 = vadd.f32 %v7686, %v7718
        %v7752 = vadd.f32 %v7687, %v7710
        %v7753 = vadd.f32 %v7688, %v7714
        %v7754 = vadd.f32 %v7689, %v7718
        %v7755 = vadd.f32 %v7690, %v7710
        %v7756 = vadd.f32 %v7691, %v7714
        %v7757 = vadd.f32 %v7692, %v7718
        %v7758 = vadd.f32 %v7693, %v7710
        %v7759 = vadd.f32 %v7694, %v7714
        %v7760 = vadd.f32 %v7695, %v7718
        %v7761 = vadd.f32 %v7696, %v7710
        %v7762 = vadd.f32 %v7697, %v7714
        %v7763 = vadd.f32 %v7698, %v7718
        %v7764 = vadd.f32 %v7699, %v7710
        %v7765 = vadd.f32 %v7700, %v7714
        %v7766 = vadd.f32 %v7701, %v7718
        %v7767 = vadd.f32 %v7702, %v7710
        %v7768 = vadd.f32 %v7703, %v7714
        %v7769 = vadd.f32 %v7704, %v7718
        %7770 = vst [vmem:[%s257] sm:$0xff] %v7722
        %7771 = vst [vmem:[%s257 + $0x8] sm:$0xff] %v7723
        %7772 = vst [vmem:[%s257 + $0x10] sm:$0xff] %v7724
        %7773 = vst [vmem:[%s257 + $0x18] sm:$0xff] %v7725
        %7774 = vst [vmem:[%s257 + $0x20] sm:$0xff] %v7726
        %7775 = vst [vmem:[%s257 + $0x28] sm:$0xff] %v7727
        %7776 = vst [vmem:[%s257 + $0x30] sm:$0xff] %v7728
        %7777 = vst [vmem:[%s257 + $0x38] sm:$0xff] %v7729
        %7778 = vst [vmem:[%s257 + $0x40] sm:$0xff] %v7730
        %7779 = vst [vmem:[%s257 + $0x48] sm:$0xff] %v7731
        %7780 = vst [vmem:[%s257 + $0x50] sm:$0xff] %v7732
        %7781 = vst [vmem:[%s257 + $0x58] sm:$0xff] %v7733
        %7782 = vst [vmem:[%s257 + $0x60] sm:$0xff] %v7734
        %7783 = vst [vmem:[%s257 + $0x68] sm:$0xff] %v7735
        %7784 = vst [vmem:[%s257 + $0x70] sm:$0xff] %v7736
        %7785 = vst [vmem:[%s257 + $0x78] sm:$0xff] %v7737
        %7786 = vst [vmem:[%s257 + $0x80] sm:$0xff] %v7738
        %7787 = vst [vmem:[%s257 + $0x88] sm:$0xff] %v7739
        %7788 = vst [vmem:[%s257 + $0x90] sm:$0xff] %v7740
        %7789 = vst [vmem:[%s257 + $0x98] sm:$0xff] %v7741
        %7790 = vst [vmem:[%s257 + $0xa0] sm:$0xff] %v7742
        %7791 = vst [vmem:[%s257 + $0xa8] sm:$0xff] %v7743
        %7792 = vst [vmem:[%s257 + $0xb0] sm:$0xff] %v7744
        %7793 = vst [vmem:[%s257 + $0xb8] sm:$0xff] %v7745
        %7794 = vst [vmem:[%s257 + $0xc0] sm:$0xff] %v7746
        %7795 = vst [vmem:[%s257 + $0xc8] sm:$0xff] %v7747
        %7796 = vst [vmem:[%s257 + $0xd0] sm:$0xff] %v7748
        %7797 = vst [vmem:[%s257 + $0xd8] sm:$0xff] %v7749
        %7798 = vst [vmem:[%s257 + $0xe0] sm:$0xff] %v7750
        %7799 = vst [vmem:[%s257 + $0xe8] sm:$0xff] %v7751
        %7800 = vst [vmem:[%s257 + $0xf0] sm:$0xff] %v7752
        %7801 = vst [vmem:[%s257 + $0xf8] sm:$0xff] %v7753
        %7802 = vst [vmem:[%s257 + $0x100] sm:$0xff] %v7754
        %7803 = vst [vmem:[%s257 + $0x108] sm:$0xff] %v7755
        %7804 = vst [vmem:[%s257 + $0x110] sm:$0xff] %v7756
        %7805 = vst [vmem:[%s257 + $0x118] sm:$0xff] %v7757
        %7806 = vst [vmem:[%s257 + $0x120] sm:$0xff] %v7758
        %7807 = vst [vmem:[%s257 + $0x128] sm:$0xff] %v7759
        %7808 = vst [vmem:[%s257 + $0x130] sm:$0xff] %v7760
        %7809 = vst [vmem:[%s257 + $0x138] sm:$0xff] %v7761
        %7810 = vst [vmem:[%s257 + $0x140] sm:$0xff] %v7762
        %7811 = vst [vmem:[%s257 + $0x148] sm:$0xff] %v7763
        %7812 = vst [vmem:[%s257 + $0x150] sm:$0xff] %v7764
        %7813 = vst [vmem:[%s257 + $0x158] sm:$0xff] %v7765
        %7814 = vst [vmem:[%s257 + $0x160] sm:$0xff] %v7766
        %7815 = vst [vmem:[%s257 + $0x168] sm:$0xff] %v7767
        %7816 = vst [vmem:[%s257 + $0x170] sm:$0xff] %v7768
        %7817 = vst [vmem:[%s257 + $0x178] sm:$0xff] %v7769
        %s7818 = sand.u32 %s120, 1
        %s7819 = scalar_lea.sflag [#allocation4], %s7818
        %s7820 = sand.u32 %s120, 1
        %s7821 = smul.addr %s7820, 384
        %s7822 = scalar_lea.vmem [#allocation10], %s7821
        // Predicated region
        $region53: #{multi_head_attention.1} parent=35 // pred_check
          %p7823 = pneg %p130
        $region54: #{multi_head_attention.1} parent=35 // pred_check_branch
          %7825 = sbr.rel (%p7823) target = $region56
        $region55: #{multi_head_attention.1} parent=35 // pred_region
          %s7827 = ssub.s32 6144, 6144
          %7828 = vsyncadd %s7819, %s7827
          %s7829 = smul.addr %s23, 48
          %s7830 = smul.addr %s7829, 128
          %s7831 = scalar_lea.hbm %s4, %s7830
          %s7832 = sshll.u32 %s7822, 4
          %s7833 = int_to_ptr.vmem [resolvable:$true] %s7832
          %7838 = dma.vmem_to_hbm [thread:$0]  %s7833, 6144, %s7831, %s7819, 384, 384, 24
        $region56: #{multi_head_attention.1} parent=35 // pred_fallthru
          _
      $region36: #{multi_head_attention.1} parent=5 // pred_fallthru
        _
      %p7839 = scmp.le.s32.totalorder 2, %s18
      // Predicated region
      $region57: #{multi_head_attention.1} parent=5 // pred_check
        %p7840 = pneg %p7839
      $region58: #{multi_head_attention.1} parent=5 // pred_check_branch
        %7842 = sbr.rel (%p7840) target = $region60
      $region59: #{multi_head_attention.1} parent=5 // pred_region
        %s7843 = ssub.s32 %s18, 2
        // Predicated region
        $region61: #{multi_head_attention.1} parent=59 // pred_check
          %p7844 = pneg %p136
        $region62: #{multi_head_attention.1} parent=59 // pred_check_branch
          %7846 = sbr.rel (%p7844) target = $region64
        $region63: #{multi_head_attention.1} parent=59 // pred_region
          %s7847 = sand.u32 %s121, 1
          %s7848 = scalar_lea.sflag [#allocation4], %s7847
          %s7849 = sand.u32 %s121, 1
          %s7850 = smul.addr %s7849, 384
          %s7851 = scalar_lea.vmem [#allocation10], %s7850
          %7852 = dma.done %s7848, 6144
        $region64: #{multi_head_attention.1} parent=59 // pred_fallthru
          _
      $region60: #{multi_head_attention.1} parent=5 // pred_fallthru
        _
    $region6: #{multi_head_attention.1} parent=1 // loop_footer
      %s22 = sadd.s32 1, %s18
    $region7: #{multi_head_attention.1} parent=1 // loop_footer_branch
      %17 = sbr.rel target = $region3
    $region8: #{multi_head_attention.1} parent=1 // loop_exit
      _
    %7853 = vsyncpa [#allocation3], 1
    %s7854 = scalar_lea.sflag [#allocation3], 1
    %7855 = vsyncpa %s7854, 1
    %7856 = vsyncpa [#allocation6], 1
    %7857 = vsyncpa [#allocation9], 1
    %7858 = vsyncpa [#allocation4], 1
    %s7859 = scalar_lea.sflag [#allocation4], 1
    %7860 = vsyncpa %s7859, 1

</llo_original>
